<compile_context>
chip_gen: v7x
topology: tpu7x:2x2x1
jax: 0.10.0
libtpu: 0.0.40
codegen_flags: <defaults>
</compile_context>

<pallas_src>
import functools

import jax
import jax.numpy as jnp
import numpy as np
from jax.experimental import pallas as pl
from jax.experimental.pallas import tpu as pltpu


def _ctx_resblock_kernel(y_sref, x_ref, wp_ref, bp_ref, mask_ref,
                         t1_ref, t2_ref, o_ref, *, width):
    block_n, C, HW = x_ref.shape
    K = wp_ref.shape[1]
    gbase = pl.program_id(0) * block_n              # global index of image 0 in this block

    ones_blk = jnp.ones((8, HW), jnp.float32)       # feeds the folded-bias tap columns
    inv_c = jnp.float32(1.0 / C)
    inv_cm1 = jnp.float32(1.0 / (C - 1))

    def conv3x3(hin, t_ref):
        # roll+mask im2col -> single (C, 9C+8) @ (9C+8, HW) MXU matmul (bias folded).
        cols = []
        for k in range(9):                           # static unroll over the 9 taps
            dy, dx = k // 3 - 1, k % 3 - 1
            d = dy * width + dx                      # flat-index offset of this tap
            if d == 0:
                cols.append(hin)                     # center tap: mask is all-ones
            else:
                rolled = pltpu.roll(hin, shift=(-d) % HW, axis=1)   # XLU rotate
                cols.append(mask_ref[k] * rolled)                    # VPU boundary mask
        cols.append(ones_blk)                        # aligned 8-row block: bias + 7 zero cols
        stacked = jnp.concatenate(cols, axis=0)      # (9C + 8, HW)
        return jnp.dot(t_ref[...], stacked, preferred_element_type=jnp.float32)

    def body(b, carry):
        x = x_ref[b]                                 # (C, HW)

        # ---- fused project(y): p = Wp @ y_n + bp via K scalar MACs (y scalars in SMEM)
        p = bp_ref[...]                              # (C, 1)
        for k in range(K):                           # static unroll, tiny
            p = p + wp_ref[:, k:k + 1] * y_sref[gbase + b, k]
        h = x + p

        # ---- LayerNorm over channels (sublanes), unbiased var, no affine — one sweep
        s1 = jnp.sum(h, axis=0, keepdims=True)       # (1, HW)
        s2 = jnp.sum(h * h, axis=0, keepdims=True)   # (1, HW)
        mean = s1 * inv_c
        var = (s2 - jnp.float32(C) * mean * mean) * inv_cm1
        h = (h - mean) * jax.lax.rsqrt(var + 1e-5)

        # ---- Conv3x3 -> SiLU -> Conv3x3 (biases folded into the tap matrices)
        h = conv3x3(h, t1_ref)
        h = jax.nn.silu(h)
        h = conv3x3(h, t2_ref)

        # ---- residual
        o_ref[b] = (x + h).astype(o_ref.dtype)
        return carry

    jax.lax.fori_loop(0, block_n, body, 0, unroll=block_n <= 8)


def _build_boundary_masks(H, W, C):
    """masks[k, :, p] = 1 iff pixel p shifted by tap k stays inside the image."""
    HW = H * W
    ii, jj = np.divmod(np.arange(HW), W)
    m = np.zeros((9, 1, HW), np.float32)
    for ky in range(3):
        for kx in range(3):
            dy, dx = ky - 1, kx - 1
            valid = (ii + dy >= 0) & (ii + dy < H) & (jj + dx >= 0) & (jj + dx < W)
            m[ky * 3 + kx, 0, :] = valid.astype(np.float32)
    # pre-broadcast over channels: vreg-aligned VPU multiplies in the kernel
    return jnp.asarray(np.ascontiguousarray(np.broadcast_to(m, (9, C, HW))))


def pack_params(Wp, bp, Wc1, b1, Wc2, b2, H, W):
    """One-time parameter repack — call at parameter-load time, NOT per forward."""
    C, _ = Wp.shape

    def pack_taps(Wc, b):
        taps = jnp.concatenate([Wc[:, :, ky, kx]
                                for ky in range(3) for kx in range(3)], axis=1)  # (C, 9C)
        bias_cols = jnp.concatenate(
            [b.reshape(C, 1), jnp.zeros((C, 7), jnp.float32)], axis=1)           # (C, 8)
        return jnp.concatenate([taps, bias_cols], axis=1).astype(jnp.float32)    # (C, 9C+8)

    return dict(
        wp=jnp.asarray(Wp, jnp.float32),
        bp=jnp.asarray(bp, jnp.float32).reshape(C, 1),
        masks=_build_boundary_masks(H, W, C),
        taps1=pack_taps(jnp.asarray(Wc1, jnp.float32), jnp.asarray(b1, jnp.float32)),
        taps2=pack_taps(jnp.asarray(Wc2, jnp.float32), jnp.asarray(b2, jnp.float32)),
    )


def _choose_block_n(n, target=32):
    # Images per grid step: multiples of 8 keep sublane alignment; keep >= 2
    # grid steps when N allows so the "parallel" axis splits across v7x's 2 TCs.
    if n <= 8:
        return max(n, 1)
    return max(8, min(target, (n // 2) // 8 * 8))


def context_residual_block(x, y, params, *, block_n=None):
    """x: (N, C, H, W) float32 (torch NCHW); y: (N, K) context; params from pack_params."""
    N, C, H, W = x.shape
    K = y.shape[1]
    HW = H * W
    if block_n is None:
        block_n = _choose_block_n(N)
    n_blocks = pl.cdiv(N, block_n)
    n_pad = n_blocks * block_n

    x_flat = x.reshape(N, C, HW).astype(jnp.float32)
    y32 = y.astype(jnp.float32)
    if n_pad != N:                                   # pad batch to a block multiple
        x_flat = jnp.pad(x_flat, ((0, n_pad - N), (0, 0), (0, 0)))
        y32 = jnp.pad(y32, ((0, n_pad - N), (0, 0)))

    nt = 9 * C + 8
    kernel = functools.partial(_ctx_resblock_kernel, width=W)
    out = pl.pallas_call(
        kernel,
        out_shape=jax.ShapeDtypeStruct((n_pad, C, HW), jnp.float32),
        grid_spec=pltpu.PrefetchScalarGridSpec(
            num_scalar_prefetch=1,                   # y -> SMEM scalar table
            grid=(n_blocks,),
            in_specs=[
                pl.BlockSpec((block_n, C, HW), lambda n, _: (n, 0, 0)),   # x (BN images)
                pl.BlockSpec((C, K), lambda n, _: (0, 0)),                # Wp
                pl.BlockSpec((C, 1), lambda n, _: (0, 0)),                # bp
                pl.BlockSpec((9, C, HW), lambda n, _: (0, 0, 0)),         # boundary masks
                pl.BlockSpec((C, nt), lambda n, _: (0, 0)),               # conv1 taps (+bias)
                pl.BlockSpec((C, nt), lambda n, _: (0, 0)),               # conv2 taps (+bias)
            ],
            out_specs=pl.BlockSpec((block_n, C, HW), lambda n, _: (n, 0, 0)),
        ),
        compiler_params=pltpu.CompilerParams(
            dimension_semantics=("parallel",),
        ),
    )(y32, x_flat, params["wp"], params["bp"], params["masks"],
      params["taps1"], params["taps2"])

    return out[:N].reshape(N, C, H, W)


def reference(x, y, Wp, bp, Wc1, b1, Wc2, b2):
    """Pure-JAX NCHW reference mirroring the PyTorch module."""
    p = y @ Wp.T + bp                                          # Linear
    h = x + p[:, :, None, None]                                # Unflatten + add
    mean = jnp.mean(h, axis=1, keepdims=True)                  # LayerNorm (dim=-3)
    var = jnp.var(h, axis=1, keepdims=True, ddof=1)
    h = (h - mean) / jnp.sqrt(var + 1e-5)
    h = jax.lax.conv_general_dilated(
        h, Wc1, (1, 1), ((1, 1), (1, 1)),
        dimension_numbers=("NCHW", "OIHW", "NCHW")) + b1[None, :, None, None]
    h = jax.nn.silu(h)
    h = jax.lax.conv_general_dilated(
        h, Wc2, (1, 1), ((1, 1), (1, 1)),
        dimension_numbers=("NCHW", "OIHW", "NCHW")) + b2[None, :, None, None]
    return x + h


if __name__ == "__main__":
    # Small but batched enough to exercise multi-image blocks and a 2-step grid.
    N, C, H, W, K = 16, 8, 16, 16, 8
    key = jax.random.PRNGKey(0)
    ks = jax.random.split(key, 8)

    x = jax.random.normal(ks[0], (N, C, H, W), jnp.float32)
    y = jax.random.normal(ks[1], (N, K), jnp.float32)

    # torch layouts: Linear (out,in), Conv2d (O,I,kH,kW)
    Wp = 0.2 * jax.random.normal(ks[2], (C, K), jnp.float32)
    bp = 0.1 * jax.random.normal(ks[3], (C,), jnp.float32)
    Wc1 = 0.2 * jax.random.normal(ks[4], (C, C, 3, 3), jnp.float32)
    b1 = 0.1 * jax.random.normal(ks[5], (C,), jnp.float32)
    Wc2 = 0.2 * jax.random.normal(ks[6], (C, C, 3, 3), jnp.float32)
    b2 = 0.1 * jax.random.normal(ks[7], (C,), jnp.float32)

    params = pack_params(Wp, bp, Wc1, b1, Wc2, b2, H, W)       # once, at load time
    out = context_residual_block(x, y, params)
    out = jax.block_until_ready(out)

    ref = reference(x, y, Wp, bp, Wc1, b1, Wc2, b2)
    np.testing.assert_allclose(np.asarray(out), np.asarray(ref), rtol=5e-4, atol=1e-4)

    print("KERNEL_OK")
</pallas_src>

<mosaic_0001>
module attributes {stable_mosaic.version = 11 : i64} {
  func.func @_ctx_resblock_kernel(%arg0: i32, %arg1: memref<16x8xf32, #tpu.memory_space<smem>>, %arg2: memref<8x8x256xf32, #tpu.memory_space<vmem>>, %arg3: memref<8x8xf32, #tpu.memory_space<vmem>>, %arg4: memref<8x1xf32, #tpu.memory_space<vmem>>, %arg5: memref<9x8x256xf32, #tpu.memory_space<vmem>>, %arg6: memref<8x80xf32, #tpu.memory_space<vmem>>, %arg7: memref<8x80xf32, #tpu.memory_space<vmem>>, %arg8: memref<8x8x256xf32, #tpu.memory_space<vmem>>) attributes {dimension_semantics = [#tpu.dimension_semantics<parallel>], iteration_bounds = array<i64: 2>, scalar_prefetch = 1 : i64, scratch_operands = 0 : i64, tpu.core_type = #tpu.core_type<tc>, window_params = [{transform_indices = @transform_0, window_bounds = array<i64: 8, 8, 256>}, {pipeline_mode = #tpu.pipeline_mode<synchronous>, transform_indices = @transform_1, window_bounds = array<i64: 8, 8>}, {pipeline_mode = #tpu.pipeline_mode<synchronous>, transform_indices = @transform_2, window_bounds = array<i64: 8, 1>}, {pipeline_mode = #tpu.pipeline_mode<synchronous>, transform_indices = @transform_3, window_bounds = array<i64: 9, 8, 256>}, {pipeline_mode = #tpu.pipeline_mode<synchronous>, transform_indices = @transform_4, window_bounds = array<i64: 8, 80>}, {pipeline_mode = #tpu.pipeline_mode<synchronous>, transform_indices = @transform_5, window_bounds = array<i64: 8, 80>}, {transform_indices = @transform_6, window_bounds = array<i64: 8, 8, 256>}]} {
    %c8_i32 = arith.constant 8 : i32
    %0 = arith.muli %arg0, %c8_i32 : i32
    %cst = arith.constant 1.000000e+00 : f32
    %1 = vector.broadcast %cst : f32 to vector<8x256xf32>
    %cst_0 = arith.constant 1.250000e-01 : f32
    %cst_1 = arith.constant 0.142857149 : f32
    %c0_i32 = arith.constant 0 : i32
    %2 = arith.index_cast %c0_i32 : i32 to index
    %c0 = arith.constant 0 : index
    %c0_2 = arith.constant 0 : index
    %3 = vector.load %arg2[%2, %c0, %c0_2] : memref<8x8x256xf32, #tpu.memory_space<vmem>>, vector<1x8x256xf32>
    %4 = vector.shape_cast %3 : vector<1x8x256xf32> to vector<8x256xf32>
    %c0_3 = arith.constant 0 : index
    %c0_4 = arith.constant 0 : index
    %5 = vector.load %arg4[%c0_3, %c0_4] : memref<8x1xf32, #tpu.memory_space<vmem>>, vector<8x1xf32>
    %c0_5 = arith.constant 0 : index
    %c0_6 = arith.constant 0 : index
    %6 = vector.load %arg3[%c0_5, %c0_6] : memref<8x8xf32, #tpu.memory_space<vmem>>, vector<8x1xf32>
    %7 = arith.addi %0, %c0_i32 : i32
    %8 = arith.index_cast %7 : i32 to index
    %c0_7 = arith.constant 0 : index
    %9 = memref.load %arg1[%8, %c0_7] : memref<16x8xf32, #tpu.memory_space<smem>>
    %10 = vector.broadcast %9 : f32 to vector<8x1xf32>
    %11 = arith.mulf %6, %10 : vector<8x1xf32>
    %12 = arith.addf %5, %11 : vector<8x1xf32>
    %c0_8 = arith.constant 0 : index
    %c1 = arith.constant 1 : index
    %13 = vector.load %arg3[%c0_8, %c1] : memref<8x8xf32, #tpu.memory_space<vmem>>, vector<8x1xf32>
    %14 = arith.addi %0, %c0_i32 : i32
    %15 = arith.index_cast %14 : i32 to index
    %c1_9 = arith.constant 1 : index
    %16 = memref.load %arg1[%15, %c1_9] : memref<16x8xf32, #tpu.memory_space<smem>>
    %17 = vector.broadcast %16 : f32 to vector<8x1xf32>
    %18 = arith.mulf %13, %17 : vector<8x1xf32>
    %19 = arith.addf %12, %18 : vector<8x1xf32>
    %c0_10 = arith.constant 0 : index
    %c2 = arith.constant 2 : index
    %20 = vector.load %arg3[%c0_10, %c2] : memref<8x8xf32, #tpu.memory_space<vmem>>, vector<8x1xf32>
    %21 = arith.addi %0, %c0_i32 : i32
    %22 = arith.index_cast %21 : i32 to index
    %c2_11 = arith.constant 2 : index
    %23 = memref.load %arg1[%22, %c2_11] : memref<16x8xf32, #tpu.memory_space<smem>>
    %24 = vector.broadcast %23 : f32 to vector<8x1xf32>
    %25 = arith.mulf %20, %24 : vector<8x1xf32>
    %26 = arith.addf %19, %25 : vector<8x1xf32>
    %c0_12 = arith.constant 0 : index
    %c3 = arith.constant 3 : index
    %27 = vector.load %arg3[%c0_12, %c3] : memref<8x8xf32, #tpu.memory_space<vmem>>, vector<8x1xf32>
    %28 = arith.addi %0, %c0_i32 : i32
    %29 = arith.index_cast %28 : i32 to index
    %c3_13 = arith.constant 3 : index
    %30 = memref.load %arg1[%29, %c3_13] : memref<16x8xf32, #tpu.memory_space<smem>>
    %31 = vector.broadcast %30 : f32 to vector<8x1xf32>
    %32 = arith.mulf %27, %31 : vector<8x1xf32>
    %33 = arith.addf %26, %32 : vector<8x1xf32>
    %c0_14 = arith.constant 0 : index
    %c4 = arith.constant 4 : index
    %34 = vector.load %arg3[%c0_14, %c4] : memref<8x8xf32, #tpu.memory_space<vmem>>, vector<8x1xf32>
    %35 = arith.addi %0, %c0_i32 : i32
    %36 = arith.index_cast %35 : i32 to index
    %c4_15 = arith.constant 4 : index
    %37 = memref.load %arg1[%36, %c4_15] : memref<16x8xf32, #tpu.memory_space<smem>>
    %38 = vector.broadcast %37 : f32 to vector<8x1xf32>
    %39 = arith.mulf %34, %38 : vector<8x1xf32>
    %40 = arith.addf %33, %39 : vector<8x1xf32>
    %c0_16 = arith.constant 0 : index
    %c5 = arith.constant 5 : index
    %41 = vector.load %arg3[%c0_16, %c5] : memref<8x8xf32, #tpu.memory_space<vmem>>, vector<8x1xf32>
    %42 = arith.addi %0, %c0_i32 : i32
    %43 = arith.index_cast %42 : i32 to index
    %c5_17 = arith.constant 5 : index
    %44 = memref.load %arg1[%43, %c5_17] : memref<16x8xf32, #tpu.memory_space<smem>>
    %45 = vector.broadcast %44 : f32 to vector<8x1xf32>
    %46 = arith.mulf %41, %45 : vector<8x1xf32>
    %47 = arith.addf %40, %46 : vector<8x1xf32>
    %c0_18 = arith.constant 0 : index
    %c6 = arith.constant 6 : index
    %48 = vector.load %arg3[%c0_18, %c6] : memref<8x8xf32, #tpu.memory_space<vmem>>, vector<8x1xf32>
    %49 = arith.addi %0, %c0_i32 : i32
    %50 = arith.index_cast %49 : i32 to index
    %c6_19 = arith.constant 6 : index
    %51 = memref.load %arg1[%50, %c6_19] : memref<16x8xf32, #tpu.memory_space<smem>>
    %52 = vector.broadcast %51 : f32 to vector<8x1xf32>
    %53 = arith.mulf %48, %52 : vector<8x1xf32>
    %54 = arith.addf %47, %53 : vector<8x1xf32>
    %c0_20 = arith.constant 0 : index
    %c7 = arith.constant 7 : index
    %55 = vector.load %arg3[%c0_20, %c7] : memref<8x8xf32, #tpu.memory_space<vmem>>, vector<8x1xf32>
    %56 = arith.addi %0, %c0_i32 : i32
    %57 = arith.index_cast %56 : i32 to index
    %c7_21 = arith.constant 7 : index
    %58 = memref.load %arg1[%57, %c7_21] : memref<16x8xf32, #tpu.memory_space<smem>>
    %59 = vector.broadcast %58 : f32 to vector<8x1xf32>
    %60 = arith.mulf %55, %59 : vector<8x1xf32>
    %61 = arith.addf %54, %60 : vector<8x1xf32>
    %62 = vector.broadcast %61 : vector<8x1xf32> to vector<8x256xf32>
    %63 = arith.addf %4, %62 : vector<8x256xf32>
    %cst_22 = arith.constant dense<0.000000e+00> : vector<256xf32>
    %64 = vector.multi_reduction <add>, %63, %cst_22 [0] : vector<8x256xf32> to vector<256xf32>
    %65 = vector.shape_cast %64 : vector<256xf32> to vector<1x256xf32>
    %66 = arith.mulf %63, %63 : vector<8x256xf32>
    %cst_23 = arith.constant dense<0.000000e+00> : vector<256xf32>
    %67 = vector.multi_reduction <add>, %66, %cst_23 [0] : vector<8x256xf32> to vector<256xf32>
    %68 = vector.shape_cast %67 : vector<256xf32> to vector<1x256xf32>
    %69 = vector.broadcast %cst_0 : f32 to vector<1x256xf32>
    %70 = arith.mulf %65, %69 : vector<1x256xf32>
    %cst_24 = arith.constant 8.000000e+00 : f32
    %71 = vector.broadcast %cst_24 : f32 to vector<1x256xf32>
    %72 = arith.mulf %71, %70 : vector<1x256xf32>
    %73 = arith.mulf %72, %70 : vector<1x256xf32>
    %74 = arith.subf %68, %73 : vector<1x256xf32>
    %75 = vector.broadcast %cst_1 : f32 to vector<1x256xf32>
    %76 = arith.mulf %74, %75 : vector<1x256xf32>
    %77 = vector.broadcast %70 : vector<1x256xf32> to vector<8x256xf32>
    %78 = arith.subf %63, %77 : vector<8x256xf32>
    %cst_25 = arith.constant 9.99999974E-6 : f32
    %79 = vector.broadcast %cst_25 : f32 to vector<1x256xf32>
    %80 = arith.addf %76, %79 : vector<1x256xf32>
    %81 = math.rsqrt %80 : vector<1x256xf32>
    %82 = vector.broadcast %81 : vector<1x256xf32> to vector<8x256xf32>
    %83 = arith.mulf %78, %82 : vector<8x256xf32>
    %c17_i32 = arith.constant 17 : i32
    %84 = tpu.dynamic_rotate %83 by %c17_i32 dim 1 : vector<8x256xf32>, i32 -> vector<8x256xf32>
    %c0_26 = arith.constant 0 : index
    %c0_27 = arith.constant 0 : index
    %c0_28 = arith.constant 0 : index
    %85 = vector.load %arg5[%c0_26, %c0_27, %c0_28] : memref<9x8x256xf32, #tpu.memory_space<vmem>>, vector<1x8x256xf32>
    %86 = vector.shape_cast %85 : vector<1x8x256xf32> to vector<8x256xf32>
    %87 = arith.mulf %86, %84 : vector<8x256xf32>
    %c16_i32 = arith.constant 16 : i32
    %88 = tpu.dynamic_rotate %83 by %c16_i32 dim 1 : vector<8x256xf32>, i32 -> vector<8x256xf32>
    %c1_29 = arith.constant 1 : index
    %c0_30 = arith.constant 0 : index
    %c0_31 = arith.constant 0 : index
    %89 = vector.load %arg5[%c1_29, %c0_30, %c0_31] : memref<9x8x256xf32, #tpu.memory_space<vmem>>, vector<1x8x256xf32>
    %90 = vector.shape_cast %89 : vector<1x8x256xf32> to vector<8x256xf32>
    %91 = arith.mulf %90, %88 : vector<8x256xf32>
    %c15_i32 = arith.constant 15 : i32
    %92 = tpu.dynamic_rotate %83 by %c15_i32 dim 1 : vector<8x256xf32>, i32 -> vector<8x256xf32>
    %c2_32 = arith.constant 2 : index
    %c0_33 = arith.constant 0 : index
    %c0_34 = arith.constant 0 : index
    %93 = vector.load %arg5[%c2_32, %c0_33, %c0_34] : memref<9x8x256xf32, #tpu.memory_space<vmem>>, vector<1x8x256xf32>
    %94 = vector.shape_cast %93 : vector<1x8x256xf32> to vector<8x256xf32>
    %95 = arith.mulf %94, %92 : vector<8x256xf32>
    %c1_i32 = arith.constant 1 : i32
    %96 = tpu.dynamic_rotate %83 by %c1_i32 dim 1 : vector<8x256xf32>, i32 -> vector<8x256xf32>
    %c3_35 = arith.constant 3 : index
    %c0_36 = arith.constant 0 : index
    %c0_37 = arith.constant 0 : index
    %97 = vector.load %arg5[%c3_35, %c0_36, %c0_37] : memref<9x8x256xf32, #tpu.memory_space<vmem>>, vector<1x8x256xf32>
    %98 = vector.shape_cast %97 : vector<1x8x256xf32> to vector<8x256xf32>
    %99 = arith.mulf %98, %96 : vector<8x256xf32>
    %c255_i32 = arith.constant 255 : i32
    %100 = tpu.dynamic_rotate %83 by %c255_i32 dim 1 : vector<8x256xf32>, i32 -> vector<8x256xf32>
    %c5_38 = arith.constant 5 : index
    %c0_39 = arith.constant 0 : index
    %c0_40 = arith.constant 0 : index
    %101 = vector.load %arg5[%c5_38, %c0_39, %c0_40] : memref<9x8x256xf32, #tpu.memory_space<vmem>>, vector<1x8x256xf32>
    %102 = vector.shape_cast %101 : vector<1x8x256xf32> to vector<8x256xf32>
    %103 = arith.mulf %102, %100 : vector<8x256xf32>
    %c241_i32 = arith.constant 241 : i32
    %104 = tpu.dynamic_rotate %83 by %c241_i32 dim 1 : vector<8x256xf32>, i32 -> vector<8x256xf32>
    %c6_41 = arith.constant 6 : index
    %c0_42 = arith.constant 0 : index
    %c0_43 = arith.constant 0 : index
    %105 = vector.load %arg5[%c6_41, %c0_42, %c0_43] : memref<9x8x256xf32, #tpu.memory_space<vmem>>, vector<1x8x256xf32>
    %106 = vector.shape_cast %105 : vector<1x8x256xf32> to vector<8x256xf32>
    %107 = arith.mulf %106, %104 : vector<8x256xf32>
    %c240_i32 = arith.constant 240 : i32
    %108 = tpu.dynamic_rotate %83 by %c240_i32 dim 1 : vector<8x256xf32>, i32 -> vector<8x256xf32>
    %c7_44 = arith.constant 7 : index
    %c0_45 = arith.constant 0 : index
    %c0_46 = arith.constant 0 : index
    %109 = vector.load %arg5[%c7_44, %c0_45, %c0_46] : memref<9x8x256xf32, #tpu.memory_space<vmem>>, vector<1x8x256xf32>
    %110 = vector.shape_cast %109 : vector<1x8x256xf32> to vector<8x256xf32>
    %111 = arith.mulf %110, %108 : vector<8x256xf32>
    %c239_i32 = arith.constant 239 : i32
    %112 = tpu.dynamic_rotate %83 by %c239_i32 dim 1 : vector<8x256xf32>, i32 -> vector<8x256xf32>
    %c8 = arith.constant 8 : index
    %c0_47 = arith.constant 0 : index
    %c0_48 = arith.constant 0 : index
    %113 = vector.load %arg5[%c8, %c0_47, %c0_48] : memref<9x8x256xf32, #tpu.memory_space<vmem>>, vector<1x8x256xf32>
    %114 = vector.shape_cast %113 : vector<1x8x256xf32> to vector<8x256xf32>
    %115 = arith.mulf %114, %112 : vector<8x256xf32>
    %116 = tpu.concatenate %87, %91, %95, %99, %83, %103, %107, %111, %115, %1 in 0 : vector<8x256xf32>, vector<8x256xf32>, vector<8x256xf32>, vector<8x256xf32>, vector<8x256xf32>, vector<8x256xf32>, vector<8x256xf32>, vector<8x256xf32>, vector<8x256xf32>, vector<8x256xf32> -> vector<80x256xf32>
    %c0_49 = arith.constant 0 : index
    %c0_50 = arith.constant 0 : index
    %117 = vector.load %arg6[%c0_49, %c0_50] : memref<8x80xf32, #tpu.memory_space<vmem>>, vector<8x80xf32>
    %cst_51 = arith.constant dense<0.000000e+00> : vector<8x256xf32>
    %118 = tpu.matmul %117, %116, %cst_51 {dimension_numbers = #tpu.dot_dimension_numbers<[1], [0], [0], [1], [0, 0, 1, 1], [], []>} : vector<8x80xf32>, vector<80x256xf32>, vector<8x256xf32> -> vector<8x256xf32>
    %119 = arith.negf %118 : vector<8x256xf32>
    %120 = math.exp %119 : vector<8x256xf32>
    %cst_52 = arith.constant 1.000000e+00 : f32
    %121 = vector.broadcast %cst_52 : f32 to vector<8x256xf32>
    %122 = arith.addf %121, %120 : vector<8x256xf32>
    %123 = arith.divf %121, %122 : vector<8x256xf32>
    %124 = arith.mulf %118, %123 : vector<8x256xf32>
    %c17_i32_53 = arith.constant 17 : i32
    %125 = tpu.dynamic_rotate %124 by %c17_i32_53 dim 1 : vector<8x256xf32>, i32 -> vector<8x256xf32>
    %c0_54 = arith.constant 0 : index
    %c0_55 = arith.constant 0 : index
    %c0_56 = arith.constant 0 : index
    %126 = vector.load %arg5[%c0_54, %c0_55, %c0_56] : memref<9x8x256xf32, #tpu.memory_space<vmem>>, vector<1x8x256xf32>
    %127 = vector.shape_cast %126 : vector<1x8x256xf32> to vector<8x256xf32>
    %128 = arith.mulf %127, %125 : vector<8x256xf32>
    %c16_i32_57 = arith.constant 16 : i32
    %129 = tpu.dynamic_rotate %124 by %c16_i32_57 dim 1 : vector<8x256xf32>, i32 -> vector<8x256xf32>
    %c1_58 = arith.constant 1 : index
    %c0_59 = arith.constant 0 : index
    %c0_60 = arith.constant 0 : index
    %130 = vector.load %arg5[%c1_58, %c0_59, %c0_60] : memref<9x8x256xf32, #tpu.memory_space<vmem>>, vector<1x8x256xf32>
    %131 = vector.shape_cast %130 : vector<1x8x256xf32> to vector<8x256xf32>
    %132 = arith.mulf %131, %129 : vector<8x256xf32>
    %c15_i32_61 = arith.constant 15 : i32
    %133 = tpu.dynamic_rotate %124 by %c15_i32_61 dim 1 : vector<8x256xf32>, i32 -> vector<8x256xf32>
    %c2_62 = arith.constant 2 : index
    %c0_63 = arith.constant 0 : index
    %c0_64 = arith.constant 0 : index
    %134 = vector.load %arg5[%c2_62, %c0_63, %c0_64] : memref<9x8x256xf32, #tpu.memory_space<vmem>>, vector<1x8x256xf32>
    %135 = vector.shape_cast %134 : vector<1x8x256xf32> to vector<8x256xf32>
    %136 = arith.mulf %135, %133 : vector<8x256xf32>
    %c1_i32_65 = arith.constant 1 : i32
    %137 = tpu.dynamic_rotate %124 by %c1_i32_65 dim 1 : vector<8x256xf32>, i32 -> vector<8x256xf32>
    %c3_66 = arith.constant 3 : index
    %c0_67 = arith.constant 0 : index
    %c0_68 = arith.constant 0 : index
    %138 = vector.load %arg5[%c3_66, %c0_67, %c0_68] : memref<9x8x256xf32, #tpu.memory_space<vmem>>, vector<1x8x256xf32>
    %139 = vector.shape_cast %138 : vector<1x8x256xf32> to vector<8x256xf32>
    %140 = arith.mulf %139, %137 : vector<8x256xf32>
    %c255_i32_69 = arith.constant 255 : i32
    %141 = tpu.dynamic_rotate %124 by %c255_i32_69 dim 1 : vector<8x256xf32>, i32 -> vector<8x256xf32>
    %c5_70 = arith.constant 5 : index
    %c0_71 = arith.constant 0 : index
    %c0_72 = arith.constant 0 : index
    %142 = vector.load %arg5[%c5_70, %c0_71, %c0_72] : memref<9x8x256xf32, #tpu.memory_space<vmem>>, vector<1x8x256xf32>
    %143 = vector.shape_cast %142 : vector<1x8x256xf32> to vector<8x256xf32>
    %144 = arith.mulf %143, %141 : vector<8x256xf32>
    %c241_i32_73 = arith.constant 241 : i32
    %145 = tpu.dynamic_rotate %124 by %c241_i32_73 dim 1 : vector<8x256xf32>, i32 -> vector<8x256xf32>
    %c6_74 = arith.constant 6 : index
    %c0_75 = arith.constant 0 : index
    %c0_76 = arith.constant 0 : index
    %146 = vector.load %arg5[%c6_74, %c0_75, %c0_76] : memref<9x8x256xf32, #tpu.memory_space<vmem>>, vector<1x8x256xf32>
    %147 = vector.shape_cast %146 : vector<1x8x256xf32> to vector<8x256xf32>
    %148 = arith.mulf %147, %145 : vector<8x256xf32>
    %c240_i32_77 = arith.constant 240 : i32
    %149 = tpu.dynamic_rotate %124 by %c240_i32_77 dim 1 : vector<8x256xf32>, i32 -> vector<8x256xf32>
    %c7_78 = arith.constant 7 : index
    %c0_79 = arith.constant 0 : index
    %c0_80 = arith.constant 0 : index
    %150 = vector.load %arg5[%c7_78, %c0_79, %c0_80] : memref<9x8x256xf32, #tpu.memory_space<vmem>>, vector<1x8x256xf32>
    %151 = vector.shape_cast %150 : vector<1x8x256xf32> to vector<8x256xf32>
    %152 = arith.mulf %151, %149 : vector<8x256xf32>
    %c239_i32_81 = arith.constant 239 : i32
    %153 = tpu.dynamic_rotate %124 by %c239_i32_81 dim 1 : vector<8x256xf32>, i32 -> vector<8x256xf32>
    %c8_82 = arith.constant 8 : index
    %c0_83 = arith.constant 0 : index
    %c0_84 = arith.constant 0 : index
    %154 = vector.load %arg5[%c8_82, %c0_83, %c0_84] : memref<9x8x256xf32, #tpu.memory_space<vmem>>, vector<1x8x256xf32>
    %155 = vector.shape_cast %154 : vector<1x8x256xf32> to vector<8x256xf32>
    %156 = arith.mulf %155, %153 : vector<8x256xf32>
    %157 = tpu.concatenate %128, %132, %136, %140, %124, %144, %148, %152, %156, %1 in 0 : vector<8x256xf32>, vector<8x256xf32>, vector<8x256xf32>, vector<8x256xf32>, vector<8x256xf32>, vector<8x256xf32>, vector<8x256xf32>, vector<8x256xf32>, vector<8x256xf32>, vector<8x256xf32> -> vector<80x256xf32>
    %c0_85 = arith.constant 0 : index
    %c0_86 = arith.constant 0 : index
    %158 = vector.load %arg7[%c0_85, %c0_86] : memref<8x80xf32, #tpu.memory_space<vmem>>, vector<8x80xf32>
    %cst_87 = arith.constant dense<0.000000e+00> : vector<8x256xf32>
    %159 = tpu.matmul %158, %157, %cst_87 {dimension_numbers = #tpu.dot_dimension_numbers<[1], [0], [0], [1], [0, 0, 1, 1], [], []>} : vector<8x80xf32>, vector<80x256xf32>, vector<8x256xf32> -> vector<8x256xf32>
    %160 = arith.addf %4, %159 : vector<8x256xf32>
    %161 = arith.index_cast %c0_i32 : i32 to index
    %c0_88 = arith.constant 0 : index
    %c0_89 = arith.constant 0 : index
    %162 = vector.load %arg8[%161, %c0_88, %c0_89] : memref<8x8x256xf32, #tpu.memory_space<vmem>>, vector<1x8x256xf32>
    %163 = vector.shape_cast %162 : vector<1x8x256xf32> to vector<8x256xf32>
    %164 = vector.shape_cast %160 : vector<8x256xf32> to vector<1x8x256xf32>
    tpu.vector_store %arg8[%161, %c0_88, %c0_89], %164 {strides = array<i32>} : memref<8x8x256xf32, #tpu.memory_space<vmem>>, vector<1x8x256xf32>,
    %c1_i32_90 = arith.constant 1 : i32
    %165 = arith.index_cast %c1_i32_90 : i32 to index
    %c0_91 = arith.constant 0 : index
    %c0_92 = arith.constant 0 : index
    %166 = vector.load %arg2[%165, %c0_91, %c0_92] : memref<8x8x256xf32, #tpu.memory_space<vmem>>, vector<1x8x256xf32>
    %167 = vector.shape_cast %166 : vector<1x8x256xf32> to vector<8x256xf32>
    %c0_93 = arith.constant 0 : index
    %c0_94 = arith.constant 0 : index
    %168 = vector.load %arg4[%c0_93, %c0_94] : memref<8x1xf32, #tpu.memory_space<vmem>>, vector<8x1xf32>
    %c0_95 = arith.constant 0 : index
    %c0_96 = arith.constant 0 : index
    %169 = vector.load %arg3[%c0_95, %c0_96] : memref<8x8xf32, #tpu.memory_space<vmem>>, vector<8x1xf32>
    %170 = arith.addi %0, %c1_i32_90 : i32
    %171 = arith.index_cast %170 : i32 to index
    %c0_97 = arith.constant 0 : index
    %172 = memref.load %arg1[%171, %c0_97] : memref<16x8xf32, #tpu.memory_space<smem>>
    %173 = vector.broadcast %172 : f32 to vector<8x1xf32>
    %174 = arith.mulf %169, %173 : vector<8x1xf32>
    %175 = arith.addf %168, %174 : vector<8x1xf32>
    %c0_98 = arith.constant 0 : index
    %c1_99 = arith.constant 1 : index
    %176 = vector.load %arg3[%c0_98, %c1_99] : memref<8x8xf32, #tpu.memory_space<vmem>>, vector<8x1xf32>
    %177 = arith.addi %0, %c1_i32_90 : i32
    %178 = arith.index_cast %177 : i32 to index
    %c1_100 = arith.constant 1 : index
    %179 = memref.load %arg1[%178, %c1_100] : memref<16x8xf32, #tpu.memory_space<smem>>
    %180 = vector.broadcast %179 : f32 to vector<8x1xf32>
    %181 = arith.mulf %176, %180 : vector<8x1xf32>
    %182 = arith.addf %175, %181 : vector<8x1xf32>
    %c0_101 = arith.constant 0 : index
    %c2_102 = arith.constant 2 : index
    %183 = vector.load %arg3[%c0_101, %c2_102] : memref<8x8xf32, #tpu.memory_space<vmem>>, vector<8x1xf32>
    %184 = arith.addi %0, %c1_i32_90 : i32
    %185 = arith.index_cast %184 : i32 to index
    %c2_103 = arith.constant 2 : index
    %186 = memref.load %arg1[%185, %c2_103] : memref<16x8xf32, #tpu.memory_space<smem>>
    %187 = vector.broadcast %186 : f32 to vector<8x1xf32>
    %188 = arith.mulf %183, %187 : vector<8x1xf32>
    %189 = arith.addf %182, %188 : vector<8x1xf32>
    %c0_104 = arith.constant 0 : index
    %c3_105 = arith.constant 3 : index
    %190 = vector.load %arg3[%c0_104, %c3_105] : memref<8x8xf32, #tpu.memory_space<vmem>>, vector<8x1xf32>
    %191 = arith.addi %0, %c1_i32_90 : i32
    %192 = arith.index_cast %191 : i32 to index
    %c3_106 = arith.constant 3 : index
    %193 = memref.load %arg1[%192, %c3_106] : memref<16x8xf32, #tpu.memory_space<smem>>
    %194 = vector.broadcast %193 : f32 to vector<8x1xf32>
    %195 = arith.mulf %190, %194 : vector<8x1xf32>
    %196 = arith.addf %189, %195 : vector<8x1xf32>
    %c0_107 = arith.constant 0 : index
    %c4_108 = arith.constant 4 : index
    %197 = vector.load %arg3[%c0_107, %c4_108] : memref<8x8xf32, #tpu.memory_space<vmem>>, vector<8x1xf32>
    %198 = arith.addi %0, %c1_i32_90 : i32
    %199 = arith.index_cast %198 : i32 to index
    %c4_109 = arith.constant 4 : index
    %200 = memref.load %arg1[%199, %c4_109] : memref<16x8xf32, #tpu.memory_space<smem>>
    %201 = vector.broadcast %200 : f32 to vector<8x1xf32>
    %202 = arith.mulf %197, %201 : vector<8x1xf32>
    %203 = arith.addf %196, %202 : vector<8x1xf32>
    %c0_110 = arith.constant 0 : index
    %c5_111 = arith.constant 5 : index
    %204 = vector.load %arg3[%c0_110, %c5_111] : memref<8x8xf32, #tpu.memory_space<vmem>>, vector<8x1xf32>
    %205 = arith.addi %0, %c1_i32_90 : i32
    %206 = arith.index_cast %205 : i32 to index
    %c5_112 = arith.constant 5 : index
    %207 = memref.load %arg1[%206, %c5_112] : memref<16x8xf32, #tpu.memory_space<smem>>
    %208 = vector.broadcast %207 : f32 to vector<8x1xf32>
    %209 = arith.mulf %204, %208 : vector<8x1xf32>
    %210 = arith.addf %203, %209 : vector<8x1xf32>
    %c0_113 = arith.constant 0 : index
    %c6_114 = arith.constant 6 : index
    %211 = vector.load %arg3[%c0_113, %c6_114] : memref<8x8xf32, #tpu.memory_space<vmem>>, vector<8x1xf32>
    %212 = arith.addi %0, %c1_i32_90 : i32
    %213 = arith.index_cast %212 : i32 to index
    %c6_115 = arith.constant 6 : index
    %214 = memref.load %arg1[%213, %c6_115] : memref<16x8xf32, #tpu.memory_space<smem>>
    %215 = vector.broadcast %214 : f32 to vector<8x1xf32>
    %216 = arith.mulf %211, %215 : vector<8x1xf32>
    %217 = arith.addf %210, %216 : vector<8x1xf32>
    %c0_116 = arith.constant 0 : index
    %c7_117 = arith.constant 7 : index
    %218 = vector.load %arg3[%c0_116, %c7_117] : memref<8x8xf32, #tpu.memory_space<vmem>>, vector<8x1xf32>
    %219 = arith.addi %0, %c1_i32_90 : i32
    %220 = arith.index_cast %219 : i32 to index
    %c7_118 = arith.constant 7 : index
    %221 = memref.load %arg1[%220, %c7_118] : memref<16x8xf32, #tpu.memory_space<smem>>
    %222 = vector.broadcast %221 : f32 to vector<8x1xf32>
    %223 = arith.mulf %218, %222 : vector<8x1xf32>
    %224 = arith.addf %217, %223 : vector<8x1xf32>
    %225 = vector.broadcast %224 : vector<8x1xf32> to vector<8x256xf32>
    %226 = arith.addf %167, %225 : vector<8x256xf32>
    %cst_119 = arith.constant dense<0.000000e+00> : vector<256xf32>
    %227 = vector.multi_reduction <add>, %226, %cst_119 [0] : vector<8x256xf32> to vector<256xf32>
    %228 = vector.shape_cast %227 : vector<256xf32> to vector<1x256xf32>
    %229 = arith.mulf %226, %226 : vector<8x256xf32>
    %cst_120 = arith.constant dense<0.000000e+00> : vector<256xf32>
    %230 = vector.multi_reduction <add>, %229, %cst_120 [0] : vector<8x256xf32> to vector<256xf32>
    %231 = vector.shape_cast %230 : vector<256xf32> to vector<1x256xf32>
    %232 = vector.broadcast %cst_0 : f32 to vector<1x256xf32>
    %233 = arith.mulf %228, %232 : vector<1x256xf32>
    %cst_121 = arith.constant 8.000000e+00 : f32
    %234 = vector.broadcast %cst_121 : f32 to vector<1x256xf32>
    %235 = arith.mulf %234, %233 : vector<1x256xf32>
    %236 = arith.mulf %235, %233 : vector<1x256xf32>
    %237 = arith.subf %231, %236 : vector<1x256xf32>
    %238 = vector.broadcast %cst_1 : f32 to vector<1x256xf32>
    %239 = arith.mulf %237, %238 : vector<1x256xf32>
    %240 = vector.broadcast %233 : vector<1x256xf32> to vector<8x256xf32>
    %241 = arith.subf %226, %240 : vector<8x256xf32>
    %cst_122 = arith.constant 9.99999974E-6 : f32
    %242 = vector.broadcast %cst_122 : f32 to vector<1x256xf32>
    %243 = arith.addf %239, %242 : vector<1x256xf32>
    %244 = math.rsqrt %243 : vector<1x256xf32>
    %245 = vector.broadcast %244 : vector<1x256xf32> to vector<8x256xf32>
    %246 = arith.mulf %241, %245 : vector<8x256xf32>
    %c17_i32_123 = arith.constant 17 : i32
    %247 = tpu.dynamic_rotate %246 by %c17_i32_123 dim 1 : vector<8x256xf32>, i32 -> vector<8x256xf32>
    %c0_124 = arith.constant 0 : index
    %c0_125 = arith.constant 0 : index
    %c0_126 = arith.constant 0 : index
    %248 = vector.load %arg5[%c0_124, %c0_125, %c0_126] : memref<9x8x256xf32, #tpu.memory_space<vmem>>, vector<1x8x256xf32>
    %249 = vector.shape_cast %248 : vector<1x8x256xf32> to vector<8x256xf32>
    %250 = arith.mulf %249, %247 : vector<8x256xf32>
    %c16_i32_127 = arith.constant 16 : i32
    %251 = tpu.dynamic_rotate %246 by %c16_i32_127 dim 1 : vector<8x256xf32>, i32 -> vector<8x256xf32>
    %c1_128 = arith.constant 1 : index
    %c0_129 = arith.constant 0 : index
    %c0_130 = arith.constant 0 : index
    %252 = vector.load %arg5[%c1_128, %c0_129, %c0_130] : memref<9x8x256xf32, #tpu.memory_space<vmem>>, vector<1x8x256xf32>
    %253 = vector.shape_cast %252 : vector<1x8x256xf32> to vector<8x256xf32>
    %254 = arith.mulf %253, %251 : vector<8x256xf32>
    %c15_i32_131 = arith.constant 15 : i32
    %255 = tpu.dynamic_rotate %246 by %c15_i32_131 dim 1 : vector<8x256xf32>, i32 -> vector<8x256xf32>
    %c2_132 = arith.constant 2 : index
    %c0_133 = arith.constant 0 : index
    %c0_134 = arith.constant 0 : index
    %256 = vector.load %arg5[%c2_132, %c0_133, %c0_134] : memref<9x8x256xf32, #tpu.memory_space<vmem>>, vector<1x8x256xf32>
    %257 = vector.shape_cast %256 : vector<1x8x256xf32> to vector<8x256xf32>
    %258 = arith.mulf %257, %255 : vector<8x256xf32>
    %c1_i32_135 = arith.constant 1 : i32
    %259 = tpu.dynamic_rotate %246 by %c1_i32_135 dim 1 : vector<8x256xf32>, i32 -> vector<8x256xf32>
    %c3_136 = arith.constant 3 : index
    %c0_137 = arith.constant 0 : index
    %c0_138 = arith.constant 0 : index
    %260 = vector.load %arg5[%c3_136, %c0_137, %c0_138] : memref<9x8x256xf32, #tpu.memory_space<vmem>>, vector<1x8x256xf32>
    %261 = vector.shape_cast %260 : vector<1x8x256xf32> to vector<8x256xf32>
    %262 = arith.mulf %261, %259 : vector<8x256xf32>
    %c255_i32_139 = arith.constant 255 : i32
    %263 = tpu.dynamic_rotate %246 by %c255_i32_139 dim 1 : vector<8x256xf32>, i32 -> vector<8x256xf32>
    %c5_140 = arith.constant 5 : index
    %c0_141 = arith.constant 0 : index
    %c0_142 = arith.constant 0 : index
    %264 = vector.load %arg5[%c5_140, %c0_141, %c0_142] : memref<9x8x256xf32, #tpu.memory_space<vmem>>, vector<1x8x256xf32>
    %265 = vector.shape_cast %264 : vector<1x8x256xf32> to vector<8x256xf32>
    %266 = arith.mulf %265, %263 : vector<8x256xf32>
    %c241_i32_143 = arith.constant 241 : i32
    %267 = tpu.dynamic_rotate %246 by %c241_i32_143 dim 1 : vector<8x256xf32>, i32 -> vector<8x256xf32>
    %c6_144 = arith.constant 6 : index
    %c0_145 = arith.constant 0 : index
    %c0_146 = arith.constant 0 : index
    %268 = vector.load %arg5[%c6_144, %c0_145, %c0_146] : memref<9x8x256xf32, #tpu.memory_space<vmem>>, vector<1x8x256xf32>
    %269 = vector.shape_cast %268 : vector<1x8x256xf32> to vector<8x256xf32>
    %270 = arith.mulf %269, %267 : vector<8x256xf32>
    %c240_i32_147 = arith.constant 240 : i32
    %271 = tpu.dynamic_rotate %246 by %c240_i32_147 dim 1 : vector<8x256xf32>, i32 -> vector<8x256xf32>
    %c7_148 = arith.constant 7 : index
    %c0_149 = arith.constant 0 : index
    %c0_150 = arith.constant 0 : index
    %272 = vector.load %arg5[%c7_148, %c0_149, %c0_150] : memref<9x8x256xf32, #tpu.memory_space<vmem>>, vector<1x8x256xf32>
    %273 = vector.shape_cast %272 : vector<1x8x256xf32> to vector<8x256xf32>
    %274 = arith.mulf %273, %271 : vector<8x256xf32>
    %c239_i32_151 = arith.constant 239 : i32
    %275 = tpu.dynamic_rotate %246 by %c239_i32_151 dim 1 : vector<8x256xf32>, i32 -> vector<8x256xf32>
    %c8_152 = arith.constant 8 : index
    %c0_153 = arith.constant 0 : index
    %c0_154 = arith.constant 0 : index
    %276 = vector.load %arg5[%c8_152, %c0_153, %c0_154] : memref<9x8x256xf32, #tpu.memory_space<vmem>>, vector<1x8x256xf32>
    %277 = vector.shape_cast %276 : vector<1x8x256xf32> to vector<8x256xf32>
    %278 = arith.mulf %277, %275 : vector<8x256xf32>
    %279 = tpu.concatenate %250, %254, %258, %262, %246, %266, %270, %274, %278, %1 in 0 : vector<8x256xf32>, vector<8x256xf32>, vector<8x256xf32>, vector<8x256xf32>, vector<8x256xf32>, vector<8x256xf32>, vector<8x256xf32>, vector<8x256xf32>, vector<8x256xf32>, vector<8x256xf32> -> vector<80x256xf32>
    %c0_155 = arith.constant 0 : index
    %c0_156 = arith.constant 0 : index
    %280 = vector.load %arg6[%c0_155, %c0_156] : memref<8x80xf32, #tpu.memory_space<vmem>>, vector<8x80xf32>
    %cst_157 = arith.constant dense<0.000000e+00> : vector<8x256xf32>
    %281 = tpu.matmul %280, %279, %cst_157 {dimension_numbers = #tpu.dot_dimension_numbers<[1], [0], [0], [1], [0, 0, 1, 1], [], []>} : vector<8x80xf32>, vector<80x256xf32>, vector<8x256xf32> -> vector<8x256xf32>
    %282 = arith.negf %281 : vector<8x256xf32>
    %283 = math.exp %282 : vector<8x256xf32>
    %cst_158 = arith.constant 1.000000e+00 : f32
    %284 = vector.broadcast %cst_158 : f32 to vector<8x256xf32>
    %285 = arith.addf %284, %283 : vector<8x256xf32>
    %286 = arith.divf %284, %285 : vector<8x256xf32>
    %287 = arith.mulf %281, %286 : vector<8x256xf32>
    %c17_i32_159 = arith.constant 17 : i32
    %288 = tpu.dynamic_rotate %287 by %c17_i32_159 dim 1 : vector<8x256xf32>, i32 -> vector<8x256xf32>
    %c0_160 = arith.constant 0 : index
    %c0_161 = arith.constant 0 : index
    %c0_162 = arith.constant 0 : index
    %289 = vector.load %arg5[%c0_160, %c0_161, %c0_162] : memref<9x8x256xf32, #tpu.memory_space<vmem>>, vector<1x8x256xf32>
    %290 = vector.shape_cast %289 : vector<1x8x256xf32> to vector<8x256xf32>
    %291 = arith.mulf %290, %288 : vector<8x256xf32>
    %c16_i32_163 = arith.constant 16 : i32
    %292 = tpu.dynamic_rotate %287 by %c16_i32_163 dim 1 : vector<8x256xf32>, i32 -> vector<8x256xf32>
    %c1_164 = arith.constant 1 : index
    %c0_165 = arith.constant 0 : index
    %c0_166 = arith.constant 0 : index
    %293 = vector.load %arg5[%c1_164, %c0_165, %c0_166] : memref<9x8x256xf32, #tpu.memory_space<vmem>>, vector<1x8x256xf32>
    %294 = vector.shape_cast %293 : vector<1x8x256xf32> to vector<8x256xf32>
    %295 = arith.mulf %294, %292 : vector<8x256xf32>
    %c15_i32_167 = arith.constant 15 : i32
    %296 = tpu.dynamic_rotate %287 by %c15_i32_167 dim 1 : vector<8x256xf32>, i32 -> vector<8x256xf32>
    %c2_168 = arith.constant 2 : index
    %c0_169 = arith.constant 0 : index
    %c0_170 = arith.constant 0 : index
    %297 = vector.load %arg5[%c2_168, %c0_169, %c0_170] : memref<9x8x256xf32, #tpu.memory_space<vmem>>, vector<1x8x256xf32>
    %298 = vector.shape_cast %297 : vector<1x8x256xf32> to vector<8x256xf32>
    %299 = arith.mulf %298, %296 : vector<8x256xf32>
    %c1_i32_171 = arith.constant 1 : i32
    %300 = tpu.dynamic_rotate %287 by %c1_i32_171 dim 1 : vector<8x256xf32>, i32 -> vector<8x256xf32>
    %c3_172 = arith.constant 3 : index
    %c0_173 = arith.constant 0 : index
    %c0_174 = arith.constant 0 : index
    %301 = vector.load %arg5[%c3_172, %c0_173, %c0_174] : memref<9x8x256xf32, #tpu.memory_space<vmem>>, vector<1x8x256xf32>
    %302 = vector.shape_cast %301 : vector<1x8x256xf32> to vector<8x256xf32>
    %303 = arith.mulf %302, %300 : vector<8x256xf32>
    %c255_i32_175 = arith.constant 255 : i32
    %304 = tpu.dynamic_rotate %287 by %c255_i32_175 dim 1 : vector<8x256xf32>, i32 -> vector<8x256xf32>
    %c5_176 = arith.constant 5 : index
    %c0_177 = arith.constant 0 : index
    %c0_178 = arith.constant 0 : index
    %305 = vector.load %arg5[%c5_176, %c0_177, %c0_178] : memref<9x8x256xf32, #tpu.memory_space<vmem>>, vector<1x8x256xf32>
    %306 = vector.shape_cast %305 : vector<1x8x256xf32> to vector<8x256xf32>
    %307 = arith.mulf %306, %304 : vector<8x256xf32>
    %c241_i32_179 = arith.constant 241 : i32
    %308 = tpu.dynamic_rotate %287 by %c241_i32_179 dim 1 : vector<8x256xf32>, i32 -> vector<8x256xf32>
    %c6_180 = arith.constant 6 : index
    %c0_181 = arith.constant 0 : index
    %c0_182 = arith.constant 0 : index
    %309 = vector.load %arg5[%c6_180, %c0_181, %c0_182] : memref<9x8x256xf32, #tpu.memory_space<vmem>>, vector<1x8x256xf32>
    %310 = vector.shape_cast %309 : vector<1x8x256xf32> to vector<8x256xf32>
    %311 = arith.mulf %310, %308 : vector<8x256xf32>
    %c240_i32_183 = arith.constant 240 : i32
    %312 = tpu.dynamic_rotate %287 by %c240_i32_183 dim 1 : vector<8x256xf32>, i32 -> vector<8x256xf32>
    %c7_184 = arith.constant 7 : index
    %c0_185 = arith.constant 0 : index
    %c0_186 = arith.constant 0 : index
    %313 = vector.load %arg5[%c7_184, %c0_185, %c0_186] : memref<9x8x256xf32, #tpu.memory_space<vmem>>, vector<1x8x256xf32>
    %314 = vector.shape_cast %313 : vector<1x8x256xf32> to vector<8x256xf32>
    %315 = arith.mulf %314, %312 : vector<8x256xf32>
    %c239_i32_187 = arith.constant 239 : i32
    %316 = tpu.dynamic_rotate %287 by %c239_i32_187 dim 1 : vector<8x256xf32>, i32 -> vector<8x256xf32>
    %c8_188 = arith.constant 8 : index
    %c0_189 = arith.constant 0 : index
    %c0_190 = arith.constant 0 : index
    %317 = vector.load %arg5[%c8_188, %c0_189, %c0_190] : memref<9x8x256xf32, #tpu.memory_space<vmem>>, vector<1x8x256xf32>
    %318 = vector.shape_cast %317 : vector<1x8x256xf32> to vector<8x256xf32>
    %319 = arith.mulf %318, %316 : vector<8x256xf32>
    %320 = tpu.concatenate %291, %295, %299, %303, %287, %307, %311, %315, %319, %1 in 0 : vector<8x256xf32>, vector<8x256xf32>, vector<8x256xf32>, vector<8x256xf32>, vector<8x256xf32>, vector<8x256xf32>, vector<8x256xf32>, vector<8x256xf32>, vector<8x256xf32>, vector<8x256xf32> -> vector<80x256xf32>
    %c0_191 = arith.constant 0 : index
    %c0_192 = arith.constant 0 : index
    %321 = vector.load %arg7[%c0_191, %c0_192] : memref<8x80xf32, #tpu.memory_space<vmem>>, vector<8x80xf32>
    %cst_193 = arith.constant dense<0.000000e+00> : vector<8x256xf32>
    %322 = tpu.matmul %321, %320, %cst_193 {dimension_numbers = #tpu.dot_dimension_numbers<[1], [0], [0], [1], [0, 0, 1, 1], [], []>} : vector<8x80xf32>, vector<80x256xf32>, vector<8x256xf32> -> vector<8x256xf32>
    %323 = arith.addf %167, %322 : vector<8x256xf32>
    %324 = arith.index_cast %c1_i32_90 : i32 to index
    %c0_194 = arith.constant 0 : index
    %c0_195 = arith.constant 0 : index
    %325 = vector.load %arg8[%324, %c0_194, %c0_195] : memref<8x8x256xf32, #tpu.memory_space<vmem>>, vector<1x8x256xf32>
    %326 = vector.shape_cast %325 : vector<1x8x256xf32> to vector<8x256xf32>
    %327 = vector.shape_cast %323 : vector<8x256xf32> to vector<1x8x256xf32>
    tpu.vector_store %arg8[%324, %c0_194, %c0_195], %327 {strides = array<i32>} : memref<8x8x256xf32, #tpu.memory_space<vmem>>, vector<1x8x256xf32>,
    %c2_i32 = arith.constant 2 : i32
    %328 = arith.index_cast %c2_i32 : i32 to index
    %c0_196 = arith.constant 0 : index
    %c0_197 = arith.constant 0 : index
    %329 = vector.load %arg2[%328, %c0_196, %c0_197] : memref<8x8x256xf32, #tpu.memory_space<vmem>>, vector<1x8x256xf32>
    %330 = vector.shape_cast %329 : vector<1x8x256xf32> to vector<8x256xf32>
    %c0_198 = arith.constant 0 : index
    %c0_199 = arith.constant 0 : index
    %331 = vector.load %arg4[%c0_198, %c0_199] : memref<8x1xf32, #tpu.memory_space<vmem>>, vector<8x1xf32>
    %c0_200 = arith.constant 0 : index
    %c0_201 = arith.constant 0 : index
    %332 = vector.load %arg3[%c0_200, %c0_201] : memref<8x8xf32, #tpu.memory_space<vmem>>, vector<8x1xf32>
    %333 = arith.addi %0, %c2_i32 : i32
    %334 = arith.index_cast %333 : i32 to index
    %c0_202 = arith.constant 0 : index
    %335 = memref.load %arg1[%334, %c0_202] : memref<16x8xf32, #tpu.memory_space<smem>>
    %336 = vector.broadcast %335 : f32 to vector<8x1xf32>
    %337 = arith.mulf %332, %336 : vector<8x1xf32>
    %338 = arith.addf %331, %337 : vector<8x1xf32>
    %c0_203 = arith.constant 0 : index
    %c1_204 = arith.constant 1 : index
    %339 = vector.load %arg3[%c0_203, %c1_204] : memref<8x8xf32, #tpu.memory_space<vmem>>, vector<8x1xf32>
    %340 = arith.addi %0, %c2_i32 : i32
    %341 = arith.index_cast %340 : i32 to index
    %c1_205 = arith.constant 1 : index
    %342 = memref.load %arg1[%341, %c1_205] : memref<16x8xf32, #tpu.memory_space<smem>>
    %343 = vector.broadcast %342 : f32 to vector<8x1xf32>
    %344 = arith.mulf %339, %343 : vector<8x1xf32>
    %345 = arith.addf %338, %344 : vector<8x1xf32>
    %c0_206 = arith.constant 0 : index
    %c2_207 = arith.constant 2 : index
    %346 = vector.load %arg3[%c0_206, %c2_207] : memref<8x8xf32, #tpu.memory_space<vmem>>, vector<8x1xf32>
    %347 = arith.addi %0, %c2_i32 : i32
    %348 = arith.index_cast %347 : i32 to index
    %c2_208 = arith.constant 2 : index
    %349 = memref.load %arg1[%348, %c2_208] : memref<16x8xf32, #tpu.memory_space<smem>>
    %350 = vector.broadcast %349 : f32 to vector<8x1xf32>
    %351 = arith.mulf %346, %350 : vector<8x1xf32>
    %352 = arith.addf %345, %351 : vector<8x1xf32>
    %c0_209 = arith.constant 0 : index
    %c3_210 = arith.constant 3 : index
    %353 = vector.load %arg3[%c0_209, %c3_210] : memref<8x8xf32, #tpu.memory_space<vmem>>, vector<8x1xf32>
    %354 = arith.addi %0, %c2_i32 : i32
    %355 = arith.index_cast %354 : i32 to index
    %c3_211 = arith.constant 3 : index
    %356 = memref.load %arg1[%355, %c3_211] : memref<16x8xf32, #tpu.memory_space<smem>>
    %357 = vector.broadcast %356 : f32 to vector<8x1xf32>
    %358 = arith.mulf %353, %357 : vector<8x1xf32>
    %359 = arith.addf %352, %358 : vector<8x1xf32>
    %c0_212 = arith.constant 0 : index
    %c4_213 = arith.constant 4 : index
    %360 = vector.load %arg3[%c0_212, %c4_213] : memref<8x8xf32, #tpu.memory_space<vmem>>, vector<8x1xf32>
    %361 = arith.addi %0, %c2_i32 : i32
    %362 = arith.index_cast %361 : i32 to index
    %c4_214 = arith.constant 4 : index
    %363 = memref.load %arg1[%362, %c4_214] : memref<16x8xf32, #tpu.memory_space<smem>>
    %364 = vector.broadcast %363 : f32 to vector<8x1xf32>
    %365 = arith.mulf %360, %364 : vector<8x1xf32>
    %366 = arith.addf %359, %365 : vector<8x1xf32>
    %c0_215 = arith.constant 0 : index
    %c5_216 = arith.constant 5 : index
    %367 = vector.load %arg3[%c0_215, %c5_216] : memref<8x8xf32, #tpu.memory_space<vmem>>, vector<8x1xf32>
    %368 = arith.addi %0, %c2_i32 : i32
    %369 = arith.index_cast %368 : i32 to index
    %c5_217 = arith.constant 5 : index
    %370 = memref.load %arg1[%369, %c5_217] : memref<16x8xf32, #tpu.memory_space<smem>>
    %371 = vector.broadcast %370 : f32 to vector<8x1xf32>
    %372 = arith.mulf %367, %371 : vector<8x1xf32>
    %373 = arith.addf %366, %372 : vector<8x1xf32>
    %c0_218 = arith.constant 0 : index
    %c6_219 = arith.constant 6 : index
    %374 = vector.load %arg3[%c0_218, %c6_219] : memref<8x8xf32, #tpu.memory_space<vmem>>, vector<8x1xf32>
    %375 = arith.addi %0, %c2_i32 : i32
    %376 = arith.index_cast %375 : i32 to index
    %c6_220 = arith.constant 6 : index
    %377 = memref.load %arg1[%376, %c6_220] : memref<16x8xf32, #tpu.memory_space<smem>>
    %378 = vector.broadcast %377 : f32 to vector<8x1xf32>
    %379 = arith.mulf %374, %378 : vector<8x1xf32>
    %380 = arith.addf %373, %379 : vector<8x1xf32>
    %c0_221 = arith.constant 0 : index
    %c7_222 = arith.constant 7 : index
    %381 = vector.load %arg3[%c0_221, %c7_222] : memref<8x8xf32, #tpu.memory_space<vmem>>, vector<8x1xf32>
    %382 = arith.addi %0, %c2_i32 : i32
    %383 = arith.index_cast %382 : i32 to index
    %c7_223 = arith.constant 7 : index
    %384 = memref.load %arg1[%383, %c7_223] : memref<16x8xf32, #tpu.memory_space<smem>>
    %385 = vector.broadcast %384 : f32 to vector<8x1xf32>
    %386 = arith.mulf %381, %385 : vector<8x1xf32>
    %387 = arith.addf %380, %386 : vector<8x1xf32>
    %388 = vector.broadcast %387 : vector<8x1xf32> to vector<8x256xf32>
    %389 = arith.addf %330, %388 : vector<8x256xf32>
    %cst_224 = arith.constant dense<0.000000e+00> : vector<256xf32>
    %390 = vector.multi_reduction <add>, %389, %cst_224 [0] : vector<8x256xf32> to vector<256xf32>
    %391 = vector.shape_cast %390 : vector<256xf32> to vector<1x256xf32>
    %392 = arith.mulf %389, %389 : vector<8x256xf32>
    %cst_225 = arith.constant dense<0.000000e+00> : vector<256xf32>
    %393 = vector.multi_reduction <add>, %392, %cst_225 [0] : vector<8x256xf32> to vector<256xf32>
    %394 = vector.shape_cast %393 : vector<256xf32> to vector<1x256xf32>
    %395 = vector.broadcast %cst_0 : f32 to vector<1x256xf32>
    %396 = arith.mulf %391, %395 : vector<1x256xf32>
    %cst_226 = arith.constant 8.000000e+00 : f32
    %397 = vector.broadcast %cst_226 : f32 to vector<1x256xf32>
    %398 = arith.mulf %397, %396 : vector<1x256xf32>
    %399 = arith.mulf %398, %396 : vector<1x256xf32>
    %400 = arith.subf %394, %399 : vector<1x256xf32>
    %401 = vector.broadcast %cst_1 : f32 to vector<1x256xf32>
    %402 = arith.mulf %400, %401 : vector<1x256xf32>
    %403 = vector.broadcast %396 : vector<1x256xf32> to vector<8x256xf32>
    %404 = arith.subf %389, %403 : vector<8x256xf32>
    %cst_227 = arith.constant 9.99999974E-6 : f32
    %405 = vector.broadcast %cst_227 : f32 to vector<1x256xf32>
    %406 = arith.addf %402, %405 : vector<1x256xf32>
    %407 = math.rsqrt %406 : vector<1x256xf32>
    %408 = vector.broadcast %407 : vector<1x256xf32> to vector<8x256xf32>
    %409 = arith.mulf %404, %408 : vector<8x256xf32>
    %c17_i32_228 = arith.constant 17 : i32
    %410 = tpu.dynamic_rotate %409 by %c17_i32_228 dim 1 : vector<8x256xf32>, i32 -> vector<8x256xf32>
    %c0_229 = arith.constant 0 : index
    %c0_230 = arith.constant 0 : index
    %c0_231 = arith.constant 0 : index
    %411 = vector.load %arg5[%c0_229, %c0_230, %c0_231] : memref<9x8x256xf32, #tpu.memory_space<vmem>>, vector<1x8x256xf32>
    %412 = vector.shape_cast %411 : vector<1x8x256xf32> to vector<8x256xf32>
    %413 = arith.mulf %412, %410 : vector<8x256xf32>
    %c16_i32_232 = arith.constant 16 : i32
    %414 = tpu.dynamic_rotate %409 by %c16_i32_232 dim 1 : vector<8x256xf32>, i32 -> vector<8x256xf32>
    %c1_233 = arith.constant 1 : index
    %c0_234 = arith.constant 0 : index
    %c0_235 = arith.constant 0 : index
    %415 = vector.load %arg5[%c1_233, %c0_234, %c0_235] : memref<9x8x256xf32, #tpu.memory_space<vmem>>, vector<1x8x256xf32>
    %416 = vector.shape_cast %415 : vector<1x8x256xf32> to vector<8x256xf32>
    %417 = arith.mulf %416, %414 : vector<8x256xf32>
    %c15_i32_236 = arith.constant 15 : i32
    %418 = tpu.dynamic_rotate %409 by %c15_i32_236 dim 1 : vector<8x256xf32>, i32 -> vector<8x256xf32>
    %c2_237 = arith.constant 2 : index
    %c0_238 = arith.constant 0 : index
    %c0_239 = arith.constant 0 : index
    %419 = vector.load %arg5[%c2_237, %c0_238, %c0_239] : memref<9x8x256xf32, #tpu.memory_space<vmem>>, vector<1x8x256xf32>
    %420 = vector.shape_cast %419 : vector<1x8x256xf32> to vector<8x256xf32>
    %421 = arith.mulf %420, %418 : vector<8x256xf32>
    %c1_i32_240 = arith.constant 1 : i32
    %422 = tpu.dynamic_rotate %409 by %c1_i32_240 dim 1 : vector<8x256xf32>, i32 -> vector<8x256xf32>
    %c3_241 = arith.constant 3 : index
    %c0_242 = arith.constant 0 : index
    %c0_243 = arith.constant 0 : index
    %423 = vector.load %arg5[%c3_241, %c0_242, %c0_243] : memref<9x8x256xf32, #tpu.memory_space<vmem>>, vector<1x8x256xf32>
    %424 = vector.shape_cast %423 : vector<1x8x256xf32> to vector<8x256xf32>
    %425 = arith.mulf %424, %422 : vector<8x256xf32>
    %c255_i32_244 = arith.constant 255 : i32
    %426 = tpu.dynamic_rotate %409 by %c255_i32_244 dim 1 : vector<8x256xf32>, i32 -> vector<8x256xf32>
    %c5_245 = arith.constant 5 : index
    %c0_246 = arith.constant 0 : index
    %c0_247 = arith.constant 0 : index
    %427 = vector.load %arg5[%c5_245, %c0_246, %c0_247] : memref<9x8x256xf32, #tpu.memory_space<vmem>>, vector<1x8x256xf32>
    %428 = vector.shape_cast %427 : vector<1x8x256xf32> to vector<8x256xf32>
    %429 = arith.mulf %428, %426 : vector<8x256xf32>
    %c241_i32_248 = arith.constant 241 : i32
    %430 = tpu.dynamic_rotate %409 by %c241_i32_248 dim 1 : vector<8x256xf32>, i32 -> vector<8x256xf32>
    %c6_249 = arith.constant 6 : index
    %c0_250 = arith.constant 0 : index
    %c0_251 = arith.constant 0 : index
    %431 = vector.load %arg5[%c6_249, %c0_250, %c0_251] : memref<9x8x256xf32, #tpu.memory_space<vmem>>, vector<1x8x256xf32>
    %432 = vector.shape_cast %431 : vector<1x8x256xf32> to vector<8x256xf32>
    %433 = arith.mulf %432, %430 : vector<8x256xf32>
    %c240_i32_252 = arith.constant 240 : i32
    %434 = tpu.dynamic_rotate %409 by %c240_i32_252 dim 1 : vector<8x256xf32>, i32 -> vector<8x256xf32>
    %c7_253 = arith.constant 7 : index
    %c0_254 = arith.constant 0 : index
    %c0_255 = arith.constant 0 : index
    %435 = vector.load %arg5[%c7_253, %c0_254, %c0_255] : memref<9x8x256xf32, #tpu.memory_space<vmem>>, vector<1x8x256xf32>
    %436 = vector.shape_cast %435 : vector<1x8x256xf32> to vector<8x256xf32>
    %437 = arith.mulf %436, %434 : vector<8x256xf32>
    %c239_i32_256 = arith.constant 239 : i32
    %438 = tpu.dynamic_rotate %409 by %c239_i32_256 dim 1 : vector<8x256xf32>, i32 -> vector<8x256xf32>
    %c8_257 = arith.constant 8 : index
    %c0_258 = arith.constant 0 : index
    %c0_259 = arith.constant 0 : index
    %439 = vector.load %arg5[%c8_257, %c0_258, %c0_259] : memref<9x8x256xf32, #tpu.memory_space<vmem>>, vector<1x8x256xf32>
    %440 = vector.shape_cast %439 : vector<1x8x256xf32> to vector<8x256xf32>
    %441 = arith.mulf %440, %438 : vector<8x256xf32>
    %442 = tpu.concatenate %413, %417, %421, %425, %409, %429, %433, %437, %441, %1 in 0 : vector<8x256xf32>, vector<8x256xf32>, vector<8x256xf32>, vector<8x256xf32>, vector<8x256xf32>, vector<8x256xf32>, vector<8x256xf32>, vector<8x256xf32>, vector<8x256xf32>, vector<8x256xf32> -> vector<80x256xf32>
    %c0_260 = arith.constant 0 : index
    %c0_261 = arith.constant 0 : index
    %443 = vector.load %arg6[%c0_260, %c0_261] : memref<8x80xf32, #tpu.memory_space<vmem>>, vector<8x80xf32>
    %cst_262 = arith.constant dense<0.000000e+00> : vector<8x256xf32>
    %444 = tpu.matmul %443, %442, %cst_262 {dimension_numbers = #tpu.dot_dimension_numbers<[1], [0], [0], [1], [0, 0, 1, 1], [], []>} : vector<8x80xf32>, vector<80x256xf32>, vector<8x256xf32> -> vector<8x256xf32>
    %445 = arith.negf %444 : vector<8x256xf32>
    %446 = math.exp %445 : vector<8x256xf32>
    %cst_263 = arith.constant 1.000000e+00 : f32
    %447 = vector.broadcast %cst_263 : f32 to vector<8x256xf32>
    %448 = arith.addf %447, %446 : vector<8x256xf32>
    %449 = arith.divf %447, %448 : vector<8x256xf32>
    %450 = arith.mulf %444, %449 : vector<8x256xf32>
    %c17_i32_264 = arith.constant 17 : i32
    %451 = tpu.dynamic_rotate %450 by %c17_i32_264 dim 1 : vector<8x256xf32>, i32 -> vector<8x256xf32>
    %c0_265 = arith.constant 0 : index
    %c0_266 = arith.constant 0 : index
    %c0_267 = arith.constant 0 : index
    %452 = vector.load %arg5[%c0_265, %c0_266, %c0_267] : memref<9x8x256xf32, #tpu.memory_space<vmem>>, vector<1x8x256xf32>
    %453 = vector.shape_cast %452 : vector<1x8x256xf32> to vector<8x256xf32>
    %454 = arith.mulf %453, %451 : vector<8x256xf32>
    %c16_i32_268 = arith.constant 16 : i32
    %455 = tpu.dynamic_rotate %450 by %c16_i32_268 dim 1 : vector<8x256xf32>, i32 -> vector<8x256xf32>
    %c1_269 = arith.constant 1 : index
    %c0_270 = arith.constant 0 : index
    %c0_271 = arith.constant 0 : index
    %456 = vector.load %arg5[%c1_269, %c0_270, %c0_271] : memref<9x8x256xf32, #tpu.memory_space<vmem>>, vector<1x8x256xf32>
    %457 = vector.shape_cast %456 : vector<1x8x256xf32> to vector<8x256xf32>
    %458 = arith.mulf %457, %455 : vector<8x256xf32>
    %c15_i32_272 = arith.constant 15 : i32
    %459 = tpu.dynamic_rotate %450 by %c15_i32_272 dim 1 : vector<8x256xf32>, i32 -> vector<8x256xf32>
    %c2_273 = arith.constant 2 : index
    %c0_274 = arith.constant 0 : index
    %c0_275 = arith.constant 0 : index
    %460 = vector.load %arg5[%c2_273, %c0_274, %c0_275] : memref<9x8x256xf32, #tpu.memory_space<vmem>>, vector<1x8x256xf32>
    %461 = vector.shape_cast %460 : vector<1x8x256xf32> to vector<8x256xf32>
    %462 = arith.mulf %461, %459 : vector<8x256xf32>
    %c1_i32_276 = arith.constant 1 : i32
    %463 = tpu.dynamic_rotate %450 by %c1_i32_276 dim 1 : vector<8x256xf32>, i32 -> vector<8x256xf32>
    %c3_277 = arith.constant 3 : index
    %c0_278 = arith.constant 0 : index
    %c0_279 = arith.constant 0 : index
    %464 = vector.load %arg5[%c3_277, %c0_278, %c0_279] : memref<9x8x256xf32, #tpu.memory_space<vmem>>, vector<1x8x256xf32>
    %465 = vector.shape_cast %464 : vector<1x8x256xf32> to vector<8x256xf32>
    %466 = arith.mulf %465, %463 : vector<8x256xf32>
    %c255_i32_280 = arith.constant 255 : i32
    %467 = tpu.dynamic_rotate %450 by %c255_i32_280 dim 1 : vector<8x256xf32>, i32 -> vector<8x256xf32>
    %c5_281 = arith.constant 5 : index
    %c0_282 = arith.constant 0 : index
    %c0_283 = arith.constant 0 : index
    %468 = vector.load %arg5[%c5_281, %c0_282, %c0_283] : memref<9x8x256xf32, #tpu.memory_space<vmem>>, vector<1x8x256xf32>
    %469 = vector.shape_cast %468 : vector<1x8x256xf32> to vector<8x256xf32>
    %470 = arith.mulf %469, %467 : vector<8x256xf32>
    %c241_i32_284 = arith.constant 241 : i32
    %471 = tpu.dynamic_rotate %450 by %c241_i32_284 dim 1 : vector<8x256xf32>, i32 -> vector<8x256xf32>
    %c6_285 = arith.constant 6 : index
    %c0_286 = arith.constant 0 : index
    %c0_287 = arith.constant 0 : index
    %472 = vector.load %arg5[%c6_285, %c0_286, %c0_287] : memref<9x8x256xf32, #tpu.memory_space<vmem>>, vector<1x8x256xf32>
    %473 = vector.shape_cast %472 : vector<1x8x256xf32> to vector<8x256xf32>
    %474 = arith.mulf %473, %471 : vector<8x256xf32>
    %c240_i32_288 = arith.constant 240 : i32
    %475 = tpu.dynamic_rotate %450 by %c240_i32_288 dim 1 : vector<8x256xf32>, i32 -> vector<8x256xf32>
    %c7_289 = arith.constant 7 : index
    %c0_290 = arith.constant 0 : index
    %c0_291 = arith.constant 0 : index
    %476 = vector.load %arg5[%c7_289, %c0_290, %c0_291] : memref<9x8x256xf32, #tpu.memory_space<vmem>>, vector<1x8x256xf32>
    %477 = vector.shape_cast %476 : vector<1x8x256xf32> to vector<8x256xf32>
    %478 = arith.mulf %477, %475 : vector<8x256xf32>
    %c239_i32_292 = arith.constant 239 : i32
    %479 = tpu.dynamic_rotate %450 by %c239_i32_292 dim 1 : vector<8x256xf32>, i32 -> vector<8x256xf32>
    %c8_293 = arith.constant 8 : index
    %c0_294 = arith.constant 0 : index
    %c0_295 = arith.constant 0 : index
    %480 = vector.load %arg5[%c8_293, %c0_294, %c0_295] : memref<9x8x256xf32, #tpu.memory_space<vmem>>, vector<1x8x256xf32>
    %481 = vector.shape_cast %480 : vector<1x8x256xf32> to vector<8x256xf32>
    %482 = arith.mulf %481, %479 : vector<8x256xf32>
    %483 = tpu.concatenate %454, %458, %462, %466, %450, %470, %474, %478, %482, %1 in 0 : vector<8x256xf32>, vector<8x256xf32>, vector<8x256xf32>, vector<8x256xf32>, vector<8x256xf32>, vector<8x256xf32>, vector<8x256xf32>, vector<8x256xf32>, vector<8x256xf32>, vector<8x256xf32> -> vector<80x256xf32>
    %c0_296 = arith.constant 0 : index
    %c0_297 = arith.constant 0 : index
    %484 = vector.load %arg7[%c0_296, %c0_297] : memref<8x80xf32, #tpu.memory_space<vmem>>, vector<8x80xf32>
    %cst_298 = arith.constant dense<0.000000e+00> : vector<8x256xf32>
    %485 = tpu.matmul %484, %483, %cst_298 {dimension_numbers = #tpu.dot_dimension_numbers<[1], [0], [0], [1], [0, 0, 1, 1], [], []>} : vector<8x80xf32>, vector<80x256xf32>, vector<8x256xf32> -> vector<8x256xf32>
    %486 = arith.addf %330, %485 : vector<8x256xf32>
    %487 = arith.index_cast %c2_i32 : i32 to index
    %c0_299 = arith.constant 0 : index
    %c0_300 = arith.constant 0 : index
    %488 = vector.load %arg8[%487, %c0_299, %c0_300] : memref<8x8x256xf32, #tpu.memory_space<vmem>>, vector<1x8x256xf32>
    %489 = vector.shape_cast %488 : vector<1x8x256xf32> to vector<8x256xf32>
    %490 = vector.shape_cast %486 : vector<8x256xf32> to vector<1x8x256xf32>
    tpu.vector_store %arg8[%487, %c0_299, %c0_300], %490 {strides = array<i32>} : memref<8x8x256xf32, #tpu.memory_space<vmem>>, vector<1x8x256xf32>,
    %c3_i32 = arith.constant 3 : i32
    %491 = arith.index_cast %c3_i32 : i32 to index
    %c0_301 = arith.constant 0 : index
    %c0_302 = arith.constant 0 : index
    %492 = vector.load %arg2[%491, %c0_301, %c0_302] : memref<8x8x256xf32, #tpu.memory_space<vmem>>, vector<1x8x256xf32>
    %493 = vector.shape_cast %492 : vector<1x8x256xf32> to vector<8x256xf32>
    %c0_303 = arith.constant 0 : index
    %c0_304 = arith.constant 0 : index
    %494 = vector.load %arg4[%c0_303, %c0_304] : memref<8x1xf32, #tpu.memory_space<vmem>>, vector<8x1xf32>
    %c0_305 = arith.constant 0 : index
    %c0_306 = arith.constant 0 : index
    %495 = vector.load %arg3[%c0_305, %c0_306] : memref<8x8xf32, #tpu.memory_space<vmem>>, vector<8x1xf32>
    %496 = arith.addi %0, %c3_i32 : i32
    %497 = arith.index_cast %496 : i32 to index
    %c0_307 = arith.constant 0 : index
    %498 = memref.load %arg1[%497, %c0_307] : memref<16x8xf32, #tpu.memory_space<smem>>
    %499 = vector.broadcast %498 : f32 to vector<8x1xf32>
    %500 = arith.mulf %495, %499 : vector<8x1xf32>
    %501 = arith.addf %494, %500 : vector<8x1xf32>
    %c0_308 = arith.constant 0 : index
    %c1_309 = arith.constant 1 : index
    %502 = vector.load %arg3[%c0_308, %c1_309] : memref<8x8xf32, #tpu.memory_space<vmem>>, vector<8x1xf32>
    %503 = arith.addi %0, %c3_i32 : i32
    %504 = arith.index_cast %503 : i32 to index
    %c1_310 = arith.constant 1 : index
    %505 = memref.load %arg1[%504, %c1_310] : memref<16x8xf32, #tpu.memory_space<smem>>
    %506 = vector.broadcast %505 : f32 to vector<8x1xf32>
    %507 = arith.mulf %502, %506 : vector<8x1xf32>
    %508 = arith.addf %501, %507 : vector<8x1xf32>
    %c0_311 = arith.constant 0 : index
    %c2_312 = arith.constant 2 : index
    %509 = vector.load %arg3[%c0_311, %c2_312] : memref<8x8xf32, #tpu.memory_space<vmem>>, vector<8x1xf32>
    %510 = arith.addi %0, %c3_i32 : i32
    %511 = arith.index_cast %510 : i32 to index
    %c2_313 = arith.constant 2 : index
    %512 = memref.load %arg1[%511, %c2_313] : memref<16x8xf32, #tpu.memory_space<smem>>
    %513 = vector.broadcast %512 : f32 to vector<8x1xf32>
    %514 = arith.mulf %509, %513 : vector<8x1xf32>
    %515 = arith.addf %508, %514 : vector<8x1xf32>
    %c0_314 = arith.constant 0 : index
    %c3_315 = arith.constant 3 : index
    %516 = vector.load %arg3[%c0_314, %c3_315] : memref<8x8xf32, #tpu.memory_space<vmem>>, vector<8x1xf32>
    %517 = arith.addi %0, %c3_i32 : i32
    %518 = arith.index_cast %517 : i32 to index
    %c3_316 = arith.constant 3 : index
    %519 = memref.load %arg1[%518, %c3_316] : memref<16x8xf32, #tpu.memory_space<smem>>
    %520 = vector.broadcast %519 : f32 to vector<8x1xf32>
    %521 = arith.mulf %516, %520 : vector<8x1xf32>
    %522 = arith.addf %515, %521 : vector<8x1xf32>
    %c0_317 = arith.constant 0 : index
    %c4_318 = arith.constant 4 : index
    %523 = vector.load %arg3[%c0_317, %c4_318] : memref<8x8xf32, #tpu.memory_space<vmem>>, vector<8x1xf32>
    %524 = arith.addi %0, %c3_i32 : i32
    %525 = arith.index_cast %524 : i32 to index
    %c4_319 = arith.constant 4 : index
    %526 = memref.load %arg1[%525, %c4_319] : memref<16x8xf32, #tpu.memory_space<smem>>
    %527 = vector.broadcast %526 : f32 to vector<8x1xf32>
    %528 = arith.mulf %523, %527 : vector<8x1xf32>
    %529 = arith.addf %522, %528 : vector<8x1xf32>
    %c0_320 = arith.constant 0 : index
    %c5_321 = arith.constant 5 : index
    %530 = vector.load %arg3[%c0_320, %c5_321] : memref<8x8xf32, #tpu.memory_space<vmem>>, vector<8x1xf32>
    %531 = arith.addi %0, %c3_i32 : i32
    %532 = arith.index_cast %531 : i32 to index
    %c5_322 = arith.constant 5 : index
    %533 = memref.load %arg1[%532, %c5_322] : memref<16x8xf32, #tpu.memory_space<smem>>
    %534 = vector.broadcast %533 : f32 to vector<8x1xf32>
    %535 = arith.mulf %530, %534 : vector<8x1xf32>
    %536 = arith.addf %529, %535 : vector<8x1xf32>
    %c0_323 = arith.constant 0 : index
    %c6_324 = arith.constant 6 : index
    %537 = vector.load %arg3[%c0_323, %c6_324] : memref<8x8xf32, #tpu.memory_space<vmem>>, vector<8x1xf32>
    %538 = arith.addi %0, %c3_i32 : i32
    %539 = arith.index_cast %538 : i32 to index
    %c6_325 = arith.constant 6 : index
    %540 = memref.load %arg1[%539, %c6_325] : memref<16x8xf32, #tpu.memory_space<smem>>
    %541 = vector.broadcast %540 : f32 to vector<8x1xf32>
    %542 = arith.mulf %537, %541 : vector<8x1xf32>
    %543 = arith.addf %536, %542 : vector<8x1xf32>
    %c0_326 = arith.constant 0 : index
    %c7_327 = arith.constant 7 : index
    %544 = vector.load %arg3[%c0_326, %c7_327] : memref<8x8xf32, #tpu.memory_space<vmem>>, vector<8x1xf32>
    %545 = arith.addi %0, %c3_i32 : i32
    %546 = arith.index_cast %545 : i32 to index
    %c7_328 = arith.constant 7 : index
    %547 = memref.load %arg1[%546, %c7_328] : memref<16x8xf32, #tpu.memory_space<smem>>
    %548 = vector.broadcast %547 : f32 to vector<8x1xf32>
    %549 = arith.mulf %544, %548 : vector<8x1xf32>
    %550 = arith.addf %543, %549 : vector<8x1xf32>
    %551 = vector.broadcast %550 : vector<8x1xf32> to vector<8x256xf32>
    %552 = arith.addf %493, %551 : vector<8x256xf32>
    %cst_329 = arith.constant dense<0.000000e+00> : vector<256xf32>
    %553 = vector.multi_reduction <add>, %552, %cst_329 [0] : vector<8x256xf32> to vector<256xf32>
    %554 = vector.shape_cast %553 : vector<256xf32> to vector<1x256xf32>
    %555 = arith.mulf %552, %552 : vector<8x256xf32>
    %cst_330 = arith.constant dense<0.000000e+00> : vector<256xf32>
    %556 = vector.multi_reduction <add>, %555, %cst_330 [0] : vector<8x256xf32> to vector<256xf32>
    %557 = vector.shape_cast %556 : vector<256xf32> to vector<1x256xf32>
    %558 = vector.broadcast %cst_0 : f32 to vector<1x256xf32>
    %559 = arith.mulf %554, %558 : vector<1x256xf32>
    %cst_331 = arith.constant 8.000000e+00 : f32
    %560 = vector.broadcast %cst_331 : f32 to vector<1x256xf32>
    %561 = arith.mulf %560, %559 : vector<1x256xf32>
    %562 = arith.mulf %561, %559 : vector<1x256xf32>
    %563 = arith.subf %557, %562 : vector<1x256xf32>
    %564 = vector.broadcast %cst_1 : f32 to vector<1x256xf32>
    %565 = arith.mulf %563, %564 : vector<1x256xf32>
    %566 = vector.broadcast %559 : vector<1x256xf32> to vector<8x256xf32>
    %567 = arith.subf %552, %566 : vector<8x256xf32>
    %cst_332 = arith.constant 9.99999974E-6 : f32
    %568 = vector.broadcast %cst_332 : f32 to vector<1x256xf32>
    %569 = arith.addf %565, %568 : vector<1x256xf32>
    %570 = math.rsqrt %569 : vector<1x256xf32>
    %571 = vector.broadcast %570 : vector<1x256xf32> to vector<8x256xf32>
    %572 = arith.mulf %567, %571 : vector<8x256xf32>
    %c17_i32_333 = arith.constant 17 : i32
    %573 = tpu.dynamic_rotate %572 by %c17_i32_333 dim 1 : vector<8x256xf32>, i32 -> vector<8x256xf32>
    %c0_334 = arith.constant 0 : index
    %c0_335 = arith.constant 0 : index
    %c0_336 = arith.constant 0 : index
    %574 = vector.load %arg5[%c0_334, %c0_335, %c0_336] : memref<9x8x256xf32, #tpu.memory_space<vmem>>, vector<1x8x256xf32>
    %575 = vector.shape_cast %574 : vector<1x8x256xf32> to vector<8x256xf32>
    %576 = arith.mulf %575, %573 : vector<8x256xf32>
    %c16_i32_337 = arith.constant 16 : i32
    %577 = tpu.dynamic_rotate %572 by %c16_i32_337 dim 1 : vector<8x256xf32>, i32 -> vector<8x256xf32>
    %c1_338 = arith.constant 1 : index
    %c0_339 = arith.constant 0 : index
    %c0_340 = arith.constant 0 : index
    %578 = vector.load %arg5[%c1_338, %c0_339, %c0_340] : memref<9x8x256xf32, #tpu.memory_space<vmem>>, vector<1x8x256xf32>
    %579 = vector.shape_cast %578 : vector<1x8x256xf32> to vector<8x256xf32>
    %580 = arith.mulf %579, %577 : vector<8x256xf32>
    %c15_i32_341 = arith.constant 15 : i32
    %581 = tpu.dynamic_rotate %572 by %c15_i32_341 dim 1 : vector<8x256xf32>, i32 -> vector<8x256xf32>
    %c2_342 = arith.constant 2 : index
    %c0_343 = arith.constant 0 : index
    %c0_344 = arith.constant 0 : index
    %582 = vector.load %arg5[%c2_342, %c0_343, %c0_344] : memref<9x8x256xf32, #tpu.memory_space<vmem>>, vector<1x8x256xf32>
    %583 = vector.shape_cast %582 : vector<1x8x256xf32> to vector<8x256xf32>
    %584 = arith.mulf %583, %581 : vector<8x256xf32>
    %c1_i32_345 = arith.constant 1 : i32
    %585 = tpu.dynamic_rotate %572 by %c1_i32_345 dim 1 : vector<8x256xf32>, i32 -> vector<8x256xf32>
    %c3_346 = arith.constant 3 : index
    %c0_347 = arith.constant 0 : index
    %c0_348 = arith.constant 0 : index
    %586 = vector.load %arg5[%c3_346, %c0_347, %c0_348] : memref<9x8x256xf32, #tpu.memory_space<vmem>>, vector<1x8x256xf32>
    %587 = vector.shape_cast %586 : vector<1x8x256xf32> to vector<8x256xf32>
    %588 = arith.mulf %587, %585 : vector<8x256xf32>
    %c255_i32_349 = arith.constant 255 : i32
    %589 = tpu.dynamic_rotate %572 by %c255_i32_349 dim 1 : vector<8x256xf32>, i32 -> vector<8x256xf32>
    %c5_350 = arith.constant 5 : index
    %c0_351 = arith.constant 0 : index
    %c0_352 = arith.constant 0 : index
    %590 = vector.load %arg5[%c5_350, %c0_351, %c0_352] : memref<9x8x256xf32, #tpu.memory_space<vmem>>, vector<1x8x256xf32>
    %591 = vector.shape_cast %590 : vector<1x8x256xf32> to vector<8x256xf32>
    %592 = arith.mulf %591, %589 : vector<8x256xf32>
    %c241_i32_353 = arith.constant 241 : i32
    %593 = tpu.dynamic_rotate %572 by %c241_i32_353 dim 1 : vector<8x256xf32>, i32 -> vector<8x256xf32>
    %c6_354 = arith.constant 6 : index
    %c0_355 = arith.constant 0 : index
    %c0_356 = arith.constant 0 : index
    %594 = vector.load %arg5[%c6_354, %c0_355, %c0_356] : memref<9x8x256xf32, #tpu.memory_space<vmem>>, vector<1x8x256xf32>
    %595 = vector.shape_cast %594 : vector<1x8x256xf32> to vector<8x256xf32>
    %596 = arith.mulf %595, %593 : vector<8x256xf32>
    %c240_i32_357 = arith.constant 240 : i32
    %597 = tpu.dynamic_rotate %572 by %c240_i32_357 dim 1 : vector<8x256xf32>, i32 -> vector<8x256xf32>
    %c7_358 = arith.constant 7 : index
    %c0_359 = arith.constant 0 : index
    %c0_360 = arith.constant 0 : index
    %598 = vector.load %arg5[%c7_358, %c0_359, %c0_360] : memref<9x8x256xf32, #tpu.memory_space<vmem>>, vector<1x8x256xf32>
    %599 = vector.shape_cast %598 : vector<1x8x256xf32> to vector<8x256xf32>
    %600 = arith.mulf %599, %597 : vector<8x256xf32>
    %c239_i32_361 = arith.constant 239 : i32
    %601 = tpu.dynamic_rotate %572 by %c239_i32_361 dim 1 : vector<8x256xf32>, i32 -> vector<8x256xf32>
    %c8_362 = arith.constant 8 : index
    %c0_363 = arith.constant 0 : index
    %c0_364 = arith.constant 0 : index
    %602 = vector.load %arg5[%c8_362, %c0_363, %c0_364] : memref<9x8x256xf32, #tpu.memory_space<vmem>>, vector<1x8x256xf32>
    %603 = vector.shape_cast %602 : vector<1x8x256xf32> to vector<8x256xf32>
    %604 = arith.mulf %603, %601 : vector<8x256xf32>
    %605 = tpu.concatenate %576, %580, %584, %588, %572, %592, %596, %600, %604, %1 in 0 : vector<8x256xf32>, vector<8x256xf32>, vector<8x256xf32>, vector<8x256xf32>, vector<8x256xf32>, vector<8x256xf32>, vector<8x256xf32>, vector<8x256xf32>, vector<8x256xf32>, vector<8x256xf32> -> vector<80x256xf32>
    %c0_365 = arith.constant 0 : index
    %c0_366 = arith.constant 0 : index
    %606 = vector.load %arg6[%c0_365, %c0_366] : memref<8x80xf32, #tpu.memory_space<vmem>>, vector<8x80xf32>
    %cst_367 = arith.constant dense<0.000000e+00> : vector<8x256xf32>
    %607 = tpu.matmul %606, %605, %cst_367 {dimension_numbers = #tpu.dot_dimension_numbers<[1], [0], [0], [1], [0, 0, 1, 1], [], []>} : vector<8x80xf32>, vector<80x256xf32>, vector<8x256xf32> -> vector<8x256xf32>
    %608 = arith.negf %607 : vector<8x256xf32>
    %609 = math.exp %608 : vector<8x256xf32>
    %cst_368 = arith.constant 1.000000e+00 : f32
    %610 = vector.broadcast %cst_368 : f32 to vector<8x256xf32>
    %611 = arith.addf %610, %609 : vector<8x256xf32>
    %612 = arith.divf %610, %611 : vector<8x256xf32>
    %613 = arith.mulf %607, %612 : vector<8x256xf32>
    %c17_i32_369 = arith.constant 17 : i32
    %614 = tpu.dynamic_rotate %613 by %c17_i32_369 dim 1 : vector<8x256xf32>, i32 -> vector<8x256xf32>
    %c0_370 = arith.constant 0 : index
    %c0_371 = arith.constant 0 : index
    %c0_372 = arith.constant 0 : index
    %615 = vector.load %arg5[%c0_370, %c0_371, %c0_372] : memref<9x8x256xf32, #tpu.memory_space<vmem>>, vector<1x8x256xf32>
    %616 = vector.shape_cast %615 : vector<1x8x256xf32> to vector<8x256xf32>
    %617 = arith.mulf %616, %614 : vector<8x256xf32>
    %c16_i32_373 = arith.constant 16 : i32
    %618 = tpu.dynamic_rotate %613 by %c16_i32_373 dim 1 : vector<8x256xf32>, i32 -> vector<8x256xf32>
    %c1_374 = arith.constant 1 : index
    %c0_375 = arith.constant 0 : index
    %c0_376 = arith.constant 0 : index
    %619 = vector.load %arg5[%c1_374, %c0_375, %c0_376] : memref<9x8x256xf32, #tpu.memory_space<vmem>>, vector<1x8x256xf32>
    %620 = vector.shape_cast %619 : vector<1x8x256xf32> to vector<8x256xf32>
    %621 = arith.mulf %620, %618 : vector<8x256xf32>
    %c15_i32_377 = arith.constant 15 : i32
    %622 = tpu.dynamic_rotate %613 by %c15_i32_377 dim 1 : vector<8x256xf32>, i32 -> vector<8x256xf32>
    %c2_378 = arith.constant 2 : index
    %c0_379 = arith.constant 0 : index
    %c0_380 = arith.constant 0 : index
    %623 = vector.load %arg5[%c2_378, %c0_379, %c0_380] : memref<9x8x256xf32, #tpu.memory_space<vmem>>, vector<1x8x256xf32>
    %624 = vector.shape_cast %623 : vector<1x8x256xf32> to vector<8x256xf32>
    %625 = arith.mulf %624, %622 : vector<8x256xf32>
    %c1_i32_381 = arith.constant 1 : i32
    %626 = tpu.dynamic_rotate %613 by %c1_i32_381 dim 1 : vector<8x256xf32>, i32 -> vector<8x256xf32>
    %c3_382 = arith.constant 3 : index
    %c0_383 = arith.constant 0 : index
    %c0_384 = arith.constant 0 : index
    %627 = vector.load %arg5[%c3_382, %c0_383, %c0_384] : memref<9x8x256xf32, #tpu.memory_space<vmem>>, vector<1x8x256xf32>
    %628 = vector.shape_cast %627 : vector<1x8x256xf32> to vector<8x256xf32>
    %629 = arith.mulf %628, %626 : vector<8x256xf32>
    %c255_i32_385 = arith.constant 255 : i32
    %630 = tpu.dynamic_rotate %613 by %c255_i32_385 dim 1 : vector<8x256xf32>, i32 -> vector<8x256xf32>
    %c5_386 = arith.constant 5 : index
    %c0_387 = arith.constant 0 : index
    %c0_388 = arith.constant 0 : index
    %631 = vector.load %arg5[%c5_386, %c0_387, %c0_388] : memref<9x8x256xf32, #tpu.memory_space<vmem>>, vector<1x8x256xf32>
    %632 = vector.shape_cast %631 : vector<1x8x256xf32> to vector<8x256xf32>
    %633 = arith.mulf %632, %630 : vector<8x256xf32>
    %c241_i32_389 = arith.constant 241 : i32
    %634 = tpu.dynamic_rotate %613 by %c241_i32_389 dim 1 : vector<8x256xf32>, i32 -> vector<8x256xf32>
    %c6_390 = arith.constant 6 : index
    %c0_391 = arith.constant 0 : index
    %c0_392 = arith.constant 0 : index
    %635 = vector.load %arg5[%c6_390, %c0_391, %c0_392] : memref<9x8x256xf32, #tpu.memory_space<vmem>>, vector<1x8x256xf32>
    %636 = vector.shape_cast %635 : vector<1x8x256xf32> to vector<8x256xf32>
    %637 = arith.mulf %636, %634 : vector<8x256xf32>
    %c240_i32_393 = arith.constant 240 : i32
    %638 = tpu.dynamic_rotate %613 by %c240_i32_393 dim 1 : vector<8x256xf32>, i32 -> vector<8x256xf32>
    %c7_394 = arith.constant 7 : index
    %c0_395 = arith.constant 0 : index
    %c0_396 = arith.constant 0 : index
    %639 = vector.load %arg5[%c7_394, %c0_395, %c0_396] : memref<9x8x256xf32, #tpu.memory_space<vmem>>, vector<1x8x256xf32>
    %640 = vector.shape_cast %639 : vector<1x8x256xf32> to vector<8x256xf32>
    %641 = arith.mulf %640, %638 : vector<8x256xf32>
    %c239_i32_397 = arith.constant 239 : i32
    %642 = tpu.dynamic_rotate %613 by %c239_i32_397 dim 1 : vector<8x256xf32>, i32 -> vector<8x256xf32>
    %c8_398 = arith.constant 8 : index
    %c0_399 = arith.constant 0 : index
    %c0_400 = arith.constant 0 : index
    %643 = vector.load %arg5[%c8_398, %c0_399, %c0_400] : memref<9x8x256xf32, #tpu.memory_space<vmem>>, vector<1x8x256xf32>
    %644 = vector.shape_cast %643 : vector<1x8x256xf32> to vector<8x256xf32>
    %645 = arith.mulf %644, %642 : vector<8x256xf32>
    %646 = tpu.concatenate %617, %621, %625, %629, %613, %633, %637, %641, %645, %1 in 0 : vector<8x256xf32>, vector<8x256xf32>, vector<8x256xf32>, vector<8x256xf32>, vector<8x256xf32>, vector<8x256xf32>, vector<8x256xf32>, vector<8x256xf32>, vector<8x256xf32>, vector<8x256xf32> -> vector<80x256xf32>
    %c0_401 = arith.constant 0 : index
    %c0_402 = arith.constant 0 : index
    %647 = vector.load %arg7[%c0_401, %c0_402] : memref<8x80xf32, #tpu.memory_space<vmem>>, vector<8x80xf32>
    %cst_403 = arith.constant dense<0.000000e+00> : vector<8x256xf32>
    %648 = tpu.matmul %647, %646, %cst_403 {dimension_numbers = #tpu.dot_dimension_numbers<[1], [0], [0], [1], [0, 0, 1, 1], [], []>} : vector<8x80xf32>, vector<80x256xf32>, vector<8x256xf32> -> vector<8x256xf32>
    %649 = arith.addf %493, %648 : vector<8x256xf32>
    %650 = arith.index_cast %c3_i32 : i32 to index
    %c0_404 = arith.constant 0 : index
    %c0_405 = arith.constant 0 : index
    %651 = vector.load %arg8[%650, %c0_404, %c0_405] : memref<8x8x256xf32, #tpu.memory_space<vmem>>, vector<1x8x256xf32>
    %652 = vector.shape_cast %651 : vector<1x8x256xf32> to vector<8x256xf32>
    %653 = vector.shape_cast %649 : vector<8x256xf32> to vector<1x8x256xf32>
    tpu.vector_store %arg8[%650, %c0_404, %c0_405], %653 {strides = array<i32>} : memref<8x8x256xf32, #tpu.memory_space<vmem>>, vector<1x8x256xf32>,
    %c4_i32 = arith.constant 4 : i32
    %654 = arith.index_cast %c4_i32 : i32 to index
    %c0_406 = arith.constant 0 : index
    %c0_407 = arith.constant 0 : index
    %655 = vector.load %arg2[%654, %c0_406, %c0_407] : memref<8x8x256xf32, #tpu.memory_space<vmem>>, vector<1x8x256xf32>
    %656 = vector.shape_cast %655 : vector<1x8x256xf32> to vector<8x256xf32>
    %c0_408 = arith.constant 0 : index
    %c0_409 = arith.constant 0 : index
    %657 = vector.load %arg4[%c0_408, %c0_409] : memref<8x1xf32, #tpu.memory_space<vmem>>, vector<8x1xf32>
    %c0_410 = arith.constant 0 : index
    %c0_411 = arith.constant 0 : index
    %658 = vector.load %arg3[%c0_410, %c0_411] : memref<8x8xf32, #tpu.memory_space<vmem>>, vector<8x1xf32>
    %659 = arith.addi %0, %c4_i32 : i32
    %660 = arith.index_cast %659 : i32 to index
    %c0_412 = arith.constant 0 : index
    %661 = memref.load %arg1[%660, %c0_412] : memref<16x8xf32, #tpu.memory_space<smem>>
    %662 = vector.broadcast %661 : f32 to vector<8x1xf32>
    %663 = arith.mulf %658, %662 : vector<8x1xf32>
    %664 = arith.addf %657, %663 : vector<8x1xf32>
    %c0_413 = arith.constant 0 : index
    %c1_414 = arith.constant 1 : index
    %665 = vector.load %arg3[%c0_413, %c1_414] : memref<8x8xf32, #tpu.memory_space<vmem>>, vector<8x1xf32>
    %666 = arith.addi %0, %c4_i32 : i32
    %667 = arith.index_cast %666 : i32 to index
    %c1_415 = arith.constant 1 : index
    %668 = memref.load %arg1[%667, %c1_415] : memref<16x8xf32, #tpu.memory_space<smem>>
    %669 = vector.broadcast %668 : f32 to vector<8x1xf32>
    %670 = arith.mulf %665, %669 : vector<8x1xf32>
    %671 = arith.addf %664, %670 : vector<8x1xf32>
    %c0_416 = arith.constant 0 : index
    %c2_417 = arith.constant 2 : index
    %672 = vector.load %arg3[%c0_416, %c2_417] : memref<8x8xf32, #tpu.memory_space<vmem>>, vector<8x1xf32>
    %673 = arith.addi %0, %c4_i32 : i32
    %674 = arith.index_cast %673 : i32 to index
    %c2_418 = arith.constant 2 : index
    %675 = memref.load %arg1[%674, %c2_418] : memref<16x8xf32, #tpu.memory_space<smem>>
    %676 = vector.broadcast %675 : f32 to vector<8x1xf32>
    %677 = arith.mulf %672, %676 : vector<8x1xf32>
    %678 = arith.addf %671, %677 : vector<8x1xf32>
    %c0_419 = arith.constant 0 : index
    %c3_420 = arith.constant 3 : index
    %679 = vector.load %arg3[%c0_419, %c3_420] : memref<8x8xf32, #tpu.memory_space<vmem>>, vector<8x1xf32>
    %680 = arith.addi %0, %c4_i32 : i32
    %681 = arith.index_cast %680 : i32 to index
    %c3_421 = arith.constant 3 : index
    %682 = memref.load %arg1[%681, %c3_421] : memref<16x8xf32, #tpu.memory_space<smem>>
    %683 = vector.broadcast %682 : f32 to vector<8x1xf32>
    %684 = arith.mulf %679, %683 : vector<8x1xf32>
    %685 = arith.addf %678, %684 : vector<8x1xf32>
    %c0_422 = arith.constant 0 : index
    %c4_423 = arith.constant 4 : index
    %686 = vector.load %arg3[%c0_422, %c4_423] : memref<8x8xf32, #tpu.memory_space<vmem>>, vector<8x1xf32>
    %687 = arith.addi %0, %c4_i32 : i32
    %688 = arith.index_cast %687 : i32 to index
    %c4_424 = arith.constant 4 : index
    %689 = memref.load %arg1[%688, %c4_424] : memref<16x8xf32, #tpu.memory_space<smem>>
    %690 = vector.broadcast %689 : f32 to vector<8x1xf32>
    %691 = arith.mulf %686, %690 : vector<8x1xf32>
    %692 = arith.addf %685, %691 : vector<8x1xf32>
    %c0_425 = arith.constant 0 : index
    %c5_426 = arith.constant 5 : index
    %693 = vector.load %arg3[%c0_425, %c5_426] : memref<8x8xf32, #tpu.memory_space<vmem>>, vector<8x1xf32>
    %694 = arith.addi %0, %c4_i32 : i32
    %695 = arith.index_cast %694 : i32 to index
    %c5_427 = arith.constant 5 : index
    %696 = memref.load %arg1[%695, %c5_427] : memref<16x8xf32, #tpu.memory_space<smem>>
    %697 = vector.broadcast %696 : f32 to vector<8x1xf32>
    %698 = arith.mulf %693, %697 : vector<8x1xf32>
    %699 = arith.addf %692, %698 : vector<8x1xf32>
    %c0_428 = arith.constant 0 : index
    %c6_429 = arith.constant 6 : index
    %700 = vector.load %arg3[%c0_428, %c6_429] : memref<8x8xf32, #tpu.memory_space<vmem>>, vector<8x1xf32>
    %701 = arith.addi %0, %c4_i32 : i32
    %702 = arith.index_cast %701 : i32 to index
    %c6_430 = arith.constant 6 : index
    %703 = memref.load %arg1[%702, %c6_430] : memref<16x8xf32, #tpu.memory_space<smem>>
    %704 = vector.broadcast %703 : f32 to vector<8x1xf32>
    %705 = arith.mulf %700, %704 : vector<8x1xf32>
    %706 = arith.addf %699, %705 : vector<8x1xf32>
    %c0_431 = arith.constant 0 : index
    %c7_432 = arith.constant 7 : index
    %707 = vector.load %arg3[%c0_431, %c7_432] : memref<8x8xf32, #tpu.memory_space<vmem>>, vector<8x1xf32>
    %708 = arith.addi %0, %c4_i32 : i32
    %709 = arith.index_cast %708 : i32 to index
    %c7_433 = arith.constant 7 : index
    %710 = memref.load %arg1[%709, %c7_433] : memref<16x8xf32, #tpu.memory_space<smem>>
    %711 = vector.broadcast %710 : f32 to vector<8x1xf32>
    %712 = arith.mulf %707, %711 : vector<8x1xf32>
    %713 = arith.addf %706, %712 : vector<8x1xf32>
    %714 = vector.broadcast %713 : vector<8x1xf32> to vector<8x256xf32>
    %715 = arith.addf %656, %714 : vector<8x256xf32>
    %cst_434 = arith.constant dense<0.000000e+00> : vector<256xf32>
    %716 = vector.multi_reduction <add>, %715, %cst_434 [0] : vector<8x256xf32> to vector<256xf32>
    %717 = vector.shape_cast %716 : vector<256xf32> to vector<1x256xf32>
    %718 = arith.mulf %715, %715 : vector<8x256xf32>
    %cst_435 = arith.constant dense<0.000000e+00> : vector<256xf32>
    %719 = vector.multi_reduction <add>, %718, %cst_435 [0] : vector<8x256xf32> to vector<256xf32>
    %720 = vector.shape_cast %719 : vector<256xf32> to vector<1x256xf32>
    %721 = vector.broadcast %cst_0 : f32 to vector<1x256xf32>
    %722 = arith.mulf %717, %721 : vector<1x256xf32>
    %cst_436 = arith.constant 8.000000e+00 : f32
    %723 = vector.broadcast %cst_436 : f32 to vector<1x256xf32>
    %724 = arith.mulf %723, %722 : vector<1x256xf32>
    %725 = arith.mulf %724, %722 : vector<1x256xf32>
    %726 = arith.subf %720, %725 : vector<1x256xf32>
    %727 = vector.broadcast %cst_1 : f32 to vector<1x256xf32>
    %728 = arith.mulf %726, %727 : vector<1x256xf32>
    %729 = vector.broadcast %722 : vector<1x256xf32> to vector<8x256xf32>
    %730 = arith.subf %715, %729 : vector<8x256xf32>
    %cst_437 = arith.constant 9.99999974E-6 : f32
    %731 = vector.broadcast %cst_437 : f32 to vector<1x256xf32>
    %732 = arith.addf %728, %731 : vector<1x256xf32>
    %733 = math.rsqrt %732 : vector<1x256xf32>
    %734 = vector.broadcast %733 : vector<1x256xf32> to vector<8x256xf32>
    %735 = arith.mulf %730, %734 : vector<8x256xf32>
    %c17_i32_438 = arith.constant 17 : i32
    %736 = tpu.dynamic_rotate %735 by %c17_i32_438 dim 1 : vector<8x256xf32>, i32 -> vector<8x256xf32>
    %c0_439 = arith.constant 0 : index
    %c0_440 = arith.constant 0 : index
    %c0_441 = arith.constant 0 : index
    %737 = vector.load %arg5[%c0_439, %c0_440, %c0_441] : memref<9x8x256xf32, #tpu.memory_space<vmem>>, vector<1x8x256xf32>
    %738 = vector.shape_cast %737 : vector<1x8x256xf32> to vector<8x256xf32>
    %739 = arith.mulf %738, %736 : vector<8x256xf32>
    %c16_i32_442 = arith.constant 16 : i32
    %740 = tpu.dynamic_rotate %735 by %c16_i32_442 dim 1 : vector<8x256xf32>, i32 -> vector<8x256xf32>
    %c1_443 = arith.constant 1 : index
    %c0_444 = arith.constant 0 : index
    %c0_445 = arith.constant 0 : index
    %741 = vector.load %arg5[%c1_443, %c0_444, %c0_445] : memref<9x8x256xf32, #tpu.memory_space<vmem>>, vector<1x8x256xf32>
    %742 = vector.shape_cast %741 : vector<1x8x256xf32> to vector<8x256xf32>
    %743 = arith.mulf %742, %740 : vector<8x256xf32>
    %c15_i32_446 = arith.constant 15 : i32
    %744 = tpu.dynamic_rotate %735 by %c15_i32_446 dim 1 : vector<8x256xf32>, i32 -> vector<8x256xf32>
    %c2_447 = arith.constant 2 : index
    %c0_448 = arith.constant 0 : index
    %c0_449 = arith.constant 0 : index
    %745 = vector.load %arg5[%c2_447, %c0_448, %c0_449] : memref<9x8x256xf32, #tpu.memory_space<vmem>>, vector<1x8x256xf32>
    %746 = vector.shape_cast %745 : vector<1x8x256xf32> to vector<8x256xf32>
    %747 = arith.mulf %746, %744 : vector<8x256xf32>
    %c1_i32_450 = arith.constant 1 : i32
    %748 = tpu.dynamic_rotate %735 by %c1_i32_450 dim 1 : vector<8x256xf32>, i32 -> vector<8x256xf32>
    %c3_451 = arith.constant 3 : index
    %c0_452 = arith.constant 0 : index
    %c0_453 = arith.constant 0 : index
    %749 = vector.load %arg5[%c3_451, %c0_452, %c0_453] : memref<9x8x256xf32, #tpu.memory_space<vmem>>, vector<1x8x256xf32>
    %750 = vector.shape_cast %749 : vector<1x8x256xf32> to vector<8x256xf32>
    %751 = arith.mulf %750, %748 : vector<8x256xf32>
    %c255_i32_454 = arith.constant 255 : i32
    %752 = tpu.dynamic_rotate %735 by %c255_i32_454 dim 1 : vector<8x256xf32>, i32 -> vector<8x256xf32>
    %c5_455 = arith.constant 5 : index
    %c0_456 = arith.constant 0 : index
    %c0_457 = arith.constant 0 : index
    %753 = vector.load %arg5[%c5_455, %c0_456, %c0_457] : memref<9x8x256xf32, #tpu.memory_space<vmem>>, vector<1x8x256xf32>
    %754 = vector.shape_cast %753 : vector<1x8x256xf32> to vector<8x256xf32>
    %755 = arith.mulf %754, %752 : vector<8x256xf32>
    %c241_i32_458 = arith.constant 241 : i32
    %756 = tpu.dynamic_rotate %735 by %c241_i32_458 dim 1 : vector<8x256xf32>, i32 -> vector<8x256xf32>
    %c6_459 = arith.constant 6 : index
    %c0_460 = arith.constant 0 : index
    %c0_461 = arith.constant 0 : index
    %757 = vector.load %arg5[%c6_459, %c0_460, %c0_461] : memref<9x8x256xf32, #tpu.memory_space<vmem>>, vector<1x8x256xf32>
    %758 = vector.shape_cast %757 : vector<1x8x256xf32> to vector<8x256xf32>
    %759 = arith.mulf %758, %756 : vector<8x256xf32>
    %c240_i32_462 = arith.constant 240 : i32
    %760 = tpu.dynamic_rotate %735 by %c240_i32_462 dim 1 : vector<8x256xf32>, i32 -> vector<8x256xf32>
    %c7_463 = arith.constant 7 : index
    %c0_464 = arith.constant 0 : index
    %c0_465 = arith.constant 0 : index
    %761 = vector.load %arg5[%c7_463, %c0_464, %c0_465] : memref<9x8x256xf32, #tpu.memory_space<vmem>>, vector<1x8x256xf32>
    %762 = vector.shape_cast %761 : vector<1x8x256xf32> to vector<8x256xf32>
    %763 = arith.mulf %762, %760 : vector<8x256xf32>
    %c239_i32_466 = arith.constant 239 : i32
    %764 = tpu.dynamic_rotate %735 by %c239_i32_466 dim 1 : vector<8x256xf32>, i32 -> vector<8x256xf32>
    %c8_467 = arith.constant 8 : index
    %c0_468 = arith.constant 0 : index
    %c0_469 = arith.constant 0 : index
    %765 = vector.load %arg5[%c8_467, %c0_468, %c0_469] : memref<9x8x256xf32, #tpu.memory_space<vmem>>, vector<1x8x256xf32>
    %766 = vector.shape_cast %765 : vector<1x8x256xf32> to vector<8x256xf32>
    %767 = arith.mulf %766, %764 : vector<8x256xf32>
    %768 = tpu.concatenate %739, %743, %747, %751, %735, %755, %759, %763, %767, %1 in 0 : vector<8x256xf32>, vector<8x256xf32>, vector<8x256xf32>, vector<8x256xf32>, vector<8x256xf32>, vector<8x256xf32>, vector<8x256xf32>, vector<8x256xf32>, vector<8x256xf32>, vector<8x256xf32> -> vector<80x256xf32>
    %c0_470 = arith.constant 0 : index
    %c0_471 = arith.constant 0 : index
    %769 = vector.load %arg6[%c0_470, %c0_471] : memref<8x80xf32, #tpu.memory_space<vmem>>, vector<8x80xf32>
    %cst_472 = arith.constant dense<0.000000e+00> : vector<8x256xf32>
    %770 = tpu.matmul %769, %768, %cst_472 {dimension_numbers = #tpu.dot_dimension_numbers<[1], [0], [0], [1], [0, 0, 1, 1], [], []>} : vector<8x80xf32>, vector<80x256xf32>, vector<8x256xf32> -> vector<8x256xf32>
    %771 = arith.negf %770 : vector<8x256xf32>
    %772 = math.exp %771 : vector<8x256xf32>
    %cst_473 = arith.constant 1.000000e+00 : f32
    %773 = vector.broadcast %cst_473 : f32 to vector<8x256xf32>
    %774 = arith.addf %773, %772 : vector<8x256xf32>
    %775 = arith.divf %773, %774 : vector<8x256xf32>
    %776 = arith.mulf %770, %775 : vector<8x256xf32>
    %c17_i32_474 = arith.constant 17 : i32
    %777 = tpu.dynamic_rotate %776 by %c17_i32_474 dim 1 : vector<8x256xf32>, i32 -> vector<8x256xf32>
    %c0_475 = arith.constant 0 : index
    %c0_476 = arith.constant 0 : index
    %c0_477 = arith.constant 0 : index
    %778 = vector.load %arg5[%c0_475, %c0_476, %c0_477] : memref<9x8x256xf32, #tpu.memory_space<vmem>>, vector<1x8x256xf32>
    %779 = vector.shape_cast %778 : vector<1x8x256xf32> to vector<8x256xf32>
    %780 = arith.mulf %779, %777 : vector<8x256xf32>
    %c16_i32_478 = arith.constant 16 : i32
    %781 = tpu.dynamic_rotate %776 by %c16_i32_478 dim 1 : vector<8x256xf32>, i32 -> vector<8x256xf32>
    %c1_479 = arith.constant 1 : index
    %c0_480 = arith.constant 0 : index
    %c0_481 = arith.constant 0 : index
    %782 = vector.load %arg5[%c1_479, %c0_480, %c0_481] : memref<9x8x256xf32, #tpu.memory_space<vmem>>, vector<1x8x256xf32>
    %783 = vector.shape_cast %782 : vector<1x8x256xf32> to vector<8x256xf32>
    %784 = arith.mulf %783, %781 : vector<8x256xf32>
    %c15_i32_482 = arith.constant 15 : i32
    %785 = tpu.dynamic_rotate %776 by %c15_i32_482 dim 1 : vector<8x256xf32>, i32 -> vector<8x256xf32>
    %c2_483 = arith.constant 2 : index
    %c0_484 = arith.constant 0 : index
    %c0_485 = arith.constant 0 : index
    %786 = vector.load %arg5[%c2_483, %c0_484, %c0_485] : memref<9x8x256xf32, #tpu.memory_space<vmem>>, vector<1x8x256xf32>
    %787 = vector.shape_cast %786 : vector<1x8x256xf32> to vector<8x256xf32>
    %788 = arith.mulf %787, %785 : vector<8x256xf32>
    %c1_i32_486 = arith.constant 1 : i32
    %789 = tpu.dynamic_rotate %776 by %c1_i32_486 dim 1 : vector<8x256xf32>, i32 -> vector<8x256xf32>
    %c3_487 = arith.constant 3 : index
    %c0_488 = arith.constant 0 : index
    %c0_489 = arith.constant 0 : index
    %790 = vector.load %arg5[%c3_487, %c0_488, %c0_489] : memref<9x8x256xf32, #tpu.memory_space<vmem>>, vector<1x8x256xf32>
    %791 = vector.shape_cast %790 : vector<1x8x256xf32> to vector<8x256xf32>
    %792 = arith.mulf %791, %789 : vector<8x256xf32>
    %c255_i32_490 = arith.constant 255 : i32
    %793 = tpu.dynamic_rotate %776 by %c255_i32_490 dim 1 : vector<8x256xf32>, i32 -> vector<8x256xf32>
    %c5_491 = arith.constant 5 : index
    %c0_492 = arith.constant 0 : index
    %c0_493 = arith.constant 0 : index
    %794 = vector.load %arg5[%c5_491, %c0_492, %c0_493] : memref<9x8x256xf32, #tpu.memory_space<vmem>>, vector<1x8x256xf32>
    %795 = vector.shape_cast %794 : vector<1x8x256xf32> to vector<8x256xf32>
    %796 = arith.mulf %795, %793 : vector<8x256xf32>
    %c241_i32_494 = arith.constant 241 : i32
    %797 = tpu.dynamic_rotate %776 by %c241_i32_494 dim 1 : vector<8x256xf32>, i32 -> vector<8x256xf32>
    %c6_495 = arith.constant 6 : index
    %c0_496 = arith.constant 0 : index
    %c0_497 = arith.constant 0 : index
    %798 = vector.load %arg5[%c6_495, %c0_496, %c0_497] : memref<9x8x256xf32, #tpu.memory_space<vmem>>, vector<1x8x256xf32>
    %799 = vector.shape_cast %798 : vector<1x8x256xf32> to vector<8x256xf32>
    %800 = arith.mulf %799, %797 : vector<8x256xf32>
    %c240_i32_498 = arith.constant 240 : i32
    %801 = tpu.dynamic_rotate %776 by %c240_i32_498 dim 1 : vector<8x256xf32>, i32 -> vector<8x256xf32>
    %c7_499 = arith.constant 7 : index
    %c0_500 = arith.constant 0 : index
    %c0_501 = arith.constant 0 : index
    %802 = vector.load %arg5[%c7_499, %c0_500, %c0_501] : memref<9x8x256xf32, #tpu.memory_space<vmem>>, vector<1x8x256xf32>
    %803 = vector.shape_cast %802 : vector<1x8x256xf32> to vector<8x256xf32>
    %804 = arith.mulf %803, %801 : vector<8x256xf32>
    %c239_i32_502 = arith.constant 239 : i32
    %805 = tpu.dynamic_rotate %776 by %c239_i32_502 dim 1 : vector<8x256xf32>, i32 -> vector<8x256xf32>
    %c8_503 = arith.constant 8 : index
    %c0_504 = arith.constant 0 : index
    %c0_505 = arith.constant 0 : index
    %806 = vector.load %arg5[%c8_503, %c0_504, %c0_505] : memref<9x8x256xf32, #tpu.memory_space<vmem>>, vector<1x8x256xf32>
    %807 = vector.shape_cast %806 : vector<1x8x256xf32> to vector<8x256xf32>
    %808 = arith.mulf %807, %805 : vector<8x256xf32>
    %809 = tpu.concatenate %780, %784, %788, %792, %776, %796, %800, %804, %808, %1 in 0 : vector<8x256xf32>, vector<8x256xf32>, vector<8x256xf32>, vector<8x256xf32>, vector<8x256xf32>, vector<8x256xf32>, vector<8x256xf32>, vector<8x256xf32>, vector<8x256xf32>, vector<8x256xf32> -> vector<80x256xf32>
    %c0_506 = arith.constant 0 : index
    %c0_507 = arith.constant 0 : index
    %810 = vector.load %arg7[%c0_506, %c0_507] : memref<8x80xf32, #tpu.memory_space<vmem>>, vector<8x80xf32>
    %cst_508 = arith.constant dense<0.000000e+00> : vector<8x256xf32>
    %811 = tpu.matmul %810, %809, %cst_508 {dimension_numbers = #tpu.dot_dimension_numbers<[1], [0], [0], [1], [0, 0, 1, 1], [], []>} : vector<8x80xf32>, vector<80x256xf32>, vector<8x256xf32> -> vector<8x256xf32>
    %812 = arith.addf %656, %811 : vector<8x256xf32>
    %813 = arith.index_cast %c4_i32 : i32 to index
    %c0_509 = arith.constant 0 : index
    %c0_510 = arith.constant 0 : index
    %814 = vector.load %arg8[%813, %c0_509, %c0_510] : memref<8x8x256xf32, #tpu.memory_space<vmem>>, vector<1x8x256xf32>
    %815 = vector.shape_cast %814 : vector<1x8x256xf32> to vector<8x256xf32>
    %816 = vector.shape_cast %812 : vector<8x256xf32> to vector<1x8x256xf32>
    tpu.vector_store %arg8[%813, %c0_509, %c0_510], %816 {strides = array<i32>} : memref<8x8x256xf32, #tpu.memory_space<vmem>>, vector<1x8x256xf32>,
    %c5_i32 = arith.constant 5 : i32
    %817 = arith.index_cast %c5_i32 : i32 to index
    %c0_511 = arith.constant 0 : index
    %c0_512 = arith.constant 0 : index
    %818 = vector.load %arg2[%817, %c0_511, %c0_512] : memref<8x8x256xf32, #tpu.memory_space<vmem>>, vector<1x8x256xf32>
    %819 = vector.shape_cast %818 : vector<1x8x256xf32> to vector<8x256xf32>
    %c0_513 = arith.constant 0 : index
    %c0_514 = arith.constant 0 : index
    %820 = vector.load %arg4[%c0_513, %c0_514] : memref<8x1xf32, #tpu.memory_space<vmem>>, vector<8x1xf32>
    %c0_515 = arith.constant 0 : index
    %c0_516 = arith.constant 0 : index
    %821 = vector.load %arg3[%c0_515, %c0_516] : memref<8x8xf32, #tpu.memory_space<vmem>>, vector<8x1xf32>
    %822 = arith.addi %0, %c5_i32 : i32
    %823 = arith.index_cast %822 : i32 to index
    %c0_517 = arith.constant 0 : index
    %824 = memref.load %arg1[%823, %c0_517] : memref<16x8xf32, #tpu.memory_space<smem>>
    %825 = vector.broadcast %824 : f32 to vector<8x1xf32>
    %826 = arith.mulf %821, %825 : vector<8x1xf32>
    %827 = arith.addf %820, %826 : vector<8x1xf32>
    %c0_518 = arith.constant 0 : index
    %c1_519 = arith.constant 1 : index
    %828 = vector.load %arg3[%c0_518, %c1_519] : memref<8x8xf32, #tpu.memory_space<vmem>>, vector<8x1xf32>
    %829 = arith.addi %0, %c5_i32 : i32
    %830 = arith.index_cast %829 : i32 to index
    %c1_520 = arith.constant 1 : index
    %831 = memref.load %arg1[%830, %c1_520] : memref<16x8xf32, #tpu.memory_space<smem>>
    %832 = vector.broadcast %831 : f32 to vector<8x1xf32>
    %833 = arith.mulf %828, %832 : vector<8x1xf32>
    %834 = arith.addf %827, %833 : vector<8x1xf32>
    %c0_521 = arith.constant 0 : index
    %c2_522 = arith.constant 2 : index
    %835 = vector.load %arg3[%c0_521, %c2_522] : memref<8x8xf32, #tpu.memory_space<vmem>>, vector<8x1xf32>
    %836 = arith.addi %0, %c5_i32 : i32
    %837 = arith.index_cast %836 : i32 to index
    %c2_523 = arith.constant 2 : index
    %838 = memref.load %arg1[%837, %c2_523] : memref<16x8xf32, #tpu.memory_space<smem>>
    %839 = vector.broadcast %838 : f32 to vector<8x1xf32>
    %840 = arith.mulf %835, %839 : vector<8x1xf32>
    %841 = arith.addf %834, %840 : vector<8x1xf32>
    %c0_524 = arith.constant 0 : index
    %c3_525 = arith.constant 3 : index
    %842 = vector.load %arg3[%c0_524, %c3_525] : memref<8x8xf32, #tpu.memory_space<vmem>>, vector<8x1xf32>
    %843 = arith.addi %0, %c5_i32 : i32
    %844 = arith.index_cast %843 : i32 to index
    %c3_526 = arith.constant 3 : index
    %845 = memref.load %arg1[%844, %c3_526] : memref<16x8xf32, #tpu.memory_space<smem>>
    %846 = vector.broadcast %845 : f32 to vector<8x1xf32>
    %847 = arith.mulf %842, %846 : vector<8x1xf32>
    %848 = arith.addf %841, %847 : vector<8x1xf32>
    %c0_527 = arith.constant 0 : index
    %c4_528 = arith.constant 4 : index
    %849 = vector.load %arg3[%c0_527, %c4_528] : memref<8x8xf32, #tpu.memory_space<vmem>>, vector<8x1xf32>
    %850 = arith.addi %0, %c5_i32 : i32
    %851 = arith.index_cast %850 : i32 to index
    %c4_529 = arith.constant 4 : index
    %852 = memref.load %arg1[%851, %c4_529] : memref<16x8xf32, #tpu.memory_space<smem>>
    %853 = vector.broadcast %852 : f32 to vector<8x1xf32>
    %854 = arith.mulf %849, %853 : vector<8x1xf32>
    %855 = arith.addf %848, %854 : vector<8x1xf32>
    %c0_530 = arith.constant 0 : index
    %c5_531 = arith.constant 5 : index
    %856 = vector.load %arg3[%c0_530, %c5_531] : memref<8x8xf32, #tpu.memory_space<vmem>>, vector<8x1xf32>
    %857 = arith.addi %0, %c5_i32 : i32
    %858 = arith.index_cast %857 : i32 to index
    %c5_532 = arith.constant 5 : index
    %859 = memref.load %arg1[%858, %c5_532] : memref<16x8xf32, #tpu.memory_space<smem>>
    %860 = vector.broadcast %859 : f32 to vector<8x1xf32>
    %861 = arith.mulf %856, %860 : vector<8x1xf32>
    %862 = arith.addf %855, %861 : vector<8x1xf32>
    %c0_533 = arith.constant 0 : index
    %c6_534 = arith.constant 6 : index
    %863 = vector.load %arg3[%c0_533, %c6_534] : memref<8x8xf32, #tpu.memory_space<vmem>>, vector<8x1xf32>
    %864 = arith.addi %0, %c5_i32 : i32
    %865 = arith.index_cast %864 : i32 to index
    %c6_535 = arith.constant 6 : index
    %866 = memref.load %arg1[%865, %c6_535] : memref<16x8xf32, #tpu.memory_space<smem>>
    %867 = vector.broadcast %866 : f32 to vector<8x1xf32>
    %868 = arith.mulf %863, %867 : vector<8x1xf32>
    %869 = arith.addf %862, %868 : vector<8x1xf32>
    %c0_536 = arith.constant 0 : index
    %c7_537 = arith.constant 7 : index
    %870 = vector.load %arg3[%c0_536, %c7_537] : memref<8x8xf32, #tpu.memory_space<vmem>>, vector<8x1xf32>
    %871 = arith.addi %0, %c5_i32 : i32
    %872 = arith.index_cast %871 : i32 to index
    %c7_538 = arith.constant 7 : index
    %873 = memref.load %arg1[%872, %c7_538] : memref<16x8xf32, #tpu.memory_space<smem>>
    %874 = vector.broadcast %873 : f32 to vector<8x1xf32>
    %875 = arith.mulf %870, %874 : vector<8x1xf32>
    %876 = arith.addf %869, %875 : vector<8x1xf32>
    %877 = vector.broadcast %876 : vector<8x1xf32> to vector<8x256xf32>
    %878 = arith.addf %819, %877 : vector<8x256xf32>
    %cst_539 = arith.constant dense<0.000000e+00> : vector<256xf32>
    %879 = vector.multi_reduction <add>, %878, %cst_539 [0] : vector<8x256xf32> to vector<256xf32>
    %880 = vector.shape_cast %879 : vector<256xf32> to vector<1x256xf32>
    %881 = arith.mulf %878, %878 : vector<8x256xf32>
    %cst_540 = arith.constant dense<0.000000e+00> : vector<256xf32>
    %882 = vector.multi_reduction <add>, %881, %cst_540 [0] : vector<8x256xf32> to vector<256xf32>
    %883 = vector.shape_cast %882 : vector<256xf32> to vector<1x256xf32>
    %884 = vector.broadcast %cst_0 : f32 to vector<1x256xf32>
    %885 = arith.mulf %880, %884 : vector<1x256xf32>
    %cst_541 = arith.constant 8.000000e+00 : f32
    %886 = vector.broadcast %cst_541 : f32 to vector<1x256xf32>
    %887 = arith.mulf %886, %885 : vector<1x256xf32>
    %888 = arith.mulf %887, %885 : vector<1x256xf32>
    %889 = arith.subf %883, %888 : vector<1x256xf32>
    %890 = vector.broadcast %cst_1 : f32 to vector<1x256xf32>
    %891 = arith.mulf %889, %890 : vector<1x256xf32>
    %892 = vector.broadcast %885 : vector<1x256xf32> to vector<8x256xf32>
    %893 = arith.subf %878, %892 : vector<8x256xf32>
    %cst_542 = arith.constant 9.99999974E-6 : f32
    %894 = vector.broadcast %cst_542 : f32 to vector<1x256xf32>
    %895 = arith.addf %891, %894 : vector<1x256xf32>
    %896 = math.rsqrt %895 : vector<1x256xf32>
    %897 = vector.broadcast %896 : vector<1x256xf32> to vector<8x256xf32>
    %898 = arith.mulf %893, %897 : vector<8x256xf32>
    %c17_i32_543 = arith.constant 17 : i32
    %899 = tpu.dynamic_rotate %898 by %c17_i32_543 dim 1 : vector<8x256xf32>, i32 -> vector<8x256xf32>
    %c0_544 = arith.constant 0 : index
    %c0_545 = arith.constant 0 : index
    %c0_546 = arith.constant 0 : index
    %900 = vector.load %arg5[%c0_544, %c0_545, %c0_546] : memref<9x8x256xf32, #tpu.memory_space<vmem>>, vector<1x8x256xf32>
    %901 = vector.shape_cast %900 : vector<1x8x256xf32> to vector<8x256xf32>
    %902 = arith.mulf %901, %899 : vector<8x256xf32>
    %c16_i32_547 = arith.constant 16 : i32
    %903 = tpu.dynamic_rotate %898 by %c16_i32_547 dim 1 : vector<8x256xf32>, i32 -> vector<8x256xf32>
    %c1_548 = arith.constant 1 : index
    %c0_549 = arith.constant 0 : index
    %c0_550 = arith.constant 0 : index
    %904 = vector.load %arg5[%c1_548, %c0_549, %c0_550] : memref<9x8x256xf32, #tpu.memory_space<vmem>>, vector<1x8x256xf32>
    %905 = vector.shape_cast %904 : vector<1x8x256xf32> to vector<8x256xf32>
    %906 = arith.mulf %905, %903 : vector<8x256xf32>
    %c15_i32_551 = arith.constant 15 : i32
    %907 = tpu.dynamic_rotate %898 by %c15_i32_551 dim 1 : vector<8x256xf32>, i32 -> vector<8x256xf32>
    %c2_552 = arith.constant 2 : index
    %c0_553 = arith.constant 0 : index
    %c0_554 = arith.constant 0 : index
    %908 = vector.load %arg5[%c2_552, %c0_553, %c0_554] : memref<9x8x256xf32, #tpu.memory_space<vmem>>, vector<1x8x256xf32>
    %909 = vector.shape_cast %908 : vector<1x8x256xf32> to vector<8x256xf32>
    %910 = arith.mulf %909, %907 : vector<8x256xf32>
    %c1_i32_555 = arith.constant 1 : i32
    %911 = tpu.dynamic_rotate %898 by %c1_i32_555 dim 1 : vector<8x256xf32>, i32 -> vector<8x256xf32>
    %c3_556 = arith.constant 3 : index
    %c0_557 = arith.constant 0 : index
    %c0_558 = arith.constant 0 : index
    %912 = vector.load %arg5[%c3_556, %c0_557, %c0_558] : memref<9x8x256xf32, #tpu.memory_space<vmem>>, vector<1x8x256xf32>
    %913 = vector.shape_cast %912 : vector<1x8x256xf32> to vector<8x256xf32>
    %914 = arith.mulf %913, %911 : vector<8x256xf32>
    %c255_i32_559 = arith.constant 255 : i32
    %915 = tpu.dynamic_rotate %898 by %c255_i32_559 dim 1 : vector<8x256xf32>, i32 -> vector<8x256xf32>
    %c5_560 = arith.constant 5 : index
    %c0_561 = arith.constant 0 : index
    %c0_562 = arith.constant 0 : index
    %916 = vector.load %arg5[%c5_560, %c0_561, %c0_562] : memref<9x8x256xf32, #tpu.memory_space<vmem>>, vector<1x8x256xf32>
    %917 = vector.shape_cast %916 : vector<1x8x256xf32> to vector<8x256xf32>
    %918 = arith.mulf %917, %915 : vector<8x256xf32>
    %c241_i32_563 = arith.constant 241 : i32
    %919 = tpu.dynamic_rotate %898 by %c241_i32_563 dim 1 : vector<8x256xf32>, i32 -> vector<8x256xf32>
    %c6_564 = arith.constant 6 : index
    %c0_565 = arith.constant 0 : index
    %c0_566 = arith.constant 0 : index
    %920 = vector.load %arg5[%c6_564, %c0_565, %c0_566] : memref<9x8x256xf32, #tpu.memory_space<vmem>>, vector<1x8x256xf32>
    %921 = vector.shape_cast %920 : vector<1x8x256xf32> to vector<8x256xf32>
    %922 = arith.mulf %921, %919 : vector<8x256xf32>
    %c240_i32_567 = arith.constant 240 : i32
    %923 = tpu.dynamic_rotate %898 by %c240_i32_567 dim 1 : vector<8x256xf32>, i32 -> vector<8x256xf32>
    %c7_568 = arith.constant 7 : index
    %c0_569 = arith.constant 0 : index
    %c0_570 = arith.constant 0 : index
    %924 = vector.load %arg5[%c7_568, %c0_569, %c0_570] : memref<9x8x256xf32, #tpu.memory_space<vmem>>, vector<1x8x256xf32>
    %925 = vector.shape_cast %924 : vector<1x8x256xf32> to vector<8x256xf32>
    %926 = arith.mulf %925, %923 : vector<8x256xf32>
    %c239_i32_571 = arith.constant 239 : i32
    %927 = tpu.dynamic_rotate %898 by %c239_i32_571 dim 1 : vector<8x256xf32>, i32 -> vector<8x256xf32>
    %c8_572 = arith.constant 8 : index
    %c0_573 = arith.constant 0 : index
    %c0_574 = arith.constant 0 : index
    %928 = vector.load %arg5[%c8_572, %c0_573, %c0_574] : memref<9x8x256xf32, #tpu.memory_space<vmem>>, vector<1x8x256xf32>
    %929 = vector.shape_cast %928 : vector<1x8x256xf32> to vector<8x256xf32>
    %930 = arith.mulf %929, %927 : vector<8x256xf32>
    %931 = tpu.concatenate %902, %906, %910, %914, %898, %918, %922, %926, %930, %1 in 0 : vector<8x256xf32>, vector<8x256xf32>, vector<8x256xf32>, vector<8x256xf32>, vector<8x256xf32>, vector<8x256xf32>, vector<8x256xf32>, vector<8x256xf32>, vector<8x256xf32>, vector<8x256xf32> -> vector<80x256xf32>
    %c0_575 = arith.constant 0 : index
    %c0_576 = arith.constant 0 : index
    %932 = vector.load %arg6[%c0_575, %c0_576] : memref<8x80xf32, #tpu.memory_space<vmem>>, vector<8x80xf32>
    %cst_577 = arith.constant dense<0.000000e+00> : vector<8x256xf32>
    %933 = tpu.matmul %932, %931, %cst_577 {dimension_numbers = #tpu.dot_dimension_numbers<[1], [0], [0], [1], [0, 0, 1, 1], [], []>} : vector<8x80xf32>, vector<80x256xf32>, vector<8x256xf32> -> vector<8x256xf32>
    %934 = arith.negf %933 : vector<8x256xf32>
    %935 = math.exp %934 : vector<8x256xf32>
    %cst_578 = arith.constant 1.000000e+00 : f32
    %936 = vector.broadcast %cst_578 : f32 to vector<8x256xf32>
    %937 = arith.addf %936, %935 : vector<8x256xf32>
    %938 = arith.divf %936, %937 : vector<8x256xf32>
    %939 = arith.mulf %933, %938 : vector<8x256xf32>
    %c17_i32_579 = arith.constant 17 : i32
    %940 = tpu.dynamic_rotate %939 by %c17_i32_579 dim 1 : vector<8x256xf32>, i32 -> vector<8x256xf32>
    %c0_580 = arith.constant 0 : index
    %c0_581 = arith.constant 0 : index
    %c0_582 = arith.constant 0 : index
    %941 = vector.load %arg5[%c0_580, %c0_581, %c0_582] : memref<9x8x256xf32, #tpu.memory_space<vmem>>, vector<1x8x256xf32>
    %942 = vector.shape_cast %941 : vector<1x8x256xf32> to vector<8x256xf32>
    %943 = arith.mulf %942, %940 : vector<8x256xf32>
    %c16_i32_583 = arith.constant 16 : i32
    %944 = tpu.dynamic_rotate %939 by %c16_i32_583 dim 1 : vector<8x256xf32>, i32 -> vector<8x256xf32>
    %c1_584 = arith.constant 1 : index
    %c0_585 = arith.constant 0 : index
    %c0_586 = arith.constant 0 : index
    %945 = vector.load %arg5[%c1_584, %c0_585, %c0_586] : memref<9x8x256xf32, #tpu.memory_space<vmem>>, vector<1x8x256xf32>
    %946 = vector.shape_cast %945 : vector<1x8x256xf32> to vector<8x256xf32>
    %947 = arith.mulf %946, %944 : vector<8x256xf32>
    %c15_i32_587 = arith.constant 15 : i32
    %948 = tpu.dynamic_rotate %939 by %c15_i32_587 dim 1 : vector<8x256xf32>, i32 -> vector<8x256xf32>
    %c2_588 = arith.constant 2 : index
    %c0_589 = arith.constant 0 : index
    %c0_590 = arith.constant 0 : index
    %949 = vector.load %arg5[%c2_588, %c0_589, %c0_590] : memref<9x8x256xf32, #tpu.memory_space<vmem>>, vector<1x8x256xf32>
    %950 = vector.shape_cast %949 : vector<1x8x256xf32> to vector<8x256xf32>
    %951 = arith.mulf %950, %948 : vector<8x256xf32>
    %c1_i32_591 = arith.constant 1 : i32
    %952 = tpu.dynamic_rotate %939 by %c1_i32_591 dim 1 : vector<8x256xf32>, i32 -> vector<8x256xf32>
    %c3_592 = arith.constant 3 : index
    %c0_593 = arith.constant 0 : index
    %c0_594 = arith.constant 0 : index
    %953 = vector.load %arg5[%c3_592, %c0_593, %c0_594] : memref<9x8x256xf32, #tpu.memory_space<vmem>>, vector<1x8x256xf32>
    %954 = vector.shape_cast %953 : vector<1x8x256xf32> to vector<8x256xf32>
    %955 = arith.mulf %954, %952 : vector<8x256xf32>
    %c255_i32_595 = arith.constant 255 : i32
    %956 = tpu.dynamic_rotate %939 by %c255_i32_595 dim 1 : vector<8x256xf32>, i32 -> vector<8x256xf32>
    %c5_596 = arith.constant 5 : index
    %c0_597 = arith.constant 0 : index
    %c0_598 = arith.constant 0 : index
    %957 = vector.load %arg5[%c5_596, %c0_597, %c0_598] : memref<9x8x256xf32, #tpu.memory_space<vmem>>, vector<1x8x256xf32>
    %958 = vector.shape_cast %957 : vector<1x8x256xf32> to vector<8x256xf32>
    %959 = arith.mulf %958, %956 : vector<8x256xf32>
    %c241_i32_599 = arith.constant 241 : i32
    %960 = tpu.dynamic_rotate %939 by %c241_i32_599 dim 1 : vector<8x256xf32>, i32 -> vector<8x256xf32>
    %c6_600 = arith.constant 6 : index
    %c0_601 = arith.constant 0 : index
    %c0_602 = arith.constant 0 : index
    %961 = vector.load %arg5[%c6_600, %c0_601, %c0_602] : memref<9x8x256xf32, #tpu.memory_space<vmem>>, vector<1x8x256xf32>
    %962 = vector.shape_cast %961 : vector<1x8x256xf32> to vector<8x256xf32>
    %963 = arith.mulf %962, %960 : vector<8x256xf32>
    %c240_i32_603 = arith.constant 240 : i32
    %964 = tpu.dynamic_rotate %939 by %c240_i32_603 dim 1 : vector<8x256xf32>, i32 -> vector<8x256xf32>
    %c7_604 = arith.constant 7 : index
    %c0_605 = arith.constant 0 : index
    %c0_606 = arith.constant 0 : index
    %965 = vector.load %arg5[%c7_604, %c0_605, %c0_606] : memref<9x8x256xf32, #tpu.memory_space<vmem>>, vector<1x8x256xf32>
    %966 = vector.shape_cast %965 : vector<1x8x256xf32> to vector<8x256xf32>
    %967 = arith.mulf %966, %964 : vector<8x256xf32>
    %c239_i32_607 = arith.constant 239 : i32
    %968 = tpu.dynamic_rotate %939 by %c239_i32_607 dim 1 : vector<8x256xf32>, i32 -> vector<8x256xf32>
    %c8_608 = arith.constant 8 : index
    %c0_609 = arith.constant 0 : index
    %c0_610 = arith.constant 0 : index
    %969 = vector.load %arg5[%c8_608, %c0_609, %c0_610] : memref<9x8x256xf32, #tpu.memory_space<vmem>>, vector<1x8x256xf32>
    %970 = vector.shape_cast %969 : vector<1x8x256xf32> to vector<8x256xf32>
    %971 = arith.mulf %970, %968 : vector<8x256xf32>
    %972 = tpu.concatenate %943, %947, %951, %955, %939, %959, %963, %967, %971, %1 in 0 : vector<8x256xf32>, vector<8x256xf32>, vector<8x256xf32>, vector<8x256xf32>, vector<8x256xf32>, vector<8x256xf32>, vector<8x256xf32>, vector<8x256xf32>, vector<8x256xf32>, vector<8x256xf32> -> vector<80x256xf32>
    %c0_611 = arith.constant 0 : index
    %c0_612 = arith.constant 0 : index
    %973 = vector.load %arg7[%c0_611, %c0_612] : memref<8x80xf32, #tpu.memory_space<vmem>>, vector<8x80xf32>
    %cst_613 = arith.constant dense<0.000000e+00> : vector<8x256xf32>
    %974 = tpu.matmul %973, %972, %cst_613 {dimension_numbers = #tpu.dot_dimension_numbers<[1], [0], [0], [1], [0, 0, 1, 1], [], []>} : vector<8x80xf32>, vector<80x256xf32>, vector<8x256xf32> -> vector<8x256xf32>
    %975 = arith.addf %819, %974 : vector<8x256xf32>
    %976 = arith.index_cast %c5_i32 : i32 to index
    %c0_614 = arith.constant 0 : index
    %c0_615 = arith.constant 0 : index
    %977 = vector.load %arg8[%976, %c0_614, %c0_615] : memref<8x8x256xf32, #tpu.memory_space<vmem>>, vector<1x8x256xf32>
    %978 = vector.shape_cast %977 : vector<1x8x256xf32> to vector<8x256xf32>
    %979 = vector.shape_cast %975 : vector<8x256xf32> to vector<1x8x256xf32>
    tpu.vector_store %arg8[%976, %c0_614, %c0_615], %979 {strides = array<i32>} : memref<8x8x256xf32, #tpu.memory_space<vmem>>, vector<1x8x256xf32>,
    %c6_i32 = arith.constant 6 : i32
    %980 = arith.index_cast %c6_i32 : i32 to index
    %c0_616 = arith.constant 0 : index
    %c0_617 = arith.constant 0 : index
    %981 = vector.load %arg2[%980, %c0_616, %c0_617] : memref<8x8x256xf32, #tpu.memory_space<vmem>>, vector<1x8x256xf32>
    %982 = vector.shape_cast %981 : vector<1x8x256xf32> to vector<8x256xf32>
    %c0_618 = arith.constant 0 : index
    %c0_619 = arith.constant 0 : index
    %983 = vector.load %arg4[%c0_618, %c0_619] : memref<8x1xf32, #tpu.memory_space<vmem>>, vector<8x1xf32>
    %c0_620 = arith.constant 0 : index
    %c0_621 = arith.constant 0 : index
    %984 = vector.load %arg3[%c0_620, %c0_621] : memref<8x8xf32, #tpu.memory_space<vmem>>, vector<8x1xf32>
    %985 = arith.addi %0, %c6_i32 : i32
    %986 = arith.index_cast %985 : i32 to index
    %c0_622 = arith.constant 0 : index
    %987 = memref.load %arg1[%986, %c0_622] : memref<16x8xf32, #tpu.memory_space<smem>>
    %988 = vector.broadcast %987 : f32 to vector<8x1xf32>
    %989 = arith.mulf %984, %988 : vector<8x1xf32>
    %990 = arith.addf %983, %989 : vector<8x1xf32>
    %c0_623 = arith.constant 0 : index
    %c1_624 = arith.constant 1 : index
    %991 = vector.load %arg3[%c0_623, %c1_624] : memref<8x8xf32, #tpu.memory_space<vmem>>, vector<8x1xf32>
    %992 = arith.addi %0, %c6_i32 : i32
    %993 = arith.index_cast %992 : i32 to index
    %c1_625 = arith.constant 1 : index
    %994 = memref.load %arg1[%993, %c1_625] : memref<16x8xf32, #tpu.memory_space<smem>>
    %995 = vector.broadcast %994 : f32 to vector<8x1xf32>
    %996 = arith.mulf %991, %995 : vector<8x1xf32>
    %997 = arith.addf %990, %996 : vector<8x1xf32>
    %c0_626 = arith.constant 0 : index
    %c2_627 = arith.constant 2 : index
    %998 = vector.load %arg3[%c0_626, %c2_627] : memref<8x8xf32, #tpu.memory_space<vmem>>, vector<8x1xf32>
    %999 = arith.addi %0, %c6_i32 : i32
    %1000 = arith.index_cast %999 : i32 to index
    %c2_628 = arith.constant 2 : index
    %1001 = memref.load %arg1[%1000, %c2_628] : memref<16x8xf32, #tpu.memory_space<smem>>
    %1002 = vector.broadcast %1001 : f32 to vector<8x1xf32>
    %1003 = arith.mulf %998, %1002 : vector<8x1xf32>
    %1004 = arith.addf %997, %1003 : vector<8x1xf32>
    %c0_629 = arith.constant 0 : index
    %c3_630 = arith.constant 3 : index
    %1005 = vector.load %arg3[%c0_629, %c3_630] : memref<8x8xf32, #tpu.memory_space<vmem>>, vector<8x1xf32>
    %1006 = arith.addi %0, %c6_i32 : i32
    %1007 = arith.index_cast %1006 : i32 to index
    %c3_631 = arith.constant 3 : index
    %1008 = memref.load %arg1[%1007, %c3_631] : memref<16x8xf32, #tpu.memory_space<smem>>
    %1009 = vector.broadcast %1008 : f32 to vector<8x1xf32>
    %1010 = arith.mulf %1005, %1009 : vector<8x1xf32>
    %1011 = arith.addf %1004, %1010 : vector<8x1xf32>
    %c0_632 = arith.constant 0 : index
    %c4_633 = arith.constant 4 : index
    %1012 = vector.load %arg3[%c0_632, %c4_633] : memref<8x8xf32, #tpu.memory_space<vmem>>, vector<8x1xf32>
    %1013 = arith.addi %0, %c6_i32 : i32
    %1014 = arith.index_cast %1013 : i32 to index
    %c4_634 = arith.constant 4 : index
    %1015 = memref.load %arg1[%1014, %c4_634] : memref<16x8xf32, #tpu.memory_space<smem>>
    %1016 = vector.broadcast %1015 : f32 to vector<8x1xf32>
    %1017 = arith.mulf %1012, %1016 : vector<8x1xf32>
    %1018 = arith.addf %1011, %1017 : vector<8x1xf32>
    %c0_635 = arith.constant 0 : index
    %c5_636 = arith.constant 5 : index
    %1019 = vector.load %arg3[%c0_635, %c5_636] : memref<8x8xf32, #tpu.memory_space<vmem>>, vector<8x1xf32>
    %1020 = arith.addi %0, %c6_i32 : i32
    %1021 = arith.index_cast %1020 : i32 to index
    %c5_637 = arith.constant 5 : index
    %1022 = memref.load %arg1[%1021, %c5_637] : memref<16x8xf32, #tpu.memory_space<smem>>
    %1023 = vector.broadcast %1022 : f32 to vector<8x1xf32>
    %1024 = arith.mulf %1019, %1023 : vector<8x1xf32>
    %1025 = arith.addf %1018, %1024 : vector<8x1xf32>
    %c0_638 = arith.constant 0 : index
    %c6_639 = arith.constant 6 : index
    %1026 = vector.load %arg3[%c0_638, %c6_639] : memref<8x8xf32, #tpu.memory_space<vmem>>, vector<8x1xf32>
    %1027 = arith.addi %0, %c6_i32 : i32
    %1028 = arith.index_cast %1027 : i32 to index
    %c6_640 = arith.constant 6 : index
    %1029 = memref.load %arg1[%1028, %c6_640] : memref<16x8xf32, #tpu.memory_space<smem>>
    %1030 = vector.broadcast %1029 : f32 to vector<8x1xf32>
    %1031 = arith.mulf %1026, %1030 : vector<8x1xf32>
    %1032 = arith.addf %1025, %1031 : vector<8x1xf32>
    %c0_641 = arith.constant 0 : index
    %c7_642 = arith.constant 7 : index
    %1033 = vector.load %arg3[%c0_641, %c7_642] : memref<8x8xf32, #tpu.memory_space<vmem>>, vector<8x1xf32>
    %1034 = arith.addi %0, %c6_i32 : i32
    %1035 = arith.index_cast %1034 : i32 to index
    %c7_643 = arith.constant 7 : index
    %1036 = memref.load %arg1[%1035, %c7_643] : memref<16x8xf32, #tpu.memory_space<smem>>
    %1037 = vector.broadcast %1036 : f32 to vector<8x1xf32>
    %1038 = arith.mulf %1033, %1037 : vector<8x1xf32>
    %1039 = arith.addf %1032, %1038 : vector<8x1xf32>
    %1040 = vector.broadcast %1039 : vector<8x1xf32> to vector<8x256xf32>
    %1041 = arith.addf %982, %1040 : vector<8x256xf32>
    %cst_644 = arith.constant dense<0.000000e+00> : vector<256xf32>
    %1042 = vector.multi_reduction <add>, %1041, %cst_644 [0] : vector<8x256xf32> to vector<256xf32>
    %1043 = vector.shape_cast %1042 : vector<256xf32> to vector<1x256xf32>
    %1044 = arith.mulf %1041, %1041 : vector<8x256xf32>
    %cst_645 = arith.constant dense<0.000000e+00> : vector<256xf32>
    %1045 = vector.multi_reduction <add>, %1044, %cst_645 [0] : vector<8x256xf32> to vector<256xf32>
    %1046 = vector.shape_cast %1045 : vector<256xf32> to vector<1x256xf32>
    %1047 = vector.broadcast %cst_0 : f32 to vector<1x256xf32>
    %1048 = arith.mulf %1043, %1047 : vector<1x256xf32>
    %cst_646 = arith.constant 8.000000e+00 : f32
    %1049 = vector.broadcast %cst_646 : f32 to vector<1x256xf32>
    %1050 = arith.mulf %1049, %1048 : vector<1x256xf32>
    %1051 = arith.mulf %1050, %1048 : vector<1x256xf32>
    %1052 = arith.subf %1046, %1051 : vector<1x256xf32>
    %1053 = vector.broadcast %cst_1 : f32 to vector<1x256xf32>
    %1054 = arith.mulf %1052, %1053 : vector<1x256xf32>
    %1055 = vector.broadcast %1048 : vector<1x256xf32> to vector<8x256xf32>
    %1056 = arith.subf %1041, %1055 : vector<8x256xf32>
    %cst_647 = arith.constant 9.99999974E-6 : f32
    %1057 = vector.broadcast %cst_647 : f32 to vector<1x256xf32>
    %1058 = arith.addf %1054, %1057 : vector<1x256xf32>
    %1059 = math.rsqrt %1058 : vector<1x256xf32>
    %1060 = vector.broadcast %1059 : vector<1x256xf32> to vector<8x256xf32>
    %1061 = arith.mulf %1056, %1060 : vector<8x256xf32>
    %c17_i32_648 = arith.constant 17 : i32
    %1062 = tpu.dynamic_rotate %1061 by %c17_i32_648 dim 1 : vector<8x256xf32>, i32 -> vector<8x256xf32>
    %c0_649 = arith.constant 0 : index
    %c0_650 = arith.constant 0 : index
    %c0_651 = arith.constant 0 : index
    %1063 = vector.load %arg5[%c0_649, %c0_650, %c0_651] : memref<9x8x256xf32, #tpu.memory_space<vmem>>, vector<1x8x256xf32>
    %1064 = vector.shape_cast %1063 : vector<1x8x256xf32> to vector<8x256xf32>
    %1065 = arith.mulf %1064, %1062 : vector<8x256xf32>
    %c16_i32_652 = arith.constant 16 : i32
    %1066 = tpu.dynamic_rotate %1061 by %c16_i32_652 dim 1 : vector<8x256xf32>, i32 -> vector<8x256xf32>
    %c1_653 = arith.constant 1 : index
    %c0_654 = arith.constant 0 : index
    %c0_655 = arith.constant 0 : index
    %1067 = vector.load %arg5[%c1_653, %c0_654, %c0_655] : memref<9x8x256xf32, #tpu.memory_space<vmem>>, vector<1x8x256xf32>
    %1068 = vector.shape_cast %1067 : vector<1x8x256xf32> to vector<8x256xf32>
    %1069 = arith.mulf %1068, %1066 : vector<8x256xf32>
    %c15_i32_656 = arith.constant 15 : i32
    %1070 = tpu.dynamic_rotate %1061 by %c15_i32_656 dim 1 : vector<8x256xf32>, i32 -> vector<8x256xf32>
    %c2_657 = arith.constant 2 : index
    %c0_658 = arith.constant 0 : index
    %c0_659 = arith.constant 0 : index
    %1071 = vector.load %arg5[%c2_657, %c0_658, %c0_659] : memref<9x8x256xf32, #tpu.memory_space<vmem>>, vector<1x8x256xf32>
    %1072 = vector.shape_cast %1071 : vector<1x8x256xf32> to vector<8x256xf32>
    %1073 = arith.mulf %1072, %1070 : vector<8x256xf32>
    %c1_i32_660 = arith.constant 1 : i32
    %1074 = tpu.dynamic_rotate %1061 by %c1_i32_660 dim 1 : vector<8x256xf32>, i32 -> vector<8x256xf32>
    %c3_661 = arith.constant 3 : index
    %c0_662 = arith.constant 0 : index
    %c0_663 = arith.constant 0 : index
    %1075 = vector.load %arg5[%c3_661, %c0_662, %c0_663] : memref<9x8x256xf32, #tpu.memory_space<vmem>>, vector<1x8x256xf32>
    %1076 = vector.shape_cast %1075 : vector<1x8x256xf32> to vector<8x256xf32>
    %1077 = arith.mulf %1076, %1074 : vector<8x256xf32>
    %c255_i32_664 = arith.constant 255 : i32
    %1078 = tpu.dynamic_rotate %1061 by %c255_i32_664 dim 1 : vector<8x256xf32>, i32 -> vector<8x256xf32>
    %c5_665 = arith.constant 5 : index
    %c0_666 = arith.constant 0 : index
    %c0_667 = arith.constant 0 : index
    %1079 = vector.load %arg5[%c5_665, %c0_666, %c0_667] : memref<9x8x256xf32, #tpu.memory_space<vmem>>, vector<1x8x256xf32>
    %1080 = vector.shape_cast %1079 : vector<1x8x256xf32> to vector<8x256xf32>
    %1081 = arith.mulf %1080, %1078 : vector<8x256xf32>
    %c241_i32_668 = arith.constant 241 : i32
    %1082 = tpu.dynamic_rotate %1061 by %c241_i32_668 dim 1 : vector<8x256xf32>, i32 -> vector<8x256xf32>
    %c6_669 = arith.constant 6 : index
    %c0_670 = arith.constant 0 : index
    %c0_671 = arith.constant 0 : index
    %1083 = vector.load %arg5[%c6_669, %c0_670, %c0_671] : memref<9x8x256xf32, #tpu.memory_space<vmem>>, vector<1x8x256xf32>
    %1084 = vector.shape_cast %1083 : vector<1x8x256xf32> to vector<8x256xf32>
    %1085 = arith.mulf %1084, %1082 : vector<8x256xf32>
    %c240_i32_672 = arith.constant 240 : i32
    %1086 = tpu.dynamic_rotate %1061 by %c240_i32_672 dim 1 : vector<8x256xf32>, i32 -> vector<8x256xf32>
    %c7_673 = arith.constant 7 : index
    %c0_674 = arith.constant 0 : index
    %c0_675 = arith.constant 0 : index
    %1087 = vector.load %arg5[%c7_673, %c0_674, %c0_675] : memref<9x8x256xf32, #tpu.memory_space<vmem>>, vector<1x8x256xf32>
    %1088 = vector.shape_cast %1087 : vector<1x8x256xf32> to vector<8x256xf32>
    %1089 = arith.mulf %1088, %1086 : vector<8x256xf32>
    %c239_i32_676 = arith.constant 239 : i32
    %1090 = tpu.dynamic_rotate %1061 by %c239_i32_676 dim 1 : vector<8x256xf32>, i32 -> vector<8x256xf32>
    %c8_677 = arith.constant 8 : index
    %c0_678 = arith.constant 0 : index
    %c0_679 = arith.constant 0 : index
    %1091 = vector.load %arg5[%c8_677, %c0_678, %c0_679] : memref<9x8x256xf32, #tpu.memory_space<vmem>>, vector<1x8x256xf32>
    %1092 = vector.shape_cast %1091 : vector<1x8x256xf32> to vector<8x256xf32>
    %1093 = arith.mulf %1092, %1090 : vector<8x256xf32>
    %1094 = tpu.concatenate %1065, %1069, %1073, %1077, %1061, %1081, %1085, %1089, %1093, %1 in 0 : vector<8x256xf32>, vector<8x256xf32>, vector<8x256xf32>, vector<8x256xf32>, vector<8x256xf32>, vector<8x256xf32>, vector<8x256xf32>, vector<8x256xf32>, vector<8x256xf32>, vector<8x256xf32> -> vector<80x256xf32>
    %c0_680 = arith.constant 0 : index
    %c0_681 = arith.constant 0 : index
    %1095 = vector.load %arg6[%c0_680, %c0_681] : memref<8x80xf32, #tpu.memory_space<vmem>>, vector<8x80xf32>
    %cst_682 = arith.constant dense<0.000000e+00> : vector<8x256xf32>
    %1096 = tpu.matmul %1095, %1094, %cst_682 {dimension_numbers = #tpu.dot_dimension_numbers<[1], [0], [0], [1], [0, 0, 1, 1], [], []>} : vector<8x80xf32>, vector<80x256xf32>, vector<8x256xf32> -> vector<8x256xf32>
    %1097 = arith.negf %1096 : vector<8x256xf32>
    %1098 = math.exp %1097 : vector<8x256xf32>
    %cst_683 = arith.constant 1.000000e+00 : f32
    %1099 = vector.broadcast %cst_683 : f32 to vector<8x256xf32>
    %1100 = arith.addf %1099, %1098 : vector<8x256xf32>
    %1101 = arith.divf %1099, %1100 : vector<8x256xf32>
    %1102 = arith.mulf %1096, %1101 : vector<8x256xf32>
    %c17_i32_684 = arith.constant 17 : i32
    %1103 = tpu.dynamic_rotate %1102 by %c17_i32_684 dim 1 : vector<8x256xf32>, i32 -> vector<8x256xf32>
    %c0_685 = arith.constant 0 : index
    %c0_686 = arith.constant 0 : index
    %c0_687 = arith.constant 0 : index
    %1104 = vector.load %arg5[%c0_685, %c0_686, %c0_687] : memref<9x8x256xf32, #tpu.memory_space<vmem>>, vector<1x8x256xf32>
    %1105 = vector.shape_cast %1104 : vector<1x8x256xf32> to vector<8x256xf32>
    %1106 = arith.mulf %1105, %1103 : vector<8x256xf32>
    %c16_i32_688 = arith.constant 16 : i32
    %1107 = tpu.dynamic_rotate %1102 by %c16_i32_688 dim 1 : vector<8x256xf32>, i32 -> vector<8x256xf32>
    %c1_689 = arith.constant 1 : index
    %c0_690 = arith.constant 0 : index
    %c0_691 = arith.constant 0 : index
    %1108 = vector.load %arg5[%c1_689, %c0_690, %c0_691] : memref<9x8x256xf32, #tpu.memory_space<vmem>>, vector<1x8x256xf32>
    %1109 = vector.shape_cast %1108 : vector<1x8x256xf32> to vector<8x256xf32>
    %1110 = arith.mulf %1109, %1107 : vector<8x256xf32>
    %c15_i32_692 = arith.constant 15 : i32
    %1111 = tpu.dynamic_rotate %1102 by %c15_i32_692 dim 1 : vector<8x256xf32>, i32 -> vector<8x256xf32>
    %c2_693 = arith.constant 2 : index
    %c0_694 = arith.constant 0 : index
    %c0_695 = arith.constant 0 : index
    %1112 = vector.load %arg5[%c2_693, %c0_694, %c0_695] : memref<9x8x256xf32, #tpu.memory_space<vmem>>, vector<1x8x256xf32>
    %1113 = vector.shape_cast %1112 : vector<1x8x256xf32> to vector<8x256xf32>
    %1114 = arith.mulf %1113, %1111 : vector<8x256xf32>
    %c1_i32_696 = arith.constant 1 : i32
    %1115 = tpu.dynamic_rotate %1102 by %c1_i32_696 dim 1 : vector<8x256xf32>, i32 -> vector<8x256xf32>
    %c3_697 = arith.constant 3 : index
    %c0_698 = arith.constant 0 : index
    %c0_699 = arith.constant 0 : index
    %1116 = vector.load %arg5[%c3_697, %c0_698, %c0_699] : memref<9x8x256xf32, #tpu.memory_space<vmem>>, vector<1x8x256xf32>
    %1117 = vector.shape_cast %1116 : vector<1x8x256xf32> to vector<8x256xf32>
    %1118 = arith.mulf %1117, %1115 : vector<8x256xf32>
    %c255_i32_700 = arith.constant 255 : i32
    %1119 = tpu.dynamic_rotate %1102 by %c255_i32_700 dim 1 : vector<8x256xf32>, i32 -> vector<8x256xf32>
    %c5_701 = arith.constant 5 : index
    %c0_702 = arith.constant 0 : index
    %c0_703 = arith.constant 0 : index
    %1120 = vector.load %arg5[%c5_701, %c0_702, %c0_703] : memref<9x8x256xf32, #tpu.memory_space<vmem>>, vector<1x8x256xf32>
    %1121 = vector.shape_cast %1120 : vector<1x8x256xf32> to vector<8x256xf32>
    %1122 = arith.mulf %1121, %1119 : vector<8x256xf32>
    %c241_i32_704 = arith.constant 241 : i32
    %1123 = tpu.dynamic_rotate %1102 by %c241_i32_704 dim 1 : vector<8x256xf32>, i32 -> vector<8x256xf32>
    %c6_705 = arith.constant 6 : index
    %c0_706 = arith.constant 0 : index
    %c0_707 = arith.constant 0 : index
    %1124 = vector.load %arg5[%c6_705, %c0_706, %c0_707] : memref<9x8x256xf32, #tpu.memory_space<vmem>>, vector<1x8x256xf32>
    %1125 = vector.shape_cast %1124 : vector<1x8x256xf32> to vector<8x256xf32>
    %1126 = arith.mulf %1125, %1123 : vector<8x256xf32>
    %c240_i32_708 = arith.constant 240 : i32
    %1127 = tpu.dynamic_rotate %1102 by %c240_i32_708 dim 1 : vector<8x256xf32>, i32 -> vector<8x256xf32>
    %c7_709 = arith.constant 7 : index
    %c0_710 = arith.constant 0 : index
    %c0_711 = arith.constant 0 : index
    %1128 = vector.load %arg5[%c7_709, %c0_710, %c0_711] : memref<9x8x256xf32, #tpu.memory_space<vmem>>, vector<1x8x256xf32>
    %1129 = vector.shape_cast %1128 : vector<1x8x256xf32> to vector<8x256xf32>
    %1130 = arith.mulf %1129, %1127 : vector<8x256xf32>
    %c239_i32_712 = arith.constant 239 : i32
    %1131 = tpu.dynamic_rotate %1102 by %c239_i32_712 dim 1 : vector<8x256xf32>, i32 -> vector<8x256xf32>
    %c8_713 = arith.constant 8 : index
    %c0_714 = arith.constant 0 : index
    %c0_715 = arith.constant 0 : index
    %1132 = vector.load %arg5[%c8_713, %c0_714, %c0_715] : memref<9x8x256xf32, #tpu.memory_space<vmem>>, vector<1x8x256xf32>
    %1133 = vector.shape_cast %1132 : vector<1x8x256xf32> to vector<8x256xf32>
    %1134 = arith.mulf %1133, %1131 : vector<8x256xf32>
    %1135 = tpu.concatenate %1106, %1110, %1114, %1118, %1102, %1122, %1126, %1130, %1134, %1 in 0 : vector<8x256xf32>, vector<8x256xf32>, vector<8x256xf32>, vector<8x256xf32>, vector<8x256xf32>, vector<8x256xf32>, vector<8x256xf32>, vector<8x256xf32>, vector<8x256xf32>, vector<8x256xf32> -> vector<80x256xf32>
    %c0_716 = arith.constant 0 : index
    %c0_717 = arith.constant 0 : index
    %1136 = vector.load %arg7[%c0_716, %c0_717] : memref<8x80xf32, #tpu.memory_space<vmem>>, vector<8x80xf32>
    %cst_718 = arith.constant dense<0.000000e+00> : vector<8x256xf32>
    %1137 = tpu.matmul %1136, %1135, %cst_718 {dimension_numbers = #tpu.dot_dimension_numbers<[1], [0], [0], [1], [0, 0, 1, 1], [], []>} : vector<8x80xf32>, vector<80x256xf32>, vector<8x256xf32> -> vector<8x256xf32>
    %1138 = arith.addf %982, %1137 : vector<8x256xf32>
    %1139 = arith.index_cast %c6_i32 : i32 to index
    %c0_719 = arith.constant 0 : index
    %c0_720 = arith.constant 0 : index
    %1140 = vector.load %arg8[%1139, %c0_719, %c0_720] : memref<8x8x256xf32, #tpu.memory_space<vmem>>, vector<1x8x256xf32>
    %1141 = vector.shape_cast %1140 : vector<1x8x256xf32> to vector<8x256xf32>
    %1142 = vector.shape_cast %1138 : vector<8x256xf32> to vector<1x8x256xf32>
    tpu.vector_store %arg8[%1139, %c0_719, %c0_720], %1142 {strides = array<i32>} : memref<8x8x256xf32, #tpu.memory_space<vmem>>, vector<1x8x256xf32>,
    %c7_i32 = arith.constant 7 : i32
    %1143 = arith.index_cast %c7_i32 : i32 to index
    %c0_721 = arith.constant 0 : index
    %c0_722 = arith.constant 0 : index
    %1144 = vector.load %arg2[%1143, %c0_721, %c0_722] : memref<8x8x256xf32, #tpu.memory_space<vmem>>, vector<1x8x256xf32>
    %1145 = vector.shape_cast %1144 : vector<1x8x256xf32> to vector<8x256xf32>
    %c0_723 = arith.constant 0 : index
    %c0_724 = arith.constant 0 : index
    %1146 = vector.load %arg4[%c0_723, %c0_724] : memref<8x1xf32, #tpu.memory_space<vmem>>, vector<8x1xf32>
    %c0_725 = arith.constant 0 : index
    %c0_726 = arith.constant 0 : index
    %1147 = vector.load %arg3[%c0_725, %c0_726] : memref<8x8xf32, #tpu.memory_space<vmem>>, vector<8x1xf32>
    %1148 = arith.addi %0, %c7_i32 : i32
    %1149 = arith.index_cast %1148 : i32 to index
    %c0_727 = arith.constant 0 : index
    %1150 = memref.load %arg1[%1149, %c0_727] : memref<16x8xf32, #tpu.memory_space<smem>>
    %1151 = vector.broadcast %1150 : f32 to vector<8x1xf32>
    %1152 = arith.mulf %1147, %1151 : vector<8x1xf32>
    %1153 = arith.addf %1146, %1152 : vector<8x1xf32>
    %c0_728 = arith.constant 0 : index
    %c1_729 = arith.constant 1 : index
    %1154 = vector.load %arg3[%c0_728, %c1_729] : memref<8x8xf32, #tpu.memory_space<vmem>>, vector<8x1xf32>
    %1155 = arith.addi %0, %c7_i32 : i32
    %1156 = arith.index_cast %1155 : i32 to index
    %c1_730 = arith.constant 1 : index
    %1157 = memref.load %arg1[%1156, %c1_730] : memref<16x8xf32, #tpu.memory_space<smem>>
    %1158 = vector.broadcast %1157 : f32 to vector<8x1xf32>
    %1159 = arith.mulf %1154, %1158 : vector<8x1xf32>
    %1160 = arith.addf %1153, %1159 : vector<8x1xf32>
    %c0_731 = arith.constant 0 : index
    %c2_732 = arith.constant 2 : index
    %1161 = vector.load %arg3[%c0_731, %c2_732] : memref<8x8xf32, #tpu.memory_space<vmem>>, vector<8x1xf32>
    %1162 = arith.addi %0, %c7_i32 : i32
    %1163 = arith.index_cast %1162 : i32 to index
    %c2_733 = arith.constant 2 : index
    %1164 = memref.load %arg1[%1163, %c2_733] : memref<16x8xf32, #tpu.memory_space<smem>>
    %1165 = vector.broadcast %1164 : f32 to vector<8x1xf32>
    %1166 = arith.mulf %1161, %1165 : vector<8x1xf32>
    %1167 = arith.addf %1160, %1166 : vector<8x1xf32>
    %c0_734 = arith.constant 0 : index
    %c3_735 = arith.constant 3 : index
    %1168 = vector.load %arg3[%c0_734, %c3_735] : memref<8x8xf32, #tpu.memory_space<vmem>>, vector<8x1xf32>
    %1169 = arith.addi %0, %c7_i32 : i32
    %1170 = arith.index_cast %1169 : i32 to index
    %c3_736 = arith.constant 3 : index
    %1171 = memref.load %arg1[%1170, %c3_736] : memref<16x8xf32, #tpu.memory_space<smem>>
    %1172 = vector.broadcast %1171 : f32 to vector<8x1xf32>
    %1173 = arith.mulf %1168, %1172 : vector<8x1xf32>
    %1174 = arith.addf %1167, %1173 : vector<8x1xf32>
    %c0_737 = arith.constant 0 : index
    %c4_738 = arith.constant 4 : index
    %1175 = vector.load %arg3[%c0_737, %c4_738] : memref<8x8xf32, #tpu.memory_space<vmem>>, vector<8x1xf32>
    %1176 = arith.addi %0, %c7_i32 : i32
    %1177 = arith.index_cast %1176 : i32 to index
    %c4_739 = arith.constant 4 : index
    %1178 = memref.load %arg1[%1177, %c4_739] : memref<16x8xf32, #tpu.memory_space<smem>>
    %1179 = vector.broadcast %1178 : f32 to vector<8x1xf32>
    %1180 = arith.mulf %1175, %1179 : vector<8x1xf32>
    %1181 = arith.addf %1174, %1180 : vector<8x1xf32>
    %c0_740 = arith.constant 0 : index
    %c5_741 = arith.constant 5 : index
    %1182 = vector.load %arg3[%c0_740, %c5_741] : memref<8x8xf32, #tpu.memory_space<vmem>>, vector<8x1xf32>
    %1183 = arith.addi %0, %c7_i32 : i32
    %1184 = arith.index_cast %1183 : i32 to index
    %c5_742 = arith.constant 5 : index
    %1185 = memref.load %arg1[%1184, %c5_742] : memref<16x8xf32, #tpu.memory_space<smem>>
    %1186 = vector.broadcast %1185 : f32 to vector<8x1xf32>
    %1187 = arith.mulf %1182, %1186 : vector<8x1xf32>
    %1188 = arith.addf %1181, %1187 : vector<8x1xf32>
    %c0_743 = arith.constant 0 : index
    %c6_744 = arith.constant 6 : index
    %1189 = vector.load %arg3[%c0_743, %c6_744] : memref<8x8xf32, #tpu.memory_space<vmem>>, vector<8x1xf32>
    %1190 = arith.addi %0, %c7_i32 : i32
    %1191 = arith.index_cast %1190 : i32 to index
    %c6_745 = arith.constant 6 : index
    %1192 = memref.load %arg1[%1191, %c6_745] : memref<16x8xf32, #tpu.memory_space<smem>>
    %1193 = vector.broadcast %1192 : f32 to vector<8x1xf32>
    %1194 = arith.mulf %1189, %1193 : vector<8x1xf32>
    %1195 = arith.addf %1188, %1194 : vector<8x1xf32>
    %c0_746 = arith.constant 0 : index
    %c7_747 = arith.constant 7 : index
    %1196 = vector.load %arg3[%c0_746, %c7_747] : memref<8x8xf32, #tpu.memory_space<vmem>>, vector<8x1xf32>
    %1197 = arith.addi %0, %c7_i32 : i32
    %1198 = arith.index_cast %1197 : i32 to index
    %c7_748 = arith.constant 7 : index
    %1199 = memref.load %arg1[%1198, %c7_748] : memref<16x8xf32, #tpu.memory_space<smem>>
    %1200 = vector.broadcast %1199 : f32 to vector<8x1xf32>
    %1201 = arith.mulf %1196, %1200 : vector<8x1xf32>
    %1202 = arith.addf %1195, %1201 : vector<8x1xf32>
    %1203 = vector.broadcast %1202 : vector<8x1xf32> to vector<8x256xf32>
    %1204 = arith.addf %1145, %1203 : vector<8x256xf32>
    %cst_749 = arith.constant dense<0.000000e+00> : vector<256xf32>
    %1205 = vector.multi_reduction <add>, %1204, %cst_749 [0] : vector<8x256xf32> to vector<256xf32>
    %1206 = vector.shape_cast %1205 : vector<256xf32> to vector<1x256xf32>
    %1207 = arith.mulf %1204, %1204 : vector<8x256xf32>
    %cst_750 = arith.constant dense<0.000000e+00> : vector<256xf32>
    %1208 = vector.multi_reduction <add>, %1207, %cst_750 [0] : vector<8x256xf32> to vector<256xf32>
    %1209 = vector.shape_cast %1208 : vector<256xf32> to vector<1x256xf32>
    %1210 = vector.broadcast %cst_0 : f32 to vector<1x256xf32>
    %1211 = arith.mulf %1206, %1210 : vector<1x256xf32>
    %cst_751 = arith.constant 8.000000e+00 : f32
    %1212 = vector.broadcast %cst_751 : f32 to vector<1x256xf32>
    %1213 = arith.mulf %1212, %1211 : vector<1x256xf32>
    %1214 = arith.mulf %1213, %1211 : vector<1x256xf32>
    %1215 = arith.subf %1209, %1214 : vector<1x256xf32>
    %1216 = vector.broadcast %cst_1 : f32 to vector<1x256xf32>
    %1217 = arith.mulf %1215, %1216 : vector<1x256xf32>
    %1218 = vector.broadcast %1211 : vector<1x256xf32> to vector<8x256xf32>
    %1219 = arith.subf %1204, %1218 : vector<8x256xf32>
    %cst_752 = arith.constant 9.99999974E-6 : f32
    %1220 = vector.broadcast %cst_752 : f32 to vector<1x256xf32>
    %1221 = arith.addf %1217, %1220 : vector<1x256xf32>
    %1222 = math.rsqrt %1221 : vector<1x256xf32>
    %1223 = vector.broadcast %1222 : vector<1x256xf32> to vector<8x256xf32>
    %1224 = arith.mulf %1219, %1223 : vector<8x256xf32>
    %c17_i32_753 = arith.constant 17 : i32
    %1225 = tpu.dynamic_rotate %1224 by %c17_i32_753 dim 1 : vector<8x256xf32>, i32 -> vector<8x256xf32>
    %c0_754 = arith.constant 0 : index
    %c0_755 = arith.constant 0 : index
    %c0_756 = arith.constant 0 : index
    %1226 = vector.load %arg5[%c0_754, %c0_755, %c0_756] : memref<9x8x256xf32, #tpu.memory_space<vmem>>, vector<1x8x256xf32>
    %1227 = vector.shape_cast %1226 : vector<1x8x256xf32> to vector<8x256xf32>
    %1228 = arith.mulf %1227, %1225 : vector<8x256xf32>
    %c16_i32_757 = arith.constant 16 : i32
    %1229 = tpu.dynamic_rotate %1224 by %c16_i32_757 dim 1 : vector<8x256xf32>, i32 -> vector<8x256xf32>
    %c1_758 = arith.constant 1 : index
    %c0_759 = arith.constant 0 : index
    %c0_760 = arith.constant 0 : index
    %1230 = vector.load %arg5[%c1_758, %c0_759, %c0_760] : memref<9x8x256xf32, #tpu.memory_space<vmem>>, vector<1x8x256xf32>
    %1231 = vector.shape_cast %1230 : vector<1x8x256xf32> to vector<8x256xf32>
    %1232 = arith.mulf %1231, %1229 : vector<8x256xf32>
    %c15_i32_761 = arith.constant 15 : i32
    %1233 = tpu.dynamic_rotate %1224 by %c15_i32_761 dim 1 : vector<8x256xf32>, i32 -> vector<8x256xf32>
    %c2_762 = arith.constant 2 : index
    %c0_763 = arith.constant 0 : index
    %c0_764 = arith.constant 0 : index
    %1234 = vector.load %arg5[%c2_762, %c0_763, %c0_764] : memref<9x8x256xf32, #tpu.memory_space<vmem>>, vector<1x8x256xf32>
    %1235 = vector.shape_cast %1234 : vector<1x8x256xf32> to vector<8x256xf32>
    %1236 = arith.mulf %1235, %1233 : vector<8x256xf32>
    %c1_i32_765 = arith.constant 1 : i32
    %1237 = tpu.dynamic_rotate %1224 by %c1_i32_765 dim 1 : vector<8x256xf32>, i32 -> vector<8x256xf32>
    %c3_766 = arith.constant 3 : index
    %c0_767 = arith.constant 0 : index
    %c0_768 = arith.constant 0 : index
    %1238 = vector.load %arg5[%c3_766, %c0_767, %c0_768] : memref<9x8x256xf32, #tpu.memory_space<vmem>>, vector<1x8x256xf32>
    %1239 = vector.shape_cast %1238 : vector<1x8x256xf32> to vector<8x256xf32>
    %1240 = arith.mulf %1239, %1237 : vector<8x256xf32>
    %c255_i32_769 = arith.constant 255 : i32
    %1241 = tpu.dynamic_rotate %1224 by %c255_i32_769 dim 1 : vector<8x256xf32>, i32 -> vector<8x256xf32>
    %c5_770 = arith.constant 5 : index
    %c0_771 = arith.constant 0 : index
    %c0_772 = arith.constant 0 : index
    %1242 = vector.load %arg5[%c5_770, %c0_771, %c0_772] : memref<9x8x256xf32, #tpu.memory_space<vmem>>, vector<1x8x256xf32>
    %1243 = vector.shape_cast %1242 : vector<1x8x256xf32> to vector<8x256xf32>
    %1244 = arith.mulf %1243, %1241 : vector<8x256xf32>
    %c241_i32_773 = arith.constant 241 : i32
    %1245 = tpu.dynamic_rotate %1224 by %c241_i32_773 dim 1 : vector<8x256xf32>, i32 -> vector<8x256xf32>
    %c6_774 = arith.constant 6 : index
    %c0_775 = arith.constant 0 : index
    %c0_776 = arith.constant 0 : index
    %1246 = vector.load %arg5[%c6_774, %c0_775, %c0_776] : memref<9x8x256xf32, #tpu.memory_space<vmem>>, vector<1x8x256xf32>
    %1247 = vector.shape_cast %1246 : vector<1x8x256xf32> to vector<8x256xf32>
    %1248 = arith.mulf %1247, %1245 : vector<8x256xf32>
    %c240_i32_777 = arith.constant 240 : i32
    %1249 = tpu.dynamic_rotate %1224 by %c240_i32_777 dim 1 : vector<8x256xf32>, i32 -> vector<8x256xf32>
    %c7_778 = arith.constant 7 : index
    %c0_779 = arith.constant 0 : index
    %c0_780 = arith.constant 0 : index
    %1250 = vector.load %arg5[%c7_778, %c0_779, %c0_780] : memref<9x8x256xf32, #tpu.memory_space<vmem>>, vector<1x8x256xf32>
    %1251 = vector.shape_cast %1250 : vector<1x8x256xf32> to vector<8x256xf32>
    %1252 = arith.mulf %1251, %1249 : vector<8x256xf32>
    %c239_i32_781 = arith.constant 239 : i32
    %1253 = tpu.dynamic_rotate %1224 by %c239_i32_781 dim 1 : vector<8x256xf32>, i32 -> vector<8x256xf32>
    %c8_782 = arith.constant 8 : index
    %c0_783 = arith.constant 0 : index
    %c0_784 = arith.constant 0 : index
    %1254 = vector.load %arg5[%c8_782, %c0_783, %c0_784] : memref<9x8x256xf32, #tpu.memory_space<vmem>>, vector<1x8x256xf32>
    %1255 = vector.shape_cast %1254 : vector<1x8x256xf32> to vector<8x256xf32>
    %1256 = arith.mulf %1255, %1253 : vector<8x256xf32>
    %1257 = tpu.concatenate %1228, %1232, %1236, %1240, %1224, %1244, %1248, %1252, %1256, %1 in 0 : vector<8x256xf32>, vector<8x256xf32>, vector<8x256xf32>, vector<8x256xf32>, vector<8x256xf32>, vector<8x256xf32>, vector<8x256xf32>, vector<8x256xf32>, vector<8x256xf32>, vector<8x256xf32> -> vector<80x256xf32>
    %c0_785 = arith.constant 0 : index
    %c0_786 = arith.constant 0 : index
    %1258 = vector.load %arg6[%c0_785, %c0_786] : memref<8x80xf32, #tpu.memory_space<vmem>>, vector<8x80xf32>
    %cst_787 = arith.constant dense<0.000000e+00> : vector<8x256xf32>
    %1259 = tpu.matmul %1258, %1257, %cst_787 {dimension_numbers = #tpu.dot_dimension_numbers<[1], [0], [0], [1], [0, 0, 1, 1], [], []>} : vector<8x80xf32>, vector<80x256xf32>, vector<8x256xf32> -> vector<8x256xf32>
    %1260 = arith.negf %1259 : vector<8x256xf32>
    %1261 = math.exp %1260 : vector<8x256xf32>
    %cst_788 = arith.constant 1.000000e+00 : f32
    %1262 = vector.broadcast %cst_788 : f32 to vector<8x256xf32>
    %1263 = arith.addf %1262, %1261 : vector<8x256xf32>
    %1264 = arith.divf %1262, %1263 : vector<8x256xf32>
    %1265 = arith.mulf %1259, %1264 : vector<8x256xf32>
    %c17_i32_789 = arith.constant 17 : i32
    %1266 = tpu.dynamic_rotate %1265 by %c17_i32_789 dim 1 : vector<8x256xf32>, i32 -> vector<8x256xf32>
    %c0_790 = arith.constant 0 : index
    %c0_791 = arith.constant 0 : index
    %c0_792 = arith.constant 0 : index
    %1267 = vector.load %arg5[%c0_790, %c0_791, %c0_792] : memref<9x8x256xf32, #tpu.memory_space<vmem>>, vector<1x8x256xf32>
    %1268 = vector.shape_cast %1267 : vector<1x8x256xf32> to vector<8x256xf32>
    %1269 = arith.mulf %1268, %1266 : vector<8x256xf32>
    %c16_i32_793 = arith.constant 16 : i32
    %1270 = tpu.dynamic_rotate %1265 by %c16_i32_793 dim 1 : vector<8x256xf32>, i32 -> vector<8x256xf32>
    %c1_794 = arith.constant 1 : index
    %c0_795 = arith.constant 0 : index
    %c0_796 = arith.constant 0 : index
    %1271 = vector.load %arg5[%c1_794, %c0_795, %c0_796] : memref<9x8x256xf32, #tpu.memory_space<vmem>>, vector<1x8x256xf32>
    %1272 = vector.shape_cast %1271 : vector<1x8x256xf32> to vector<8x256xf32>
    %1273 = arith.mulf %1272, %1270 : vector<8x256xf32>
    %c15_i32_797 = arith.constant 15 : i32
    %1274 = tpu.dynamic_rotate %1265 by %c15_i32_797 dim 1 : vector<8x256xf32>, i32 -> vector<8x256xf32>
    %c2_798 = arith.constant 2 : index
    %c0_799 = arith.constant 0 : index
    %c0_800 = arith.constant 0 : index
    %1275 = vector.load %arg5[%c2_798, %c0_799, %c0_800] : memref<9x8x256xf32, #tpu.memory_space<vmem>>, vector<1x8x256xf32>
    %1276 = vector.shape_cast %1275 : vector<1x8x256xf32> to vector<8x256xf32>
    %1277 = arith.mulf %1276, %1274 : vector<8x256xf32>
    %c1_i32_801 = arith.constant 1 : i32
    %1278 = tpu.dynamic_rotate %1265 by %c1_i32_801 dim 1 : vector<8x256xf32>, i32 -> vector<8x256xf32>
    %c3_802 = arith.constant 3 : index
    %c0_803 = arith.constant 0 : index
    %c0_804 = arith.constant 0 : index
    %1279 = vector.load %arg5[%c3_802, %c0_803, %c0_804] : memref<9x8x256xf32, #tpu.memory_space<vmem>>, vector<1x8x256xf32>
    %1280 = vector.shape_cast %1279 : vector<1x8x256xf32> to vector<8x256xf32>
    %1281 = arith.mulf %1280, %1278 : vector<8x256xf32>
    %c255_i32_805 = arith.constant 255 : i32
    %1282 = tpu.dynamic_rotate %1265 by %c255_i32_805 dim 1 : vector<8x256xf32>, i32 -> vector<8x256xf32>
    %c5_806 = arith.constant 5 : index
    %c0_807 = arith.constant 0 : index
    %c0_808 = arith.constant 0 : index
    %1283 = vector.load %arg5[%c5_806, %c0_807, %c0_808] : memref<9x8x256xf32, #tpu.memory_space<vmem>>, vector<1x8x256xf32>
    %1284 = vector.shape_cast %1283 : vector<1x8x256xf32> to vector<8x256xf32>
    %1285 = arith.mulf %1284, %1282 : vector<8x256xf32>
    %c241_i32_809 = arith.constant 241 : i32
    %1286 = tpu.dynamic_rotate %1265 by %c241_i32_809 dim 1 : vector<8x256xf32>, i32 -> vector<8x256xf32>
    %c6_810 = arith.constant 6 : index
    %c0_811 = arith.constant 0 : index
    %c0_812 = arith.constant 0 : index
    %1287 = vector.load %arg5[%c6_810, %c0_811, %c0_812] : memref<9x8x256xf32, #tpu.memory_space<vmem>>, vector<1x8x256xf32>
    %1288 = vector.shape_cast %1287 : vector<1x8x256xf32> to vector<8x256xf32>
    %1289 = arith.mulf %1288, %1286 : vector<8x256xf32>
    %c240_i32_813 = arith.constant 240 : i32
    %1290 = tpu.dynamic_rotate %1265 by %c240_i32_813 dim 1 : vector<8x256xf32>, i32 -> vector<8x256xf32>
    %c7_814 = arith.constant 7 : index
    %c0_815 = arith.constant 0 : index
    %c0_816 = arith.constant 0 : index
    %1291 = vector.load %arg5[%c7_814, %c0_815, %c0_816] : memref<9x8x256xf32, #tpu.memory_space<vmem>>, vector<1x8x256xf32>
    %1292 = vector.shape_cast %1291 : vector<1x8x256xf32> to vector<8x256xf32>
    %1293 = arith.mulf %1292, %1290 : vector<8x256xf32>
    %c239_i32_817 = arith.constant 239 : i32
    %1294 = tpu.dynamic_rotate %1265 by %c239_i32_817 dim 1 : vector<8x256xf32>, i32 -> vector<8x256xf32>
    %c8_818 = arith.constant 8 : index
    %c0_819 = arith.constant 0 : index
    %c0_820 = arith.constant 0 : index
    %1295 = vector.load %arg5[%c8_818, %c0_819, %c0_820] : memref<9x8x256xf32, #tpu.memory_space<vmem>>, vector<1x8x256xf32>
    %1296 = vector.shape_cast %1295 : vector<1x8x256xf32> to vector<8x256xf32>
    %1297 = arith.mulf %1296, %1294 : vector<8x256xf32>
    %1298 = tpu.concatenate %1269, %1273, %1277, %1281, %1265, %1285, %1289, %1293, %1297, %1 in 0 : vector<8x256xf32>, vector<8x256xf32>, vector<8x256xf32>, vector<8x256xf32>, vector<8x256xf32>, vector<8x256xf32>, vector<8x256xf32>, vector<8x256xf32>, vector<8x256xf32>, vector<8x256xf32> -> vector<80x256xf32>
    %c0_821 = arith.constant 0 : index
    %c0_822 = arith.constant 0 : index
    %1299 = vector.load %arg7[%c0_821, %c0_822] : memref<8x80xf32, #tpu.memory_space<vmem>>, vector<8x80xf32>
    %cst_823 = arith.constant dense<0.000000e+00> : vector<8x256xf32>
    %1300 = tpu.matmul %1299, %1298, %cst_823 {dimension_numbers = #tpu.dot_dimension_numbers<[1], [0], [0], [1], [0, 0, 1, 1], [], []>} : vector<8x80xf32>, vector<80x256xf32>, vector<8x256xf32> -> vector<8x256xf32>
    %1301 = arith.addf %1145, %1300 : vector<8x256xf32>
    %1302 = arith.index_cast %c7_i32 : i32 to index
    %c0_824 = arith.constant 0 : index
    %c0_825 = arith.constant 0 : index
    %1303 = vector.load %arg8[%1302, %c0_824, %c0_825] : memref<8x8x256xf32, #tpu.memory_space<vmem>>, vector<1x8x256xf32>
    %1304 = vector.shape_cast %1303 : vector<1x8x256xf32> to vector<8x256xf32>
    %1305 = vector.shape_cast %1301 : vector<8x256xf32> to vector<1x8x256xf32>
    tpu.vector_store %arg8[%1302, %c0_824, %c0_825], %1305 {strides = array<i32>} : memref<8x8x256xf32, #tpu.memory_space<vmem>>, vector<1x8x256xf32>,
    %c8_i32_826 = arith.constant 8 : i32
    return
  }
  func.func @transform_0(%arg0: i32, %arg1: memref<16x8xf32, #tpu.memory_space<smem>>) -> (i32, i32, i32) {
    %c0_i32 = arith.constant 0 : i32
    %c0_i32_0 = arith.constant 0 : i32
    %c0_i32_1 = arith.constant 0 : i32
    return %arg0, %c0_i32, %c0_i32_0 : i32, i32, i32
  }
  func.func @transform_1(%arg0: i32, %arg1: memref<16x8xf32, #tpu.memory_space<smem>>) -> (i32, i32) {
    %c0_i32 = arith.constant 0 : i32
    %c0_i32_0 = arith.constant 0 : i32
    %c0_i32_1 = arith.constant 0 : i32
    return %c0_i32, %c0_i32_0 : i32, i32
  }
  func.func @transform_2(%arg0: i32, %arg1: memref<16x8xf32, #tpu.memory_space<smem>>) -> (i32, i32) {
    %c0_i32 = arith.constant 0 : i32
    %c0_i32_0 = arith.constant 0 : i32
    %c0_i32_1 = arith.constant 0 : i32
    return %c0_i32, %c0_i32_0 : i32, i32
  }
  func.func @transform_3(%arg0: i32, %arg1: memref<16x8xf32, #tpu.memory_space<smem>>) -> (i32, i32, i32) {
    %c0_i32 = arith.constant 0 : i32
    %c0_i32_0 = arith.constant 0 : i32
    %c0_i32_1 = arith.constant 0 : i32
    %c0_i32_2 = arith.constant 0 : i32
    return %c0_i32, %c0_i32_0, %c0_i32_1 : i32, i32, i32
  }
  func.func @transform_4(%arg0: i32, %arg1: memref<16x8xf32, #tpu.memory_space<smem>>) -> (i32, i32) {
    %c0_i32 = arith.constant 0 : i32
    %c0_i32_0 = arith.constant 0 : i32
    %c0_i32_1 = arith.constant 0 : i32
    return %c0_i32, %c0_i32_0 : i32, i32
  }
  func.func @transform_5(%arg0: i32, %arg1: memref<16x8xf32, #tpu.memory_space<smem>>) -> (i32, i32) {
    %c0_i32 = arith.constant 0 : i32
    %c0_i32_0 = arith.constant 0 : i32
    %c0_i32_1 = arith.constant 0 : i32
    return %c0_i32, %c0_i32_0 : i32, i32
  }
  func.func @transform_6(%arg0: i32, %arg1: memref<16x8xf32, #tpu.memory_space<smem>>) -> (i32, i32, i32) {
    %c0_i32 = arith.constant 0 : i32
    %c0_i32_0 = arith.constant 0 : i32
    %c0_i32_1 = arith.constant 0 : i32
    return %arg0, %c0_i32, %c0_i32_0 : i32, i32, i32
  }
}

</mosaic_0001>

<llo_original>
// kernel: tpu_custom_call.1
$region0: #{tpu_custom_call.1}
  #allocation0 [shape = 'u32[]', space=smem, size = 0x4, offset = 0x4, fixed_abs, tag = 'smem constant byte address 0x4 - core index']
  #allocation1 [shape = 'u32[144,128]{1,0:T(1,128)}', space=vmem, size = 0x12000, scoped, tag = 'internal scratch']
  #allocation2 [shape = 's32[1]{0}', space=sflag, size = 0x4, scoped, tag = 'scoped memory for tpu_custom_call.1']
  #allocation3 [shape = 'u8[8192]{0}', space=smem, size = 0x2000, scoped, tag = 'prefetched SMEM operand 0']
  %s0 = inlined_call_operand.vmem [shape: f32[16,8], index: 0, kind: input, shape index: {}]
  %s1 = inlined_call_operand.hbm [shape: f32[16,8,256], index: 1, kind: input, shape index: {}]
  %s2 = inlined_call_operand.vmem [shape: f32[8,8], index: 2, kind: input, shape index: {}]
  %s3 = inlined_call_operand.vmem [shape: f32[8,1], index: 3, kind: input, shape index: {}]
  %s4 = inlined_call_operand.hbm [shape: f32[9,8,256], index: 4, kind: input, shape index: {}]
  %s5 = inlined_call_operand.vmem [shape: f32[8,80], index: 5, kind: input, shape index: {}]
  %s6 = inlined_call_operand.vmem [shape: f32[8,80], index: 6, kind: input, shape index: {}]
  %s7 = inlined_call_operand.hbm [shape: f32[16,8,256], index: 7, kind: output, shape index: {}]
  %s8 = sld [smem:[#allocation0]]
  $region65: #{tpu_custom_call.1} parent=0
    _
  %s10 = ssub.s32 1, %s8
  %s11 = scalar_select 0, %s10, %s8
  %s12 = sshll.u32 %s0, 4
  %s13 = int_to_ptr.vmem [resolvable:$true] %s12
  %15 = dma.vmem_to_smem %s13, 256, [#allocation3], [#allocation2]
  %16 = dma.done [#allocation2], 256
  %17 = sfence
  $region1: #{tpu_custom_call.1} parent=0
    #allocation4 [shape = 'u8[131072]{0}', space=vmem, size = 0x20000, scoped, tag = 'input window, operand 1']
    #allocation5 [shape = 's32[2]{0}', space=sflag, size = 0x8, scoped, tag = 'scoped memory for tpu_custom_call.1']
    #allocation6 [shape = 's32[2]{0}', space=sflag, size = 0x8, scoped, tag = 'scoped memory for tpu_custom_call.1']
    #allocation7 [shape = 'u8[73728]{0}', space=vmem, size = 0x12000, scoped, tag = 'input window, operand 4, single buffered']
    #allocation8 [shape = 's32[1]{0}', space=sflag, size = 0x4, scoped, tag = 'scoped memory for tpu_custom_call.1']
    #allocation9 [shape = 'u8[131072]{0}', space=vmem, size = 0x20000, scoped, tag = 'output window, operand 0']
    %18 = vsyncpa [#allocation5], 0
    %s19 = scalar_lea.sflag [#allocation5], 1
    %20 = vsyncpa %s19, 0
    %21 = vsyncpa [#allocation8], 0
    %22 = vsyncpa [#allocation6], 0
    %s23 = scalar_lea.sflag [#allocation6], 1
    %24 = vsyncpa %s23, 0
    loop: start=0, step=1, limit=4
    $region2: #{tpu_custom_call.1} parent=1 // loop_pre_header
      _
    $region3: #{tpu_custom_call.1} parent=1 // loop_header
      %s26 = sphi 0, %s30
      %p27 = scmp.ge.s32.totalorder %s26, 4
      %s36 = sphi 0, %s38
      %s39 = sphi 0, %s36
      %s40 = sphi 0, %s39
      %s56 = sphi 0, %s40
      %s60 = sphi 0, %s60
      %s62 = sphi 0, %s60
      %s63 = sphi 0, %s62
      %s77 = sphi 0, %s63
      %s81 = sphi 0, %s81
      %s83 = sphi 0, %s81
      %s84 = sphi 0, %s83
      %s98 = sphi 0, %s84
      %s102 = sphi 0, %s102
      %s104 = sphi 0, %s102
      %s105 = sphi 0, %s104
      %s119 = sphi 0, %s105
      %s123 = sphi 0, %s123
      %s125 = sphi 0, %s123
      %s126 = sphi 0, %s125
      %s140 = sphi 0, %s126
      %s144 = sphi 0, %s144
      %s146 = sphi 0, %s144
      %s147 = sphi 0, %s146
      %s161 = sphi 0, %s147
      %s167 = sphi 0, %s169
      %s170 = sphi 0, %s167
      %s171 = sphi 0, %s170
      %s187 = sphi 0, %s171
    $region4: #{tpu_custom_call.1} parent=1 // loop_header_branch
      %29 = sbr.rel (%p27) target = $region8
    $region5: #{tpu_custom_call.1} parent=1 // loop_body
      %s31 = ssub.s32 %s26, 1
      %s32 = ssub.s32 %s26, 2
      %s33 = sadd.s32 %s26, 1
      %s34 = ssub.s32 %s26, %s33
      %p35 = scmp.eq.s32.totalorder %s34, 0
      %s37 = sadd.s32 %s36, 1
      %s38 = scalar_select %p35, %s36, %s37
      %p41 = pneg %p35
      %p42 = scmp.eq.s32.totalorder %s26, 1
      %p43 = por %p41, %p42
      %p44 = scmp.ne.s32.totalorder %s36, %s39
      %p45 = scmp.eq.s32.totalorder %s26, 0
      %p46 = por %p44, %p45
      %p47 = scmp.ne.s32.totalorder %s36, %s39
      %p48 = scmp.eq.s32.totalorder %s31, 1
      %p49 = por %p47, %p48
      %p50 = scmp.ne.s32.totalorder %s39, %s40
      %p51 = scmp.eq.s32.totalorder %s31, 0
      %p52 = por %p50, %p51
      %p53 = scmp.ne.s32.totalorder %s39, %s40
      %p54 = scmp.eq.s32.totalorder %s32, 1
      %p55 = por %p53, %p54
      %p57 = scmp.ne.s32.totalorder %s40, %s56
      %p58 = scmp.eq.s32.totalorder %s32, 0
      %p59 = por %p57, %p58
      %s61 = sadd.s32 %s60, 1
      %p64 = scmp.eq.s32.totalorder %s26, 1
      %p65 = scmp.ne.s32.totalorder %s60, %s62
      %p66 = scmp.eq.s32.totalorder %s26, 0
      %p67 = por %p65, %p66
      %p68 = scmp.ne.s32.totalorder %s60, %s62
      %p69 = scmp.eq.s32.totalorder %s31, 1
      %p70 = por %p68, %p69
      %p71 = scmp.ne.s32.totalorder %s62, %s63
      %p72 = scmp.eq.s32.totalorder %s31, 0
      %p73 = por %p71, %p72
      %p74 = scmp.ne.s32.totalorder %s62, %s63
      %p75 = scmp.eq.s32.totalorder %s32, 1
      %p76 = por %p74, %p75
      %p78 = scmp.ne.s32.totalorder %s63, %s77
      %p79 = scmp.eq.s32.totalorder %s32, 0
      %p80 = por %p78, %p79
      %s82 = sadd.s32 %s81, 1
      %p85 = scmp.eq.s32.totalorder %s26, 1
      %p86 = scmp.ne.s32.totalorder %s81, %s83
      %p87 = scmp.eq.s32.totalorder %s26, 0
      %p88 = por %p86, %p87
      %p89 = scmp.ne.s32.totalorder %s81, %s83
      %p90 = scmp.eq.s32.totalorder %s31, 1
      %p91 = por %p89, %p90
      %p92 = scmp.ne.s32.totalorder %s83, %s84
      %p93 = scmp.eq.s32.totalorder %s31, 0
      %p94 = por %p92, %p93
      %p95 = scmp.ne.s32.totalorder %s83, %s84
      %p96 = scmp.eq.s32.totalorder %s32, 1
      %p97 = por %p95, %p96
      %p99 = scmp.ne.s32.totalorder %s84, %s98
      %p100 = scmp.eq.s32.totalorder %s32, 0
      %p101 = por %p99, %p100
      %s103 = sadd.s32 %s102, 1
      %p106 = scmp.eq.s32.totalorder %s26, 1
      %p107 = scmp.ne.s32.totalorder %s102, %s104
      %p108 = scmp.eq.s32.totalorder %s26, 0
      %p109 = por %p107, %p108
      %p110 = scmp.ne.s32.totalorder %s102, %s104
      %p111 = scmp.eq.s32.totalorder %s31, 1
      %p112 = por %p110, %p111
      %p113 = scmp.ne.s32.totalorder %s104, %s105
      %p114 = scmp.eq.s32.totalorder %s31, 0
      %p115 = por %p113, %p114
      %p116 = scmp.ne.s32.totalorder %s104, %s105
      %p117 = scmp.eq.s32.totalorder %s32, 1
      %p118 = por %p116, %p117
      %p120 = scmp.ne.s32.totalorder %s105, %s119
      %p121 = scmp.eq.s32.totalorder %s32, 0
      %p122 = por %p120, %p121
      %s124 = sadd.s32 %s123, 1
      %p127 = scmp.eq.s32.totalorder %s26, 1
      %p128 = scmp.ne.s32.totalorder %s123, %s125
      %p129 = scmp.eq.s32.totalorder %s26, 0
      %p130 = por %p128, %p129
      %p131 = scmp.ne.s32.totalorder %s123, %s125
      %p132 = scmp.eq.s32.totalorder %s31, 1
      %p133 = por %p131, %p132
      %p134 = scmp.ne.s32.totalorder %s125, %s126
      %p135 = scmp.eq.s32.totalorder %s31, 0
      %p136 = por %p134, %p135
      %p137 = scmp.ne.s32.totalorder %s125, %s126
      %p138 = scmp.eq.s32.totalorder %s32, 1
      %p139 = por %p137, %p138
      %p141 = scmp.ne.s32.totalorder %s126, %s140
      %p142 = scmp.eq.s32.totalorder %s32, 0
      %p143 = por %p141, %p142
      %s145 = sadd.s32 %s144, 1
      %p148 = scmp.eq.s32.totalorder %s26, 1
      %p149 = scmp.ne.s32.totalorder %s144, %s146
      %p150 = scmp.eq.s32.totalorder %s26, 0
      %p151 = por %p149, %p150
      %p152 = scmp.ne.s32.totalorder %s144, %s146
      %p153 = scmp.eq.s32.totalorder %s31, 1
      %p154 = por %p152, %p153
      %p155 = scmp.ne.s32.totalorder %s146, %s147
      %p156 = scmp.eq.s32.totalorder %s31, 0
      %p157 = por %p155, %p156
      %p158 = scmp.ne.s32.totalorder %s146, %s147
      %p159 = scmp.eq.s32.totalorder %s32, 1
      %p160 = por %p158, %p159
      %p162 = scmp.ne.s32.totalorder %s147, %s161
      %p163 = scmp.eq.s32.totalorder %s32, 0
      %p164 = por %p162, %p163
      %s165 = ssub.s32 %s26, %s33
      %p166 = scmp.eq.s32.totalorder %s165, 0
      %s168 = sadd.s32 %s167, 1
      %s169 = scalar_select %p166, %s167, %s168
      %p172 = pneg %p166
      %p173 = scmp.eq.s32.totalorder %s26, 1
      %p174 = por %p172, %p173
      %p175 = scmp.ne.s32.totalorder %s167, %s170
      %p176 = scmp.eq.s32.totalorder %s26, 0
      %p177 = por %p175, %p176
      %p178 = scmp.ne.s32.totalorder %s167, %s170
      %p179 = scmp.eq.s32.totalorder %s31, 1
      %p180 = por %p178, %p179
      %p181 = scmp.ne.s32.totalorder %s170, %s171
      %p182 = scmp.eq.s32.totalorder %s31, 0
      %p183 = por %p181, %p182
      %p184 = scmp.ne.s32.totalorder %s170, %s171
      %p185 = scmp.eq.s32.totalorder %s32, 1
      %p186 = por %p184, %p185
      %p188 = scmp.ne.s32.totalorder %s171, %s187
      %p189 = scmp.eq.s32.totalorder %s32, 0
      %p190 = por %p188, %p189
      %p191 = scmp.le.s32.totalorder 1, %s26
      %p192 = scmp.lt.s32.totalorder %s26, 3
      %p193 = pnand %p191, %p192
      %p194 = pneg %p193
      // Predicated region
      $region9: #{tpu_custom_call.1} parent=5 // pred_check
        _
      $region10: #{tpu_custom_call.1} parent=5 // pred_check_branch
        %196 = sbr.rel (%p193) target = $region12
      $region11: #{tpu_custom_call.1} parent=5 // pred_region
        %s197 = ssub.s32 %s26, 1
        // Predicated region
        $region13: #{tpu_custom_call.1} parent=11 // pred_check
          %p198 = pneg %p73
        $region14: #{tpu_custom_call.1} parent=11 // pred_check_branch
          %200 = sbr.rel (%p198) target = $region16
        $region15: #{tpu_custom_call.1} parent=11 // pred_region
          _
        $region16: #{tpu_custom_call.1} parent=11 // pred_fallthru
          _
        // Predicated region
        $region17: #{tpu_custom_call.1} parent=11 // pred_check
          %p201 = pneg %p94
        $region18: #{tpu_custom_call.1} parent=11 // pred_check_branch
          %203 = sbr.rel (%p201) target = $region20
        $region19: #{tpu_custom_call.1} parent=11 // pred_region
          _
        $region20: #{tpu_custom_call.1} parent=11 // pred_fallthru
          _
        // Predicated region
        $region21: #{tpu_custom_call.1} parent=11 // pred_check
          %p204 = pneg %p115
        $region22: #{tpu_custom_call.1} parent=11 // pred_check_branch
          %206 = sbr.rel (%p204) target = $region24
        $region23: #{tpu_custom_call.1} parent=11 // pred_region
          %s208 = ssub.s32 2304, 2304
          %209 = vsyncadd [#allocation8], %s208
          %s210 = sshll.u32 [#allocation7], 4
          %s211 = int_to_ptr.vmem [resolvable:$true] %s210
          %216 = dma.hbm_to_vmem [thread:$0]  %s4, 2304, %s211, [#allocation8], 256, 256, 16
        $region24: #{tpu_custom_call.1} parent=11 // pred_fallthru
          _
        // Predicated region
        $region25: #{tpu_custom_call.1} parent=11 // pred_check
          %p217 = pneg %p136
        $region26: #{tpu_custom_call.1} parent=11 // pred_check_branch
          %219 = sbr.rel (%p217) target = $region28
        $region27: #{tpu_custom_call.1} parent=11 // pred_region
          _
        $region28: #{tpu_custom_call.1} parent=11 // pred_fallthru
          _
        // Predicated region
        $region29: #{tpu_custom_call.1} parent=11 // pred_check
          %p220 = pneg %p157
        $region30: #{tpu_custom_call.1} parent=11 // pred_check_branch
          %222 = sbr.rel (%p220) target = $region32
        $region31: #{tpu_custom_call.1} parent=11 // pred_region
          _
        $region32: #{tpu_custom_call.1} parent=11 // pred_fallthru
          _
      $region12: #{tpu_custom_call.1} parent=5 // pred_fallthru
        _
      %p223 = scmp.lt.s32.totalorder %s26, 2
      // Predicated region
      $region33: #{tpu_custom_call.1} parent=5 // pred_check
        %p224 = pneg %p223
      $region34: #{tpu_custom_call.1} parent=5 // pred_check_branch
        %226 = sbr.rel (%p224) target = $region36
      $region35: #{tpu_custom_call.1} parent=5 // pred_region
        // Predicated region
        $region37: #{tpu_custom_call.1} parent=35 // pred_check
          %p227 = pneg %p46
        $region38: #{tpu_custom_call.1} parent=35 // pred_check_branch
          %229 = sbr.rel (%p227) target = $region40
        $region39: #{tpu_custom_call.1} parent=35 // pred_region
          %s230 = sand.u32 %s36, 1
          %s231 = scalar_lea.sflag [#allocation5], %s230
          %s232 = sand.u32 %s36, 1
          %s233 = smul.addr %s232, 128
          %s234 = scalar_lea.vmem [#allocation4], %s233
          %s235 = smul.u32 8, %s26
          %s237 = ssub.s32 2048, 2048
          %238 = vsyncadd %s231, %s237
          %s239 = smul.addr %s235, 2
          %s240 = smul.addr %s239, 128
          %s241 = scalar_lea.hbm %s1, %s240
          %s242 = sshll.u32 %s234, 4
          %s243 = int_to_ptr.vmem [resolvable:$true] %s242
          %248 = dma.hbm_to_vmem [thread:$0]  %s241, 2048, %s243, %s231, 256, 256, 16
        $region40: #{tpu_custom_call.1} parent=35 // pred_fallthru
          _
      $region36: #{tpu_custom_call.1} parent=5 // pred_fallthru
        _
      %p249 = scmp.le.s32.totalorder 1, %s26
      %p250 = scmp.lt.s32.totalorder %s26, 3
      %p251 = pnand %p249, %p250
      %p252 = pneg %p251
      // Predicated region
      $region41: #{tpu_custom_call.1} parent=5 // pred_check
        _
      $region42: #{tpu_custom_call.1} parent=5 // pred_check_branch
        %254 = sbr.rel (%p251) target = $region44
      $region43: #{tpu_custom_call.1} parent=5 // pred_region
        %s255 = ssub.s32 %s26, 1
        %s256 = sand.u32 %s39, 1
        %s257 = scalar_lea.sflag [#allocation5], %s256
        %s258 = sand.u32 %s39, 1
        %s259 = smul.addr %s258, 128
        %s260 = scalar_lea.vmem [#allocation4], %s259
        // Predicated region
        $region45: #{tpu_custom_call.1} parent=43 // pred_check
          %p261 = pneg %p52
        $region46: #{tpu_custom_call.1} parent=43 // pred_check_branch
          %263 = sbr.rel (%p261) target = $region48
        $region47: #{tpu_custom_call.1} parent=43 // pred_region
          %264 = dma.done %s257, 2048
        $region48: #{tpu_custom_call.1} parent=43 // pred_fallthru
          _
        // Predicated region
        $region49: #{tpu_custom_call.1} parent=43 // pred_check
          %p265 = pneg %p115
        $region50: #{tpu_custom_call.1} parent=43 // pred_check_branch
          %267 = sbr.rel (%p265) target = $region52
        $region51: #{tpu_custom_call.1} parent=43 // pred_region
          %268 = dma.done [#allocation8], 2304
        $region52: #{tpu_custom_call.1} parent=43 // pred_fallthru
          _
        %s269 = sand.u32 %s39, 1
        %s270 = scalar_lea.sflag [#allocation5], %s269
        %s271 = sand.u32 %s39, 1
        %s272 = smul.addr %s271, 128
        %s273 = scalar_lea.vmem [#allocation4], %s272
        %p274 = pneg %p52
        %p275 = pneg %p49
        %p276 = pneg %p73
        %p277 = pneg %p70
        %p278 = pneg %p94
        %p279 = pneg %p91
        %p280 = pneg %p115
        %p281 = pneg %p112
        %p282 = pneg %p136
        %p283 = pneg %p133
        %p284 = pneg %p157
        %p285 = pneg %p154
        %p286 = pneg %p183
        %p287 = pneg %p180
        %s288 = sand.u32 %s170, 1
        %s289 = scalar_lea.sflag [#allocation6], %s288
        %s290 = sand.u32 %s170, 1
        %s291 = smul.addr %s290, 128
        %s292 = scalar_lea.vmem [#allocation9], %s291
        %s293 = smul.u32 8, %s31
        %s294 = smul.u32 8, %s31
        %s295 = smul.u32 %s31, 8
        %v296 = vld [vmem:[%s260] sm:$0xff]
        %v297 = vld [vmem:[%s260 + $0x8] sm:$0xff]
        %v298 = vld [vmem:[%s3] sm:$0xff]
        %v299 = vld [vmem:[%s2] sm:$0xff]
        %s300 = smul.u32 %s295, 128
        %s301 = sld [smem:[#allocation3 + %s300]]
        %v302 = vstv %s301
        %v303 = vmul.f32 %v299, %v302
        %v304 = vadd.f32 %v298, %v303
        %s305 = sadd.s32 %s300, 1
        %s306 = sld [smem:[#allocation3 + %s305]]
        %v307 = vstv %s306
        %v308 = vmul.f32 %v299, %v307
        %310 = vrot.lane.b32.xlu0 %v308, 127
        %v311 = vpop.permute.xlu0 %310
        %v313 = vadd.f32 %v304, %v311
        %s314 = sadd.s32 %s300, 2
        %s315 = sld [smem:[#allocation3 + %s314]]
        %v316 = vstv %s315
        %v317 = vmul.f32 %v299, %v316
        %319 = vrot.lane.b32.xlu0 %v317, 126
        %v320 = vpop.permute.xlu0 %319
        %v322 = vadd.f32 %v313, %v320
        %s323 = sadd.s32 %s300, 3
        %s324 = sld [smem:[#allocation3 + %s323]]
        %v325 = vstv %s324
        %v326 = vmul.f32 %v299, %v325
        %328 = vrot.lane.b32.xlu0 %v326, 125
        %v329 = vpop.permute.xlu0 %328
        %v331 = vadd.f32 %v322, %v329
        %s332 = sadd.s32 %s300, 4
        %s333 = sld [smem:[#allocation3 + %s332]]
        %v334 = vstv %s333
        %v335 = vmul.f32 %v299, %v334
        %337 = vrot.lane.b32.xlu0 %v335, 124
        %v338 = vpop.permute.xlu0 %337
        %v340 = vadd.f32 %v331, %v338
        %s341 = sadd.s32 %s300, 5
        %s342 = sld [smem:[#allocation3 + %s341]]
        %v343 = vstv %s342
        %v344 = vmul.f32 %v299, %v343
        %346 = vrot.lane.b32.xlu0 %v344, 123
        %v347 = vpop.permute.xlu0 %346
        %v349 = vadd.f32 %v340, %v347
        %s350 = sadd.s32 %s300, 6
        %s351 = sld [smem:[#allocation3 + %s350]]
        %v352 = vstv %s351
        %v353 = vmul.f32 %v299, %v352
        %355 = vrot.lane.b32.xlu0 %v353, 122
        %v356 = vpop.permute.xlu0 %355
        %v358 = vadd.f32 %v349, %v356
        %s359 = sadd.s32 %s300, 7
        %s360 = sld [smem:[#allocation3 + %s359]]
        %v361 = vstv %s360
        %v362 = vmul.f32 %v299, %v361
        %364 = vrot.lane.b32.xlu0 %v362, 121
        %v365 = vpop.permute.xlu0 %364
        %v367 = vadd.f32 %v358, %v365
        %369 = vset.pattern.permute.xlu0 0
        %370 = vperm.xlu0 %369, %v367
        %v371 = vpop.permute.xlu0 %370
        %v373 = vadd.f32 %v296, %v371
        %v374 = vadd.f32 %v297, %v371
        %v375 = vrot.slane %v373, 4
        %v376 = vadd.f32 %v373, %v375
        %v377 = vrot.slane %v376, 2
        %v378 = vadd.f32 %v376, %v377
        %v379 = vrot.slane %v378, 1
        %v380 = vadd.f32 %v378, %v379
        %v381 = vrot.slane %v374, 4
        %v382 = vadd.f32 %v374, %v381
        %v383 = vrot.slane %v382, 2
        %v384 = vadd.f32 %v382, %v383
        %v385 = vrot.slane %v384, 1
        %v386 = vadd.f32 %v384, %v385
        %v387 = vmul.f32 %v373, %v373
        %v388 = vmul.f32 %v374, %v374
        %v389 = vrot.slane %v387, 4
        %v390 = vadd.f32 %v387, %v389
        %v391 = vrot.slane %v390, 2
        %v392 = vadd.f32 %v390, %v391
        %v393 = vrot.slane %v392, 1
        %v394 = vadd.f32 %v392, %v393
        %v395 = vrot.slane %v388, 4
        %v396 = vadd.f32 %v388, %v395
        %v397 = vrot.slane %v396, 2
        %v398 = vadd.f32 %v396, %v397
        %v399 = vrot.slane %v398, 1
        %v400 = vadd.f32 %v398, %v399
        %v401 = vmul.f32 %v380, 0.125
        %v402 = vmul.f32 %v386, 0.125
        %v403 = vmul.f32 %v401, 8.0
        %v404 = vmul.f32 %v402, 8.0
        %v405 = vmul.f32 %v403, %v401
        %v406 = vmul.f32 %v404, %v402
        %v407 = vsub.f32 %v394, %v405
        %v408 = vsub.f32 %v400, %v406
        %v409 = vmul.f32 %v407, 0.14285715
        %v410 = vmul.f32 %v408, 0.14285715
        %v411 = vsub.f32 %v373, %v401
        %v412 = vsub.f32 %v374, %v402
        %v413 = vadd.f32 %v409, 1e-05
        %v414 = vadd.f32 %v410, 1e-05
        %v415 = vrsqrt.pop %v413
        %v416 = vrsqrt.pop %v414
        %v417 = vmul.f32 %v411, %v415
        %v418 = vmul.f32 %v412, %v416
        %419 = vrot.lane.b32.xlu0 %v417, 17
        %v420 = vpop.permute.xlu0 %419
        %421 = vrot.lane.b32.xlu0 %v418, 17
        %v422 = vpop.permute.xlu0 %421
        %v423 = vlaneseq
        %v424 = vand.u32 %v423, 127
        %vm425 = vcmp.lt.s32.totalorder %v424, 17
        %v426 = vsel %vm425, %v420, %v422
        %v427 = vsel %vm425, %v422, %v420
        %v428 = vld [vmem:[#allocation7] sm:$0xff]
        %v429 = vld [vmem:[#allocation7 + $0x8] sm:$0xff]
        %v430 = vmul.f32 %v428, %v427
        %v431 = vmul.f32 %v429, %v426
        %432 = vrot.lane.b32.xlu0 %v417, 16
        %v433 = vpop.permute.xlu0 %432
        %434 = vrot.lane.b32.xlu0 %v418, 16
        %v435 = vpop.permute.xlu0 %434
        %vm436 = vcmp.lt.s32.totalorder %v424, 16
        %v437 = vsel %vm436, %v433, %v435
        %v438 = vsel %vm436, %v435, %v433
        %s439 = scalar_lea.vmem [#allocation7], 16
        %v440 = vld [vmem:[%s439] sm:$0xff]
        %v441 = vld [vmem:[%s439 + $0x8] sm:$0xff]
        %v442 = vmul.f32 %v440, %v438
        %v443 = vmul.f32 %v441, %v437
        %444 = vrot.lane.b32.xlu0 %v417, 15
        %v445 = vpop.permute.xlu0 %444
        %446 = vrot.lane.b32.xlu0 %v418, 15
        %v447 = vpop.permute.xlu0 %446
        %vm448 = vcmp.lt.s32.totalorder %v424, 15
        %v449 = vsel %vm448, %v445, %v447
        %v450 = vsel %vm448, %v447, %v445
        %s451 = scalar_lea.vmem [#allocation7], 32
        %v452 = vld [vmem:[%s451] sm:$0xff]
        %v453 = vld [vmem:[%s451 + $0x8] sm:$0xff]
        %v454 = vmul.f32 %v452, %v450
        %v455 = vmul.f32 %v453, %v449
        %456 = vrot.lane.b32.xlu0 %v417, 1
        %v457 = vpop.permute.xlu0 %456
        %458 = vrot.lane.b32.xlu0 %v418, 1
        %v459 = vpop.permute.xlu0 %458
        %vm460 = vcmp.lt.s32.totalorder %v424, 1
        %v461 = vsel %vm460, %v457, %v459
        %v462 = vsel %vm460, %v459, %v457
        %s463 = scalar_lea.vmem [#allocation7], 48
        %v464 = vld [vmem:[%s463] sm:$0xff]
        %v465 = vld [vmem:[%s463 + $0x8] sm:$0xff]
        %v466 = vmul.f32 %v464, %v462
        %v467 = vmul.f32 %v465, %v461
        %468 = vrot.lane.b32.xlu0 %v417, 127
        %v469 = vpop.permute.xlu0 %468
        %470 = vrot.lane.b32.xlu0 %v418, 127
        %v471 = vpop.permute.xlu0 %470
        %vm472 = vcmp.lt.s32.totalorder %v424, 127
        %v473 = vsel %vm472, %v469, %v471
        %v474 = vsel %vm472, %v471, %v469
        %s475 = scalar_lea.vmem [#allocation7], 80
        %v476 = vld [vmem:[%s475] sm:$0xff]
        %v477 = vld [vmem:[%s475 + $0x8] sm:$0xff]
        %v478 = vmul.f32 %v476, %v473
        %v479 = vmul.f32 %v477, %v474
        %480 = vrot.lane.b32.xlu0 %v417, 113
        %v481 = vpop.permute.xlu0 %480
        %482 = vrot.lane.b32.xlu0 %v418, 113
        %v483 = vpop.permute.xlu0 %482
        %vm484 = vcmp.lt.s32.totalorder %v424, 113
        %v485 = vsel %vm484, %v481, %v483
        %v486 = vsel %vm484, %v483, %v481
        %s487 = scalar_lea.vmem [#allocation7], 96
        %v488 = vld [vmem:[%s487] sm:$0xff]
        %v489 = vld [vmem:[%s487 + $0x8] sm:$0xff]
        %v490 = vmul.f32 %v488, %v485
        %v491 = vmul.f32 %v489, %v486
        %492 = vrot.lane.b32.xlu0 %v417, 112
        %v493 = vpop.permute.xlu0 %492
        %494 = vrot.lane.b32.xlu0 %v418, 112
        %v495 = vpop.permute.xlu0 %494
        %vm496 = vcmp.lt.s32.totalorder %v424, 112
        %v497 = vsel %vm496, %v493, %v495
        %v498 = vsel %vm496, %v495, %v493
        %s499 = scalar_lea.vmem [#allocation7], 112
        %v500 = vld [vmem:[%s499] sm:$0xff]
        %v501 = vld [vmem:[%s499 + $0x8] sm:$0xff]
        %v502 = vmul.f32 %v500, %v497
        %v503 = vmul.f32 %v501, %v498
        %504 = vrot.lane.b32.xlu0 %v417, 111
        %v505 = vpop.permute.xlu0 %504
        %506 = vrot.lane.b32.xlu0 %v418, 111
        %v507 = vpop.permute.xlu0 %506
        %vm508 = vcmp.lt.s32.totalorder %v424, 111
        %v509 = vsel %vm508, %v505, %v507
        %v510 = vsel %vm508, %v507, %v505
        %s511 = scalar_lea.vmem [#allocation7], 128
        %v512 = vld [vmem:[%s511] sm:$0xff]
        %v513 = vld [vmem:[%s511 + $0x8] sm:$0xff]
        %v514 = vmul.f32 %v512, %v509
        %v515 = vmul.f32 %v513, %v510
        %v516 = vld [vmem:[%s5] sm:$0xff]
        %vm517 = vcmask 654336
        %v519 = vsel %vm517, %v516, 0
        %521 = vmatprep.subr.mxu0 %v431
        %522 = vmatpush1.msra.mxu0 %v430
        %523 = vmatprep.subr.mxu0 %v443
        %524 = vmatpush1.msra.mxu0 %v442
        %525 = vmatprep.subr.mxu0 %v455
        %526 = vmatpush1.msra.mxu0 %v454
        %527 = vmatprep.subr.mxu0 %v467
        %528 = vmatpush1.msra.mxu0 %v466
        %529 = vmatprep.subr.mxu0 %v418
        %530 = vmatpush1.msra.mxu0 %v417
        %531 = vmatprep.subr.mxu0 %v479
        %532 = vmatpush1.msra.mxu0 %v478
        %533 = vmatprep.subr.mxu0 %v491
        %534 = vmatpush1.msra.mxu0 %v490
        %535 = vmatprep.subr.mxu0 %v503
        %536 = vmatpush1.msra.mxu0 %v502
        %537 = vmatprep.subr.mxu0 %v515
        %538 = vmatpush1.msra.mxu0 %v514
        %539 = vmatprep.subr.mxu0 1.0
        %540 = vmatpush1.msra.mxu0 1.0
        %541 = vmatprep.subr.mxu0 0.0
        %542 = vmatpush1.msra.mxu0 0.0
        %543 = vmatprep.subr.mxu0 0.0
        %544 = vmatpush1.msra.mxu0 0.0
        %545 = vmatprep.subr.mxu0 0.0
        %546 = vmatpush1.msra.mxu0 0.0
        %547 = vmatprep.subr.mxu0 0.0
        %548 = vmatpush1.msra.mxu0 0.0
        %549 = vmatprep.subr.mxu0 0.0
        %550 = vmatpush1.msra.mxu0 0.0
        %551 = vmatprep.subr.mxu0 0.0
        %552 = vmatpush1.msra.mxu0 0.0
        %553 = vmatprep.subr.mxu0 0.0
        %554 = vmatpush1.msra.mxu0 0.0
        %555 = vmatprep.subr.mxu0 0.0
        %556 = vmatpush1.msra.mxu0 0.0
        %557 = vmatprep.subr.mxu0 0.0
        %558 = vmatpush1.msra.mxu0 0.0
        %559 = vmatprep.subr.mxu0 0.0
        %560 = vmatpush1.msra.mxu0 0.0
        %561 = vmatprep.subr.mxu0 0.0
        %562 = vmatpush1.msra.mxu0 0.0
        %563 = vmatprep.subr.mxu0 0.0
        %564 = vmatpush1.msra.mxu0 0.0
        %565 = vmatprep.subr.mxu0 0.0
        %566 = vmatpush1.msra.mxu0 0.0
        %567 = vmatprep.subr.mxu0 0.0
        %568 = vmatpush1.msra.mxu0 0.0
        %569 = vmatprep.subr.mxu0 0.0
        %570 = vmatpush1.msra.mxu0 0.0
        %571 = vmatprep.subr.mxu0 0.0
        %572 = vmatpush1.msra.mxu0 0.0
        %573 = vmatprep.subr.mxu0 0.0
        %574 = vmatpush1.msra.mxu0 0.0
        %575 = vmatprep.subr.mxu0 0.0
        %576 = vmatpush1.msra.mxu0 0.0
        %577 = vmatprep.subr.mxu0 0.0
        %578 = vmatpush1.msra.mxu0 0.0
        %579 = vmatprep.subr.mxu0 0.0
        %580 = vmatpush1.msra.mxu0 0.0
        %581 = vmatprep.subr.mxu0 0.0
        %582 = vmatpush1.msra.mxu0 0.0
        %583 = vmatprep.subr.mxu0 0.0
        %584 = vmatpush1.msra.mxu0 0.0
        %585 = vmatprep.mubr.f32.mxu0 0.0
        %586 = vmatmul.mubr.f32.gmra.mrb[0].mxu0 %v519
        %v587 = vpop.f32.mrb[0].mxu0
        %v588 = vadd.f32 0.0, %v587
        %v589 = vpop.f32.mrb[0].mxu0
        %v590 = vadd.f32 0.0, %v589
        %591 = vdwg.mxu0
        %v592 = vxor.u32 %v588, 2147483648
        %v593 = vxor.u32 %v590, 2147483648
        %v594 = vmul.f32 %v592, 1.442695
        %v595 = vpow.pop %v594
        %v596 = vmul.f32 %v593, 1.442695
        %v597 = vpow.pop %v596
        %v598 = vadd.f32 %v595, 1.0
        %v599 = vadd.f32 %v597, 1.0
        %v600 = vrcp.pop %v598
        %v601 = vmul.f32 1.0, %v600
        %v602 = vrcp.pop %v599
        %v603 = vmul.f32 1.0, %v602
        %v604 = vmul.f32 %v588, %v601
        %v605 = vmul.f32 %v590, %v603
        %606 = vrot.lane.b32.xlu0 %v604, 17
        %v607 = vpop.permute.xlu0 %606
        %608 = vrot.lane.b32.xlu0 %v605, 17
        %v609 = vpop.permute.xlu0 %608
        %v610 = vsel %vm425, %v607, %v609
        %v611 = vsel %vm425, %v609, %v607
        %v612 = vmul.f32 %v428, %v611
        %v613 = vmul.f32 %v429, %v610
        %614 = vrot.lane.b32.xlu0 %v604, 16
        %v615 = vpop.permute.xlu0 %614
        %616 = vrot.lane.b32.xlu0 %v605, 16
        %v617 = vpop.permute.xlu0 %616
        %v618 = vsel %vm436, %v615, %v617
        %v619 = vsel %vm436, %v617, %v615
        %v620 = vmul.f32 %v440, %v619
        %v621 = vmul.f32 %v441, %v618
        %622 = vrot.lane.b32.xlu0 %v604, 15
        %v623 = vpop.permute.xlu0 %622
        %624 = vrot.lane.b32.xlu0 %v605, 15
        %v625 = vpop.permute.xlu0 %624
        %v626 = vsel %vm448, %v623, %v625
        %v627 = vsel %vm448, %v625, %v623
        %v628 = vmul.f32 %v452, %v627
        %v629 = vmul.f32 %v453, %v626
        %630 = vrot.lane.b32.xlu0 %v604, 1
        %v631 = vpop.permute.xlu0 %630
        %632 = vrot.lane.b32.xlu0 %v605, 1
        %v633 = vpop.permute.xlu0 %632
        %v634 = vsel %vm460, %v631, %v633
        %v635 = vsel %vm460, %v633, %v631
        %v636 = vmul.f32 %v464, %v635
        %v637 = vmul.f32 %v465, %v634
        %638 = vrot.lane.b32.xlu0 %v604, 127
        %v639 = vpop.permute.xlu0 %638
        %640 = vrot.lane.b32.xlu0 %v605, 127
        %v641 = vpop.permute.xlu0 %640
        %v642 = vsel %vm472, %v639, %v641
        %v643 = vsel %vm472, %v641, %v639
        %v644 = vmul.f32 %v476, %v642
        %v645 = vmul.f32 %v477, %v643
        %646 = vrot.lane.b32.xlu0 %v604, 113
        %v647 = vpop.permute.xlu0 %646
        %648 = vrot.lane.b32.xlu0 %v605, 113
        %v649 = vpop.permute.xlu0 %648
        %v650 = vsel %vm484, %v647, %v649
        %v651 = vsel %vm484, %v649, %v647
        %v652 = vmul.f32 %v488, %v650
        %v653 = vmul.f32 %v489, %v651
        %654 = vrot.lane.b32.xlu0 %v604, 112
        %v655 = vpop.permute.xlu0 %654
        %656 = vrot.lane.b32.xlu0 %v605, 112
        %v657 = vpop.permute.xlu0 %656
        %v658 = vsel %vm496, %v655, %v657
        %v659 = vsel %vm496, %v657, %v655
        %v660 = vmul.f32 %v500, %v658
        %v661 = vmul.f32 %v501, %v659
        %662 = vrot.lane.b32.xlu0 %v604, 111
        %v663 = vpop.permute.xlu0 %662
        %664 = vrot.lane.b32.xlu0 %v605, 111
        %v665 = vpop.permute.xlu0 %664
        %v666 = vsel %vm508, %v663, %v665
        %v667 = vsel %vm508, %v665, %v663
        %v668 = vmul.f32 %v512, %v666
        %v669 = vmul.f32 %v513, %v667
        %v670 = vld [vmem:[%s6] sm:$0xff]
        %v672 = vsel %vm517, %v670, 0
        %674 = vmatprep.subr.mxu0 %v613
        %675 = vmatpush1.msra.mxu0 %v612
        %676 = vmatprep.subr.mxu0 %v621
        %677 = vmatpush1.msra.mxu0 %v620
        %678 = vmatprep.subr.mxu0 %v629
        %679 = vmatpush1.msra.mxu0 %v628
        %680 = vmatprep.subr.mxu0 %v637
        %681 = vmatpush1.msra.mxu0 %v636
        %682 = vmatprep.subr.mxu0 %v605
        %683 = vmatpush1.msra.mxu0 %v604
        %684 = vmatprep.subr.mxu0 %v645
        %685 = vmatpush1.msra.mxu0 %v644
        %686 = vmatprep.subr.mxu0 %v653
        %687 = vmatpush1.msra.mxu0 %v652
        %688 = vmatprep.subr.mxu0 %v661
        %689 = vmatpush1.msra.mxu0 %v660
        %690 = vmatprep.subr.mxu0 %v669
        %691 = vmatpush1.msra.mxu0 %v668
        %692 = vmatprep.subr.mxu0 1.0
        %693 = vmatpush1.msra.mxu0 1.0
        %694 = vmatprep.subr.mxu0 0.0
        %695 = vmatpush1.msra.mxu0 0.0
        %696 = vmatprep.subr.mxu0 0.0
        %697 = vmatpush1.msra.mxu0 0.0
        %698 = vmatprep.subr.mxu0 0.0
        %699 = vmatpush1.msra.mxu0 0.0
        %700 = vmatprep.subr.mxu0 0.0
        %701 = vmatpush1.msra.mxu0 0.0
        %702 = vmatprep.subr.mxu0 0.0
        %703 = vmatpush1.msra.mxu0 0.0
        %704 = vmatprep.subr.mxu0 0.0
        %705 = vmatpush1.msra.mxu0 0.0
        %706 = vmatprep.subr.mxu0 0.0
        %707 = vmatpush1.msra.mxu0 0.0
        %708 = vmatprep.subr.mxu0 0.0
        %709 = vmatpush1.msra.mxu0 0.0
        %710 = vmatprep.subr.mxu0 0.0
        %711 = vmatpush1.msra.mxu0 0.0
        %712 = vmatprep.subr.mxu0 0.0
        %713 = vmatpush1.msra.mxu0 0.0
        %714 = vmatprep.subr.mxu0 0.0
        %715 = vmatpush1.msra.mxu0 0.0
        %716 = vmatprep.subr.mxu0 0.0
        %717 = vmatpush1.msra.mxu0 0.0
        %718 = vmatprep.subr.mxu0 0.0
        %719 = vmatpush1.msra.mxu0 0.0
        %720 = vmatprep.subr.mxu0 0.0
        %721 = vmatpush1.msra.mxu0 0.0
        %722 = vmatprep.subr.mxu0 0.0
        %723 = vmatpush1.msra.mxu0 0.0
        %724 = vmatprep.subr.mxu0 0.0
        %725 = vmatpush1.msra.mxu0 0.0
        %726 = vmatprep.subr.mxu0 0.0
        %727 = vmatpush1.msra.mxu0 0.0
        %728 = vmatprep.subr.mxu0 0.0
        %729 = vmatpush1.msra.mxu0 0.0
        %730 = vmatprep.subr.mxu0 0.0
        %731 = vmatpush1.msra.mxu0 0.0
        %732 = vmatprep.subr.mxu0 0.0
        %733 = vmatpush1.msra.mxu0 0.0
        %734 = vmatprep.subr.mxu0 0.0
        %735 = vmatpush1.msra.mxu0 0.0
        %736 = vmatprep.subr.mxu0 0.0
        %737 = vmatpush1.msra.mxu0 0.0
        %738 = vmatprep.mubr.f32.mxu0 0.0
        %739 = vmatmul.mubr.f32.gmra.mrb[0].mxu0 %v672
        %v740 = vpop.f32.mrb[0].mxu0
        %v741 = vadd.f32 0.0, %v740
        %v742 = vpop.f32.mrb[0].mxu0
        %v743 = vadd.f32 0.0, %v742
        %744 = vdwg.mxu0
        %v745 = vadd.f32 %v296, %v741
        %v746 = vadd.f32 %v297, %v743
        %747 = vst [vmem:[%s292] sm:$0xff] %v745
        %748 = vst [vmem:[%s292 + $0x8] sm:$0xff] %v746
        %s749 = scalar_lea.vmem %s260, 16 [#allocation4]
        %v750 = vld [vmem:[%s749] sm:$0xff]
        %v751 = vld [vmem:[%s749 + $0x8] sm:$0xff]
        %v752 = vld [vmem:[%s3] sm:$0xff]
        %v753 = vld [vmem:[%s2] sm:$0xff]
        %s754 = sadd.s32 %s295, 1
        %s755 = smul.u32 %s754, 128
        %s756 = sld [smem:[#allocation3 + %s755]]
        %v757 = vstv %s756
        %v758 = vmul.f32 %v753, %v757
        %v759 = vadd.f32 %v752, %v758
        %s760 = sadd.s32 %s755, 1
        %s761 = sld [smem:[#allocation3 + %s760]]
        %v762 = vstv %s761
        %v763 = vmul.f32 %v753, %v762
        %765 = vrot.lane.b32.xlu0 %v763, 127
        %v766 = vpop.permute.xlu0 %765
        %v768 = vadd.f32 %v759, %v766
        %s769 = sadd.s32 %s755, 2
        %s770 = sld [smem:[#allocation3 + %s769]]
        %v771 = vstv %s770
        %v772 = vmul.f32 %v753, %v771
        %774 = vrot.lane.b32.xlu0 %v772, 126
        %v775 = vpop.permute.xlu0 %774
        %v777 = vadd.f32 %v768, %v775
        %s778 = sadd.s32 %s755, 3
        %s779 = sld [smem:[#allocation3 + %s778]]
        %v780 = vstv %s779
        %v781 = vmul.f32 %v753, %v780
        %783 = vrot.lane.b32.xlu0 %v781, 125
        %v784 = vpop.permute.xlu0 %783
        %v786 = vadd.f32 %v777, %v784
        %s787 = sadd.s32 %s755, 4
        %s788 = sld [smem:[#allocation3 + %s787]]
        %v789 = vstv %s788
        %v790 = vmul.f32 %v753, %v789
        %792 = vrot.lane.b32.xlu0 %v790, 124
        %v793 = vpop.permute.xlu0 %792
        %v795 = vadd.f32 %v786, %v793
        %s796 = sadd.s32 %s755, 5
        %s797 = sld [smem:[#allocation3 + %s796]]
        %v798 = vstv %s797
        %v799 = vmul.f32 %v753, %v798
        %801 = vrot.lane.b32.xlu0 %v799, 123
        %v802 = vpop.permute.xlu0 %801
        %v804 = vadd.f32 %v795, %v802
        %s805 = sadd.s32 %s755, 6
        %s806 = sld [smem:[#allocation3 + %s805]]
        %v807 = vstv %s806
        %v808 = vmul.f32 %v753, %v807
        %810 = vrot.lane.b32.xlu0 %v808, 122
        %v811 = vpop.permute.xlu0 %810
        %v813 = vadd.f32 %v804, %v811
        %s814 = sadd.s32 %s755, 7
        %s815 = sld [smem:[#allocation3 + %s814]]
        %v816 = vstv %s815
        %v817 = vmul.f32 %v753, %v816
        %819 = vrot.lane.b32.xlu0 %v817, 121
        %v820 = vpop.permute.xlu0 %819
        %v822 = vadd.f32 %v813, %v820
        %824 = vset.pattern.permute.xlu0 0
        %825 = vperm.xlu0 %824, %v822
        %v826 = vpop.permute.xlu0 %825
        %v828 = vadd.f32 %v750, %v826
        %v829 = vadd.f32 %v751, %v826
        %v830 = vrot.slane %v828, 4
        %v831 = vadd.f32 %v828, %v830
        %v832 = vrot.slane %v831, 2
        %v833 = vadd.f32 %v831, %v832
        %v834 = vrot.slane %v833, 1
        %v835 = vadd.f32 %v833, %v834
        %v836 = vrot.slane %v829, 4
        %v837 = vadd.f32 %v829, %v836
        %v838 = vrot.slane %v837, 2
        %v839 = vadd.f32 %v837, %v838
        %v840 = vrot.slane %v839, 1
        %v841 = vadd.f32 %v839, %v840
        %v842 = vmul.f32 %v828, %v828
        %v843 = vmul.f32 %v829, %v829
        %v844 = vrot.slane %v842, 4
        %v845 = vadd.f32 %v842, %v844
        %v846 = vrot.slane %v845, 2
        %v847 = vadd.f32 %v845, %v846
        %v848 = vrot.slane %v847, 1
        %v849 = vadd.f32 %v847, %v848
        %v850 = vrot.slane %v843, 4
        %v851 = vadd.f32 %v843, %v850
        %v852 = vrot.slane %v851, 2
        %v853 = vadd.f32 %v851, %v852
        %v854 = vrot.slane %v853, 1
        %v855 = vadd.f32 %v853, %v854
        %v856 = vmul.f32 %v835, 0.125
        %v857 = vmul.f32 %v841, 0.125
        %v858 = vmul.f32 %v856, 8.0
        %v859 = vmul.f32 %v857, 8.0
        %v860 = vmul.f32 %v858, %v856
        %v861 = vmul.f32 %v859, %v857
        %v862 = vsub.f32 %v849, %v860
        %v863 = vsub.f32 %v855, %v861
        %v864 = vmul.f32 %v862, 0.14285715
        %v865 = vmul.f32 %v863, 0.14285715
        %v866 = vsub.f32 %v828, %v856
        %v867 = vsub.f32 %v829, %v857
        %v868 = vadd.f32 %v864, 1e-05
        %v869 = vadd.f32 %v865, 1e-05
        %v870 = vrsqrt.pop %v868
        %v871 = vrsqrt.pop %v869
        %v872 = vmul.f32 %v866, %v870
        %v873 = vmul.f32 %v867, %v871
        %874 = vrot.lane.b32.xlu0 %v872, 17
        %v875 = vpop.permute.xlu0 %874
        %876 = vrot.lane.b32.xlu0 %v873, 17
        %v877 = vpop.permute.xlu0 %876
        %v878 = vsel %vm425, %v875, %v877
        %v879 = vsel %vm425, %v877, %v875
        %v880 = vld [vmem:[#allocation7] sm:$0xff]
        %v881 = vld [vmem:[#allocation7 + $0x8] sm:$0xff]
        %v882 = vmul.f32 %v880, %v879
        %v883 = vmul.f32 %v881, %v878
        %884 = vrot.lane.b32.xlu0 %v872, 16
        %v885 = vpop.permute.xlu0 %884
        %886 = vrot.lane.b32.xlu0 %v873, 16
        %v887 = vpop.permute.xlu0 %886
        %v888 = vsel %vm436, %v885, %v887
        %v889 = vsel %vm436, %v887, %v885
        %v890 = vld [vmem:[%s439] sm:$0xff]
        %v891 = vld [vmem:[%s439 + $0x8] sm:$0xff]
        %v892 = vmul.f32 %v890, %v889
        %v893 = vmul.f32 %v891, %v888
        %894 = vrot.lane.b32.xlu0 %v872, 15
        %v895 = vpop.permute.xlu0 %894
        %896 = vrot.lane.b32.xlu0 %v873, 15
        %v897 = vpop.permute.xlu0 %896
        %v898 = vsel %vm448, %v895, %v897
        %v899 = vsel %vm448, %v897, %v895
        %v900 = vld [vmem:[%s451] sm:$0xff]
        %v901 = vld [vmem:[%s451 + $0x8] sm:$0xff]
        %v902 = vmul.f32 %v900, %v899
        %v903 = vmul.f32 %v901, %v898
        %904 = vrot.lane.b32.xlu0 %v872, 1
        %v905 = vpop.permute.xlu0 %904
        %906 = vrot.lane.b32.xlu0 %v873, 1
        %v907 = vpop.permute.xlu0 %906
        %v908 = vsel %vm460, %v905, %v907
        %v909 = vsel %vm460, %v907, %v905
        %v910 = vld [vmem:[%s463] sm:$0xff]
        %v911 = vld [vmem:[%s463 + $0x8] sm:$0xff]
        %v912 = vmul.f32 %v910, %v909
        %v913 = vmul.f32 %v911, %v908
        %914 = vrot.lane.b32.xlu0 %v872, 127
        %v915 = vpop.permute.xlu0 %914
        %916 = vrot.lane.b32.xlu0 %v873, 127
        %v917 = vpop.permute.xlu0 %916
        %v918 = vsel %vm472, %v915, %v917
        %v919 = vsel %vm472, %v917, %v915
        %v920 = vld [vmem:[%s475] sm:$0xff]
        %v921 = vld [vmem:[%s475 + $0x8] sm:$0xff]
        %v922 = vmul.f32 %v920, %v918
        %v923 = vmul.f32 %v921, %v919
        %924 = vrot.lane.b32.xlu0 %v872, 113
        %v925 = vpop.permute.xlu0 %924
        %926 = vrot.lane.b32.xlu0 %v873, 113
        %v927 = vpop.permute.xlu0 %926
        %v928 = vsel %vm484, %v925, %v927
        %v929 = vsel %vm484, %v927, %v925
        %v930 = vld [vmem:[%s487] sm:$0xff]
        %v931 = vld [vmem:[%s487 + $0x8] sm:$0xff]
        %v932 = vmul.f32 %v930, %v928
        %v933 = vmul.f32 %v931, %v929
        %934 = vrot.lane.b32.xlu0 %v872, 112
        %v935 = vpop.permute.xlu0 %934
        %936 = vrot.lane.b32.xlu0 %v873, 112
        %v937 = vpop.permute.xlu0 %936
        %v938 = vsel %vm496, %v935, %v937
        %v939 = vsel %vm496, %v937, %v935
        %v940 = vld [vmem:[%s499] sm:$0xff]
        %v941 = vld [vmem:[%s499 + $0x8] sm:$0xff]
        %v942 = vmul.f32 %v940, %v938
        %v943 = vmul.f32 %v941, %v939
        %944 = vrot.lane.b32.xlu0 %v872, 111
        %v945 = vpop.permute.xlu0 %944
        %946 = vrot.lane.b32.xlu0 %v873, 111
        %v947 = vpop.permute.xlu0 %946
        %v948 = vsel %vm508, %v945, %v947
        %v949 = vsel %vm508, %v947, %v945
        %v950 = vld [vmem:[%s511] sm:$0xff]
        %v951 = vld [vmem:[%s511 + $0x8] sm:$0xff]
        %v952 = vmul.f32 %v950, %v948
        %v953 = vmul.f32 %v951, %v949
        %v954 = vld [vmem:[%s5] sm:$0xff]
        %v956 = vsel %vm517, %v954, 0
        %958 = vmatprep.subr.mxu0 %v883
        %959 = vmatpush1.msra.mxu0 %v882
        %960 = vmatprep.subr.mxu0 %v893
        %961 = vmatpush1.msra.mxu0 %v892
        %962 = vmatprep.subr.mxu0 %v903
        %963 = vmatpush1.msra.mxu0 %v902
        %964 = vmatprep.subr.mxu0 %v913
        %965 = vmatpush1.msra.mxu0 %v912
        %966 = vmatprep.subr.mxu0 %v873
        %967 = vmatpush1.msra.mxu0 %v872
        %968 = vmatprep.subr.mxu0 %v923
        %969 = vmatpush1.msra.mxu0 %v922
        %970 = vmatprep.subr.mxu0 %v933
        %971 = vmatpush1.msra.mxu0 %v932
        %972 = vmatprep.subr.mxu0 %v943
        %973 = vmatpush1.msra.mxu0 %v942
        %974 = vmatprep.subr.mxu0 %v953
        %975 = vmatpush1.msra.mxu0 %v952
        %976 = vmatprep.subr.mxu0 1.0
        %977 = vmatpush1.msra.mxu0 1.0
        %978 = vmatprep.subr.mxu0 0.0
        %979 = vmatpush1.msra.mxu0 0.0
        %980 = vmatprep.subr.mxu0 0.0
        %981 = vmatpush1.msra.mxu0 0.0
        %982 = vmatprep.subr.mxu0 0.0
        %983 = vmatpush1.msra.mxu0 0.0
        %984 = vmatprep.subr.mxu0 0.0
        %985 = vmatpush1.msra.mxu0 0.0
        %986 = vmatprep.subr.mxu0 0.0
        %987 = vmatpush1.msra.mxu0 0.0
        %988 = vmatprep.subr.mxu0 0.0
        %989 = vmatpush1.msra.mxu0 0.0
        %990 = vmatprep.subr.mxu0 0.0
        %991 = vmatpush1.msra.mxu0 0.0
        %992 = vmatprep.subr.mxu0 0.0
        %993 = vmatpush1.msra.mxu0 0.0
        %994 = vmatprep.subr.mxu0 0.0
        %995 = vmatpush1.msra.mxu0 0.0
        %996 = vmatprep.subr.mxu0 0.0
        %997 = vmatpush1.msra.mxu0 0.0
        %998 = vmatprep.subr.mxu0 0.0
        %999 = vmatpush1.msra.mxu0 0.0
        %1000 = vmatprep.subr.mxu0 0.0
        %1001 = vmatpush1.msra.mxu0 0.0
        %1002 = vmatprep.subr.mxu0 0.0
        %1003 = vmatpush1.msra.mxu0 0.0
        %1004 = vmatprep.subr.mxu0 0.0
        %1005 = vmatpush1.msra.mxu0 0.0
        %1006 = vmatprep.subr.mxu0 0.0
        %1007 = vmatpush1.msra.mxu0 0.0
        %1008 = vmatprep.subr.mxu0 0.0
        %1009 = vmatpush1.msra.mxu0 0.0
        %1010 = vmatprep.subr.mxu0 0.0
        %1011 = vmatpush1.msra.mxu0 0.0
        %1012 = vmatprep.subr.mxu0 0.0
        %1013 = vmatpush1.msra.mxu0 0.0
        %1014 = vmatprep.subr.mxu0 0.0
        %1015 = vmatpush1.msra.mxu0 0.0
        %1016 = vmatprep.subr.mxu0 0.0
        %1017 = vmatpush1.msra.mxu0 0.0
        %1018 = vmatprep.subr.mxu0 0.0
        %1019 = vmatpush1.msra.mxu0 0.0
        %1020 = vmatprep.subr.mxu0 0.0
        %1021 = vmatpush1.msra.mxu0 0.0
        %1022 = vmatprep.mubr.f32.mxu0 0.0
        %1023 = vmatmul.mubr.f32.gmra.mrb[0].mxu0 %v956
        %v1024 = vpop.f32.mrb[0].mxu0
        %v1025 = vadd.f32 0.0, %v1024
        %v1026 = vpop.f32.mrb[0].mxu0
        %v1027 = vadd.f32 0.0, %v1026
        %1028 = vdwg.mxu0
        %v1029 = vxor.u32 %v1025, 2147483648
        %v1030 = vxor.u32 %v1027, 2147483648
        %v1031 = vmul.f32 %v1029, 1.442695
        %v1032 = vpow.pop %v1031
        %v1033 = vmul.f32 %v1030, 1.442695
        %v1034 = vpow.pop %v1033
        %v1035 = vadd.f32 %v1032, 1.0
        %v1036 = vadd.f32 %v1034, 1.0
        %v1037 = vrcp.pop %v1035
        %v1038 = vmul.f32 1.0, %v1037
        %v1039 = vrcp.pop %v1036
        %v1040 = vmul.f32 1.0, %v1039
        %v1041 = vmul.f32 %v1025, %v1038
        %v1042 = vmul.f32 %v1027, %v1040
        %1043 = vrot.lane.b32.xlu0 %v1041, 17
        %v1044 = vpop.permute.xlu0 %1043
        %1045 = vrot.lane.b32.xlu0 %v1042, 17
        %v1046 = vpop.permute.xlu0 %1045
        %v1047 = vsel %vm425, %v1044, %v1046
        %v1048 = vsel %vm425, %v1046, %v1044
        %v1049 = vmul.f32 %v880, %v1048
        %v1050 = vmul.f32 %v881, %v1047
        %1051 = vrot.lane.b32.xlu0 %v1041, 16
        %v1052 = vpop.permute.xlu0 %1051
        %1053 = vrot.lane.b32.xlu0 %v1042, 16
        %v1054 = vpop.permute.xlu0 %1053
        %v1055 = vsel %vm436, %v1052, %v1054
        %v1056 = vsel %vm436, %v1054, %v1052
        %v1057 = vmul.f32 %v890, %v1056
        %v1058 = vmul.f32 %v891, %v1055
        %1059 = vrot.lane.b32.xlu0 %v1041, 15
        %v1060 = vpop.permute.xlu0 %1059
        %1061 = vrot.lane.b32.xlu0 %v1042, 15
        %v1062 = vpop.permute.xlu0 %1061
        %v1063 = vsel %vm448, %v1060, %v1062
        %v1064 = vsel %vm448, %v1062, %v1060
        %v1065 = vmul.f32 %v900, %v1064
        %v1066 = vmul.f32 %v901, %v1063
        %1067 = vrot.lane.b32.xlu0 %v1041, 1
        %v1068 = vpop.permute.xlu0 %1067
        %1069 = vrot.lane.b32.xlu0 %v1042, 1
        %v1070 = vpop.permute.xlu0 %1069
        %v1071 = vsel %vm460, %v1068, %v1070
        %v1072 = vsel %vm460, %v1070, %v1068
        %v1073 = vmul.f32 %v910, %v1072
        %v1074 = vmul.f32 %v911, %v1071
        %1075 = vrot.lane.b32.xlu0 %v1041, 127
        %v1076 = vpop.permute.xlu0 %1075
        %1077 = vrot.lane.b32.xlu0 %v1042, 127
        %v1078 = vpop.permute.xlu0 %1077
        %v1079 = vsel %vm472, %v1076, %v1078
        %v1080 = vsel %vm472, %v1078, %v1076
        %v1081 = vmul.f32 %v920, %v1079
        %v1082 = vmul.f32 %v921, %v1080
        %1083 = vrot.lane.b32.xlu0 %v1041, 113
        %v1084 = vpop.permute.xlu0 %1083
        %1085 = vrot.lane.b32.xlu0 %v1042, 113
        %v1086 = vpop.permute.xlu0 %1085
        %v1087 = vsel %vm484, %v1084, %v1086
        %v1088 = vsel %vm484, %v1086, %v1084
        %v1089 = vmul.f32 %v930, %v1087
        %v1090 = vmul.f32 %v931, %v1088
        %1091 = vrot.lane.b32.xlu0 %v1041, 112
        %v1092 = vpop.permute.xlu0 %1091
        %1093 = vrot.lane.b32.xlu0 %v1042, 112
        %v1094 = vpop.permute.xlu0 %1093
        %v1095 = vsel %vm496, %v1092, %v1094
        %v1096 = vsel %vm496, %v1094, %v1092
        %v1097 = vmul.f32 %v940, %v1095
        %v1098 = vmul.f32 %v941, %v1096
        %1099 = vrot.lane.b32.xlu0 %v1041, 111
        %v1100 = vpop.permute.xlu0 %1099
        %1101 = vrot.lane.b32.xlu0 %v1042, 111
        %v1102 = vpop.permute.xlu0 %1101
        %v1103 = vsel %vm508, %v1100, %v1102
        %v1104 = vsel %vm508, %v1102, %v1100
        %v1105 = vmul.f32 %v950, %v1103
        %v1106 = vmul.f32 %v951, %v1104
        %v1107 = vld [vmem:[%s6] sm:$0xff]
        %v1109 = vsel %vm517, %v1107, 0
        %1111 = vmatprep.subr.mxu0 %v1050
        %1112 = vmatpush1.msra.mxu0 %v1049
        %1113 = vmatprep.subr.mxu0 %v1058
        %1114 = vmatpush1.msra.mxu0 %v1057
        %1115 = vmatprep.subr.mxu0 %v1066
        %1116 = vmatpush1.msra.mxu0 %v1065
        %1117 = vmatprep.subr.mxu0 %v1074
        %1118 = vmatpush1.msra.mxu0 %v1073
        %1119 = vmatprep.subr.mxu0 %v1042
        %1120 = vmatpush1.msra.mxu0 %v1041
        %1121 = vmatprep.subr.mxu0 %v1082
        %1122 = vmatpush1.msra.mxu0 %v1081
        %1123 = vmatprep.subr.mxu0 %v1090
        %1124 = vmatpush1.msra.mxu0 %v1089
        %1125 = vmatprep.subr.mxu0 %v1098
        %1126 = vmatpush1.msra.mxu0 %v1097
        %1127 = vmatprep.subr.mxu0 %v1106
        %1128 = vmatpush1.msra.mxu0 %v1105
        %1129 = vmatprep.subr.mxu0 1.0
        %1130 = vmatpush1.msra.mxu0 1.0
        %1131 = vmatprep.subr.mxu0 0.0
        %1132 = vmatpush1.msra.mxu0 0.0
        %1133 = vmatprep.subr.mxu0 0.0
        %1134 = vmatpush1.msra.mxu0 0.0
        %1135 = vmatprep.subr.mxu0 0.0
        %1136 = vmatpush1.msra.mxu0 0.0
        %1137 = vmatprep.subr.mxu0 0.0
        %1138 = vmatpush1.msra.mxu0 0.0
        %1139 = vmatprep.subr.mxu0 0.0
        %1140 = vmatpush1.msra.mxu0 0.0
        %1141 = vmatprep.subr.mxu0 0.0
        %1142 = vmatpush1.msra.mxu0 0.0
        %1143 = vmatprep.subr.mxu0 0.0
        %1144 = vmatpush1.msra.mxu0 0.0
        %1145 = vmatprep.subr.mxu0 0.0
        %1146 = vmatpush1.msra.mxu0 0.0
        %1147 = vmatprep.subr.mxu0 0.0
        %1148 = vmatpush1.msra.mxu0 0.0
        %1149 = vmatprep.subr.mxu0 0.0
        %1150 = vmatpush1.msra.mxu0 0.0
        %1151 = vmatprep.subr.mxu0 0.0
        %1152 = vmatpush1.msra.mxu0 0.0
        %1153 = vmatprep.subr.mxu0 0.0
        %1154 = vmatpush1.msra.mxu0 0.0
        %1155 = vmatprep.subr.mxu0 0.0
        %1156 = vmatpush1.msra.mxu0 0.0
        %1157 = vmatprep.subr.mxu0 0.0
        %1158 = vmatpush1.msra.mxu0 0.0
        %1159 = vmatprep.subr.mxu0 0.0
        %1160 = vmatpush1.msra.mxu0 0.0
        %1161 = vmatprep.subr.mxu0 0.0
        %1162 = vmatpush1.msra.mxu0 0.0
        %1163 = vmatprep.subr.mxu0 0.0
        %1164 = vmatpush1.msra.mxu0 0.0
        %1165 = vmatprep.subr.mxu0 0.0
        %1166 = vmatpush1.msra.mxu0 0.0
        %1167 = vmatprep.subr.mxu0 0.0
        %1168 = vmatpush1.msra.mxu0 0.0
        %1169 = vmatprep.subr.mxu0 0.0
        %1170 = vmatpush1.msra.mxu0 0.0
        %1171 = vmatprep.subr.mxu0 0.0
        %1172 = vmatpush1.msra.mxu0 0.0
        %1173 = vmatprep.subr.mxu0 0.0
        %1174 = vmatpush1.msra.mxu0 0.0
        %1175 = vmatprep.mubr.f32.mxu0 0.0
        %1176 = vmatmul.mubr.f32.gmra.mrb[0].mxu0 %v1109
        %v1177 = vpop.f32.mrb[0].mxu0
        %v1178 = vadd.f32 0.0, %v1177
        %v1179 = vpop.f32.mrb[0].mxu0
        %v1180 = vadd.f32 0.0, %v1179
        %1181 = vdwg.mxu0
        %v1182 = vadd.f32 %v750, %v1178
        %v1183 = vadd.f32 %v751, %v1180
        %s1184 = scalar_lea.vmem %s292, 16 [#allocation9]
        %1185 = vst [vmem:[%s1184] sm:$0xff] %v1182
        %1186 = vst [vmem:[%s1184 + $0x8] sm:$0xff] %v1183
        %s1187 = scalar_lea.vmem %s260, 32 [#allocation4]
        %v1188 = vld [vmem:[%s1187] sm:$0xff]
        %v1189 = vld [vmem:[%s1187 + $0x8] sm:$0xff]
        %v1190 = vld [vmem:[%s3] sm:$0xff]
        %v1191 = vld [vmem:[%s2] sm:$0xff]
        %s1192 = sadd.s32 %s295, 2
        %s1193 = smul.u32 %s1192, 128
        %s1194 = sld [smem:[#allocation3 + %s1193]]
        %v1195 = vstv %s1194
        %v1196 = vmul.f32 %v1191, %v1195
        %v1197 = vadd.f32 %v1190, %v1196
        %s1198 = sadd.s32 %s1193, 1
        %s1199 = sld [smem:[#allocation3 + %s1198]]
        %v1200 = vstv %s1199
        %v1201 = vmul.f32 %v1191, %v1200
        %1203 = vrot.lane.b32.xlu0 %v1201, 127
        %v1204 = vpop.permute.xlu0 %1203
        %v1206 = vadd.f32 %v1197, %v1204
        %s1207 = sadd.s32 %s1193, 2
        %s1208 = sld [smem:[#allocation3 + %s1207]]
        %v1209 = vstv %s1208
        %v1210 = vmul.f32 %v1191, %v1209
        %1212 = vrot.lane.b32.xlu0 %v1210, 126
        %v1213 = vpop.permute.xlu0 %1212
        %v1215 = vadd.f32 %v1206, %v1213
        %s1216 = sadd.s32 %s1193, 3
        %s1217 = sld [smem:[#allocation3 + %s1216]]
        %v1218 = vstv %s1217
        %v1219 = vmul.f32 %v1191, %v1218
        %1221 = vrot.lane.b32.xlu0 %v1219, 125
        %v1222 = vpop.permute.xlu0 %1221
        %v1224 = vadd.f32 %v1215, %v1222
        %s1225 = sadd.s32 %s1193, 4
        %s1226 = sld [smem:[#allocation3 + %s1225]]
        %v1227 = vstv %s1226
        %v1228 = vmul.f32 %v1191, %v1227
        %1230 = vrot.lane.b32.xlu0 %v1228, 124
        %v1231 = vpop.permute.xlu0 %1230
        %v1233 = vadd.f32 %v1224, %v1231
        %s1234 = sadd.s32 %s1193, 5
        %s1235 = sld [smem:[#allocation3 + %s1234]]
        %v1236 = vstv %s1235
        %v1237 = vmul.f32 %v1191, %v1236
        %1239 = vrot.lane.b32.xlu0 %v1237, 123
        %v1240 = vpop.permute.xlu0 %1239
        %v1242 = vadd.f32 %v1233, %v1240
        %s1243 = sadd.s32 %s1193, 6
        %s1244 = sld [smem:[#allocation3 + %s1243]]
        %v1245 = vstv %s1244
        %v1246 = vmul.f32 %v1191, %v1245
        %1248 = vrot.lane.b32.xlu0 %v1246, 122
        %v1249 = vpop.permute.xlu0 %1248
        %v1251 = vadd.f32 %v1242, %v1249
        %s1252 = sadd.s32 %s1193, 7
        %s1253 = sld [smem:[#allocation3 + %s1252]]
        %v1254 = vstv %s1253
        %v1255 = vmul.f32 %v1191, %v1254
        %1257 = vrot.lane.b32.xlu0 %v1255, 121
        %v1258 = vpop.permute.xlu0 %1257
        %v1260 = vadd.f32 %v1251, %v1258
        %1262 = vset.pattern.permute.xlu0 0
        %1263 = vperm.xlu0 %1262, %v1260
        %v1264 = vpop.permute.xlu0 %1263
        %v1266 = vadd.f32 %v1188, %v1264
        %v1267 = vadd.f32 %v1189, %v1264
        %v1268 = vrot.slane %v1266, 4
        %v1269 = vadd.f32 %v1266, %v1268
        %v1270 = vrot.slane %v1269, 2
        %v1271 = vadd.f32 %v1269, %v1270
        %v1272 = vrot.slane %v1271, 1
        %v1273 = vadd.f32 %v1271, %v1272
        %v1274 = vrot.slane %v1267, 4
        %v1275 = vadd.f32 %v1267, %v1274
        %v1276 = vrot.slane %v1275, 2
        %v1277 = vadd.f32 %v1275, %v1276
        %v1278 = vrot.slane %v1277, 1
        %v1279 = vadd.f32 %v1277, %v1278
        %v1280 = vmul.f32 %v1266, %v1266
        %v1281 = vmul.f32 %v1267, %v1267
        %v1282 = vrot.slane %v1280, 4
        %v1283 = vadd.f32 %v1280, %v1282
        %v1284 = vrot.slane %v1283, 2
        %v1285 = vadd.f32 %v1283, %v1284
        %v1286 = vrot.slane %v1285, 1
        %v1287 = vadd.f32 %v1285, %v1286
        %v1288 = vrot.slane %v1281, 4
        %v1289 = vadd.f32 %v1281, %v1288
        %v1290 = vrot.slane %v1289, 2
        %v1291 = vadd.f32 %v1289, %v1290
        %v1292 = vrot.slane %v1291, 1
        %v1293 = vadd.f32 %v1291, %v1292
        %v1294 = vmul.f32 %v1273, 0.125
        %v1295 = vmul.f32 %v1279, 0.125
        %v1296 = vmul.f32 %v1294, 8.0
        %v1297 = vmul.f32 %v1295, 8.0
        %v1298 = vmul.f32 %v1296, %v1294
        %v1299 = vmul.f32 %v1297, %v1295
        %v1300 = vsub.f32 %v1287, %v1298
        %v1301 = vsub.f32 %v1293, %v1299
        %v1302 = vmul.f32 %v1300, 0.14285715
        %v1303 = vmul.f32 %v1301, 0.14285715
        %v1304 = vsub.f32 %v1266, %v1294
        %v1305 = vsub.f32 %v1267, %v1295
        %v1306 = vadd.f32 %v1302, 1e-05
        %v1307 = vadd.f32 %v1303, 1e-05
        %v1308 = vrsqrt.pop %v1306
        %v1309 = vrsqrt.pop %v1307
        %v1310 = vmul.f32 %v1304, %v1308
        %v1311 = vmul.f32 %v1305, %v1309
        %1312 = vrot.lane.b32.xlu0 %v1310, 17
        %v1313 = vpop.permute.xlu0 %1312
        %1314 = vrot.lane.b32.xlu0 %v1311, 17
        %v1315 = vpop.permute.xlu0 %1314
        %v1316 = vsel %vm425, %v1313, %v1315
        %v1317 = vsel %vm425, %v1315, %v1313
        %v1318 = vld [vmem:[#allocation7] sm:$0xff]
        %v1319 = vld [vmem:[#allocation7 + $0x8] sm:$0xff]
        %v1320 = vmul.f32 %v1318, %v1317
        %v1321 = vmul.f32 %v1319, %v1316
        %1322 = vrot.lane.b32.xlu0 %v1310, 16
        %v1323 = vpop.permute.xlu0 %1322
        %1324 = vrot.lane.b32.xlu0 %v1311, 16
        %v1325 = vpop.permute.xlu0 %1324
        %v1326 = vsel %vm436, %v1323, %v1325
        %v1327 = vsel %vm436, %v1325, %v1323
        %v1328 = vld [vmem:[%s439] sm:$0xff]
        %v1329 = vld [vmem:[%s439 + $0x8] sm:$0xff]
        %v1330 = vmul.f32 %v1328, %v1327
        %v1331 = vmul.f32 %v1329, %v1326
        %1332 = vrot.lane.b32.xlu0 %v1310, 15
        %v1333 = vpop.permute.xlu0 %1332
        %1334 = vrot.lane.b32.xlu0 %v1311, 15
        %v1335 = vpop.permute.xlu0 %1334
        %v1336 = vsel %vm448, %v1333, %v1335
        %v1337 = vsel %vm448, %v1335, %v1333
        %v1338 = vld [vmem:[%s451] sm:$0xff]
        %v1339 = vld [vmem:[%s451 + $0x8] sm:$0xff]
        %v1340 = vmul.f32 %v1338, %v1337
        %v1341 = vmul.f32 %v1339, %v1336
        %1342 = vrot.lane.b32.xlu0 %v1310, 1
        %v1343 = vpop.permute.xlu0 %1342
        %1344 = vrot.lane.b32.xlu0 %v1311, 1
        %v1345 = vpop.permute.xlu0 %1344
        %v1346 = vsel %vm460, %v1343, %v1345
        %v1347 = vsel %vm460, %v1345, %v1343
        %v1348 = vld [vmem:[%s463] sm:$0xff]
        %v1349 = vld [vmem:[%s463 + $0x8] sm:$0xff]
        %v1350 = vmul.f32 %v1348, %v1347
        %v1351 = vmul.f32 %v1349, %v1346
        %1352 = vrot.lane.b32.xlu0 %v1310, 127
        %v1353 = vpop.permute.xlu0 %1352
        %1354 = vrot.lane.b32.xlu0 %v1311, 127
        %v1355 = vpop.permute.xlu0 %1354
        %v1356 = vsel %vm472, %v1353, %v1355
        %v1357 = vsel %vm472, %v1355, %v1353
        %v1358 = vld [vmem:[%s475] sm:$0xff]
        %v1359 = vld [vmem:[%s475 + $0x8] sm:$0xff]
        %v1360 = vmul.f32 %v1358, %v1356
        %v1361 = vmul.f32 %v1359, %v1357
        %1362 = vrot.lane.b32.xlu0 %v1310, 113
        %v1363 = vpop.permute.xlu0 %1362
        %1364 = vrot.lane.b32.xlu0 %v1311, 113
        %v1365 = vpop.permute.xlu0 %1364
        %v1366 = vsel %vm484, %v1363, %v1365
        %v1367 = vsel %vm484, %v1365, %v1363
        %v1368 = vld [vmem:[%s487] sm:$0xff]
        %v1369 = vld [vmem:[%s487 + $0x8] sm:$0xff]
        %v1370 = vmul.f32 %v1368, %v1366
        %v1371 = vmul.f32 %v1369, %v1367
        %1372 = vrot.lane.b32.xlu0 %v1310, 112
        %v1373 = vpop.permute.xlu0 %1372
        %1374 = vrot.lane.b32.xlu0 %v1311, 112
        %v1375 = vpop.permute.xlu0 %1374
        %v1376 = vsel %vm496, %v1373, %v1375
        %v1377 = vsel %vm496, %v1375, %v1373
        %v1378 = vld [vmem:[%s499] sm:$0xff]
        %v1379 = vld [vmem:[%s499 + $0x8] sm:$0xff]
        %v1380 = vmul.f32 %v1378, %v1376
        %v1381 = vmul.f32 %v1379, %v1377
        %1382 = vrot.lane.b32.xlu0 %v1310, 111
        %v1383 = vpop.permute.xlu0 %1382
        %1384 = vrot.lane.b32.xlu0 %v1311, 111
        %v1385 = vpop.permute.xlu0 %1384
        %v1386 = vsel %vm508, %v1383, %v1385
        %v1387 = vsel %vm508, %v1385, %v1383
        %v1388 = vld [vmem:[%s511] sm:$0xff]
        %v1389 = vld [vmem:[%s511 + $0x8] sm:$0xff]
        %v1390 = vmul.f32 %v1388, %v1386
        %v1391 = vmul.f32 %v1389, %v1387
        %v1392 = vld [vmem:[%s5] sm:$0xff]
        %v1394 = vsel %vm517, %v1392, 0
        %1396 = vmatprep.subr.mxu0 %v1321
        %1397 = vmatpush1.msra.mxu0 %v1320
        %1398 = vmatprep.subr.mxu0 %v1331
        %1399 = vmatpush1.msra.mxu0 %v1330
        %1400 = vmatprep.subr.mxu0 %v1341
        %1401 = vmatpush1.msra.mxu0 %v1340
        %1402 = vmatprep.subr.mxu0 %v1351
        %1403 = vmatpush1.msra.mxu0 %v1350
        %1404 = vmatprep.subr.mxu0 %v1311
        %1405 = vmatpush1.msra.mxu0 %v1310
        %1406 = vmatprep.subr.mxu0 %v1361
        %1407 = vmatpush1.msra.mxu0 %v1360
        %1408 = vmatprep.subr.mxu0 %v1371
        %1409 = vmatpush1.msra.mxu0 %v1370
        %1410 = vmatprep.subr.mxu0 %v1381
        %1411 = vmatpush1.msra.mxu0 %v1380
        %1412 = vmatprep.subr.mxu0 %v1391
        %1413 = vmatpush1.msra.mxu0 %v1390
        %1414 = vmatprep.subr.mxu0 1.0
        %1415 = vmatpush1.msra.mxu0 1.0
        %1416 = vmatprep.subr.mxu0 0.0
        %1417 = vmatpush1.msra.mxu0 0.0
        %1418 = vmatprep.subr.mxu0 0.0
        %1419 = vmatpush1.msra.mxu0 0.0
        %1420 = vmatprep.subr.mxu0 0.0
        %1421 = vmatpush1.msra.mxu0 0.0
        %1422 = vmatprep.subr.mxu0 0.0
        %1423 = vmatpush1.msra.mxu0 0.0
        %1424 = vmatprep.subr.mxu0 0.0
        %1425 = vmatpush1.msra.mxu0 0.0
        %1426 = vmatprep.subr.mxu0 0.0
        %1427 = vmatpush1.msra.mxu0 0.0
        %1428 = vmatprep.subr.mxu0 0.0
        %1429 = vmatpush1.msra.mxu0 0.0
        %1430 = vmatprep.subr.mxu0 0.0
        %1431 = vmatpush1.msra.mxu0 0.0
        %1432 = vmatprep.subr.mxu0 0.0
        %1433 = vmatpush1.msra.mxu0 0.0
        %1434 = vmatprep.subr.mxu0 0.0
        %1435 = vmatpush1.msra.mxu0 0.0
        %1436 = vmatprep.subr.mxu0 0.0
        %1437 = vmatpush1.msra.mxu0 0.0
        %1438 = vmatprep.subr.mxu0 0.0
        %1439 = vmatpush1.msra.mxu0 0.0
        %1440 = vmatprep.subr.mxu0 0.0
        %1441 = vmatpush1.msra.mxu0 0.0
        %1442 = vmatprep.subr.mxu0 0.0
        %1443 = vmatpush1.msra.mxu0 0.0
        %1444 = vmatprep.subr.mxu0 0.0
        %1445 = vmatpush1.msra.mxu0 0.0
        %1446 = vmatprep.subr.mxu0 0.0
        %1447 = vmatpush1.msra.mxu0 0.0
        %1448 = vmatprep.subr.mxu0 0.0
        %1449 = vmatpush1.msra.mxu0 0.0
        %1450 = vmatprep.subr.mxu0 0.0
        %1451 = vmatpush1.msra.mxu0 0.0
        %1452 = vmatprep.subr.mxu0 0.0
        %1453 = vmatpush1.msra.mxu0 0.0
        %1454 = vmatprep.subr.mxu0 0.0
        %1455 = vmatpush1.msra.mxu0 0.0
        %1456 = vmatprep.subr.mxu0 0.0
        %1457 = vmatpush1.msra.mxu0 0.0
        %1458 = vmatprep.subr.mxu0 0.0
        %1459 = vmatpush1.msra.mxu0 0.0
        %1460 = vmatprep.mubr.f32.mxu0 0.0
        %1461 = vmatmul.mubr.f32.gmra.mrb[0].mxu0 %v1394
        %v1462 = vpop.f32.mrb[0].mxu0
        %v1463 = vadd.f32 0.0, %v1462
        %v1464 = vpop.f32.mrb[0].mxu0
        %v1465 = vadd.f32 0.0, %v1464
        %1466 = vdwg.mxu0
        %v1467 = vxor.u32 %v1463, 2147483648
        %v1468 = vxor.u32 %v1465, 2147483648
        %v1469 = vmul.f32 %v1467, 1.442695
        %v1470 = vpow.pop %v1469
        %v1471 = vmul.f32 %v1468, 1.442695
        %v1472 = vpow.pop %v1471
        %v1473 = vadd.f32 %v1470, 1.0
        %v1474 = vadd.f32 %v1472, 1.0
        %v1475 = vrcp.pop %v1473
        %v1476 = vmul.f32 1.0, %v1475
        %v1477 = vrcp.pop %v1474
        %v1478 = vmul.f32 1.0, %v1477
        %v1479 = vmul.f32 %v1463, %v1476
        %v1480 = vmul.f32 %v1465, %v1478
        %1481 = vrot.lane.b32.xlu0 %v1479, 17
        %v1482 = vpop.permute.xlu0 %1481
        %1483 = vrot.lane.b32.xlu0 %v1480, 17
        %v1484 = vpop.permute.xlu0 %1483
        %v1485 = vsel %vm425, %v1482, %v1484
        %v1486 = vsel %vm425, %v1484, %v1482
        %v1487 = vmul.f32 %v1318, %v1486
        %v1488 = vmul.f32 %v1319, %v1485
        %1489 = vrot.lane.b32.xlu0 %v1479, 16
        %v1490 = vpop.permute.xlu0 %1489
        %1491 = vrot.lane.b32.xlu0 %v1480, 16
        %v1492 = vpop.permute.xlu0 %1491
        %v1493 = vsel %vm436, %v1490, %v1492
        %v1494 = vsel %vm436, %v1492, %v1490
        %v1495 = vmul.f32 %v1328, %v1494
        %v1496 = vmul.f32 %v1329, %v1493
        %1497 = vrot.lane.b32.xlu0 %v1479, 15
        %v1498 = vpop.permute.xlu0 %1497
        %1499 = vrot.lane.b32.xlu0 %v1480, 15
        %v1500 = vpop.permute.xlu0 %1499
        %v1501 = vsel %vm448, %v1498, %v1500
        %v1502 = vsel %vm448, %v1500, %v1498
        %v1503 = vmul.f32 %v1338, %v1502
        %v1504 = vmul.f32 %v1339, %v1501
        %1505 = vrot.lane.b32.xlu0 %v1479, 1
        %v1506 = vpop.permute.xlu0 %1505
        %1507 = vrot.lane.b32.xlu0 %v1480, 1
        %v1508 = vpop.permute.xlu0 %1507
        %v1509 = vsel %vm460, %v1506, %v1508
        %v1510 = vsel %vm460, %v1508, %v1506
        %v1511 = vmul.f32 %v1348, %v1510
        %v1512 = vmul.f32 %v1349, %v1509
        %1513 = vrot.lane.b32.xlu0 %v1479, 127
        %v1514 = vpop.permute.xlu0 %1513
        %1515 = vrot.lane.b32.xlu0 %v1480, 127
        %v1516 = vpop.permute.xlu0 %1515
        %v1517 = vsel %vm472, %v1514, %v1516
        %v1518 = vsel %vm472, %v1516, %v1514
        %v1519 = vmul.f32 %v1358, %v1517
        %v1520 = vmul.f32 %v1359, %v1518
        %1521 = vrot.lane.b32.xlu0 %v1479, 113
        %v1522 = vpop.permute.xlu0 %1521
        %1523 = vrot.lane.b32.xlu0 %v1480, 113
        %v1524 = vpop.permute.xlu0 %1523
        %v1525 = vsel %vm484, %v1522, %v1524
        %v1526 = vsel %vm484, %v1524, %v1522
        %v1527 = vmul.f32 %v1368, %v1525
        %v1528 = vmul.f32 %v1369, %v1526
        %1529 = vrot.lane.b32.xlu0 %v1479, 112
        %v1530 = vpop.permute.xlu0 %1529
        %1531 = vrot.lane.b32.xlu0 %v1480, 112
        %v1532 = vpop.permute.xlu0 %1531
        %v1533 = vsel %vm496, %v1530, %v1532
        %v1534 = vsel %vm496, %v1532, %v1530
        %v1535 = vmul.f32 %v1378, %v1533
        %v1536 = vmul.f32 %v1379, %v1534
        %1537 = vrot.lane.b32.xlu0 %v1479, 111
        %v1538 = vpop.permute.xlu0 %1537
        %1539 = vrot.lane.b32.xlu0 %v1480, 111
        %v1540 = vpop.permute.xlu0 %1539
        %v1541 = vsel %vm508, %v1538, %v1540
        %v1542 = vsel %vm508, %v1540, %v1538
        %v1543 = vmul.f32 %v1388, %v1541
        %v1544 = vmul.f32 %v1389, %v1542
        %v1545 = vld [vmem:[%s6] sm:$0xff]
        %v1547 = vsel %vm517, %v1545, 0
        %1549 = vmatprep.subr.mxu0 %v1488
        %1550 = vmatpush1.msra.mxu0 %v1487
        %1551 = vmatprep.subr.mxu0 %v1496
        %1552 = vmatpush1.msra.mxu0 %v1495
        %1553 = vmatprep.subr.mxu0 %v1504
        %1554 = vmatpush1.msra.mxu0 %v1503
        %1555 = vmatprep.subr.mxu0 %v1512
        %1556 = vmatpush1.msra.mxu0 %v1511
        %1557 = vmatprep.subr.mxu0 %v1480
        %1558 = vmatpush1.msra.mxu0 %v1479
        %1559 = vmatprep.subr.mxu0 %v1520
        %1560 = vmatpush1.msra.mxu0 %v1519
        %1561 = vmatprep.subr.mxu0 %v1528
        %1562 = vmatpush1.msra.mxu0 %v1527
        %1563 = vmatprep.subr.mxu0 %v1536
        %1564 = vmatpush1.msra.mxu0 %v1535
        %1565 = vmatprep.subr.mxu0 %v1544
        %1566 = vmatpush1.msra.mxu0 %v1543
        %1567 = vmatprep.subr.mxu0 1.0
        %1568 = vmatpush1.msra.mxu0 1.0
        %1569 = vmatprep.subr.mxu0 0.0
        %1570 = vmatpush1.msra.mxu0 0.0
        %1571 = vmatprep.subr.mxu0 0.0
        %1572 = vmatpush1.msra.mxu0 0.0
        %1573 = vmatprep.subr.mxu0 0.0
        %1574 = vmatpush1.msra.mxu0 0.0
        %1575 = vmatprep.subr.mxu0 0.0
        %1576 = vmatpush1.msra.mxu0 0.0
        %1577 = vmatprep.subr.mxu0 0.0
        %1578 = vmatpush1.msra.mxu0 0.0
        %1579 = vmatprep.subr.mxu0 0.0
        %1580 = vmatpush1.msra.mxu0 0.0
        %1581 = vmatprep.subr.mxu0 0.0
        %1582 = vmatpush1.msra.mxu0 0.0
        %1583 = vmatprep.subr.mxu0 0.0
        %1584 = vmatpush1.msra.mxu0 0.0
        %1585 = vmatprep.subr.mxu0 0.0
        %1586 = vmatpush1.msra.mxu0 0.0
        %1587 = vmatprep.subr.mxu0 0.0
        %1588 = vmatpush1.msra.mxu0 0.0
        %1589 = vmatprep.subr.mxu0 0.0
        %1590 = vmatpush1.msra.mxu0 0.0
        %1591 = vmatprep.subr.mxu0 0.0
        %1592 = vmatpush1.msra.mxu0 0.0
        %1593 = vmatprep.subr.mxu0 0.0
        %1594 = vmatpush1.msra.mxu0 0.0
        %1595 = vmatprep.subr.mxu0 0.0
        %1596 = vmatpush1.msra.mxu0 0.0
        %1597 = vmatprep.subr.mxu0 0.0
        %1598 = vmatpush1.msra.mxu0 0.0
        %1599 = vmatprep.subr.mxu0 0.0
        %1600 = vmatpush1.msra.mxu0 0.0
        %1601 = vmatprep.subr.mxu0 0.0
        %1602 = vmatpush1.msra.mxu0 0.0
        %1603 = vmatprep.subr.mxu0 0.0
        %1604 = vmatpush1.msra.mxu0 0.0
        %1605 = vmatprep.subr.mxu0 0.0
        %1606 = vmatpush1.msra.mxu0 0.0
        %1607 = vmatprep.subr.mxu0 0.0
        %1608 = vmatpush1.msra.mxu0 0.0
        %1609 = vmatprep.subr.mxu0 0.0
        %1610 = vmatpush1.msra.mxu0 0.0
        %1611 = vmatprep.subr.mxu0 0.0
        %1612 = vmatpush1.msra.mxu0 0.0
        %1613 = vmatprep.mubr.f32.mxu0 0.0
        %1614 = vmatmul.mubr.f32.gmra.mrb[0].mxu0 %v1547
        %v1615 = vpop.f32.mrb[0].mxu0
        %v1616 = vadd.f32 0.0, %v1615
        %v1617 = vpop.f32.mrb[0].mxu0
        %v1618 = vadd.f32 0.0, %v1617
        %1619 = vdwg.mxu0
        %v1620 = vadd.f32 %v1188, %v1616
        %v1621 = vadd.f32 %v1189, %v1618
        %s1622 = scalar_lea.vmem %s292, 32 [#allocation9]
        %1623 = vst [vmem:[%s1622] sm:$0xff] %v1620
        %1624 = vst [vmem:[%s1622 + $0x8] sm:$0xff] %v1621
        %s1625 = scalar_lea.vmem %s260, 48 [#allocation4]
        %v1626 = vld [vmem:[%s1625] sm:$0xff]
        %v1627 = vld [vmem:[%s1625 + $0x8] sm:$0xff]
        %v1628 = vld [vmem:[%s3] sm:$0xff]
        %v1629 = vld [vmem:[%s2] sm:$0xff]
        %s1630 = sadd.s32 %s295, 3
        %s1631 = smul.u32 %s1630, 128
        %s1632 = sld [smem:[#allocation3 + %s1631]]
        %v1633 = vstv %s1632
        %v1634 = vmul.f32 %v1629, %v1633
        %v1635 = vadd.f32 %v1628, %v1634
        %s1636 = sadd.s32 %s1631, 1
        %s1637 = sld [smem:[#allocation3 + %s1636]]
        %v1638 = vstv %s1637
        %v1639 = vmul.f32 %v1629, %v1638
        %1641 = vrot.lane.b32.xlu0 %v1639, 127
        %v1642 = vpop.permute.xlu0 %1641
        %v1644 = vadd.f32 %v1635, %v1642
        %s1645 = sadd.s32 %s1631, 2
        %s1646 = sld [smem:[#allocation3 + %s1645]]
        %v1647 = vstv %s1646
        %v1648 = vmul.f32 %v1629, %v1647
        %1650 = vrot.lane.b32.xlu0 %v1648, 126
        %v1651 = vpop.permute.xlu0 %1650
        %v1653 = vadd.f32 %v1644, %v1651
        %s1654 = sadd.s32 %s1631, 3
        %s1655 = sld [smem:[#allocation3 + %s1654]]
        %v1656 = vstv %s1655
        %v1657 = vmul.f32 %v1629, %v1656
        %1659 = vrot.lane.b32.xlu0 %v1657, 125
        %v1660 = vpop.permute.xlu0 %1659
        %v1662 = vadd.f32 %v1653, %v1660
        %s1663 = sadd.s32 %s1631, 4
        %s1664 = sld [smem:[#allocation3 + %s1663]]
        %v1665 = vstv %s1664
        %v1666 = vmul.f32 %v1629, %v1665
        %1668 = vrot.lane.b32.xlu0 %v1666, 124
        %v1669 = vpop.permute.xlu0 %1668
        %v1671 = vadd.f32 %v1662, %v1669
        %s1672 = sadd.s32 %s1631, 5
        %s1673 = sld [smem:[#allocation3 + %s1672]]
        %v1674 = vstv %s1673
        %v1675 = vmul.f32 %v1629, %v1674
        %1677 = vrot.lane.b32.xlu0 %v1675, 123
        %v1678 = vpop.permute.xlu0 %1677
        %v1680 = vadd.f32 %v1671, %v1678
        %s1681 = sadd.s32 %s1631, 6
        %s1682 = sld [smem:[#allocation3 + %s1681]]
        %v1683 = vstv %s1682
        %v1684 = vmul.f32 %v1629, %v1683
        %1686 = vrot.lane.b32.xlu0 %v1684, 122
        %v1687 = vpop.permute.xlu0 %1686
        %v1689 = vadd.f32 %v1680, %v1687
        %s1690 = sadd.s32 %s1631, 7
        %s1691 = sld [smem:[#allocation3 + %s1690]]
        %v1692 = vstv %s1691
        %v1693 = vmul.f32 %v1629, %v1692
        %1695 = vrot.lane.b32.xlu0 %v1693, 121
        %v1696 = vpop.permute.xlu0 %1695
        %v1698 = vadd.f32 %v1689, %v1696
        %1700 = vset.pattern.permute.xlu0 0
        %1701 = vperm.xlu0 %1700, %v1698
        %v1702 = vpop.permute.xlu0 %1701
        %v1704 = vadd.f32 %v1626, %v1702
        %v1705 = vadd.f32 %v1627, %v1702
        %v1706 = vrot.slane %v1704, 4
        %v1707 = vadd.f32 %v1704, %v1706
        %v1708 = vrot.slane %v1707, 2
        %v1709 = vadd.f32 %v1707, %v1708
        %v1710 = vrot.slane %v1709, 1
        %v1711 = vadd.f32 %v1709, %v1710
        %v1712 = vrot.slane %v1705, 4
        %v1713 = vadd.f32 %v1705, %v1712
        %v1714 = vrot.slane %v1713, 2
        %v1715 = vadd.f32 %v1713, %v1714
        %v1716 = vrot.slane %v1715, 1
        %v1717 = vadd.f32 %v1715, %v1716
        %v1718 = vmul.f32 %v1704, %v1704
        %v1719 = vmul.f32 %v1705, %v1705
        %v1720 = vrot.slane %v1718, 4
        %v1721 = vadd.f32 %v1718, %v1720
        %v1722 = vrot.slane %v1721, 2
        %v1723 = vadd.f32 %v1721, %v1722
        %v1724 = vrot.slane %v1723, 1
        %v1725 = vadd.f32 %v1723, %v1724
        %v1726 = vrot.slane %v1719, 4
        %v1727 = vadd.f32 %v1719, %v1726
        %v1728 = vrot.slane %v1727, 2
        %v1729 = vadd.f32 %v1727, %v1728
        %v1730 = vrot.slane %v1729, 1
        %v1731 = vadd.f32 %v1729, %v1730
        %v1732 = vmul.f32 %v1711, 0.125
        %v1733 = vmul.f32 %v1717, 0.125
        %v1734 = vmul.f32 %v1732, 8.0
        %v1735 = vmul.f32 %v1733, 8.0
        %v1736 = vmul.f32 %v1734, %v1732
        %v1737 = vmul.f32 %v1735, %v1733
        %v1738 = vsub.f32 %v1725, %v1736
        %v1739 = vsub.f32 %v1731, %v1737
        %v1740 = vmul.f32 %v1738, 0.14285715
        %v1741 = vmul.f32 %v1739, 0.14285715
        %v1742 = vsub.f32 %v1704, %v1732
        %v1743 = vsub.f32 %v1705, %v1733
        %v1744 = vadd.f32 %v1740, 1e-05
        %v1745 = vadd.f32 %v1741, 1e-05
        %v1746 = vrsqrt.pop %v1744
        %v1747 = vrsqrt.pop %v1745
        %v1748 = vmul.f32 %v1742, %v1746
        %v1749 = vmul.f32 %v1743, %v1747
        %1750 = vrot.lane.b32.xlu0 %v1748, 17
        %v1751 = vpop.permute.xlu0 %1750
        %1752 = vrot.lane.b32.xlu0 %v1749, 17
        %v1753 = vpop.permute.xlu0 %1752
        %v1754 = vsel %vm425, %v1751, %v1753
        %v1755 = vsel %vm425, %v1753, %v1751
        %v1756 = vld [vmem:[#allocation7] sm:$0xff]
        %v1757 = vld [vmem:[#allocation7 + $0x8] sm:$0xff]
        %v1758 = vmul.f32 %v1756, %v1755
        %v1759 = vmul.f32 %v1757, %v1754
        %1760 = vrot.lane.b32.xlu0 %v1748, 16
        %v1761 = vpop.permute.xlu0 %1760
        %1762 = vrot.lane.b32.xlu0 %v1749, 16
        %v1763 = vpop.permute.xlu0 %1762
        %v1764 = vsel %vm436, %v1761, %v1763
        %v1765 = vsel %vm436, %v1763, %v1761
        %v1766 = vld [vmem:[%s439] sm:$0xff]
        %v1767 = vld [vmem:[%s439 + $0x8] sm:$0xff]
        %v1768 = vmul.f32 %v1766, %v1765
        %v1769 = vmul.f32 %v1767, %v1764
        %1770 = vrot.lane.b32.xlu0 %v1748, 15
        %v1771 = vpop.permute.xlu0 %1770
        %1772 = vrot.lane.b32.xlu0 %v1749, 15
        %v1773 = vpop.permute.xlu0 %1772
        %v1774 = vsel %vm448, %v1771, %v1773
        %v1775 = vsel %vm448, %v1773, %v1771
        %v1776 = vld [vmem:[%s451] sm:$0xff]
        %v1777 = vld [vmem:[%s451 + $0x8] sm:$0xff]
        %v1778 = vmul.f32 %v1776, %v1775
        %v1779 = vmul.f32 %v1777, %v1774
        %1780 = vrot.lane.b32.xlu0 %v1748, 1
        %v1781 = vpop.permute.xlu0 %1780
        %1782 = vrot.lane.b32.xlu0 %v1749, 1
        %v1783 = vpop.permute.xlu0 %1782
        %v1784 = vsel %vm460, %v1781, %v1783
        %v1785 = vsel %vm460, %v1783, %v1781
        %v1786 = vld [vmem:[%s463] sm:$0xff]
        %v1787 = vld [vmem:[%s463 + $0x8] sm:$0xff]
        %v1788 = vmul.f32 %v1786, %v1785
        %v1789 = vmul.f32 %v1787, %v1784
        %1790 = vrot.lane.b32.xlu0 %v1748, 127
        %v1791 = vpop.permute.xlu0 %1790
        %1792 = vrot.lane.b32.xlu0 %v1749, 127
        %v1793 = vpop.permute.xlu0 %1792
        %v1794 = vsel %vm472, %v1791, %v1793
        %v1795 = vsel %vm472, %v1793, %v1791
        %v1796 = vld [vmem:[%s475] sm:$0xff]
        %v1797 = vld [vmem:[%s475 + $0x8] sm:$0xff]
        %v1798 = vmul.f32 %v1796, %v1794
        %v1799 = vmul.f32 %v1797, %v1795
        %1800 = vrot.lane.b32.xlu0 %v1748, 113
        %v1801 = vpop.permute.xlu0 %1800
        %1802 = vrot.lane.b32.xlu0 %v1749, 113
        %v1803 = vpop.permute.xlu0 %1802
        %v1804 = vsel %vm484, %v1801, %v1803
        %v1805 = vsel %vm484, %v1803, %v1801
        %v1806 = vld [vmem:[%s487] sm:$0xff]
        %v1807 = vld [vmem:[%s487 + $0x8] sm:$0xff]
        %v1808 = vmul.f32 %v1806, %v1804
        %v1809 = vmul.f32 %v1807, %v1805
        %1810 = vrot.lane.b32.xlu0 %v1748, 112
        %v1811 = vpop.permute.xlu0 %1810
        %1812 = vrot.lane.b32.xlu0 %v1749, 112
        %v1813 = vpop.permute.xlu0 %1812
        %v1814 = vsel %vm496, %v1811, %v1813
        %v1815 = vsel %vm496, %v1813, %v1811
        %v1816 = vld [vmem:[%s499] sm:$0xff]
        %v1817 = vld [vmem:[%s499 + $0x8] sm:$0xff]
        %v1818 = vmul.f32 %v1816, %v1814
        %v1819 = vmul.f32 %v1817, %v1815
        %1820 = vrot.lane.b32.xlu0 %v1748, 111
        %v1821 = vpop.permute.xlu0 %1820
        %1822 = vrot.lane.b32.xlu0 %v1749, 111
        %v1823 = vpop.permute.xlu0 %1822
        %v1824 = vsel %vm508, %v1821, %v1823
        %v1825 = vsel %vm508, %v1823, %v1821
        %v1826 = vld [vmem:[%s511] sm:$0xff]
        %v1827 = vld [vmem:[%s511 + $0x8] sm:$0xff]
        %v1828 = vmul.f32 %v1826, %v1824
        %v1829 = vmul.f32 %v1827, %v1825
        %v1830 = vld [vmem:[%s5] sm:$0xff]
        %v1832 = vsel %vm517, %v1830, 0
        %1834 = vmatprep.subr.mxu0 %v1759
        %1835 = vmatpush1.msra.mxu0 %v1758
        %1836 = vmatprep.subr.mxu0 %v1769
        %1837 = vmatpush1.msra.mxu0 %v1768
        %1838 = vmatprep.subr.mxu0 %v1779
        %1839 = vmatpush1.msra.mxu0 %v1778
        %1840 = vmatprep.subr.mxu0 %v1789
        %1841 = vmatpush1.msra.mxu0 %v1788
        %1842 = vmatprep.subr.mxu0 %v1749
        %1843 = vmatpush1.msra.mxu0 %v1748
        %1844 = vmatprep.subr.mxu0 %v1799
        %1845 = vmatpush1.msra.mxu0 %v1798
        %1846 = vmatprep.subr.mxu0 %v1809
        %1847 = vmatpush1.msra.mxu0 %v1808
        %1848 = vmatprep.subr.mxu0 %v1819
        %1849 = vmatpush1.msra.mxu0 %v1818
        %1850 = vmatprep.subr.mxu0 %v1829
        %1851 = vmatpush1.msra.mxu0 %v1828
        %1852 = vmatprep.subr.mxu0 1.0
        %1853 = vmatpush1.msra.mxu0 1.0
        %1854 = vmatprep.subr.mxu0 0.0
        %1855 = vmatpush1.msra.mxu0 0.0
        %1856 = vmatprep.subr.mxu0 0.0
        %1857 = vmatpush1.msra.mxu0 0.0
        %1858 = vmatprep.subr.mxu0 0.0
        %1859 = vmatpush1.msra.mxu0 0.0
        %1860 = vmatprep.subr.mxu0 0.0
        %1861 = vmatpush1.msra.mxu0 0.0
        %1862 = vmatprep.subr.mxu0 0.0
        %1863 = vmatpush1.msra.mxu0 0.0
        %1864 = vmatprep.subr.mxu0 0.0
        %1865 = vmatpush1.msra.mxu0 0.0
        %1866 = vmatprep.subr.mxu0 0.0
        %1867 = vmatpush1.msra.mxu0 0.0
        %1868 = vmatprep.subr.mxu0 0.0
        %1869 = vmatpush1.msra.mxu0 0.0
        %1870 = vmatprep.subr.mxu0 0.0
        %1871 = vmatpush1.msra.mxu0 0.0
        %1872 = vmatprep.subr.mxu0 0.0
        %1873 = vmatpush1.msra.mxu0 0.0
        %1874 = vmatprep.subr.mxu0 0.0
        %1875 = vmatpush1.msra.mxu0 0.0
        %1876 = vmatprep.subr.mxu0 0.0
        %1877 = vmatpush1.msra.mxu0 0.0
        %1878 = vmatprep.subr.mxu0 0.0
        %1879 = vmatpush1.msra.mxu0 0.0
        %1880 = vmatprep.subr.mxu0 0.0
        %1881 = vmatpush1.msra.mxu0 0.0
        %1882 = vmatprep.subr.mxu0 0.0
        %1883 = vmatpush1.msra.mxu0 0.0
        %1884 = vmatprep.subr.mxu0 0.0
        %1885 = vmatpush1.msra.mxu0 0.0
        %1886 = vmatprep.subr.mxu0 0.0
        %1887 = vmatpush1.msra.mxu0 0.0
        %1888 = vmatprep.subr.mxu0 0.0
        %1889 = vmatpush1.msra.mxu0 0.0
        %1890 = vmatprep.subr.mxu0 0.0
        %1891 = vmatpush1.msra.mxu0 0.0
        %1892 = vmatprep.subr.mxu0 0.0
        %1893 = vmatpush1.msra.mxu0 0.0
        %1894 = vmatprep.subr.mxu0 0.0
        %1895 = vmatpush1.msra.mxu0 0.0
        %1896 = vmatprep.subr.mxu0 0.0
        %1897 = vmatpush1.msra.mxu0 0.0
        %1898 = vmatprep.mubr.f32.mxu0 0.0
        %1899 = vmatmul.mubr.f32.gmra.mrb[0].mxu0 %v1832
        %v1900 = vpop.f32.mrb[0].mxu0
        %v1901 = vadd.f32 0.0, %v1900
        %v1902 = vpop.f32.mrb[0].mxu0
        %v1903 = vadd.f32 0.0, %v1902
        %1904 = vdwg.mxu0
        %v1905 = vxor.u32 %v1901, 2147483648
        %v1906 = vxor.u32 %v1903, 2147483648
        %v1907 = vmul.f32 %v1905, 1.442695
        %v1908 = vpow.pop %v1907
        %v1909 = vmul.f32 %v1906, 1.442695
        %v1910 = vpow.pop %v1909
        %v1911 = vadd.f32 %v1908, 1.0
        %v1912 = vadd.f32 %v1910, 1.0
        %v1913 = vrcp.pop %v1911
        %v1914 = vmul.f32 1.0, %v1913
        %v1915 = vrcp.pop %v1912
        %v1916 = vmul.f32 1.0, %v1915
        %v1917 = vmul.f32 %v1901, %v1914
        %v1918 = vmul.f32 %v1903, %v1916
        %1919 = vrot.lane.b32.xlu0 %v1917, 17
        %v1920 = vpop.permute.xlu0 %1919
        %1921 = vrot.lane.b32.xlu0 %v1918, 17
        %v1922 = vpop.permute.xlu0 %1921
        %v1923 = vsel %vm425, %v1920, %v1922
        %v1924 = vsel %vm425, %v1922, %v1920
        %v1925 = vmul.f32 %v1756, %v1924
        %v1926 = vmul.f32 %v1757, %v1923
        %1927 = vrot.lane.b32.xlu0 %v1917, 16
        %v1928 = vpop.permute.xlu0 %1927
        %1929 = vrot.lane.b32.xlu0 %v1918, 16
        %v1930 = vpop.permute.xlu0 %1929
        %v1931 = vsel %vm436, %v1928, %v1930
        %v1932 = vsel %vm436, %v1930, %v1928
        %v1933 = vmul.f32 %v1766, %v1932
        %v1934 = vmul.f32 %v1767, %v1931
        %1935 = vrot.lane.b32.xlu0 %v1917, 15
        %v1936 = vpop.permute.xlu0 %1935
        %1937 = vrot.lane.b32.xlu0 %v1918, 15
        %v1938 = vpop.permute.xlu0 %1937
        %v1939 = vsel %vm448, %v1936, %v1938
        %v1940 = vsel %vm448, %v1938, %v1936
        %v1941 = vmul.f32 %v1776, %v1940
        %v1942 = vmul.f32 %v1777, %v1939
        %1943 = vrot.lane.b32.xlu0 %v1917, 1
        %v1944 = vpop.permute.xlu0 %1943
        %1945 = vrot.lane.b32.xlu0 %v1918, 1
        %v1946 = vpop.permute.xlu0 %1945
        %v1947 = vsel %vm460, %v1944, %v1946
        %v1948 = vsel %vm460, %v1946, %v1944
        %v1949 = vmul.f32 %v1786, %v1948
        %v1950 = vmul.f32 %v1787, %v1947
        %1951 = vrot.lane.b32.xlu0 %v1917, 127
        %v1952 = vpop.permute.xlu0 %1951
        %1953 = vrot.lane.b32.xlu0 %v1918, 127
        %v1954 = vpop.permute.xlu0 %1953
        %v1955 = vsel %vm472, %v1952, %v1954
        %v1956 = vsel %vm472, %v1954, %v1952
        %v1957 = vmul.f32 %v1796, %v1955
        %v1958 = vmul.f32 %v1797, %v1956
        %1959 = vrot.lane.b32.xlu0 %v1917, 113
        %v1960 = vpop.permute.xlu0 %1959
        %1961 = vrot.lane.b32.xlu0 %v1918, 113
        %v1962 = vpop.permute.xlu0 %1961
        %v1963 = vsel %vm484, %v1960, %v1962
        %v1964 = vsel %vm484, %v1962, %v1960
        %v1965 = vmul.f32 %v1806, %v1963
        %v1966 = vmul.f32 %v1807, %v1964
        %1967 = vrot.lane.b32.xlu0 %v1917, 112
        %v1968 = vpop.permute.xlu0 %1967
        %1969 = vrot.lane.b32.xlu0 %v1918, 112
        %v1970 = vpop.permute.xlu0 %1969
        %v1971 = vsel %vm496, %v1968, %v1970
        %v1972 = vsel %vm496, %v1970, %v1968
        %v1973 = vmul.f32 %v1816, %v1971
        %v1974 = vmul.f32 %v1817, %v1972
        %1975 = vrot.lane.b32.xlu0 %v1917, 111
        %v1976 = vpop.permute.xlu0 %1975
        %1977 = vrot.lane.b32.xlu0 %v1918, 111
        %v1978 = vpop.permute.xlu0 %1977
        %v1979 = vsel %vm508, %v1976, %v1978
        %v1980 = vsel %vm508, %v1978, %v1976
        %v1981 = vmul.f32 %v1826, %v1979
        %v1982 = vmul.f32 %v1827, %v1980
        %v1983 = vld [vmem:[%s6] sm:$0xff]
        %v1985 = vsel %vm517, %v1983, 0
        %1987 = vmatprep.subr.mxu0 %v1926
        %1988 = vmatpush1.msra.mxu0 %v1925
        %1989 = vmatprep.subr.mxu0 %v1934
        %1990 = vmatpush1.msra.mxu0 %v1933
        %1991 = vmatprep.subr.mxu0 %v1942
        %1992 = vmatpush1.msra.mxu0 %v1941
        %1993 = vmatprep.subr.mxu0 %v1950
        %1994 = vmatpush1.msra.mxu0 %v1949
        %1995 = vmatprep.subr.mxu0 %v1918
        %1996 = vmatpush1.msra.mxu0 %v1917
        %1997 = vmatprep.subr.mxu0 %v1958
        %1998 = vmatpush1.msra.mxu0 %v1957
        %1999 = vmatprep.subr.mxu0 %v1966
        %2000 = vmatpush1.msra.mxu0 %v1965
        %2001 = vmatprep.subr.mxu0 %v1974
        %2002 = vmatpush1.msra.mxu0 %v1973
        %2003 = vmatprep.subr.mxu0 %v1982
        %2004 = vmatpush1.msra.mxu0 %v1981
        %2005 = vmatprep.subr.mxu0 1.0
        %2006 = vmatpush1.msra.mxu0 1.0
        %2007 = vmatprep.subr.mxu0 0.0
        %2008 = vmatpush1.msra.mxu0 0.0
        %2009 = vmatprep.subr.mxu0 0.0
        %2010 = vmatpush1.msra.mxu0 0.0
        %2011 = vmatprep.subr.mxu0 0.0
        %2012 = vmatpush1.msra.mxu0 0.0
        %2013 = vmatprep.subr.mxu0 0.0
        %2014 = vmatpush1.msra.mxu0 0.0
        %2015 = vmatprep.subr.mxu0 0.0
        %2016 = vmatpush1.msra.mxu0 0.0
        %2017 = vmatprep.subr.mxu0 0.0
        %2018 = vmatpush1.msra.mxu0 0.0
        %2019 = vmatprep.subr.mxu0 0.0
        %2020 = vmatpush1.msra.mxu0 0.0
        %2021 = vmatprep.subr.mxu0 0.0
        %2022 = vmatpush1.msra.mxu0 0.0
        %2023 = vmatprep.subr.mxu0 0.0
        %2024 = vmatpush1.msra.mxu0 0.0
        %2025 = vmatprep.subr.mxu0 0.0
        %2026 = vmatpush1.msra.mxu0 0.0
        %2027 = vmatprep.subr.mxu0 0.0
        %2028 = vmatpush1.msra.mxu0 0.0
        %2029 = vmatprep.subr.mxu0 0.0
        %2030 = vmatpush1.msra.mxu0 0.0
        %2031 = vmatprep.subr.mxu0 0.0
        %2032 = vmatpush1.msra.mxu0 0.0
        %2033 = vmatprep.subr.mxu0 0.0
        %2034 = vmatpush1.msra.mxu0 0.0
        %2035 = vmatprep.subr.mxu0 0.0
        %2036 = vmatpush1.msra.mxu0 0.0
        %2037 = vmatprep.subr.mxu0 0.0
        %2038 = vmatpush1.msra.mxu0 0.0
        %2039 = vmatprep.subr.mxu0 0.0
        %2040 = vmatpush1.msra.mxu0 0.0
        %2041 = vmatprep.subr.mxu0 0.0
        %2042 = vmatpush1.msra.mxu0 0.0
        %2043 = vmatprep.subr.mxu0 0.0
        %2044 = vmatpush1.msra.mxu0 0.0
        %2045 = vmatprep.subr.mxu0 0.0
        %2046 = vmatpush1.msra.mxu0 0.0
        %2047 = vmatprep.subr.mxu0 0.0
        %2048 = vmatpush1.msra.mxu0 0.0
        %2049 = vmatprep.subr.mxu0 0.0
        %2050 = vmatpush1.msra.mxu0 0.0
        %2051 = vmatprep.mubr.f32.mxu0 0.0
        %2052 = vmatmul.mubr.f32.gmra.mrb[0].mxu0 %v1985
        %v2053 = vpop.f32.mrb[0].mxu0
        %v2054 = vadd.f32 0.0, %v2053
        %v2055 = vpop.f32.mrb[0].mxu0
        %v2056 = vadd.f32 0.0, %v2055
        %2057 = vdwg.mxu0
        %v2058 = vadd.f32 %v1626, %v2054
        %v2059 = vadd.f32 %v1627, %v2056
        %s2060 = scalar_lea.vmem %s292, 48 [#allocation9]
        %2061 = vst [vmem:[%s2060] sm:$0xff] %v2058
        %2062 = vst [vmem:[%s2060 + $0x8] sm:$0xff] %v2059
        %s2063 = scalar_lea.vmem %s260, 64 [#allocation4]
        %v2064 = vld [vmem:[%s2063] sm:$0xff]
        %v2065 = vld [vmem:[%s2063 + $0x8] sm:$0xff]
        %v2066 = vld [vmem:[%s3] sm:$0xff]
        %v2067 = vld [vmem:[%s2] sm:$0xff]
        %s2068 = sadd.s32 %s295, 4
        %s2069 = smul.u32 %s2068, 128
        %s2070 = sld [smem:[#allocation3 + %s2069]]
        %v2071 = vstv %s2070
        %v2072 = vmul.f32 %v2067, %v2071
        %v2073 = vadd.f32 %v2066, %v2072
        %s2074 = sadd.s32 %s2069, 1
        %s2075 = sld [smem:[#allocation3 + %s2074]]
        %v2076 = vstv %s2075
        %v2077 = vmul.f32 %v2067, %v2076
        %2079 = vrot.lane.b32.xlu0 %v2077, 127
        %v2080 = vpop.permute.xlu0 %2079
        %v2082 = vadd.f32 %v2073, %v2080
        %s2083 = sadd.s32 %s2069, 2
        %s2084 = sld [smem:[#allocation3 + %s2083]]
        %v2085 = vstv %s2084
        %v2086 = vmul.f32 %v2067, %v2085
        %2088 = vrot.lane.b32.xlu0 %v2086, 126
        %v2089 = vpop.permute.xlu0 %2088
        %v2091 = vadd.f32 %v2082, %v2089
        %s2092 = sadd.s32 %s2069, 3
        %s2093 = sld [smem:[#allocation3 + %s2092]]
        %v2094 = vstv %s2093
        %v2095 = vmul.f32 %v2067, %v2094
        %2097 = vrot.lane.b32.xlu0 %v2095, 125
        %v2098 = vpop.permute.xlu0 %2097
        %v2100 = vadd.f32 %v2091, %v2098
        %s2101 = sadd.s32 %s2069, 4
        %s2102 = sld [smem:[#allocation3 + %s2101]]
        %v2103 = vstv %s2102
        %v2104 = vmul.f32 %v2067, %v2103
        %2106 = vrot.lane.b32.xlu0 %v2104, 124
        %v2107 = vpop.permute.xlu0 %2106
        %v2109 = vadd.f32 %v2100, %v2107
        %s2110 = sadd.s32 %s2069, 5
        %s2111 = sld [smem:[#allocation3 + %s2110]]
        %v2112 = vstv %s2111
        %v2113 = vmul.f32 %v2067, %v2112
        %2115 = vrot.lane.b32.xlu0 %v2113, 123
        %v2116 = vpop.permute.xlu0 %2115
        %v2118 = vadd.f32 %v2109, %v2116
        %s2119 = sadd.s32 %s2069, 6
        %s2120 = sld [smem:[#allocation3 + %s2119]]
        %v2121 = vstv %s2120
        %v2122 = vmul.f32 %v2067, %v2121
        %2124 = vrot.lane.b32.xlu0 %v2122, 122
        %v2125 = vpop.permute.xlu0 %2124
        %v2127 = vadd.f32 %v2118, %v2125
        %s2128 = sadd.s32 %s2069, 7
        %s2129 = sld [smem:[#allocation3 + %s2128]]
        %v2130 = vstv %s2129
        %v2131 = vmul.f32 %v2067, %v2130
        %2133 = vrot.lane.b32.xlu0 %v2131, 121
        %v2134 = vpop.permute.xlu0 %2133
        %v2136 = vadd.f32 %v2127, %v2134
        %2138 = vset.pattern.permute.xlu0 0
        %2139 = vperm.xlu0 %2138, %v2136
        %v2140 = vpop.permute.xlu0 %2139
        %v2142 = vadd.f32 %v2064, %v2140
        %v2143 = vadd.f32 %v2065, %v2140
        %v2144 = vrot.slane %v2142, 4
        %v2145 = vadd.f32 %v2142, %v2144
        %v2146 = vrot.slane %v2145, 2
        %v2147 = vadd.f32 %v2145, %v2146
        %v2148 = vrot.slane %v2147, 1
        %v2149 = vadd.f32 %v2147, %v2148
        %v2150 = vrot.slane %v2143, 4
        %v2151 = vadd.f32 %v2143, %v2150
        %v2152 = vrot.slane %v2151, 2
        %v2153 = vadd.f32 %v2151, %v2152
        %v2154 = vrot.slane %v2153, 1
        %v2155 = vadd.f32 %v2153, %v2154
        %v2156 = vmul.f32 %v2142, %v2142
        %v2157 = vmul.f32 %v2143, %v2143
        %v2158 = vrot.slane %v2156, 4
        %v2159 = vadd.f32 %v2156, %v2158
        %v2160 = vrot.slane %v2159, 2
        %v2161 = vadd.f32 %v2159, %v2160
        %v2162 = vrot.slane %v2161, 1
        %v2163 = vadd.f32 %v2161, %v2162
        %v2164 = vrot.slane %v2157, 4
        %v2165 = vadd.f32 %v2157, %v2164
        %v2166 = vrot.slane %v2165, 2
        %v2167 = vadd.f32 %v2165, %v2166
        %v2168 = vrot.slane %v2167, 1
        %v2169 = vadd.f32 %v2167, %v2168
        %v2170 = vmul.f32 %v2149, 0.125
        %v2171 = vmul.f32 %v2155, 0.125
        %v2172 = vmul.f32 %v2170, 8.0
        %v2173 = vmul.f32 %v2171, 8.0
        %v2174 = vmul.f32 %v2172, %v2170
        %v2175 = vmul.f32 %v2173, %v2171
        %v2176 = vsub.f32 %v2163, %v2174
        %v2177 = vsub.f32 %v2169, %v2175
        %v2178 = vmul.f32 %v2176, 0.14285715
        %v2179 = vmul.f32 %v2177, 0.14285715
        %v2180 = vsub.f32 %v2142, %v2170
        %v2181 = vsub.f32 %v2143, %v2171
        %v2182 = vadd.f32 %v2178, 1e-05
        %v2183 = vadd.f32 %v2179, 1e-05
        %v2184 = vrsqrt.pop %v2182
        %v2185 = vrsqrt.pop %v2183
        %v2186 = vmul.f32 %v2180, %v2184
        %v2187 = vmul.f32 %v2181, %v2185
        %2188 = vrot.lane.b32.xlu0 %v2186, 17
        %v2189 = vpop.permute.xlu0 %2188
        %2190 = vrot.lane.b32.xlu0 %v2187, 17
        %v2191 = vpop.permute.xlu0 %2190
        %v2192 = vsel %vm425, %v2189, %v2191
        %v2193 = vsel %vm425, %v2191, %v2189
        %v2194 = vld [vmem:[#allocation7] sm:$0xff]
        %v2195 = vld [vmem:[#allocation7 + $0x8] sm:$0xff]
        %v2196 = vmul.f32 %v2194, %v2193
        %v2197 = vmul.f32 %v2195, %v2192
        %2198 = vrot.lane.b32.xlu0 %v2186, 16
        %v2199 = vpop.permute.xlu0 %2198
        %2200 = vrot.lane.b32.xlu0 %v2187, 16
        %v2201 = vpop.permute.xlu0 %2200
        %v2202 = vsel %vm436, %v2199, %v2201
        %v2203 = vsel %vm436, %v2201, %v2199
        %v2204 = vld [vmem:[%s439] sm:$0xff]
        %v2205 = vld [vmem:[%s439 + $0x8] sm:$0xff]
        %v2206 = vmul.f32 %v2204, %v2203
        %v2207 = vmul.f32 %v2205, %v2202
        %2208 = vrot.lane.b32.xlu0 %v2186, 15
        %v2209 = vpop.permute.xlu0 %2208
        %2210 = vrot.lane.b32.xlu0 %v2187, 15
        %v2211 = vpop.permute.xlu0 %2210
        %v2212 = vsel %vm448, %v2209, %v2211
        %v2213 = vsel %vm448, %v2211, %v2209
        %v2214 = vld [vmem:[%s451] sm:$0xff]
        %v2215 = vld [vmem:[%s451 + $0x8] sm:$0xff]
        %v2216 = vmul.f32 %v2214, %v2213
        %v2217 = vmul.f32 %v2215, %v2212
        %2218 = vrot.lane.b32.xlu0 %v2186, 1
        %v2219 = vpop.permute.xlu0 %2218
        %2220 = vrot.lane.b32.xlu0 %v2187, 1
        %v2221 = vpop.permute.xlu0 %2220
        %v2222 = vsel %vm460, %v2219, %v2221
        %v2223 = vsel %vm460, %v2221, %v2219
        %v2224 = vld [vmem:[%s463] sm:$0xff]
        %v2225 = vld [vmem:[%s463 + $0x8] sm:$0xff]
        %v2226 = vmul.f32 %v2224, %v2223
        %v2227 = vmul.f32 %v2225, %v2222
        %2228 = vrot.lane.b32.xlu0 %v2186, 127
        %v2229 = vpop.permute.xlu0 %2228
        %2230 = vrot.lane.b32.xlu0 %v2187, 127
        %v2231 = vpop.permute.xlu0 %2230
        %v2232 = vsel %vm472, %v2229, %v2231
        %v2233 = vsel %vm472, %v2231, %v2229
        %v2234 = vld [vmem:[%s475] sm:$0xff]
        %v2235 = vld [vmem:[%s475 + $0x8] sm:$0xff]
        %v2236 = vmul.f32 %v2234, %v2232
        %v2237 = vmul.f32 %v2235, %v2233
        %2238 = vrot.lane.b32.xlu0 %v2186, 113
        %v2239 = vpop.permute.xlu0 %2238
        %2240 = vrot.lane.b32.xlu0 %v2187, 113
        %v2241 = vpop.permute.xlu0 %2240
        %v2242 = vsel %vm484, %v2239, %v2241
        %v2243 = vsel %vm484, %v2241, %v2239
        %v2244 = vld [vmem:[%s487] sm:$0xff]
        %v2245 = vld [vmem:[%s487 + $0x8] sm:$0xff]
        %v2246 = vmul.f32 %v2244, %v2242
        %v2247 = vmul.f32 %v2245, %v2243
        %2248 = vrot.lane.b32.xlu0 %v2186, 112
        %v2249 = vpop.permute.xlu0 %2248
        %2250 = vrot.lane.b32.xlu0 %v2187, 112
        %v2251 = vpop.permute.xlu0 %2250
        %v2252 = vsel %vm496, %v2249, %v2251
        %v2253 = vsel %vm496, %v2251, %v2249
        %v2254 = vld [vmem:[%s499] sm:$0xff]
        %v2255 = vld [vmem:[%s499 + $0x8] sm:$0xff]
        %v2256 = vmul.f32 %v2254, %v2252
        %v2257 = vmul.f32 %v2255, %v2253
        %2258 = vrot.lane.b32.xlu0 %v2186, 111
        %v2259 = vpop.permute.xlu0 %2258
        %2260 = vrot.lane.b32.xlu0 %v2187, 111
        %v2261 = vpop.permute.xlu0 %2260
        %v2262 = vsel %vm508, %v2259, %v2261
        %v2263 = vsel %vm508, %v2261, %v2259
        %v2264 = vld [vmem:[%s511] sm:$0xff]
        %v2265 = vld [vmem:[%s511 + $0x8] sm:$0xff]
        %v2266 = vmul.f32 %v2264, %v2262
        %v2267 = vmul.f32 %v2265, %v2263
        %v2268 = vld [vmem:[%s5] sm:$0xff]
        %v2270 = vsel %vm517, %v2268, 0
        %2272 = vmatprep.subr.mxu0 %v2197
        %2273 = vmatpush1.msra.mxu0 %v2196
        %2274 = vmatprep.subr.mxu0 %v2207
        %2275 = vmatpush1.msra.mxu0 %v2206
        %2276 = vmatprep.subr.mxu0 %v2217
        %2277 = vmatpush1.msra.mxu0 %v2216
        %2278 = vmatprep.subr.mxu0 %v2227
        %2279 = vmatpush1.msra.mxu0 %v2226
        %2280 = vmatprep.subr.mxu0 %v2187
        %2281 = vmatpush1.msra.mxu0 %v2186
        %2282 = vmatprep.subr.mxu0 %v2237
        %2283 = vmatpush1.msra.mxu0 %v2236
        %2284 = vmatprep.subr.mxu0 %v2247
        %2285 = vmatpush1.msra.mxu0 %v2246
        %2286 = vmatprep.subr.mxu0 %v2257
        %2287 = vmatpush1.msra.mxu0 %v2256
        %2288 = vmatprep.subr.mxu0 %v2267
        %2289 = vmatpush1.msra.mxu0 %v2266
        %2290 = vmatprep.subr.mxu0 1.0
        %2291 = vmatpush1.msra.mxu0 1.0
        %2292 = vmatprep.subr.mxu0 0.0
        %2293 = vmatpush1.msra.mxu0 0.0
        %2294 = vmatprep.subr.mxu0 0.0
        %2295 = vmatpush1.msra.mxu0 0.0
        %2296 = vmatprep.subr.mxu0 0.0
        %2297 = vmatpush1.msra.mxu0 0.0
        %2298 = vmatprep.subr.mxu0 0.0
        %2299 = vmatpush1.msra.mxu0 0.0
        %2300 = vmatprep.subr.mxu0 0.0
        %2301 = vmatpush1.msra.mxu0 0.0
        %2302 = vmatprep.subr.mxu0 0.0
        %2303 = vmatpush1.msra.mxu0 0.0
        %2304 = vmatprep.subr.mxu0 0.0
        %2305 = vmatpush1.msra.mxu0 0.0
        %2306 = vmatprep.subr.mxu0 0.0
        %2307 = vmatpush1.msra.mxu0 0.0
        %2308 = vmatprep.subr.mxu0 0.0
        %2309 = vmatpush1.msra.mxu0 0.0
        %2310 = vmatprep.subr.mxu0 0.0
        %2311 = vmatpush1.msra.mxu0 0.0
        %2312 = vmatprep.subr.mxu0 0.0
        %2313 = vmatpush1.msra.mxu0 0.0
        %2314 = vmatprep.subr.mxu0 0.0
        %2315 = vmatpush1.msra.mxu0 0.0
        %2316 = vmatprep.subr.mxu0 0.0
        %2317 = vmatpush1.msra.mxu0 0.0
        %2318 = vmatprep.subr.mxu0 0.0
        %2319 = vmatpush1.msra.mxu0 0.0
        %2320 = vmatprep.subr.mxu0 0.0
        %2321 = vmatpush1.msra.mxu0 0.0
        %2322 = vmatprep.subr.mxu0 0.0
        %2323 = vmatpush1.msra.mxu0 0.0
        %2324 = vmatprep.subr.mxu0 0.0
        %2325 = vmatpush1.msra.mxu0 0.0
        %2326 = vmatprep.subr.mxu0 0.0
        %2327 = vmatpush1.msra.mxu0 0.0
        %2328 = vmatprep.subr.mxu0 0.0
        %2329 = vmatpush1.msra.mxu0 0.0
        %2330 = vmatprep.subr.mxu0 0.0
        %2331 = vmatpush1.msra.mxu0 0.0
        %2332 = vmatprep.subr.mxu0 0.0
        %2333 = vmatpush1.msra.mxu0 0.0
        %2334 = vmatprep.subr.mxu0 0.0
        %2335 = vmatpush1.msra.mxu0 0.0
        %2336 = vmatprep.mubr.f32.mxu0 0.0
        %2337 = vmatmul.mubr.f32.gmra.mrb[0].mxu0 %v2270
        %v2338 = vpop.f32.mrb[0].mxu0
        %v2339 = vadd.f32 0.0, %v2338
        %v2340 = vpop.f32.mrb[0].mxu0
        %v2341 = vadd.f32 0.0, %v2340
        %2342 = vdwg.mxu0
        %v2343 = vxor.u32 %v2339, 2147483648
        %v2344 = vxor.u32 %v2341, 2147483648
        %v2345 = vmul.f32 %v2343, 1.442695
        %v2346 = vpow.pop %v2345
        %v2347 = vmul.f32 %v2344, 1.442695
        %v2348 = vpow.pop %v2347
        %v2349 = vadd.f32 %v2346, 1.0
        %v2350 = vadd.f32 %v2348, 1.0
        %v2351 = vrcp.pop %v2349
        %v2352 = vmul.f32 1.0, %v2351
        %v2353 = vrcp.pop %v2350
        %v2354 = vmul.f32 1.0, %v2353
        %v2355 = vmul.f32 %v2339, %v2352
        %v2356 = vmul.f32 %v2341, %v2354
        %2357 = vrot.lane.b32.xlu0 %v2355, 17
        %v2358 = vpop.permute.xlu0 %2357
        %2359 = vrot.lane.b32.xlu0 %v2356, 17
        %v2360 = vpop.permute.xlu0 %2359
        %v2361 = vsel %vm425, %v2358, %v2360
        %v2362 = vsel %vm425, %v2360, %v2358
        %v2363 = vmul.f32 %v2194, %v2362
        %v2364 = vmul.f32 %v2195, %v2361
        %2365 = vrot.lane.b32.xlu0 %v2355, 16
        %v2366 = vpop.permute.xlu0 %2365
        %2367 = vrot.lane.b32.xlu0 %v2356, 16
        %v2368 = vpop.permute.xlu0 %2367
        %v2369 = vsel %vm436, %v2366, %v2368
        %v2370 = vsel %vm436, %v2368, %v2366
        %v2371 = vmul.f32 %v2204, %v2370
        %v2372 = vmul.f32 %v2205, %v2369
        %2373 = vrot.lane.b32.xlu0 %v2355, 15
        %v2374 = vpop.permute.xlu0 %2373
        %2375 = vrot.lane.b32.xlu0 %v2356, 15
        %v2376 = vpop.permute.xlu0 %2375
        %v2377 = vsel %vm448, %v2374, %v2376
        %v2378 = vsel %vm448, %v2376, %v2374
        %v2379 = vmul.f32 %v2214, %v2378
        %v2380 = vmul.f32 %v2215, %v2377
        %2381 = vrot.lane.b32.xlu0 %v2355, 1
        %v2382 = vpop.permute.xlu0 %2381
        %2383 = vrot.lane.b32.xlu0 %v2356, 1
        %v2384 = vpop.permute.xlu0 %2383
        %v2385 = vsel %vm460, %v2382, %v2384
        %v2386 = vsel %vm460, %v2384, %v2382
        %v2387 = vmul.f32 %v2224, %v2386
        %v2388 = vmul.f32 %v2225, %v2385
        %2389 = vrot.lane.b32.xlu0 %v2355, 127
        %v2390 = vpop.permute.xlu0 %2389
        %2391 = vrot.lane.b32.xlu0 %v2356, 127
        %v2392 = vpop.permute.xlu0 %2391
        %v2393 = vsel %vm472, %v2390, %v2392
        %v2394 = vsel %vm472, %v2392, %v2390
        %v2395 = vmul.f32 %v2234, %v2393
        %v2396 = vmul.f32 %v2235, %v2394
        %2397 = vrot.lane.b32.xlu0 %v2355, 113
        %v2398 = vpop.permute.xlu0 %2397
        %2399 = vrot.lane.b32.xlu0 %v2356, 113
        %v2400 = vpop.permute.xlu0 %2399
        %v2401 = vsel %vm484, %v2398, %v2400
        %v2402 = vsel %vm484, %v2400, %v2398
        %v2403 = vmul.f32 %v2244, %v2401
        %v2404 = vmul.f32 %v2245, %v2402
        %2405 = vrot.lane.b32.xlu0 %v2355, 112
        %v2406 = vpop.permute.xlu0 %2405
        %2407 = vrot.lane.b32.xlu0 %v2356, 112
        %v2408 = vpop.permute.xlu0 %2407
        %v2409 = vsel %vm496, %v2406, %v2408
        %v2410 = vsel %vm496, %v2408, %v2406
        %v2411 = vmul.f32 %v2254, %v2409
        %v2412 = vmul.f32 %v2255, %v2410
        %2413 = vrot.lane.b32.xlu0 %v2355, 111
        %v2414 = vpop.permute.xlu0 %2413
        %2415 = vrot.lane.b32.xlu0 %v2356, 111
        %v2416 = vpop.permute.xlu0 %2415
        %v2417 = vsel %vm508, %v2414, %v2416
        %v2418 = vsel %vm508, %v2416, %v2414
        %v2419 = vmul.f32 %v2264, %v2417
        %v2420 = vmul.f32 %v2265, %v2418
        %v2421 = vld [vmem:[%s6] sm:$0xff]
        %v2423 = vsel %vm517, %v2421, 0
        %2425 = vmatprep.subr.mxu0 %v2364
        %2426 = vmatpush1.msra.mxu0 %v2363
        %2427 = vmatprep.subr.mxu0 %v2372
        %2428 = vmatpush1.msra.mxu0 %v2371
        %2429 = vmatprep.subr.mxu0 %v2380
        %2430 = vmatpush1.msra.mxu0 %v2379
        %2431 = vmatprep.subr.mxu0 %v2388
        %2432 = vmatpush1.msra.mxu0 %v2387
        %2433 = vmatprep.subr.mxu0 %v2356
        %2434 = vmatpush1.msra.mxu0 %v2355
        %2435 = vmatprep.subr.mxu0 %v2396
        %2436 = vmatpush1.msra.mxu0 %v2395
        %2437 = vmatprep.subr.mxu0 %v2404
        %2438 = vmatpush1.msra.mxu0 %v2403
        %2439 = vmatprep.subr.mxu0 %v2412
        %2440 = vmatpush1.msra.mxu0 %v2411
        %2441 = vmatprep.subr.mxu0 %v2420
        %2442 = vmatpush1.msra.mxu0 %v2419
        %2443 = vmatprep.subr.mxu0 1.0
        %2444 = vmatpush1.msra.mxu0 1.0
        %2445 = vmatprep.subr.mxu0 0.0
        %2446 = vmatpush1.msra.mxu0 0.0
        %2447 = vmatprep.subr.mxu0 0.0
        %2448 = vmatpush1.msra.mxu0 0.0
        %2449 = vmatprep.subr.mxu0 0.0
        %2450 = vmatpush1.msra.mxu0 0.0
        %2451 = vmatprep.subr.mxu0 0.0
        %2452 = vmatpush1.msra.mxu0 0.0
        %2453 = vmatprep.subr.mxu0 0.0
        %2454 = vmatpush1.msra.mxu0 0.0
        %2455 = vmatprep.subr.mxu0 0.0
        %2456 = vmatpush1.msra.mxu0 0.0
        %2457 = vmatprep.subr.mxu0 0.0
        %2458 = vmatpush1.msra.mxu0 0.0
        %2459 = vmatprep.subr.mxu0 0.0
        %2460 = vmatpush1.msra.mxu0 0.0
        %2461 = vmatprep.subr.mxu0 0.0
        %2462 = vmatpush1.msra.mxu0 0.0
        %2463 = vmatprep.subr.mxu0 0.0
        %2464 = vmatpush1.msra.mxu0 0.0
        %2465 = vmatprep.subr.mxu0 0.0
        %2466 = vmatpush1.msra.mxu0 0.0
        %2467 = vmatprep.subr.mxu0 0.0
        %2468 = vmatpush1.msra.mxu0 0.0
        %2469 = vmatprep.subr.mxu0 0.0
        %2470 = vmatpush1.msra.mxu0 0.0
        %2471 = vmatprep.subr.mxu0 0.0
        %2472 = vmatpush1.msra.mxu0 0.0
        %2473 = vmatprep.subr.mxu0 0.0
        %2474 = vmatpush1.msra.mxu0 0.0
        %2475 = vmatprep.subr.mxu0 0.0
        %2476 = vmatpush1.msra.mxu0 0.0
        %2477 = vmatprep.subr.mxu0 0.0
        %2478 = vmatpush1.msra.mxu0 0.0
        %2479 = vmatprep.subr.mxu0 0.0
        %2480 = vmatpush1.msra.mxu0 0.0
        %2481 = vmatprep.subr.mxu0 0.0
        %2482 = vmatpush1.msra.mxu0 0.0
        %2483 = vmatprep.subr.mxu0 0.0
        %2484 = vmatpush1.msra.mxu0 0.0
        %2485 = vmatprep.subr.mxu0 0.0
        %2486 = vmatpush1.msra.mxu0 0.0
        %2487 = vmatprep.subr.mxu0 0.0
        %2488 = vmatpush1.msra.mxu0 0.0
        %2489 = vmatprep.mubr.f32.mxu0 0.0
        %2490 = vmatmul.mubr.f32.gmra.mrb[0].mxu0 %v2423
        %v2491 = vpop.f32.mrb[0].mxu0
        %v2492 = vadd.f32 0.0, %v2491
        %v2493 = vpop.f32.mrb[0].mxu0
        %v2494 = vadd.f32 0.0, %v2493
        %2495 = vdwg.mxu0
        %v2496 = vadd.f32 %v2064, %v2492
        %v2497 = vadd.f32 %v2065, %v2494
        %s2498 = scalar_lea.vmem %s292, 64 [#allocation9]
        %2499 = vst [vmem:[%s2498] sm:$0xff] %v2496
        %2500 = vst [vmem:[%s2498 + $0x8] sm:$0xff] %v2497
        %s2501 = scalar_lea.vmem %s260, 80 [#allocation4]
        %v2502 = vld [vmem:[%s2501] sm:$0xff]
        %v2503 = vld [vmem:[%s2501 + $0x8] sm:$0xff]
        %v2504 = vld [vmem:[%s3] sm:$0xff]
        %v2505 = vld [vmem:[%s2] sm:$0xff]
        %s2506 = sadd.s32 %s295, 5
        %s2507 = smul.u32 %s2506, 128
        %s2508 = sld [smem:[#allocation3 + %s2507]]
        %v2509 = vstv %s2508
        %v2510 = vmul.f32 %v2505, %v2509
        %v2511 = vadd.f32 %v2504, %v2510
        %s2512 = sadd.s32 %s2507, 1
        %s2513 = sld [smem:[#allocation3 + %s2512]]
        %v2514 = vstv %s2513
        %v2515 = vmul.f32 %v2505, %v2514
        %2517 = vrot.lane.b32.xlu0 %v2515, 127
        %v2518 = vpop.permute.xlu0 %2517
        %v2520 = vadd.f32 %v2511, %v2518
        %s2521 = sadd.s32 %s2507, 2
        %s2522 = sld [smem:[#allocation3 + %s2521]]
        %v2523 = vstv %s2522
        %v2524 = vmul.f32 %v2505, %v2523
        %2526 = vrot.lane.b32.xlu0 %v2524, 126
        %v2527 = vpop.permute.xlu0 %2526
        %v2529 = vadd.f32 %v2520, %v2527
        %s2530 = sadd.s32 %s2507, 3
        %s2531 = sld [smem:[#allocation3 + %s2530]]
        %v2532 = vstv %s2531
        %v2533 = vmul.f32 %v2505, %v2532
        %2535 = vrot.lane.b32.xlu0 %v2533, 125
        %v2536 = vpop.permute.xlu0 %2535
        %v2538 = vadd.f32 %v2529, %v2536
        %s2539 = sadd.s32 %s2507, 4
        %s2540 = sld [smem:[#allocation3 + %s2539]]
        %v2541 = vstv %s2540
        %v2542 = vmul.f32 %v2505, %v2541
        %2544 = vrot.lane.b32.xlu0 %v2542, 124
        %v2545 = vpop.permute.xlu0 %2544
        %v2547 = vadd.f32 %v2538, %v2545
        %s2548 = sadd.s32 %s2507, 5
        %s2549 = sld [smem:[#allocation3 + %s2548]]
        %v2550 = vstv %s2549
        %v2551 = vmul.f32 %v2505, %v2550
        %2553 = vrot.lane.b32.xlu0 %v2551, 123
        %v2554 = vpop.permute.xlu0 %2553
        %v2556 = vadd.f32 %v2547, %v2554
        %s2557 = sadd.s32 %s2507, 6
        %s2558 = sld [smem:[#allocation3 + %s2557]]
        %v2559 = vstv %s2558
        %v2560 = vmul.f32 %v2505, %v2559
        %2562 = vrot.lane.b32.xlu0 %v2560, 122
        %v2563 = vpop.permute.xlu0 %2562
        %v2565 = vadd.f32 %v2556, %v2563
        %s2566 = sadd.s32 %s2507, 7
        %s2567 = sld [smem:[#allocation3 + %s2566]]
        %v2568 = vstv %s2567
        %v2569 = vmul.f32 %v2505, %v2568
        %2571 = vrot.lane.b32.xlu0 %v2569, 121
        %v2572 = vpop.permute.xlu0 %2571
        %v2574 = vadd.f32 %v2565, %v2572
        %2576 = vset.pattern.permute.xlu0 0
        %2577 = vperm.xlu0 %2576, %v2574
        %v2578 = vpop.permute.xlu0 %2577
        %v2580 = vadd.f32 %v2502, %v2578
        %v2581 = vadd.f32 %v2503, %v2578
        %v2582 = vrot.slane %v2580, 4
        %v2583 = vadd.f32 %v2580, %v2582
        %v2584 = vrot.slane %v2583, 2
        %v2585 = vadd.f32 %v2583, %v2584
        %v2586 = vrot.slane %v2585, 1
        %v2587 = vadd.f32 %v2585, %v2586
        %v2588 = vrot.slane %v2581, 4
        %v2589 = vadd.f32 %v2581, %v2588
        %v2590 = vrot.slane %v2589, 2
        %v2591 = vadd.f32 %v2589, %v2590
        %v2592 = vrot.slane %v2591, 1
        %v2593 = vadd.f32 %v2591, %v2592
        %v2594 = vmul.f32 %v2580, %v2580
        %v2595 = vmul.f32 %v2581, %v2581
        %v2596 = vrot.slane %v2594, 4
        %v2597 = vadd.f32 %v2594, %v2596
        %v2598 = vrot.slane %v2597, 2
        %v2599 = vadd.f32 %v2597, %v2598
        %v2600 = vrot.slane %v2599, 1
        %v2601 = vadd.f32 %v2599, %v2600
        %v2602 = vrot.slane %v2595, 4
        %v2603 = vadd.f32 %v2595, %v2602
        %v2604 = vrot.slane %v2603, 2
        %v2605 = vadd.f32 %v2603, %v2604
        %v2606 = vrot.slane %v2605, 1
        %v2607 = vadd.f32 %v2605, %v2606
        %v2608 = vmul.f32 %v2587, 0.125
        %v2609 = vmul.f32 %v2593, 0.125
        %v2610 = vmul.f32 %v2608, 8.0
        %v2611 = vmul.f32 %v2609, 8.0
        %v2612 = vmul.f32 %v2610, %v2608
        %v2613 = vmul.f32 %v2611, %v2609
        %v2614 = vsub.f32 %v2601, %v2612
        %v2615 = vsub.f32 %v2607, %v2613
        %v2616 = vmul.f32 %v2614, 0.14285715
        %v2617 = vmul.f32 %v2615, 0.14285715
        %v2618 = vsub.f32 %v2580, %v2608
        %v2619 = vsub.f32 %v2581, %v2609
        %v2620 = vadd.f32 %v2616, 1e-05
        %v2621 = vadd.f32 %v2617, 1e-05
        %v2622 = vrsqrt.pop %v2620
        %v2623 = vrsqrt.pop %v2621
        %v2624 = vmul.f32 %v2618, %v2622
        %v2625 = vmul.f32 %v2619, %v2623
        %2626 = vrot.lane.b32.xlu0 %v2624, 17
        %v2627 = vpop.permute.xlu0 %2626
        %2628 = vrot.lane.b32.xlu0 %v2625, 17
        %v2629 = vpop.permute.xlu0 %2628
        %v2630 = vsel %vm425, %v2627, %v2629
        %v2631 = vsel %vm425, %v2629, %v2627
        %v2632 = vld [vmem:[#allocation7] sm:$0xff]
        %v2633 = vld [vmem:[#allocation7 + $0x8] sm:$0xff]
        %v2634 = vmul.f32 %v2632, %v2631
        %v2635 = vmul.f32 %v2633, %v2630
        %2636 = vrot.lane.b32.xlu0 %v2624, 16
        %v2637 = vpop.permute.xlu0 %2636
        %2638 = vrot.lane.b32.xlu0 %v2625, 16
        %v2639 = vpop.permute.xlu0 %2638
        %v2640 = vsel %vm436, %v2637, %v2639
        %v2641 = vsel %vm436, %v2639, %v2637
        %v2642 = vld [vmem:[%s439] sm:$0xff]
        %v2643 = vld [vmem:[%s439 + $0x8] sm:$0xff]
        %v2644 = vmul.f32 %v2642, %v2641
        %v2645 = vmul.f32 %v2643, %v2640
        %2646 = vrot.lane.b32.xlu0 %v2624, 15
        %v2647 = vpop.permute.xlu0 %2646
        %2648 = vrot.lane.b32.xlu0 %v2625, 15
        %v2649 = vpop.permute.xlu0 %2648
        %v2650 = vsel %vm448, %v2647, %v2649
        %v2651 = vsel %vm448, %v2649, %v2647
        %v2652 = vld [vmem:[%s451] sm:$0xff]
        %v2653 = vld [vmem:[%s451 + $0x8] sm:$0xff]
        %v2654 = vmul.f32 %v2652, %v2651
        %v2655 = vmul.f32 %v2653, %v2650
        %2656 = vrot.lane.b32.xlu0 %v2624, 1
        %v2657 = vpop.permute.xlu0 %2656
        %2658 = vrot.lane.b32.xlu0 %v2625, 1
        %v2659 = vpop.permute.xlu0 %2658
        %v2660 = vsel %vm460, %v2657, %v2659
        %v2661 = vsel %vm460, %v2659, %v2657
        %v2662 = vld [vmem:[%s463] sm:$0xff]
        %v2663 = vld [vmem:[%s463 + $0x8] sm:$0xff]
        %v2664 = vmul.f32 %v2662, %v2661
        %v2665 = vmul.f32 %v2663, %v2660
        %2666 = vrot.lane.b32.xlu0 %v2624, 127
        %v2667 = vpop.permute.xlu0 %2666
        %2668 = vrot.lane.b32.xlu0 %v2625, 127
        %v2669 = vpop.permute.xlu0 %2668
        %v2670 = vsel %vm472, %v2667, %v2669
        %v2671 = vsel %vm472, %v2669, %v2667
        %v2672 = vld [vmem:[%s475] sm:$0xff]
        %v2673 = vld [vmem:[%s475 + $0x8] sm:$0xff]
        %v2674 = vmul.f32 %v2672, %v2670
        %v2675 = vmul.f32 %v2673, %v2671
        %2676 = vrot.lane.b32.xlu0 %v2624, 113
        %v2677 = vpop.permute.xlu0 %2676
        %2678 = vrot.lane.b32.xlu0 %v2625, 113
        %v2679 = vpop.permute.xlu0 %2678
        %v2680 = vsel %vm484, %v2677, %v2679
        %v2681 = vsel %vm484, %v2679, %v2677
        %v2682 = vld [vmem:[%s487] sm:$0xff]
        %v2683 = vld [vmem:[%s487 + $0x8] sm:$0xff]
        %v2684 = vmul.f32 %v2682, %v2680
        %v2685 = vmul.f32 %v2683, %v2681
        %2686 = vrot.lane.b32.xlu0 %v2624, 112
        %v2687 = vpop.permute.xlu0 %2686
        %2688 = vrot.lane.b32.xlu0 %v2625, 112
        %v2689 = vpop.permute.xlu0 %2688
        %v2690 = vsel %vm496, %v2687, %v2689
        %v2691 = vsel %vm496, %v2689, %v2687
        %v2692 = vld [vmem:[%s499] sm:$0xff]
        %v2693 = vld [vmem:[%s499 + $0x8] sm:$0xff]
        %v2694 = vmul.f32 %v2692, %v2690
        %v2695 = vmul.f32 %v2693, %v2691
        %2696 = vrot.lane.b32.xlu0 %v2624, 111
        %v2697 = vpop.permute.xlu0 %2696
        %2698 = vrot.lane.b32.xlu0 %v2625, 111
        %v2699 = vpop.permute.xlu0 %2698
        %v2700 = vsel %vm508, %v2697, %v2699
        %v2701 = vsel %vm508, %v2699, %v2697
        %v2702 = vld [vmem:[%s511] sm:$0xff]
        %v2703 = vld [vmem:[%s511 + $0x8] sm:$0xff]
        %v2704 = vmul.f32 %v2702, %v2700
        %v2705 = vmul.f32 %v2703, %v2701
        %v2706 = vld [vmem:[%s5] sm:$0xff]
        %v2708 = vsel %vm517, %v2706, 0
        %2710 = vmatprep.subr.mxu0 %v2635
        %2711 = vmatpush1.msra.mxu0 %v2634
        %2712 = vmatprep.subr.mxu0 %v2645
        %2713 = vmatpush1.msra.mxu0 %v2644
        %2714 = vmatprep.subr.mxu0 %v2655
        %2715 = vmatpush1.msra.mxu0 %v2654
        %2716 = vmatprep.subr.mxu0 %v2665
        %2717 = vmatpush1.msra.mxu0 %v2664
        %2718 = vmatprep.subr.mxu0 %v2625
        %2719 = vmatpush1.msra.mxu0 %v2624
        %2720 = vmatprep.subr.mxu0 %v2675
        %2721 = vmatpush1.msra.mxu0 %v2674
        %2722 = vmatprep.subr.mxu0 %v2685
        %2723 = vmatpush1.msra.mxu0 %v2684
        %2724 = vmatprep.subr.mxu0 %v2695
        %2725 = vmatpush1.msra.mxu0 %v2694
        %2726 = vmatprep.subr.mxu0 %v2705
        %2727 = vmatpush1.msra.mxu0 %v2704
        %2728 = vmatprep.subr.mxu0 1.0
        %2729 = vmatpush1.msra.mxu0 1.0
        %2730 = vmatprep.subr.mxu0 0.0
        %2731 = vmatpush1.msra.mxu0 0.0
        %2732 = vmatprep.subr.mxu0 0.0
        %2733 = vmatpush1.msra.mxu0 0.0
        %2734 = vmatprep.subr.mxu0 0.0
        %2735 = vmatpush1.msra.mxu0 0.0
        %2736 = vmatprep.subr.mxu0 0.0
        %2737 = vmatpush1.msra.mxu0 0.0
        %2738 = vmatprep.subr.mxu0 0.0
        %2739 = vmatpush1.msra.mxu0 0.0
        %2740 = vmatprep.subr.mxu0 0.0
        %2741 = vmatpush1.msra.mxu0 0.0
        %2742 = vmatprep.subr.mxu0 0.0
        %2743 = vmatpush1.msra.mxu0 0.0
        %2744 = vmatprep.subr.mxu0 0.0
        %2745 = vmatpush1.msra.mxu0 0.0
        %2746 = vmatprep.subr.mxu0 0.0
        %2747 = vmatpush1.msra.mxu0 0.0
        %2748 = vmatprep.subr.mxu0 0.0
        %2749 = vmatpush1.msra.mxu0 0.0
        %2750 = vmatprep.subr.mxu0 0.0
        %2751 = vmatpush1.msra.mxu0 0.0
        %2752 = vmatprep.subr.mxu0 0.0
        %2753 = vmatpush1.msra.mxu0 0.0
        %2754 = vmatprep.subr.mxu0 0.0
        %2755 = vmatpush1.msra.mxu0 0.0
        %2756 = vmatprep.subr.mxu0 0.0
        %2757 = vmatpush1.msra.mxu0 0.0
        %2758 = vmatprep.subr.mxu0 0.0
        %2759 = vmatpush1.msra.mxu0 0.0
        %2760 = vmatprep.subr.mxu0 0.0
        %2761 = vmatpush1.msra.mxu0 0.0
        %2762 = vmatprep.subr.mxu0 0.0
        %2763 = vmatpush1.msra.mxu0 0.0
        %2764 = vmatprep.subr.mxu0 0.0
        %2765 = vmatpush1.msra.mxu0 0.0
        %2766 = vmatprep.subr.mxu0 0.0
        %2767 = vmatpush1.msra.mxu0 0.0
        %2768 = vmatprep.subr.mxu0 0.0
        %2769 = vmatpush1.msra.mxu0 0.0
        %2770 = vmatprep.subr.mxu0 0.0
        %2771 = vmatpush1.msra.mxu0 0.0
        %2772 = vmatprep.subr.mxu0 0.0
        %2773 = vmatpush1.msra.mxu0 0.0
        %2774 = vmatprep.mubr.f32.mxu0 0.0
        %2775 = vmatmul.mubr.f32.gmra.mrb[0].mxu0 %v2708
        %v2776 = vpop.f32.mrb[0].mxu0
        %v2777 = vadd.f32 0.0, %v2776
        %v2778 = vpop.f32.mrb[0].mxu0
        %v2779 = vadd.f32 0.0, %v2778
        %2780 = vdwg.mxu0
        %v2781 = vxor.u32 %v2777, 2147483648
        %v2782 = vxor.u32 %v2779, 2147483648
        %v2783 = vmul.f32 %v2781, 1.442695
        %v2784 = vpow.pop %v2783
        %v2785 = vmul.f32 %v2782, 1.442695
        %v2786 = vpow.pop %v2785
        %v2787 = vadd.f32 %v2784, 1.0
        %v2788 = vadd.f32 %v2786, 1.0
        %v2789 = vrcp.pop %v2787
        %v2790 = vmul.f32 1.0, %v2789
        %v2791 = vrcp.pop %v2788
        %v2792 = vmul.f32 1.0, %v2791
        %v2793 = vmul.f32 %v2777, %v2790
        %v2794 = vmul.f32 %v2779, %v2792
        %2795 = vrot.lane.b32.xlu0 %v2793, 17
        %v2796 = vpop.permute.xlu0 %2795
        %2797 = vrot.lane.b32.xlu0 %v2794, 17
        %v2798 = vpop.permute.xlu0 %2797
        %v2799 = vsel %vm425, %v2796, %v2798
        %v2800 = vsel %vm425, %v2798, %v2796
        %v2801 = vmul.f32 %v2632, %v2800
        %v2802 = vmul.f32 %v2633, %v2799
        %2803 = vrot.lane.b32.xlu0 %v2793, 16
        %v2804 = vpop.permute.xlu0 %2803
        %2805 = vrot.lane.b32.xlu0 %v2794, 16
        %v2806 = vpop.permute.xlu0 %2805
        %v2807 = vsel %vm436, %v2804, %v2806
        %v2808 = vsel %vm436, %v2806, %v2804
        %v2809 = vmul.f32 %v2642, %v2808
        %v2810 = vmul.f32 %v2643, %v2807
        %2811 = vrot.lane.b32.xlu0 %v2793, 15
        %v2812 = vpop.permute.xlu0 %2811
        %2813 = vrot.lane.b32.xlu0 %v2794, 15
        %v2814 = vpop.permute.xlu0 %2813
        %v2815 = vsel %vm448, %v2812, %v2814
        %v2816 = vsel %vm448, %v2814, %v2812
        %v2817 = vmul.f32 %v2652, %v2816
        %v2818 = vmul.f32 %v2653, %v2815
        %2819 = vrot.lane.b32.xlu0 %v2793, 1
        %v2820 = vpop.permute.xlu0 %2819
        %2821 = vrot.lane.b32.xlu0 %v2794, 1
        %v2822 = vpop.permute.xlu0 %2821
        %v2823 = vsel %vm460, %v2820, %v2822
        %v2824 = vsel %vm460, %v2822, %v2820
        %v2825 = vmul.f32 %v2662, %v2824
        %v2826 = vmul.f32 %v2663, %v2823
        %2827 = vrot.lane.b32.xlu0 %v2793, 127
        %v2828 = vpop.permute.xlu0 %2827
        %2829 = vrot.lane.b32.xlu0 %v2794, 127
        %v2830 = vpop.permute.xlu0 %2829
        %v2831 = vsel %vm472, %v2828, %v2830
        %v2832 = vsel %vm472, %v2830, %v2828
        %v2833 = vmul.f32 %v2672, %v2831
        %v2834 = vmul.f32 %v2673, %v2832
        %2835 = vrot.lane.b32.xlu0 %v2793, 113
        %v2836 = vpop.permute.xlu0 %2835
        %2837 = vrot.lane.b32.xlu0 %v2794, 113
        %v2838 = vpop.permute.xlu0 %2837
        %v2839 = vsel %vm484, %v2836, %v2838
        %v2840 = vsel %vm484, %v2838, %v2836
        %v2841 = vmul.f32 %v2682, %v2839
        %v2842 = vmul.f32 %v2683, %v2840
        %2843 = vrot.lane.b32.xlu0 %v2793, 112
        %v2844 = vpop.permute.xlu0 %2843
        %2845 = vrot.lane.b32.xlu0 %v2794, 112
        %v2846 = vpop.permute.xlu0 %2845
        %v2847 = vsel %vm496, %v2844, %v2846
        %v2848 = vsel %vm496, %v2846, %v2844
        %v2849 = vmul.f32 %v2692, %v2847
        %v2850 = vmul.f32 %v2693, %v2848
        %2851 = vrot.lane.b32.xlu0 %v2793, 111
        %v2852 = vpop.permute.xlu0 %2851
        %2853 = vrot.lane.b32.xlu0 %v2794, 111
        %v2854 = vpop.permute.xlu0 %2853
        %v2855 = vsel %vm508, %v2852, %v2854
        %v2856 = vsel %vm508, %v2854, %v2852
        %v2857 = vmul.f32 %v2702, %v2855
        %v2858 = vmul.f32 %v2703, %v2856
        %v2859 = vld [vmem:[%s6] sm:$0xff]
        %v2861 = vsel %vm517, %v2859, 0
        %2863 = vmatprep.subr.mxu0 %v2802
        %2864 = vmatpush1.msra.mxu0 %v2801
        %2865 = vmatprep.subr.mxu0 %v2810
        %2866 = vmatpush1.msra.mxu0 %v2809
        %2867 = vmatprep.subr.mxu0 %v2818
        %2868 = vmatpush1.msra.mxu0 %v2817
        %2869 = vmatprep.subr.mxu0 %v2826
        %2870 = vmatpush1.msra.mxu0 %v2825
        %2871 = vmatprep.subr.mxu0 %v2794
        %2872 = vmatpush1.msra.mxu0 %v2793
        %2873 = vmatprep.subr.mxu0 %v2834
        %2874 = vmatpush1.msra.mxu0 %v2833
        %2875 = vmatprep.subr.mxu0 %v2842
        %2876 = vmatpush1.msra.mxu0 %v2841
        %2877 = vmatprep.subr.mxu0 %v2850
        %2878 = vmatpush1.msra.mxu0 %v2849
        %2879 = vmatprep.subr.mxu0 %v2858
        %2880 = vmatpush1.msra.mxu0 %v2857
        %2881 = vmatprep.subr.mxu0 1.0
        %2882 = vmatpush1.msra.mxu0 1.0
        %2883 = vmatprep.subr.mxu0 0.0
        %2884 = vmatpush1.msra.mxu0 0.0
        %2885 = vmatprep.subr.mxu0 0.0
        %2886 = vmatpush1.msra.mxu0 0.0
        %2887 = vmatprep.subr.mxu0 0.0
        %2888 = vmatpush1.msra.mxu0 0.0
        %2889 = vmatprep.subr.mxu0 0.0
        %2890 = vmatpush1.msra.mxu0 0.0
        %2891 = vmatprep.subr.mxu0 0.0
        %2892 = vmatpush1.msra.mxu0 0.0
        %2893 = vmatprep.subr.mxu0 0.0
        %2894 = vmatpush1.msra.mxu0 0.0
        %2895 = vmatprep.subr.mxu0 0.0
        %2896 = vmatpush1.msra.mxu0 0.0
        %2897 = vmatprep.subr.mxu0 0.0
        %2898 = vmatpush1.msra.mxu0 0.0
        %2899 = vmatprep.subr.mxu0 0.0
        %2900 = vmatpush1.msra.mxu0 0.0
        %2901 = vmatprep.subr.mxu0 0.0
        %2902 = vmatpush1.msra.mxu0 0.0
        %2903 = vmatprep.subr.mxu0 0.0
        %2904 = vmatpush1.msra.mxu0 0.0
        %2905 = vmatprep.subr.mxu0 0.0
        %2906 = vmatpush1.msra.mxu0 0.0
        %2907 = vmatprep.subr.mxu0 0.0
        %2908 = vmatpush1.msra.mxu0 0.0
        %2909 = vmatprep.subr.mxu0 0.0
        %2910 = vmatpush1.msra.mxu0 0.0
        %2911 = vmatprep.subr.mxu0 0.0
        %2912 = vmatpush1.msra.mxu0 0.0
        %2913 = vmatprep.subr.mxu0 0.0
        %2914 = vmatpush1.msra.mxu0 0.0
        %2915 = vmatprep.subr.mxu0 0.0
        %2916 = vmatpush1.msra.mxu0 0.0
        %2917 = vmatprep.subr.mxu0 0.0
        %2918 = vmatpush1.msra.mxu0 0.0
        %2919 = vmatprep.subr.mxu0 0.0
        %2920 = vmatpush1.msra.mxu0 0.0
        %2921 = vmatprep.subr.mxu0 0.0
        %2922 = vmatpush1.msra.mxu0 0.0
        %2923 = vmatprep.subr.mxu0 0.0
        %2924 = vmatpush1.msra.mxu0 0.0
        %2925 = vmatprep.subr.mxu0 0.0
        %2926 = vmatpush1.msra.mxu0 0.0
        %2927 = vmatprep.mubr.f32.mxu0 0.0
        %2928 = vmatmul.mubr.f32.gmra.mrb[0].mxu0 %v2861
        %v2929 = vpop.f32.mrb[0].mxu0
        %v2930 = vadd.f32 0.0, %v2929
        %v2931 = vpop.f32.mrb[0].mxu0
        %v2932 = vadd.f32 0.0, %v2931
        %2933 = vdwg.mxu0
        %v2934 = vadd.f32 %v2502, %v2930
        %v2935 = vadd.f32 %v2503, %v2932
        %s2936 = scalar_lea.vmem %s292, 80 [#allocation9]
        %2937 = vst [vmem:[%s2936] sm:$0xff] %v2934
        %2938 = vst [vmem:[%s2936 + $0x8] sm:$0xff] %v2935
        %s2939 = scalar_lea.vmem %s260, 96 [#allocation4]
        %v2940 = vld [vmem:[%s2939] sm:$0xff]
        %v2941 = vld [vmem:[%s2939 + $0x8] sm:$0xff]
        %v2942 = vld [vmem:[%s3] sm:$0xff]
        %v2943 = vld [vmem:[%s2] sm:$0xff]
        %s2944 = sadd.s32 %s295, 6
        %s2945 = smul.u32 %s2944, 128
        %s2946 = sld [smem:[#allocation3 + %s2945]]
        %v2947 = vstv %s2946
        %v2948 = vmul.f32 %v2943, %v2947
        %v2949 = vadd.f32 %v2942, %v2948
        %s2950 = sadd.s32 %s2945, 1
        %s2951 = sld [smem:[#allocation3 + %s2950]]
        %v2952 = vstv %s2951
        %v2953 = vmul.f32 %v2943, %v2952
        %2955 = vrot.lane.b32.xlu0 %v2953, 127
        %v2956 = vpop.permute.xlu0 %2955
        %v2958 = vadd.f32 %v2949, %v2956
        %s2959 = sadd.s32 %s2945, 2
        %s2960 = sld [smem:[#allocation3 + %s2959]]
        %v2961 = vstv %s2960
        %v2962 = vmul.f32 %v2943, %v2961
        %2964 = vrot.lane.b32.xlu0 %v2962, 126
        %v2965 = vpop.permute.xlu0 %2964
        %v2967 = vadd.f32 %v2958, %v2965
        %s2968 = sadd.s32 %s2945, 3
        %s2969 = sld [smem:[#allocation3 + %s2968]]
        %v2970 = vstv %s2969
        %v2971 = vmul.f32 %v2943, %v2970
        %2973 = vrot.lane.b32.xlu0 %v2971, 125
        %v2974 = vpop.permute.xlu0 %2973
        %v2976 = vadd.f32 %v2967, %v2974
        %s2977 = sadd.s32 %s2945, 4
        %s2978 = sld [smem:[#allocation3 + %s2977]]
        %v2979 = vstv %s2978
        %v2980 = vmul.f32 %v2943, %v2979
        %2982 = vrot.lane.b32.xlu0 %v2980, 124
        %v2983 = vpop.permute.xlu0 %2982
        %v2985 = vadd.f32 %v2976, %v2983
        %s2986 = sadd.s32 %s2945, 5
        %s2987 = sld [smem:[#allocation3 + %s2986]]
        %v2988 = vstv %s2987
        %v2989 = vmul.f32 %v2943, %v2988
        %2991 = vrot.lane.b32.xlu0 %v2989, 123
        %v2992 = vpop.permute.xlu0 %2991
        %v2994 = vadd.f32 %v2985, %v2992
        %s2995 = sadd.s32 %s2945, 6
        %s2996 = sld [smem:[#allocation3 + %s2995]]
        %v2997 = vstv %s2996
        %v2998 = vmul.f32 %v2943, %v2997
        %3000 = vrot.lane.b32.xlu0 %v2998, 122
        %v3001 = vpop.permute.xlu0 %3000
        %v3003 = vadd.f32 %v2994, %v3001
        %s3004 = sadd.s32 %s2945, 7
        %s3005 = sld [smem:[#allocation3 + %s3004]]
        %v3006 = vstv %s3005
        %v3007 = vmul.f32 %v2943, %v3006
        %3009 = vrot.lane.b32.xlu0 %v3007, 121
        %v3010 = vpop.permute.xlu0 %3009
        %v3012 = vadd.f32 %v3003, %v3010
        %3014 = vset.pattern.permute.xlu0 0
        %3015 = vperm.xlu0 %3014, %v3012
        %v3016 = vpop.permute.xlu0 %3015
        %v3018 = vadd.f32 %v2940, %v3016
        %v3019 = vadd.f32 %v2941, %v3016
        %v3020 = vrot.slane %v3018, 4
        %v3021 = vadd.f32 %v3018, %v3020
        %v3022 = vrot.slane %v3021, 2
        %v3023 = vadd.f32 %v3021, %v3022
        %v3024 = vrot.slane %v3023, 1
        %v3025 = vadd.f32 %v3023, %v3024
        %v3026 = vrot.slane %v3019, 4
        %v3027 = vadd.f32 %v3019, %v3026
        %v3028 = vrot.slane %v3027, 2
        %v3029 = vadd.f32 %v3027, %v3028
        %v3030 = vrot.slane %v3029, 1
        %v3031 = vadd.f32 %v3029, %v3030
        %v3032 = vmul.f32 %v3018, %v3018
        %v3033 = vmul.f32 %v3019, %v3019
        %v3034 = vrot.slane %v3032, 4
        %v3035 = vadd.f32 %v3032, %v3034
        %v3036 = vrot.slane %v3035, 2
        %v3037 = vadd.f32 %v3035, %v3036
        %v3038 = vrot.slane %v3037, 1
        %v3039 = vadd.f32 %v3037, %v3038
        %v3040 = vrot.slane %v3033, 4
        %v3041 = vadd.f32 %v3033, %v3040
        %v3042 = vrot.slane %v3041, 2
        %v3043 = vadd.f32 %v3041, %v3042
        %v3044 = vrot.slane %v3043, 1
        %v3045 = vadd.f32 %v3043, %v3044
        %v3046 = vmul.f32 %v3025, 0.125
        %v3047 = vmul.f32 %v3031, 0.125
        %v3048 = vmul.f32 %v3046, 8.0
        %v3049 = vmul.f32 %v3047, 8.0
        %v3050 = vmul.f32 %v3048, %v3046
        %v3051 = vmul.f32 %v3049, %v3047
        %v3052 = vsub.f32 %v3039, %v3050
        %v3053 = vsub.f32 %v3045, %v3051
        %v3054 = vmul.f32 %v3052, 0.14285715
        %v3055 = vmul.f32 %v3053, 0.14285715
        %v3056 = vsub.f32 %v3018, %v3046
        %v3057 = vsub.f32 %v3019, %v3047
        %v3058 = vadd.f32 %v3054, 1e-05
        %v3059 = vadd.f32 %v3055, 1e-05
        %v3060 = vrsqrt.pop %v3058
        %v3061 = vrsqrt.pop %v3059
        %v3062 = vmul.f32 %v3056, %v3060
        %v3063 = vmul.f32 %v3057, %v3061
        %3064 = vrot.lane.b32.xlu0 %v3062, 17
        %v3065 = vpop.permute.xlu0 %3064
        %3066 = vrot.lane.b32.xlu0 %v3063, 17
        %v3067 = vpop.permute.xlu0 %3066
        %v3068 = vsel %vm425, %v3065, %v3067
        %v3069 = vsel %vm425, %v3067, %v3065
        %v3070 = vld [vmem:[#allocation7] sm:$0xff]
        %v3071 = vld [vmem:[#allocation7 + $0x8] sm:$0xff]
        %v3072 = vmul.f32 %v3070, %v3069
        %v3073 = vmul.f32 %v3071, %v3068
        %3074 = vrot.lane.b32.xlu0 %v3062, 16
        %v3075 = vpop.permute.xlu0 %3074
        %3076 = vrot.lane.b32.xlu0 %v3063, 16
        %v3077 = vpop.permute.xlu0 %3076
        %v3078 = vsel %vm436, %v3075, %v3077
        %v3079 = vsel %vm436, %v3077, %v3075
        %v3080 = vld [vmem:[%s439] sm:$0xff]
        %v3081 = vld [vmem:[%s439 + $0x8] sm:$0xff]
        %v3082 = vmul.f32 %v3080, %v3079
        %v3083 = vmul.f32 %v3081, %v3078
        %3084 = vrot.lane.b32.xlu0 %v3062, 15
        %v3085 = vpop.permute.xlu0 %3084
        %3086 = vrot.lane.b32.xlu0 %v3063, 15
        %v3087 = vpop.permute.xlu0 %3086
        %v3088 = vsel %vm448, %v3085, %v3087
        %v3089 = vsel %vm448, %v3087, %v3085
        %v3090 = vld [vmem:[%s451] sm:$0xff]
        %v3091 = vld [vmem:[%s451 + $0x8] sm:$0xff]
        %v3092 = vmul.f32 %v3090, %v3089
        %v3093 = vmul.f32 %v3091, %v3088
        %3094 = vrot.lane.b32.xlu0 %v3062, 1
        %v3095 = vpop.permute.xlu0 %3094
        %3096 = vrot.lane.b32.xlu0 %v3063, 1
        %v3097 = vpop.permute.xlu0 %3096
        %v3098 = vsel %vm460, %v3095, %v3097
        %v3099 = vsel %vm460, %v3097, %v3095
        %v3100 = vld [vmem:[%s463] sm:$0xff]
        %v3101 = vld [vmem:[%s463 + $0x8] sm:$0xff]
        %v3102 = vmul.f32 %v3100, %v3099
        %v3103 = vmul.f32 %v3101, %v3098
        %3104 = vrot.lane.b32.xlu0 %v3062, 127
        %v3105 = vpop.permute.xlu0 %3104
        %3106 = vrot.lane.b32.xlu0 %v3063, 127
        %v3107 = vpop.permute.xlu0 %3106
        %v3108 = vsel %vm472, %v3105, %v3107
        %v3109 = vsel %vm472, %v3107, %v3105
        %v3110 = vld [vmem:[%s475] sm:$0xff]
        %v3111 = vld [vmem:[%s475 + $0x8] sm:$0xff]
        %v3112 = vmul.f32 %v3110, %v3108
        %v3113 = vmul.f32 %v3111, %v3109
        %3114 = vrot.lane.b32.xlu0 %v3062, 113
        %v3115 = vpop.permute.xlu0 %3114
        %3116 = vrot.lane.b32.xlu0 %v3063, 113
        %v3117 = vpop.permute.xlu0 %3116
        %v3118 = vsel %vm484, %v3115, %v3117
        %v3119 = vsel %vm484, %v3117, %v3115
        %v3120 = vld [vmem:[%s487] sm:$0xff]
        %v3121 = vld [vmem:[%s487 + $0x8] sm:$0xff]
        %v3122 = vmul.f32 %v3120, %v3118
        %v3123 = vmul.f32 %v3121, %v3119
        %3124 = vrot.lane.b32.xlu0 %v3062, 112
        %v3125 = vpop.permute.xlu0 %3124
        %3126 = vrot.lane.b32.xlu0 %v3063, 112
        %v3127 = vpop.permute.xlu0 %3126
        %v3128 = vsel %vm496, %v3125, %v3127
        %v3129 = vsel %vm496, %v3127, %v3125
        %v3130 = vld [vmem:[%s499] sm:$0xff]
        %v3131 = vld [vmem:[%s499 + $0x8] sm:$0xff]
        %v3132 = vmul.f32 %v3130, %v3128
        %v3133 = vmul.f32 %v3131, %v3129
        %3134 = vrot.lane.b32.xlu0 %v3062, 111
        %v3135 = vpop.permute.xlu0 %3134
        %3136 = vrot.lane.b32.xlu0 %v3063, 111
        %v3137 = vpop.permute.xlu0 %3136
        %v3138 = vsel %vm508, %v3135, %v3137
        %v3139 = vsel %vm508, %v3137, %v3135
        %v3140 = vld [vmem:[%s511] sm:$0xff]
        %v3141 = vld [vmem:[%s511 + $0x8] sm:$0xff]
        %v3142 = vmul.f32 %v3140, %v3138
        %v3143 = vmul.f32 %v3141, %v3139
        %v3144 = vld [vmem:[%s5] sm:$0xff]
        %v3146 = vsel %vm517, %v3144, 0
        %3148 = vmatprep.subr.mxu0 %v3073
        %3149 = vmatpush1.msra.mxu0 %v3072
        %3150 = vmatprep.subr.mxu0 %v3083
        %3151 = vmatpush1.msra.mxu0 %v3082
        %3152 = vmatprep.subr.mxu0 %v3093
        %3153 = vmatpush1.msra.mxu0 %v3092
        %3154 = vmatprep.subr.mxu0 %v3103
        %3155 = vmatpush1.msra.mxu0 %v3102
        %3156 = vmatprep.subr.mxu0 %v3063
        %3157 = vmatpush1.msra.mxu0 %v3062
        %3158 = vmatprep.subr.mxu0 %v3113
        %3159 = vmatpush1.msra.mxu0 %v3112
        %3160 = vmatprep.subr.mxu0 %v3123
        %3161 = vmatpush1.msra.mxu0 %v3122
        %3162 = vmatprep.subr.mxu0 %v3133
        %3163 = vmatpush1.msra.mxu0 %v3132
        %3164 = vmatprep.subr.mxu0 %v3143
        %3165 = vmatpush1.msra.mxu0 %v3142
        %3166 = vmatprep.subr.mxu0 1.0
        %3167 = vmatpush1.msra.mxu0 1.0
        %3168 = vmatprep.subr.mxu0 0.0
        %3169 = vmatpush1.msra.mxu0 0.0
        %3170 = vmatprep.subr.mxu0 0.0
        %3171 = vmatpush1.msra.mxu0 0.0
        %3172 = vmatprep.subr.mxu0 0.0
        %3173 = vmatpush1.msra.mxu0 0.0
        %3174 = vmatprep.subr.mxu0 0.0
        %3175 = vmatpush1.msra.mxu0 0.0
        %3176 = vmatprep.subr.mxu0 0.0
        %3177 = vmatpush1.msra.mxu0 0.0
        %3178 = vmatprep.subr.mxu0 0.0
        %3179 = vmatpush1.msra.mxu0 0.0
        %3180 = vmatprep.subr.mxu0 0.0
        %3181 = vmatpush1.msra.mxu0 0.0
        %3182 = vmatprep.subr.mxu0 0.0
        %3183 = vmatpush1.msra.mxu0 0.0
        %3184 = vmatprep.subr.mxu0 0.0
        %3185 = vmatpush1.msra.mxu0 0.0
        %3186 = vmatprep.subr.mxu0 0.0
        %3187 = vmatpush1.msra.mxu0 0.0
        %3188 = vmatprep.subr.mxu0 0.0
        %3189 = vmatpush1.msra.mxu0 0.0
        %3190 = vmatprep.subr.mxu0 0.0
        %3191 = vmatpush1.msra.mxu0 0.0
        %3192 = vmatprep.subr.mxu0 0.0
        %3193 = vmatpush1.msra.mxu0 0.0
        %3194 = vmatprep.subr.mxu0 0.0
        %3195 = vmatpush1.msra.mxu0 0.0
        %3196 = vmatprep.subr.mxu0 0.0
        %3197 = vmatpush1.msra.mxu0 0.0
        %3198 = vmatprep.subr.mxu0 0.0
        %3199 = vmatpush1.msra.mxu0 0.0
        %3200 = vmatprep.subr.mxu0 0.0
        %3201 = vmatpush1.msra.mxu0 0.0
        %3202 = vmatprep.subr.mxu0 0.0
        %3203 = vmatpush1.msra.mxu0 0.0
        %3204 = vmatprep.subr.mxu0 0.0
        %3205 = vmatpush1.msra.mxu0 0.0
        %3206 = vmatprep.subr.mxu0 0.0
        %3207 = vmatpush1.msra.mxu0 0.0
        %3208 = vmatprep.subr.mxu0 0.0
        %3209 = vmatpush1.msra.mxu0 0.0
        %3210 = vmatprep.subr.mxu0 0.0
        %3211 = vmatpush1.msra.mxu0 0.0
        %3212 = vmatprep.mubr.f32.mxu0 0.0
        %3213 = vmatmul.mubr.f32.gmra.mrb[0].mxu0 %v3146
        %v3214 = vpop.f32.mrb[0].mxu0
        %v3215 = vadd.f32 0.0, %v3214
        %v3216 = vpop.f32.mrb[0].mxu0
        %v3217 = vadd.f32 0.0, %v3216
        %3218 = vdwg.mxu0
        %v3219 = vxor.u32 %v3215, 2147483648
        %v3220 = vxor.u32 %v3217, 2147483648
        %v3221 = vmul.f32 %v3219, 1.442695
        %v3222 = vpow.pop %v3221
        %v3223 = vmul.f32 %v3220, 1.442695
        %v3224 = vpow.pop %v3223
        %v3225 = vadd.f32 %v3222, 1.0
        %v3226 = vadd.f32 %v3224, 1.0
        %v3227 = vrcp.pop %v3225
        %v3228 = vmul.f32 1.0, %v3227
        %v3229 = vrcp.pop %v3226
        %v3230 = vmul.f32 1.0, %v3229
        %v3231 = vmul.f32 %v3215, %v3228
        %v3232 = vmul.f32 %v3217, %v3230
        %3233 = vrot.lane.b32.xlu0 %v3231, 17
        %v3234 = vpop.permute.xlu0 %3233
        %3235 = vrot.lane.b32.xlu0 %v3232, 17
        %v3236 = vpop.permute.xlu0 %3235
        %v3237 = vsel %vm425, %v3234, %v3236
        %v3238 = vsel %vm425, %v3236, %v3234
        %v3239 = vmul.f32 %v3070, %v3238
        %v3240 = vmul.f32 %v3071, %v3237
        %3241 = vrot.lane.b32.xlu0 %v3231, 16
        %v3242 = vpop.permute.xlu0 %3241
        %3243 = vrot.lane.b32.xlu0 %v3232, 16
        %v3244 = vpop.permute.xlu0 %3243
        %v3245 = vsel %vm436, %v3242, %v3244
        %v3246 = vsel %vm436, %v3244, %v3242
        %v3247 = vmul.f32 %v3080, %v3246
        %v3248 = vmul.f32 %v3081, %v3245
        %3249 = vrot.lane.b32.xlu0 %v3231, 15
        %v3250 = vpop.permute.xlu0 %3249
        %3251 = vrot.lane.b32.xlu0 %v3232, 15
        %v3252 = vpop.permute.xlu0 %3251
        %v3253 = vsel %vm448, %v3250, %v3252
        %v3254 = vsel %vm448, %v3252, %v3250
        %v3255 = vmul.f32 %v3090, %v3254
        %v3256 = vmul.f32 %v3091, %v3253
        %3257 = vrot.lane.b32.xlu0 %v3231, 1
        %v3258 = vpop.permute.xlu0 %3257
        %3259 = vrot.lane.b32.xlu0 %v3232, 1
        %v3260 = vpop.permute.xlu0 %3259
        %v3261 = vsel %vm460, %v3258, %v3260
        %v3262 = vsel %vm460, %v3260, %v3258
        %v3263 = vmul.f32 %v3100, %v3262
        %v3264 = vmul.f32 %v3101, %v3261
        %3265 = vrot.lane.b32.xlu0 %v3231, 127
        %v3266 = vpop.permute.xlu0 %3265
        %3267 = vrot.lane.b32.xlu0 %v3232, 127
        %v3268 = vpop.permute.xlu0 %3267
        %v3269 = vsel %vm472, %v3266, %v3268
        %v3270 = vsel %vm472, %v3268, %v3266
        %v3271 = vmul.f32 %v3110, %v3269
        %v3272 = vmul.f32 %v3111, %v3270
        %3273 = vrot.lane.b32.xlu0 %v3231, 113
        %v3274 = vpop.permute.xlu0 %3273
        %3275 = vrot.lane.b32.xlu0 %v3232, 113
        %v3276 = vpop.permute.xlu0 %3275
        %v3277 = vsel %vm484, %v3274, %v3276
        %v3278 = vsel %vm484, %v3276, %v3274
        %v3279 = vmul.f32 %v3120, %v3277
        %v3280 = vmul.f32 %v3121, %v3278
        %3281 = vrot.lane.b32.xlu0 %v3231, 112
        %v3282 = vpop.permute.xlu0 %3281
        %3283 = vrot.lane.b32.xlu0 %v3232, 112
        %v3284 = vpop.permute.xlu0 %3283
        %v3285 = vsel %vm496, %v3282, %v3284
        %v3286 = vsel %vm496, %v3284, %v3282
        %v3287 = vmul.f32 %v3130, %v3285
        %v3288 = vmul.f32 %v3131, %v3286
        %3289 = vrot.lane.b32.xlu0 %v3231, 111
        %v3290 = vpop.permute.xlu0 %3289
        %3291 = vrot.lane.b32.xlu0 %v3232, 111
        %v3292 = vpop.permute.xlu0 %3291
        %v3293 = vsel %vm508, %v3290, %v3292
        %v3294 = vsel %vm508, %v3292, %v3290
        %v3295 = vmul.f32 %v3140, %v3293
        %v3296 = vmul.f32 %v3141, %v3294
        %v3297 = vld [vmem:[%s6] sm:$0xff]
        %v3299 = vsel %vm517, %v3297, 0
        %3301 = vmatprep.subr.mxu0 %v3240
        %3302 = vmatpush1.msra.mxu0 %v3239
        %3303 = vmatprep.subr.mxu0 %v3248
        %3304 = vmatpush1.msra.mxu0 %v3247
        %3305 = vmatprep.subr.mxu0 %v3256
        %3306 = vmatpush1.msra.mxu0 %v3255
        %3307 = vmatprep.subr.mxu0 %v3264
        %3308 = vmatpush1.msra.mxu0 %v3263
        %3309 = vmatprep.subr.mxu0 %v3232
        %3310 = vmatpush1.msra.mxu0 %v3231
        %3311 = vmatprep.subr.mxu0 %v3272
        %3312 = vmatpush1.msra.mxu0 %v3271
        %3313 = vmatprep.subr.mxu0 %v3280
        %3314 = vmatpush1.msra.mxu0 %v3279
        %3315 = vmatprep.subr.mxu0 %v3288
        %3316 = vmatpush1.msra.mxu0 %v3287
        %3317 = vmatprep.subr.mxu0 %v3296
        %3318 = vmatpush1.msra.mxu0 %v3295
        %3319 = vmatprep.subr.mxu0 1.0
        %3320 = vmatpush1.msra.mxu0 1.0
        %3321 = vmatprep.subr.mxu0 0.0
        %3322 = vmatpush1.msra.mxu0 0.0
        %3323 = vmatprep.subr.mxu0 0.0
        %3324 = vmatpush1.msra.mxu0 0.0
        %3325 = vmatprep.subr.mxu0 0.0
        %3326 = vmatpush1.msra.mxu0 0.0
        %3327 = vmatprep.subr.mxu0 0.0
        %3328 = vmatpush1.msra.mxu0 0.0
        %3329 = vmatprep.subr.mxu0 0.0
        %3330 = vmatpush1.msra.mxu0 0.0
        %3331 = vmatprep.subr.mxu0 0.0
        %3332 = vmatpush1.msra.mxu0 0.0
        %3333 = vmatprep.subr.mxu0 0.0
        %3334 = vmatpush1.msra.mxu0 0.0
        %3335 = vmatprep.subr.mxu0 0.0
        %3336 = vmatpush1.msra.mxu0 0.0
        %3337 = vmatprep.subr.mxu0 0.0
        %3338 = vmatpush1.msra.mxu0 0.0
        %3339 = vmatprep.subr.mxu0 0.0
        %3340 = vmatpush1.msra.mxu0 0.0
        %3341 = vmatprep.subr.mxu0 0.0
        %3342 = vmatpush1.msra.mxu0 0.0
        %3343 = vmatprep.subr.mxu0 0.0
        %3344 = vmatpush1.msra.mxu0 0.0
        %3345 = vmatprep.subr.mxu0 0.0
        %3346 = vmatpush1.msra.mxu0 0.0
        %3347 = vmatprep.subr.mxu0 0.0
        %3348 = vmatpush1.msra.mxu0 0.0
        %3349 = vmatprep.subr.mxu0 0.0
        %3350 = vmatpush1.msra.mxu0 0.0
        %3351 = vmatprep.subr.mxu0 0.0
        %3352 = vmatpush1.msra.mxu0 0.0
        %3353 = vmatprep.subr.mxu0 0.0
        %3354 = vmatpush1.msra.mxu0 0.0
        %3355 = vmatprep.subr.mxu0 0.0
        %3356 = vmatpush1.msra.mxu0 0.0
        %3357 = vmatprep.subr.mxu0 0.0
        %3358 = vmatpush1.msra.mxu0 0.0
        %3359 = vmatprep.subr.mxu0 0.0
        %3360 = vmatpush1.msra.mxu0 0.0
        %3361 = vmatprep.subr.mxu0 0.0
        %3362 = vmatpush1.msra.mxu0 0.0
        %3363 = vmatprep.subr.mxu0 0.0
        %3364 = vmatpush1.msra.mxu0 0.0
        %3365 = vmatprep.mubr.f32.mxu0 0.0
        %3366 = vmatmul.mubr.f32.gmra.mrb[0].mxu0 %v3299
        %v3367 = vpop.f32.mrb[0].mxu0
        %v3368 = vadd.f32 0.0, %v3367
        %v3369 = vpop.f32.mrb[0].mxu0
        %v3370 = vadd.f32 0.0, %v3369
        %3371 = vdwg.mxu0
        %v3372 = vadd.f32 %v2940, %v3368
        %v3373 = vadd.f32 %v2941, %v3370
        %s3374 = scalar_lea.vmem %s292, 96 [#allocation9]
        %3375 = vst [vmem:[%s3374] sm:$0xff] %v3372
        %3376 = vst [vmem:[%s3374 + $0x8] sm:$0xff] %v3373
        %s3377 = scalar_lea.vmem %s260, 112 [#allocation4]
        %v3378 = vld [vmem:[%s3377] sm:$0xff]
        %v3379 = vld [vmem:[%s3377 + $0x8] sm:$0xff]
        %v3380 = vld [vmem:[%s3] sm:$0xff]
        %v3381 = vld [vmem:[%s2] sm:$0xff]
        %s3382 = sadd.s32 %s295, 7
        %s3383 = smul.u32 %s3382, 128
        %s3384 = sld [smem:[#allocation3 + %s3383]]
        %v3385 = vstv %s3384
        %v3386 = vmul.f32 %v3381, %v3385
        %v3387 = vadd.f32 %v3380, %v3386
        %s3388 = sadd.s32 %s3383, 1
        %s3389 = sld [smem:[#allocation3 + %s3388]]
        %v3390 = vstv %s3389
        %v3391 = vmul.f32 %v3381, %v3390
        %3393 = vrot.lane.b32.xlu0 %v3391, 127
        %v3394 = vpop.permute.xlu0 %3393
        %v3396 = vadd.f32 %v3387, %v3394
        %s3397 = sadd.s32 %s3383, 2
        %s3398 = sld [smem:[#allocation3 + %s3397]]
        %v3399 = vstv %s3398
        %v3400 = vmul.f32 %v3381, %v3399
        %3402 = vrot.lane.b32.xlu0 %v3400, 126
        %v3403 = vpop.permute.xlu0 %3402
        %v3405 = vadd.f32 %v3396, %v3403
        %s3406 = sadd.s32 %s3383, 3
        %s3407 = sld [smem:[#allocation3 + %s3406]]
        %v3408 = vstv %s3407
        %v3409 = vmul.f32 %v3381, %v3408
        %3411 = vrot.lane.b32.xlu0 %v3409, 125
        %v3412 = vpop.permute.xlu0 %3411
        %v3414 = vadd.f32 %v3405, %v3412
        %s3415 = sadd.s32 %s3383, 4
        %s3416 = sld [smem:[#allocation3 + %s3415]]
        %v3417 = vstv %s3416
        %v3418 = vmul.f32 %v3381, %v3417
        %3420 = vrot.lane.b32.xlu0 %v3418, 124
        %v3421 = vpop.permute.xlu0 %3420
        %v3423 = vadd.f32 %v3414, %v3421
        %s3424 = sadd.s32 %s3383, 5
        %s3425 = sld [smem:[#allocation3 + %s3424]]
        %v3426 = vstv %s3425
        %v3427 = vmul.f32 %v3381, %v3426
        %3429 = vrot.lane.b32.xlu0 %v3427, 123
        %v3430 = vpop.permute.xlu0 %3429
        %v3432 = vadd.f32 %v3423, %v3430
        %s3433 = sadd.s32 %s3383, 6
        %s3434 = sld [smem:[#allocation3 + %s3433]]
        %v3435 = vstv %s3434
        %v3436 = vmul.f32 %v3381, %v3435
        %3438 = vrot.lane.b32.xlu0 %v3436, 122
        %v3439 = vpop.permute.xlu0 %3438
        %v3441 = vadd.f32 %v3432, %v3439
        %s3442 = sadd.s32 %s3383, 7
        %s3443 = sld [smem:[#allocation3 + %s3442]]
        %v3444 = vstv %s3443
        %v3445 = vmul.f32 %v3381, %v3444
        %3447 = vrot.lane.b32.xlu0 %v3445, 121
        %v3448 = vpop.permute.xlu0 %3447
        %v3450 = vadd.f32 %v3441, %v3448
        %3452 = vset.pattern.permute.xlu0 0
        %3453 = vperm.xlu0 %3452, %v3450
        %v3454 = vpop.permute.xlu0 %3453
        %v3456 = vadd.f32 %v3378, %v3454
        %v3457 = vadd.f32 %v3379, %v3454
        %v3458 = vrot.slane %v3456, 4
        %v3459 = vadd.f32 %v3456, %v3458
        %v3460 = vrot.slane %v3459, 2
        %v3461 = vadd.f32 %v3459, %v3460
        %v3462 = vrot.slane %v3461, 1
        %v3463 = vadd.f32 %v3461, %v3462
        %v3464 = vrot.slane %v3457, 4
        %v3465 = vadd.f32 %v3457, %v3464
        %v3466 = vrot.slane %v3465, 2
        %v3467 = vadd.f32 %v3465, %v3466
        %v3468 = vrot.slane %v3467, 1
        %v3469 = vadd.f32 %v3467, %v3468
        %v3470 = vmul.f32 %v3456, %v3456
        %v3471 = vmul.f32 %v3457, %v3457
        %v3472 = vrot.slane %v3470, 4
        %v3473 = vadd.f32 %v3470, %v3472
        %v3474 = vrot.slane %v3473, 2
        %v3475 = vadd.f32 %v3473, %v3474
        %v3476 = vrot.slane %v3475, 1
        %v3477 = vadd.f32 %v3475, %v3476
        %v3478 = vrot.slane %v3471, 4
        %v3479 = vadd.f32 %v3471, %v3478
        %v3480 = vrot.slane %v3479, 2
        %v3481 = vadd.f32 %v3479, %v3480
        %v3482 = vrot.slane %v3481, 1
        %v3483 = vadd.f32 %v3481, %v3482
        %v3484 = vmul.f32 %v3463, 0.125
        %v3485 = vmul.f32 %v3469, 0.125
        %v3486 = vmul.f32 %v3484, 8.0
        %v3487 = vmul.f32 %v3485, 8.0
        %v3488 = vmul.f32 %v3486, %v3484
        %v3489 = vmul.f32 %v3487, %v3485
        %v3490 = vsub.f32 %v3477, %v3488
        %v3491 = vsub.f32 %v3483, %v3489
        %v3492 = vmul.f32 %v3490, 0.14285715
        %v3493 = vmul.f32 %v3491, 0.14285715
        %v3494 = vsub.f32 %v3456, %v3484
        %v3495 = vsub.f32 %v3457, %v3485
        %v3496 = vadd.f32 %v3492, 1e-05
        %v3497 = vadd.f32 %v3493, 1e-05
        %v3498 = vrsqrt.pop %v3496
        %v3499 = vrsqrt.pop %v3497
        %v3500 = vmul.f32 %v3494, %v3498
        %v3501 = vmul.f32 %v3495, %v3499
        %3502 = vrot.lane.b32.xlu0 %v3500, 17
        %v3503 = vpop.permute.xlu0 %3502
        %3504 = vrot.lane.b32.xlu0 %v3501, 17
        %v3505 = vpop.permute.xlu0 %3504
        %v3506 = vsel %vm425, %v3503, %v3505
        %v3507 = vsel %vm425, %v3505, %v3503
        %v3508 = vld [vmem:[#allocation7] sm:$0xff]
        %v3509 = vld [vmem:[#allocation7 + $0x8] sm:$0xff]
        %v3510 = vmul.f32 %v3508, %v3507
        %v3511 = vmul.f32 %v3509, %v3506
        %3512 = vrot.lane.b32.xlu0 %v3500, 16
        %v3513 = vpop.permute.xlu0 %3512
        %3514 = vrot.lane.b32.xlu0 %v3501, 16
        %v3515 = vpop.permute.xlu0 %3514
        %v3516 = vsel %vm436, %v3513, %v3515
        %v3517 = vsel %vm436, %v3515, %v3513
        %v3518 = vld [vmem:[%s439] sm:$0xff]
        %v3519 = vld [vmem:[%s439 + $0x8] sm:$0xff]
        %v3520 = vmul.f32 %v3518, %v3517
        %v3521 = vmul.f32 %v3519, %v3516
        %3522 = vrot.lane.b32.xlu0 %v3500, 15
        %v3523 = vpop.permute.xlu0 %3522
        %3524 = vrot.lane.b32.xlu0 %v3501, 15
        %v3525 = vpop.permute.xlu0 %3524
        %v3526 = vsel %vm448, %v3523, %v3525
        %v3527 = vsel %vm448, %v3525, %v3523
        %v3528 = vld [vmem:[%s451] sm:$0xff]
        %v3529 = vld [vmem:[%s451 + $0x8] sm:$0xff]
        %v3530 = vmul.f32 %v3528, %v3527
        %v3531 = vmul.f32 %v3529, %v3526
        %3532 = vrot.lane.b32.xlu0 %v3500, 1
        %v3533 = vpop.permute.xlu0 %3532
        %3534 = vrot.lane.b32.xlu0 %v3501, 1
        %v3535 = vpop.permute.xlu0 %3534
        %v3536 = vsel %vm460, %v3533, %v3535
        %v3537 = vsel %vm460, %v3535, %v3533
        %v3538 = vld [vmem:[%s463] sm:$0xff]
        %v3539 = vld [vmem:[%s463 + $0x8] sm:$0xff]
        %v3540 = vmul.f32 %v3538, %v3537
        %v3541 = vmul.f32 %v3539, %v3536
        %3542 = vrot.lane.b32.xlu0 %v3500, 127
        %v3543 = vpop.permute.xlu0 %3542
        %3544 = vrot.lane.b32.xlu0 %v3501, 127
        %v3545 = vpop.permute.xlu0 %3544
        %v3546 = vsel %vm472, %v3543, %v3545
        %v3547 = vsel %vm472, %v3545, %v3543
        %v3548 = vld [vmem:[%s475] sm:$0xff]
        %v3549 = vld [vmem:[%s475 + $0x8] sm:$0xff]
        %v3550 = vmul.f32 %v3548, %v3546
        %v3551 = vmul.f32 %v3549, %v3547
        %3552 = vrot.lane.b32.xlu0 %v3500, 113
        %v3553 = vpop.permute.xlu0 %3552
        %3554 = vrot.lane.b32.xlu0 %v3501, 113
        %v3555 = vpop.permute.xlu0 %3554
        %v3556 = vsel %vm484, %v3553, %v3555
        %v3557 = vsel %vm484, %v3555, %v3553
        %v3558 = vld [vmem:[%s487] sm:$0xff]
        %v3559 = vld [vmem:[%s487 + $0x8] sm:$0xff]
        %v3560 = vmul.f32 %v3558, %v3556
        %v3561 = vmul.f32 %v3559, %v3557
        %3562 = vrot.lane.b32.xlu0 %v3500, 112
        %v3563 = vpop.permute.xlu0 %3562
        %3564 = vrot.lane.b32.xlu0 %v3501, 112
        %v3565 = vpop.permute.xlu0 %3564
        %v3566 = vsel %vm496, %v3563, %v3565
        %v3567 = vsel %vm496, %v3565, %v3563
        %v3568 = vld [vmem:[%s499] sm:$0xff]
        %v3569 = vld [vmem:[%s499 + $0x8] sm:$0xff]
        %v3570 = vmul.f32 %v3568, %v3566
        %v3571 = vmul.f32 %v3569, %v3567
        %3572 = vrot.lane.b32.xlu0 %v3500, 111
        %v3573 = vpop.permute.xlu0 %3572
        %3574 = vrot.lane.b32.xlu0 %v3501, 111
        %v3575 = vpop.permute.xlu0 %3574
        %v3576 = vsel %vm508, %v3573, %v3575
        %v3577 = vsel %vm508, %v3575, %v3573
        %v3578 = vld [vmem:[%s511] sm:$0xff]
        %v3579 = vld [vmem:[%s511 + $0x8] sm:$0xff]
        %v3580 = vmul.f32 %v3578, %v3576
        %v3581 = vmul.f32 %v3579, %v3577
        %v3582 = vld [vmem:[%s5] sm:$0xff]
        %v3584 = vsel %vm517, %v3582, 0
        %3586 = vmatprep.subr.mxu0 %v3511
        %3587 = vmatpush1.msra.mxu0 %v3510
        %3588 = vmatprep.subr.mxu0 %v3521
        %3589 = vmatpush1.msra.mxu0 %v3520
        %3590 = vmatprep.subr.mxu0 %v3531
        %3591 = vmatpush1.msra.mxu0 %v3530
        %3592 = vmatprep.subr.mxu0 %v3541
        %3593 = vmatpush1.msra.mxu0 %v3540
        %3594 = vmatprep.subr.mxu0 %v3501
        %3595 = vmatpush1.msra.mxu0 %v3500
        %3596 = vmatprep.subr.mxu0 %v3551
        %3597 = vmatpush1.msra.mxu0 %v3550
        %3598 = vmatprep.subr.mxu0 %v3561
        %3599 = vmatpush1.msra.mxu0 %v3560
        %3600 = vmatprep.subr.mxu0 %v3571
        %3601 = vmatpush1.msra.mxu0 %v3570
        %3602 = vmatprep.subr.mxu0 %v3581
        %3603 = vmatpush1.msra.mxu0 %v3580
        %3604 = vmatprep.subr.mxu0 1.0
        %3605 = vmatpush1.msra.mxu0 1.0
        %3606 = vmatprep.subr.mxu0 0.0
        %3607 = vmatpush1.msra.mxu0 0.0
        %3608 = vmatprep.subr.mxu0 0.0
        %3609 = vmatpush1.msra.mxu0 0.0
        %3610 = vmatprep.subr.mxu0 0.0
        %3611 = vmatpush1.msra.mxu0 0.0
        %3612 = vmatprep.subr.mxu0 0.0
        %3613 = vmatpush1.msra.mxu0 0.0
        %3614 = vmatprep.subr.mxu0 0.0
        %3615 = vmatpush1.msra.mxu0 0.0
        %3616 = vmatprep.subr.mxu0 0.0
        %3617 = vmatpush1.msra.mxu0 0.0
        %3618 = vmatprep.subr.mxu0 0.0
        %3619 = vmatpush1.msra.mxu0 0.0
        %3620 = vmatprep.subr.mxu0 0.0
        %3621 = vmatpush1.msra.mxu0 0.0
        %3622 = vmatprep.subr.mxu0 0.0
        %3623 = vmatpush1.msra.mxu0 0.0
        %3624 = vmatprep.subr.mxu0 0.0
        %3625 = vmatpush1.msra.mxu0 0.0
        %3626 = vmatprep.subr.mxu0 0.0
        %3627 = vmatpush1.msra.mxu0 0.0
        %3628 = vmatprep.subr.mxu0 0.0
        %3629 = vmatpush1.msra.mxu0 0.0
        %3630 = vmatprep.subr.mxu0 0.0
        %3631 = vmatpush1.msra.mxu0 0.0
        %3632 = vmatprep.subr.mxu0 0.0
        %3633 = vmatpush1.msra.mxu0 0.0
        %3634 = vmatprep.subr.mxu0 0.0
        %3635 = vmatpush1.msra.mxu0 0.0
        %3636 = vmatprep.subr.mxu0 0.0
        %3637 = vmatpush1.msra.mxu0 0.0
        %3638 = vmatprep.subr.mxu0 0.0
        %3639 = vmatpush1.msra.mxu0 0.0
        %3640 = vmatprep.subr.mxu0 0.0
        %3641 = vmatpush1.msra.mxu0 0.0
        %3642 = vmatprep.subr.mxu0 0.0
        %3643 = vmatpush1.msra.mxu0 0.0
        %3644 = vmatprep.subr.mxu0 0.0
        %3645 = vmatpush1.msra.mxu0 0.0
        %3646 = vmatprep.subr.mxu0 0.0
        %3647 = vmatpush1.msra.mxu0 0.0
        %3648 = vmatprep.subr.mxu0 0.0
        %3649 = vmatpush1.msra.mxu0 0.0
        %3650 = vmatprep.mubr.f32.mxu0 0.0
        %3651 = vmatmul.mubr.f32.gmra.mrb[0].mxu0 %v3584
        %v3652 = vpop.f32.mrb[0].mxu0
        %v3653 = vadd.f32 0.0, %v3652
        %v3654 = vpop.f32.mrb[0].mxu0
        %v3655 = vadd.f32 0.0, %v3654
        %3656 = vdwg.mxu0
        %v3657 = vxor.u32 %v3653, 2147483648
        %v3658 = vxor.u32 %v3655, 2147483648
        %v3659 = vmul.f32 %v3657, 1.442695
        %v3660 = vpow.pop %v3659
        %v3661 = vmul.f32 %v3658, 1.442695
        %v3662 = vpow.pop %v3661
        %v3663 = vadd.f32 %v3660, 1.0
        %v3664 = vadd.f32 %v3662, 1.0
        %v3665 = vrcp.pop %v3663
        %v3666 = vmul.f32 1.0, %v3665
        %v3667 = vrcp.pop %v3664
        %v3668 = vmul.f32 1.0, %v3667
        %v3669 = vmul.f32 %v3653, %v3666
        %v3670 = vmul.f32 %v3655, %v3668
        %3671 = vrot.lane.b32.xlu0 %v3669, 17
        %v3672 = vpop.permute.xlu0 %3671
        %3673 = vrot.lane.b32.xlu0 %v3670, 17
        %v3674 = vpop.permute.xlu0 %3673
        %v3675 = vsel %vm425, %v3672, %v3674
        %v3676 = vsel %vm425, %v3674, %v3672
        %v3677 = vmul.f32 %v3508, %v3676
        %v3678 = vmul.f32 %v3509, %v3675
        %3679 = vrot.lane.b32.xlu0 %v3669, 16
        %v3680 = vpop.permute.xlu0 %3679
        %3681 = vrot.lane.b32.xlu0 %v3670, 16
        %v3682 = vpop.permute.xlu0 %3681
        %v3683 = vsel %vm436, %v3680, %v3682
        %v3684 = vsel %vm436, %v3682, %v3680
        %v3685 = vmul.f32 %v3518, %v3684
        %v3686 = vmul.f32 %v3519, %v3683
        %3687 = vrot.lane.b32.xlu0 %v3669, 15
        %v3688 = vpop.permute.xlu0 %3687
        %3689 = vrot.lane.b32.xlu0 %v3670, 15
        %v3690 = vpop.permute.xlu0 %3689
        %v3691 = vsel %vm448, %v3688, %v3690
        %v3692 = vsel %vm448, %v3690, %v3688
        %v3693 = vmul.f32 %v3528, %v3692
        %v3694 = vmul.f32 %v3529, %v3691
        %3695 = vrot.lane.b32.xlu0 %v3669, 1
        %v3696 = vpop.permute.xlu0 %3695
        %3697 = vrot.lane.b32.xlu0 %v3670, 1
        %v3698 = vpop.permute.xlu0 %3697
        %v3699 = vsel %vm460, %v3696, %v3698
        %v3700 = vsel %vm460, %v3698, %v3696
        %v3701 = vmul.f32 %v3538, %v3700
        %v3702 = vmul.f32 %v3539, %v3699
        %3703 = vrot.lane.b32.xlu0 %v3669, 127
        %v3704 = vpop.permute.xlu0 %3703
        %3705 = vrot.lane.b32.xlu0 %v3670, 127
        %v3706 = vpop.permute.xlu0 %3705
        %v3707 = vsel %vm472, %v3704, %v3706
        %v3708 = vsel %vm472, %v3706, %v3704
        %v3709 = vmul.f32 %v3548, %v3707
        %v3710 = vmul.f32 %v3549, %v3708
        %3711 = vrot.lane.b32.xlu0 %v3669, 113
        %v3712 = vpop.permute.xlu0 %3711
        %3713 = vrot.lane.b32.xlu0 %v3670, 113
        %v3714 = vpop.permute.xlu0 %3713
        %v3715 = vsel %vm484, %v3712, %v3714
        %v3716 = vsel %vm484, %v3714, %v3712
        %v3717 = vmul.f32 %v3558, %v3715
        %v3718 = vmul.f32 %v3559, %v3716
        %3719 = vrot.lane.b32.xlu0 %v3669, 112
        %v3720 = vpop.permute.xlu0 %3719
        %3721 = vrot.lane.b32.xlu0 %v3670, 112
        %v3722 = vpop.permute.xlu0 %3721
        %v3723 = vsel %vm496, %v3720, %v3722
        %v3724 = vsel %vm496, %v3722, %v3720
        %v3725 = vmul.f32 %v3568, %v3723
        %v3726 = vmul.f32 %v3569, %v3724
        %3727 = vrot.lane.b32.xlu0 %v3669, 111
        %v3728 = vpop.permute.xlu0 %3727
        %3729 = vrot.lane.b32.xlu0 %v3670, 111
        %v3730 = vpop.permute.xlu0 %3729
        %v3731 = vsel %vm508, %v3728, %v3730
        %v3732 = vsel %vm508, %v3730, %v3728
        %v3733 = vmul.f32 %v3578, %v3731
        %v3734 = vmul.f32 %v3579, %v3732
        %v3735 = vld [vmem:[%s6] sm:$0xff]
        %v3737 = vsel %vm517, %v3735, 0
        %3739 = vmatprep.subr.mxu0 %v3678
        %3740 = vmatpush1.msra.mxu0 %v3677
        %3741 = vmatprep.subr.mxu0 %v3686
        %3742 = vmatpush1.msra.mxu0 %v3685
        %3743 = vmatprep.subr.mxu0 %v3694
        %3744 = vmatpush1.msra.mxu0 %v3693
        %3745 = vmatprep.subr.mxu0 %v3702
        %3746 = vmatpush1.msra.mxu0 %v3701
        %3747 = vmatprep.subr.mxu0 %v3670
        %3748 = vmatpush1.msra.mxu0 %v3669
        %3749 = vmatprep.subr.mxu0 %v3710
        %3750 = vmatpush1.msra.mxu0 %v3709
        %3751 = vmatprep.subr.mxu0 %v3718
        %3752 = vmatpush1.msra.mxu0 %v3717
        %3753 = vmatprep.subr.mxu0 %v3726
        %3754 = vmatpush1.msra.mxu0 %v3725
        %3755 = vmatprep.subr.mxu0 %v3734
        %3756 = vmatpush1.msra.mxu0 %v3733
        %3757 = vmatprep.subr.mxu0 1.0
        %3758 = vmatpush1.msra.mxu0 1.0
        %3759 = vmatprep.subr.mxu0 0.0
        %3760 = vmatpush1.msra.mxu0 0.0
        %3761 = vmatprep.subr.mxu0 0.0
        %3762 = vmatpush1.msra.mxu0 0.0
        %3763 = vmatprep.subr.mxu0 0.0
        %3764 = vmatpush1.msra.mxu0 0.0
        %3765 = vmatprep.subr.mxu0 0.0
        %3766 = vmatpush1.msra.mxu0 0.0
        %3767 = vmatprep.subr.mxu0 0.0
        %3768 = vmatpush1.msra.mxu0 0.0
        %3769 = vmatprep.subr.mxu0 0.0
        %3770 = vmatpush1.msra.mxu0 0.0
        %3771 = vmatprep.subr.mxu0 0.0
        %3772 = vmatpush1.msra.mxu0 0.0
        %3773 = vmatprep.subr.mxu0 0.0
        %3774 = vmatpush1.msra.mxu0 0.0
        %3775 = vmatprep.subr.mxu0 0.0
        %3776 = vmatpush1.msra.mxu0 0.0
        %3777 = vmatprep.subr.mxu0 0.0
        %3778 = vmatpush1.msra.mxu0 0.0
        %3779 = vmatprep.subr.mxu0 0.0
        %3780 = vmatpush1.msra.mxu0 0.0
        %3781 = vmatprep.subr.mxu0 0.0
        %3782 = vmatpush1.msra.mxu0 0.0
        %3783 = vmatprep.subr.mxu0 0.0
        %3784 = vmatpush1.msra.mxu0 0.0
        %3785 = vmatprep.subr.mxu0 0.0
        %3786 = vmatpush1.msra.mxu0 0.0
        %3787 = vmatprep.subr.mxu0 0.0
        %3788 = vmatpush1.msra.mxu0 0.0
        %3789 = vmatprep.subr.mxu0 0.0
        %3790 = vmatpush1.msra.mxu0 0.0
        %3791 = vmatprep.subr.mxu0 0.0
        %3792 = vmatpush1.msra.mxu0 0.0
        %3793 = vmatprep.subr.mxu0 0.0
        %3794 = vmatpush1.msra.mxu0 0.0
        %3795 = vmatprep.subr.mxu0 0.0
        %3796 = vmatpush1.msra.mxu0 0.0
        %3797 = vmatprep.subr.mxu0 0.0
        %3798 = vmatpush1.msra.mxu0 0.0
        %3799 = vmatprep.subr.mxu0 0.0
        %3800 = vmatpush1.msra.mxu0 0.0
        %3801 = vmatprep.subr.mxu0 0.0
        %3802 = vmatpush1.msra.mxu0 0.0
        %3803 = vmatprep.mubr.f32.mxu0 0.0
        %3804 = vmatmul.mubr.f32.gmra.mrb[0].mxu0 %v3737
        %v3805 = vpop.f32.mrb[0].mxu0
        %v3806 = vadd.f32 0.0, %v3805
        %v3807 = vpop.f32.mrb[0].mxu0
        %v3808 = vadd.f32 0.0, %v3807
        %3809 = vdwg.mxu0
        %v3810 = vadd.f32 %v3378, %v3806
        %v3811 = vadd.f32 %v3379, %v3808
        %s3812 = scalar_lea.vmem %s292, 112 [#allocation9]
        %3813 = vst [vmem:[%s3812] sm:$0xff] %v3810
        %3814 = vst [vmem:[%s3812 + $0x8] sm:$0xff] %v3811
        %s3815 = sand.u32 %s170, 1
        %s3816 = scalar_lea.sflag [#allocation6], %s3815
        %s3817 = sand.u32 %s170, 1
        %s3818 = smul.addr %s3817, 128
        %s3819 = scalar_lea.vmem [#allocation9], %s3818
        // Predicated region
        $region53: #{tpu_custom_call.1} parent=43 // pred_check
          %p3820 = pneg %p180
        $region54: #{tpu_custom_call.1} parent=43 // pred_check_branch
          %3822 = sbr.rel (%p3820) target = $region56
        $region55: #{tpu_custom_call.1} parent=43 // pred_region
          %s3823 = smul.u32 8, %s31
          %s3825 = ssub.s32 2048, 2048
          %3826 = vsyncadd %s3816, %s3825
          %s3827 = smul.addr %s3823, 2
          %s3828 = smul.addr %s3827, 128
          %s3829 = scalar_lea.hbm %s7, %s3828
          %s3830 = sshll.u32 %s3819, 4
          %s3831 = int_to_ptr.vmem [resolvable:$true] %s3830
          %3836 = dma.vmem_to_hbm [thread:$0]  %s3831, 2048, %s3829, %s3816, 256, 256, 16
        $region56: #{tpu_custom_call.1} parent=43 // pred_fallthru
          _
      $region44: #{tpu_custom_call.1} parent=5 // pred_fallthru
        _
      %p3837 = scmp.le.s32.totalorder 2, %s26
      // Predicated region
      $region57: #{tpu_custom_call.1} parent=5 // pred_check
        %p3838 = pneg %p3837
      $region58: #{tpu_custom_call.1} parent=5 // pred_check_branch
        %3840 = sbr.rel (%p3838) target = $region60
      $region59: #{tpu_custom_call.1} parent=5 // pred_region
        %s3841 = ssub.s32 %s26, 2
        // Predicated region
        $region61: #{tpu_custom_call.1} parent=59 // pred_check
          %p3842 = pneg %p186
        $region62: #{tpu_custom_call.1} parent=59 // pred_check_branch
          %3844 = sbr.rel (%p3842) target = $region64
        $region63: #{tpu_custom_call.1} parent=59 // pred_region
          %s3845 = sand.u32 %s171, 1
          %s3846 = scalar_lea.sflag [#allocation6], %s3845
          %s3847 = sand.u32 %s171, 1
          %s3848 = smul.addr %s3847, 128
          %s3849 = scalar_lea.vmem [#allocation9], %s3848
          %3850 = dma.done %s3846, 2048
        $region64: #{tpu_custom_call.1} parent=59 // pred_fallthru
          _
      $region60: #{tpu_custom_call.1} parent=5 // pred_fallthru
        _
    $region6: #{tpu_custom_call.1} parent=1 // loop_footer
      %s30 = sadd.s32 1, %s26
    $region7: #{tpu_custom_call.1} parent=1 // loop_footer_branch
      %25 = sbr.rel target = $region3
    $region8: #{tpu_custom_call.1} parent=1 // loop_exit
      _
    %3851 = vsyncpa [#allocation5], 1
    %s3852 = scalar_lea.sflag [#allocation5], 1
    %3853 = vsyncpa %s3852, 1
    %3854 = vsyncpa [#allocation8], 1
    %3855 = vsyncpa [#allocation6], 1
    %s3856 = scalar_lea.sflag [#allocation6], 1
    %3857 = vsyncpa %s3856, 1

</llo_original>
